<compile_context>
chip_gen: v7x
topology: tpu7x:2x2x1
jax: 0.10.0
libtpu: 0.0.40
codegen_flags: <defaults>
</compile_context>

<pallas_src>
import functools

import numpy as np
import jax
import jax.numpy as jnp
from jax.experimental import pallas as pl
from jax.experimental.pallas import tpu as pltpu


# ---------------------------------------------------------------------------
# Fused kernel
# ---------------------------------------------------------------------------
def _leaky_relu(y, slope):
    return jnp.where(y >= 0.0, y, slope * y)


def disc_fused_kernel(p0_ref, w0_ref, b0_ref,
                      w1_ref, g1_ref, be1_ref, s1_ref,
                      w2_ref, g2_ref, be2_ref, s2_ref,
                      w3_ref, g3_ref, be3_ref, s3_ref,
                      fcw_ref, fcb_ref, o_ref,
                      *, eps: float, slope: float,
                      n_batch: int, hw_final: int):
    f32 = jnp.float32

    # ---- Layer 0: conv(Cin->64, k3 s2 p1) via precomputed im2col patches ----
    y = jnp.dot(p0_ref[...], w0_ref[...], preferred_element_type=f32)
    y = _leaky_relu(y + b0_ref[...], slope)

    # ---- Layers 1-3: in-kernel im2col (one-hot gather matmuls) + conv
    #      + BatchNorm (train-mode batch stats) + LeakyReLU ----
    def bn_conv_block(x_f32, w_ref, s_ref, g_ref, be_ref):
        xb = x_f32.astype(jnp.bfloat16)
        m, cout = s_ref.shape[1], w_ref.shape[-1]
        acc = jnp.zeros((m, cout), f32)
        for t in range(9):                      # unrolled 3x3 taps
            # one-hot row selection (zero rows == conv zero-padding): exact
            gathered = jnp.dot(s_ref[t], xb,
                               preferred_element_type=f32).astype(jnp.bfloat16)
            acc = acc + jnp.dot(gathered, w_ref[t],
                                preferred_element_type=f32)
        # Single-pass batch statistics over all (N,H,W) rows, biased variance.
        inv_m = 1.0 / m
        mu = jnp.sum(acc, axis=0, keepdims=True) * inv_m
        ex2 = jnp.sum(acc * acc, axis=0, keepdims=True) * inv_m
        var = ex2 - mu * mu
        yn = (acc - mu) * jax.lax.rsqrt(var + eps) * g_ref[...] + be_ref[...]
        return _leaky_relu(yn, slope)

    y = bn_conv_block(y, w1_ref, s1_ref, g1_ref, be1_ref)
    y = bn_conv_block(y, w2_ref, s2_ref, g2_ref, be2_ref)
    y = bn_conv_block(y, w3_ref, s3_ref, g3_ref, be3_ref)

    # ---- Head: AdaptiveAvgPool2d(1) + Flatten + Linear(512,1) + Sigmoid ----
    if hw_final > 1:                            # static; 1x1 for 16x16 inputs
        y = jnp.mean(y.reshape(n_batch, hw_final, y.shape[-1]), axis=1)
    logit = jnp.sum(y * fcw_ref[...], axis=-1, keepdims=True) + fcb_ref[...]
    o_ref[...] = jax.nn.sigmoid(logit)


# ---------------------------------------------------------------------------
# Host-side static helpers (k=3, s=2, p=1)
# ---------------------------------------------------------------------------
def _conv_out(h):
    return (h + 2 - 3) // 2 + 1


def _gather_mats(n, h, w):
    """One-hot selection matrices S[t] of shape (M, R) so that S[t] @ X picks
    the tap-t input row for every conv output position (all-zero row encodes
    the zero padding).  Rows/cols follow (n, h, w) row-major ordering, the
    same ordering the in-kernel activations use."""
    ho, wo = _conv_out(h), _conv_out(w)
    m, r = n * ho * wo, n * h * w
    s = np.zeros((9, m, r), np.float32)
    for ni in range(n):
        for oh in range(ho):
            for ow in range(wo):
                mi = (ni * ho + oh) * wo + ow
                for kh in range(3):
                    for kw in range(3):
                        ih, iw = 2 * oh + kh - 1, 2 * ow + kw - 1
                        if 0 <= ih < h and 0 <= iw < w:
                            s[kh * 3 + kw, mi, (ni * h + ih) * w + iw] = 1.0
    return s, (ho, wo)


def im2col_k3s2p1(x_nhwc):
    k, st, p = 3, 2, 1
    xp = jnp.pad(x_nhwc, ((0, 0), (p, p), (p, p), (0, 0)))
    n, hp, wp, c = xp.shape
    ho, wo = (hp - k) // st + 1, (wp - k) // st + 1
    cols = [xp[:, di:di + st * (ho - 1) + 1:st, dj:dj + st * (wo - 1) + 1:st, :]
            for di in range(k) for dj in range(k)]
    patches = jnp.concatenate(cols, axis=-1)           # (n, ho, wo, 9*c)
    return patches.reshape(n * ho * wo, k * k * c), (ho, wo)


# ---------------------------------------------------------------------------
# Parameters (deterministic, synthetic) & forward
# ---------------------------------------------------------------------------
def init_params(key, in_channels=3):
    chans = [in_channels, 64, 128, 256, 512]
    convs = []
    for li in range(4):
        key, kw = jax.random.split(key)
        cin, cout = chans[li], chans[li + 1]
        # PyTorch (Cout, Cin, kh, kw) -> tap-major (9, Cin, Cout)
        w = 0.05 * jax.random.normal(kw, (cout, cin, 3, 3), jnp.float32)
        w_taps = jnp.transpose(w, (2, 3, 1, 0)).reshape(9, cin, cout)
        if li == 0:
            k0 = 9 * cin
            k0p = -(-k0 // 8) * 8                       # pad K 27 -> 32
            w_mat = jnp.pad(w_taps.reshape(k0, cout), ((0, k0p - k0), (0, 0)))
            convs.append(dict(w=w_mat.astype(jnp.bfloat16),
                              b=jnp.zeros((1, cout), jnp.float32)))
        else:
            # Conv bias omitted: mathematically cancelled by BN mean-subtract.
            convs.append(dict(w=w_taps.astype(jnp.bfloat16),
                              gamma=jnp.ones((1, cout), jnp.float32),
                              beta=jnp.zeros((1, cout), jnp.float32)))
    key, kf = jax.random.split(key)
    fc_w = 0.05 * jax.random.normal(kf, (1, 512), jnp.float32)
    return dict(convs=convs, fc_w=fc_w, fc_b=jnp.zeros((1, 1), jnp.float32))


def discriminator_forward(x_nchw, params):
    n = x_nchw.shape[0]
    x = jnp.transpose(x_nchw, (0, 2, 3, 1)).astype(jnp.float32)   # -> NHWC

    # Layer-0 im2col in XLA (tiny), K padded to the weight's padded K.
    patches, (h1, w1) = im2col_k3s2p1(x)
    k0p = params["convs"][0]["w"].shape[0]
    p0 = jnp.pad(patches, ((0, 0), (0, k0p - patches.shape[1]))
                 ).astype(jnp.bfloat16)

    # Static in-kernel im2col selection matrices for layers 1-3 (constants).
    gmats = []
    hh, ww = h1, w1
    for _ in range(3):
        s_np, (hh, ww) = _gather_mats(n, hh, ww)
        gmats.append(jnp.asarray(s_np, jnp.bfloat16))
    hw_final = hh * ww

    c0, c1, c2, c3 = params["convs"]
    args = (p0, c0["w"], c0["b"],
            c1["w"], c1["gamma"], c1["beta"], gmats[0],
            c2["w"], c2["gamma"], c2["beta"], gmats[1],
            c3["w"], c3["gamma"], c3["beta"], gmats[2],
            params["fc_w"], params["fc_b"])

    kern = functools.partial(disc_fused_kernel, eps=1e-5, slope=0.2,
                             n_batch=n, hw_final=hw_final)

    def vmem_spec():
        return pl.BlockSpec(memory_space=pltpu.MemorySpace.VMEM)

    return pl.pallas_call(
        kern,
        out_shape=jax.ShapeDtypeStruct((n, 1), jnp.float32),
        in_specs=[vmem_spec() for _ in args],
        out_specs=vmem_spec(),
    )(*args)


# ---------------------------------------------------------------------------
if __name__ == "__main__":
    x = jax.random.normal(jax.random.PRNGKey(0), (2, 3, 16, 16), jnp.float32)
    params = init_params(jax.random.PRNGKey(1), in_channels=3)

    out = jax.block_until_ready(jax.jit(discriminator_forward)(x, params))

    assert out.shape == (2, 1)
    assert bool(jnp.all((out >= 0.0) & (out <= 1.0)))
    print("KERNEL_OK")
</pallas_src>

<mosaic_0001>
module attributes {stable_mosaic.version = 11 : i64} {
  func.func @disc_fused_kernel(%arg0: memref<128x32xbf16, #tpu.memory_space<vmem>>, %arg1: memref<32x64xbf16, #tpu.memory_space<vmem>>, %arg2: memref<1x64xf32, #tpu.memory_space<vmem>>, %arg3: memref<9x64x128xbf16, #tpu.memory_space<vmem>>, %arg4: memref<1x128xf32, #tpu.memory_space<vmem>>, %arg5: memref<1x128xf32, #tpu.memory_space<vmem>>, %arg6: memref<9x32x128xbf16, #tpu.memory_space<vmem>>, %arg7: memref<9x128x256xbf16, #tpu.memory_space<vmem>>, %arg8: memref<1x256xf32, #tpu.memory_space<vmem>>, %arg9: memref<1x256xf32, #tpu.memory_space<vmem>>, %arg10: memref<9x8x32xbf16, #tpu.memory_space<vmem>>, %arg11: memref<9x256x512xbf16, #tpu.memory_space<vmem>>, %arg12: memref<1x512xf32, #tpu.memory_space<vmem>>, %arg13: memref<1x512xf32, #tpu.memory_space<vmem>>, %arg14: memref<9x2x8xbf16, #tpu.memory_space<vmem>>, %arg15: memref<1x512xf32, #tpu.memory_space<vmem>>, %arg16: memref<1x1xf32, #tpu.memory_space<vmem>>, %arg17: memref<2x1xf32, #tpu.memory_space<vmem>>) attributes {dimension_semantics = [], scalar_prefetch = 0 : i64, scratch_operands = 0 : i64, tpu.core_type = #tpu.core_type<tc>} {
    %c0 = arith.constant 0 : index
    %c0_0 = arith.constant 0 : index
    %0 = vector.load %arg0[%c0, %c0_0] : memref<128x32xbf16, #tpu.memory_space<vmem>>, vector<128x32xbf16>
    %c0_1 = arith.constant 0 : index
    %c0_2 = arith.constant 0 : index
    %1 = vector.load %arg1[%c0_1, %c0_2] : memref<32x64xbf16, #tpu.memory_space<vmem>>, vector<32x64xbf16>
    %cst = arith.constant dense<0.000000e+00> : vector<128x64xf32>
    %2 = tpu.matmul %0, %1, %cst {dimension_numbers = #tpu.dot_dimension_numbers<[1], [0], [0], [1], [0, 0, 1, 1], [], []>} : vector<128x32xbf16>, vector<32x64xbf16>, vector<128x64xf32> -> vector<128x64xf32>
    %c0_3 = arith.constant 0 : index
    %c0_4 = arith.constant 0 : index
    %3 = vector.load %arg2[%c0_3, %c0_4] : memref<1x64xf32, #tpu.memory_space<vmem>>, vector<1x64xf32>
    %4 = vector.broadcast %3 : vector<1x64xf32> to vector<128x64xf32>
    %5 = arith.addf %2, %4 : vector<128x64xf32>
    %cst_5 = arith.constant 0.000000e+00 : f32
    %6 = vector.broadcast %cst_5 : f32 to vector<128x64xf32>
    %7 = arith.cmpf oge, %5, %6 : vector<128x64xf32>
    %cst_6 = arith.constant 2.000000e-01 : f32
    %8 = vector.broadcast %cst_6 : f32 to vector<128x64xf32>
    %9 = arith.mulf %8, %5 : vector<128x64xf32>
    %10 = arith.select %7, %5, %9 : vector<128x64xi1>, vector<128x64xf32>
    %11 = arith.truncf %10 : vector<128x64xf32> to vector<128x64xbf16>
    %cst_7 = arith.constant 0.000000e+00 : f32
    %12 = vector.broadcast %cst_7 : f32 to vector<32x128xf32>
    %c0_8 = arith.constant 0 : index
    %c0_9 = arith.constant 0 : index
    %c0_10 = arith.constant 0 : index
    %13 = vector.load %arg6[%c0_8, %c0_9, %c0_10] : memref<9x32x128xbf16, #tpu.memory_space<vmem>>, vector<1x32x128xbf16>
    %14 = vector.shape_cast %13 : vector<1x32x128xbf16> to vector<32x128xbf16>
    %cst_11 = arith.constant dense<0.000000e+00> : vector<32x64xf32>
    %15 = tpu.matmul %14, %11, %cst_11 {dimension_numbers = #tpu.dot_dimension_numbers<[1], [0], [0], [1], [0, 0, 1, 1], [], []>} : vector<32x128xbf16>, vector<128x64xbf16>, vector<32x64xf32> -> vector<32x64xf32>
    %16 = arith.truncf %15 : vector<32x64xf32> to vector<32x64xbf16>
    %c0_12 = arith.constant 0 : index
    %c0_13 = arith.constant 0 : index
    %c0_14 = arith.constant 0 : index
    %17 = vector.load %arg3[%c0_12, %c0_13, %c0_14] : memref<9x64x128xbf16, #tpu.memory_space<vmem>>, vector<1x64x128xbf16>
    %18 = vector.shape_cast %17 : vector<1x64x128xbf16> to vector<64x128xbf16>
    %cst_15 = arith.constant dense<0.000000e+00> : vector<32x128xf32>
    %19 = tpu.matmul %16, %18, %cst_15 {dimension_numbers = #tpu.dot_dimension_numbers<[1], [0], [0], [1], [0, 0, 1, 1], [], []>} : vector<32x64xbf16>, vector<64x128xbf16>, vector<32x128xf32> -> vector<32x128xf32>
    %20 = arith.addf %12, %19 : vector<32x128xf32>
    %c1 = arith.constant 1 : index
    %c0_16 = arith.constant 0 : index
    %c0_17 = arith.constant 0 : index
    %21 = vector.load %arg6[%c1, %c0_16, %c0_17] : memref<9x32x128xbf16, #tpu.memory_space<vmem>>, vector<1x32x128xbf16>
    %22 = vector.shape_cast %21 : vector<1x32x128xbf16> to vector<32x128xbf16>
    %cst_18 = arith.constant dense<0.000000e+00> : vector<32x64xf32>
    %23 = tpu.matmul %22, %11, %cst_18 {dimension_numbers = #tpu.dot_dimension_numbers<[1], [0], [0], [1], [0, 0, 1, 1], [], []>} : vector<32x128xbf16>, vector<128x64xbf16>, vector<32x64xf32> -> vector<32x64xf32>
    %24 = arith.truncf %23 : vector<32x64xf32> to vector<32x64xbf16>
    %c1_19 = arith.constant 1 : index
    %c0_20 = arith.constant 0 : index
    %c0_21 = arith.constant 0 : index
    %25 = vector.load %arg3[%c1_19, %c0_20, %c0_21] : memref<9x64x128xbf16, #tpu.memory_space<vmem>>, vector<1x64x128xbf16>
    %26 = vector.shape_cast %25 : vector<1x64x128xbf16> to vector<64x128xbf16>
    %cst_22 = arith.constant dense<0.000000e+00> : vector<32x128xf32>
    %27 = tpu.matmul %24, %26, %cst_22 {dimension_numbers = #tpu.dot_dimension_numbers<[1], [0], [0], [1], [0, 0, 1, 1], [], []>} : vector<32x64xbf16>, vector<64x128xbf16>, vector<32x128xf32> -> vector<32x128xf32>
    %28 = arith.addf %20, %27 : vector<32x128xf32>
    %c2 = arith.constant 2 : index
    %c0_23 = arith.constant 0 : index
    %c0_24 = arith.constant 0 : index
    %29 = vector.load %arg6[%c2, %c0_23, %c0_24] : memref<9x32x128xbf16, #tpu.memory_space<vmem>>, vector<1x32x128xbf16>
    %30 = vector.shape_cast %29 : vector<1x32x128xbf16> to vector<32x128xbf16>
    %cst_25 = arith.constant dense<0.000000e+00> : vector<32x64xf32>
    %31 = tpu.matmul %30, %11, %cst_25 {dimension_numbers = #tpu.dot_dimension_numbers<[1], [0], [0], [1], [0, 0, 1, 1], [], []>} : vector<32x128xbf16>, vector<128x64xbf16>, vector<32x64xf32> -> vector<32x64xf32>
    %32 = arith.truncf %31 : vector<32x64xf32> to vector<32x64xbf16>
    %c2_26 = arith.constant 2 : index
    %c0_27 = arith.constant 0 : index
    %c0_28 = arith.constant 0 : index
    %33 = vector.load %arg3[%c2_26, %c0_27, %c0_28] : memref<9x64x128xbf16, #tpu.memory_space<vmem>>, vector<1x64x128xbf16>
    %34 = vector.shape_cast %33 : vector<1x64x128xbf16> to vector<64x128xbf16>
    %cst_29 = arith.constant dense<0.000000e+00> : vector<32x128xf32>
    %35 = tpu.matmul %32, %34, %cst_29 {dimension_numbers = #tpu.dot_dimension_numbers<[1], [0], [0], [1], [0, 0, 1, 1], [], []>} : vector<32x64xbf16>, vector<64x128xbf16>, vector<32x128xf32> -> vector<32x128xf32>
    %36 = arith.addf %28, %35 : vector<32x128xf32>
    %c3 = arith.constant 3 : index
    %c0_30 = arith.constant 0 : index
    %c0_31 = arith.constant 0 : index
    %37 = vector.load %arg6[%c3, %c0_30, %c0_31] : memref<9x32x128xbf16, #tpu.memory_space<vmem>>, vector<1x32x128xbf16>
    %38 = vector.shape_cast %37 : vector<1x32x128xbf16> to vector<32x128xbf16>
    %cst_32 = arith.constant dense<0.000000e+00> : vector<32x64xf32>
    %39 = tpu.matmul %38, %11, %cst_32 {dimension_numbers = #tpu.dot_dimension_numbers<[1], [0], [0], [1], [0, 0, 1, 1], [], []>} : vector<32x128xbf16>, vector<128x64xbf16>, vector<32x64xf32> -> vector<32x64xf32>
    %40 = arith.truncf %39 : vector<32x64xf32> to vector<32x64xbf16>
    %c3_33 = arith.constant 3 : index
    %c0_34 = arith.constant 0 : index
    %c0_35 = arith.constant 0 : index
    %41 = vector.load %arg3[%c3_33, %c0_34, %c0_35] : memref<9x64x128xbf16, #tpu.memory_space<vmem>>, vector<1x64x128xbf16>
    %42 = vector.shape_cast %41 : vector<1x64x128xbf16> to vector<64x128xbf16>
    %cst_36 = arith.constant dense<0.000000e+00> : vector<32x128xf32>
    %43 = tpu.matmul %40, %42, %cst_36 {dimension_numbers = #tpu.dot_dimension_numbers<[1], [0], [0], [1], [0, 0, 1, 1], [], []>} : vector<32x64xbf16>, vector<64x128xbf16>, vector<32x128xf32> -> vector<32x128xf32>
    %44 = arith.addf %36, %43 : vector<32x128xf32>
    %c4 = arith.constant 4 : index
    %c0_37 = arith.constant 0 : index
    %c0_38 = arith.constant 0 : index
    %45 = vector.load %arg6[%c4, %c0_37, %c0_38] : memref<9x32x128xbf16, #tpu.memory_space<vmem>>, vector<1x32x128xbf16>
    %46 = vector.shape_cast %45 : vector<1x32x128xbf16> to vector<32x128xbf16>
    %cst_39 = arith.constant dense<0.000000e+00> : vector<32x64xf32>
    %47 = tpu.matmul %46, %11, %cst_39 {dimension_numbers = #tpu.dot_dimension_numbers<[1], [0], [0], [1], [0, 0, 1, 1], [], []>} : vector<32x128xbf16>, vector<128x64xbf16>, vector<32x64xf32> -> vector<32x64xf32>
    %48 = arith.truncf %47 : vector<32x64xf32> to vector<32x64xbf16>
    %c4_40 = arith.constant 4 : index
    %c0_41 = arith.constant 0 : index
    %c0_42 = arith.constant 0 : index
    %49 = vector.load %arg3[%c4_40, %c0_41, %c0_42] : memref<9x64x128xbf16, #tpu.memory_space<vmem>>, vector<1x64x128xbf16>
    %50 = vector.shape_cast %49 : vector<1x64x128xbf16> to vector<64x128xbf16>
    %cst_43 = arith.constant dense<0.000000e+00> : vector<32x128xf32>
    %51 = tpu.matmul %48, %50, %cst_43 {dimension_numbers = #tpu.dot_dimension_numbers<[1], [0], [0], [1], [0, 0, 1, 1], [], []>} : vector<32x64xbf16>, vector<64x128xbf16>, vector<32x128xf32> -> vector<32x128xf32>
    %52 = arith.addf %44, %51 : vector<32x128xf32>
    %c5 = arith.constant 5 : index
    %c0_44 = arith.constant 0 : index
    %c0_45 = arith.constant 0 : index
    %53 = vector.load %arg6[%c5, %c0_44, %c0_45] : memref<9x32x128xbf16, #tpu.memory_space<vmem>>, vector<1x32x128xbf16>
    %54 = vector.shape_cast %53 : vector<1x32x128xbf16> to vector<32x128xbf16>
    %cst_46 = arith.constant dense<0.000000e+00> : vector<32x64xf32>
    %55 = tpu.matmul %54, %11, %cst_46 {dimension_numbers = #tpu.dot_dimension_numbers<[1], [0], [0], [1], [0, 0, 1, 1], [], []>} : vector<32x128xbf16>, vector<128x64xbf16>, vector<32x64xf32> -> vector<32x64xf32>
    %56 = arith.truncf %55 : vector<32x64xf32> to vector<32x64xbf16>
    %c5_47 = arith.constant 5 : index
    %c0_48 = arith.constant 0 : index
    %c0_49 = arith.constant 0 : index
    %57 = vector.load %arg3[%c5_47, %c0_48, %c0_49] : memref<9x64x128xbf16, #tpu.memory_space<vmem>>, vector<1x64x128xbf16>
    %58 = vector.shape_cast %57 : vector<1x64x128xbf16> to vector<64x128xbf16>
    %cst_50 = arith.constant dense<0.000000e+00> : vector<32x128xf32>
    %59 = tpu.matmul %56, %58, %cst_50 {dimension_numbers = #tpu.dot_dimension_numbers<[1], [0], [0], [1], [0, 0, 1, 1], [], []>} : vector<32x64xbf16>, vector<64x128xbf16>, vector<32x128xf32> -> vector<32x128xf32>
    %60 = arith.addf %52, %59 : vector<32x128xf32>
    %c6 = arith.constant 6 : index
    %c0_51 = arith.constant 0 : index
    %c0_52 = arith.constant 0 : index
    %61 = vector.load %arg6[%c6, %c0_51, %c0_52] : memref<9x32x128xbf16, #tpu.memory_space<vmem>>, vector<1x32x128xbf16>
    %62 = vector.shape_cast %61 : vector<1x32x128xbf16> to vector<32x128xbf16>
    %cst_53 = arith.constant dense<0.000000e+00> : vector<32x64xf32>
    %63 = tpu.matmul %62, %11, %cst_53 {dimension_numbers = #tpu.dot_dimension_numbers<[1], [0], [0], [1], [0, 0, 1, 1], [], []>} : vector<32x128xbf16>, vector<128x64xbf16>, vector<32x64xf32> -> vector<32x64xf32>
    %64 = arith.truncf %63 : vector<32x64xf32> to vector<32x64xbf16>
    %c6_54 = arith.constant 6 : index
    %c0_55 = arith.constant 0 : index
    %c0_56 = arith.constant 0 : index
    %65 = vector.load %arg3[%c6_54, %c0_55, %c0_56] : memref<9x64x128xbf16, #tpu.memory_space<vmem>>, vector<1x64x128xbf16>
    %66 = vector.shape_cast %65 : vector<1x64x128xbf16> to vector<64x128xbf16>
    %cst_57 = arith.constant dense<0.000000e+00> : vector<32x128xf32>
    %67 = tpu.matmul %64, %66, %cst_57 {dimension_numbers = #tpu.dot_dimension_numbers<[1], [0], [0], [1], [0, 0, 1, 1], [], []>} : vector<32x64xbf16>, vector<64x128xbf16>, vector<32x128xf32> -> vector<32x128xf32>
    %68 = arith.addf %60, %67 : vector<32x128xf32>
    %c7 = arith.constant 7 : index
    %c0_58 = arith.constant 0 : index
    %c0_59 = arith.constant 0 : index
    %69 = vector.load %arg6[%c7, %c0_58, %c0_59] : memref<9x32x128xbf16, #tpu.memory_space<vmem>>, vector<1x32x128xbf16>
    %70 = vector.shape_cast %69 : vector<1x32x128xbf16> to vector<32x128xbf16>
    %cst_60 = arith.constant dense<0.000000e+00> : vector<32x64xf32>
    %71 = tpu.matmul %70, %11, %cst_60 {dimension_numbers = #tpu.dot_dimension_numbers<[1], [0], [0], [1], [0, 0, 1, 1], [], []>} : vector<32x128xbf16>, vector<128x64xbf16>, vector<32x64xf32> -> vector<32x64xf32>
    %72 = arith.truncf %71 : vector<32x64xf32> to vector<32x64xbf16>
    %c7_61 = arith.constant 7 : index
    %c0_62 = arith.constant 0 : index
    %c0_63 = arith.constant 0 : index
    %73 = vector.load %arg3[%c7_61, %c0_62, %c0_63] : memref<9x64x128xbf16, #tpu.memory_space<vmem>>, vector<1x64x128xbf16>
    %74 = vector.shape_cast %73 : vector<1x64x128xbf16> to vector<64x128xbf16>
    %cst_64 = arith.constant dense<0.000000e+00> : vector<32x128xf32>
    %75 = tpu.matmul %72, %74, %cst_64 {dimension_numbers = #tpu.dot_dimension_numbers<[1], [0], [0], [1], [0, 0, 1, 1], [], []>} : vector<32x64xbf16>, vector<64x128xbf16>, vector<32x128xf32> -> vector<32x128xf32>
    %76 = arith.addf %68, %75 : vector<32x128xf32>
    %c8 = arith.constant 8 : index
    %c0_65 = arith.constant 0 : index
    %c0_66 = arith.constant 0 : index
    %77 = vector.load %arg6[%c8, %c0_65, %c0_66] : memref<9x32x128xbf16, #tpu.memory_space<vmem>>, vector<1x32x128xbf16>
    %78 = vector.shape_cast %77 : vector<1x32x128xbf16> to vector<32x128xbf16>
    %cst_67 = arith.constant dense<0.000000e+00> : vector<32x64xf32>
    %79 = tpu.matmul %78, %11, %cst_67 {dimension_numbers = #tpu.dot_dimension_numbers<[1], [0], [0], [1], [0, 0, 1, 1], [], []>} : vector<32x128xbf16>, vector<128x64xbf16>, vector<32x64xf32> -> vector<32x64xf32>
    %80 = arith.truncf %79 : vector<32x64xf32> to vector<32x64xbf16>
    %c8_68 = arith.constant 8 : index
    %c0_69 = arith.constant 0 : index
    %c0_70 = arith.constant 0 : index
    %81 = vector.load %arg3[%c8_68, %c0_69, %c0_70] : memref<9x64x128xbf16, #tpu.memory_space<vmem>>, vector<1x64x128xbf16>
    %82 = vector.shape_cast %81 : vector<1x64x128xbf16> to vector<64x128xbf16>
    %cst_71 = arith.constant dense<0.000000e+00> : vector<32x128xf32>
    %83 = tpu.matmul %80, %82, %cst_71 {dimension_numbers = #tpu.dot_dimension_numbers<[1], [0], [0], [1], [0, 0, 1, 1], [], []>} : vector<32x64xbf16>, vector<64x128xbf16>, vector<32x128xf32> -> vector<32x128xf32>
    %84 = arith.addf %76, %83 : vector<32x128xf32>
    %cst_72 = arith.constant dense<0.000000e+00> : vector<128xf32>
    %85 = vector.multi_reduction <add>, %84, %cst_72 [0] : vector<32x128xf32> to vector<128xf32>
    %86 = vector.shape_cast %85 : vector<128xf32> to vector<1x128xf32>
    %cst_73 = arith.constant 3.125000e-02 : f32
    %87 = vector.broadcast %cst_73 : f32 to vector<1x128xf32>
    %88 = arith.mulf %86, %87 : vector<1x128xf32>
    %89 = arith.mulf %84, %84 : vector<32x128xf32>
    %cst_74 = arith.constant dense<0.000000e+00> : vector<128xf32>
    %90 = vector.multi_reduction <add>, %89, %cst_74 [0] : vector<32x128xf32> to vector<128xf32>
    %91 = vector.shape_cast %90 : vector<128xf32> to vector<1x128xf32>
    %cst_75 = arith.constant 3.125000e-02 : f32
    %92 = vector.broadcast %cst_75 : f32 to vector<1x128xf32>
    %93 = arith.mulf %91, %92 : vector<1x128xf32>
    %94 = arith.mulf %88, %88 : vector<1x128xf32>
    %95 = arith.subf %93, %94 : vector<1x128xf32>
    %96 = vector.broadcast %88 : vector<1x128xf32> to vector<32x128xf32>
    %97 = arith.subf %84, %96 : vector<32x128xf32>
    %cst_76 = arith.constant 9.99999974E-6 : f32
    %98 = vector.broadcast %cst_76 : f32 to vector<1x128xf32>
    %99 = arith.addf %95, %98 : vector<1x128xf32>
    %100 = math.rsqrt %99 : vector<1x128xf32>
    %101 = vector.broadcast %100 : vector<1x128xf32> to vector<32x128xf32>
    %102 = arith.mulf %97, %101 : vector<32x128xf32>
    %c0_77 = arith.constant 0 : index
    %c0_78 = arith.constant 0 : index
    %103 = vector.load %arg4[%c0_77, %c0_78] : memref<1x128xf32, #tpu.memory_space<vmem>>, vector<1x128xf32>
    %104 = vector.broadcast %103 : vector<1x128xf32> to vector<32x128xf32>
    %105 = arith.mulf %102, %104 : vector<32x128xf32>
    %c0_79 = arith.constant 0 : index
    %c0_80 = arith.constant 0 : index
    %106 = vector.load %arg5[%c0_79, %c0_80] : memref<1x128xf32, #tpu.memory_space<vmem>>, vector<1x128xf32>
    %107 = vector.broadcast %106 : vector<1x128xf32> to vector<32x128xf32>
    %108 = arith.addf %105, %107 : vector<32x128xf32>
    %cst_81 = arith.constant 0.000000e+00 : f32
    %109 = vector.broadcast %cst_81 : f32 to vector<32x128xf32>
    %110 = arith.cmpf oge, %108, %109 : vector<32x128xf32>
    %cst_82 = arith.constant 2.000000e-01 : f32
    %111 = vector.broadcast %cst_82 : f32 to vector<32x128xf32>
    %112 = arith.mulf %111, %108 : vector<32x128xf32>
    %113 = arith.select %110, %108, %112 : vector<32x128xi1>, vector<32x128xf32>
    %114 = arith.truncf %113 : vector<32x128xf32> to vector<32x128xbf16>
    %cst_83 = arith.constant 0.000000e+00 : f32
    %115 = vector.broadcast %cst_83 : f32 to vector<8x256xf32>
    %c0_84 = arith.constant 0 : index
    %c0_85 = arith.constant 0 : index
    %c0_86 = arith.constant 0 : index
    %116 = vector.load %arg10[%c0_84, %c0_85, %c0_86] : memref<9x8x32xbf16, #tpu.memory_space<vmem>>, vector<1x8x32xbf16>
    %117 = vector.shape_cast %116 : vector<1x8x32xbf16> to vector<8x32xbf16>
    %cst_87 = arith.constant dense<0.000000e+00> : vector<8x128xf32>
    %118 = tpu.matmul %117, %114, %cst_87 {dimension_numbers = #tpu.dot_dimension_numbers<[1], [0], [0], [1], [0, 0, 1, 1], [], []>} : vector<8x32xbf16>, vector<32x128xbf16>, vector<8x128xf32> -> vector<8x128xf32>
    %119 = arith.truncf %118 : vector<8x128xf32> to vector<8x128xbf16>
    %c0_88 = arith.constant 0 : index
    %c0_89 = arith.constant 0 : index
    %c0_90 = arith.constant 0 : index
    %120 = vector.load %arg7[%c0_88, %c0_89, %c0_90] : memref<9x128x256xbf16, #tpu.memory_space<vmem>>, vector<1x128x256xbf16>
    %121 = vector.shape_cast %120 : vector<1x128x256xbf16> to vector<128x256xbf16>
    %cst_91 = arith.constant dense<0.000000e+00> : vector<8x256xf32>
    %122 = tpu.matmul %119, %121, %cst_91 {dimension_numbers = #tpu.dot_dimension_numbers<[1], [0], [0], [1], [0, 0, 1, 1], [], []>} : vector<8x128xbf16>, vector<128x256xbf16>, vector<8x256xf32> -> vector<8x256xf32>
    %123 = arith.addf %115, %122 : vector<8x256xf32>
    %c1_92 = arith.constant 1 : index
    %c0_93 = arith.constant 0 : index
    %c0_94 = arith.constant 0 : index
    %124 = vector.load %arg10[%c1_92, %c0_93, %c0_94] : memref<9x8x32xbf16, #tpu.memory_space<vmem>>, vector<1x8x32xbf16>
    %125 = vector.shape_cast %124 : vector<1x8x32xbf16> to vector<8x32xbf16>
    %cst_95 = arith.constant dense<0.000000e+00> : vector<8x128xf32>
    %126 = tpu.matmul %125, %114, %cst_95 {dimension_numbers = #tpu.dot_dimension_numbers<[1], [0], [0], [1], [0, 0, 1, 1], [], []>} : vector<8x32xbf16>, vector<32x128xbf16>, vector<8x128xf32> -> vector<8x128xf32>
    %127 = arith.truncf %126 : vector<8x128xf32> to vector<8x128xbf16>
    %c1_96 = arith.constant 1 : index
    %c0_97 = arith.constant 0 : index
    %c0_98 = arith.constant 0 : index
    %128 = vector.load %arg7[%c1_96, %c0_97, %c0_98] : memref<9x128x256xbf16, #tpu.memory_space<vmem>>, vector<1x128x256xbf16>
    %129 = vector.shape_cast %128 : vector<1x128x256xbf16> to vector<128x256xbf16>
    %cst_99 = arith.constant dense<0.000000e+00> : vector<8x256xf32>
    %130 = tpu.matmul %127, %129, %cst_99 {dimension_numbers = #tpu.dot_dimension_numbers<[1], [0], [0], [1], [0, 0, 1, 1], [], []>} : vector<8x128xbf16>, vector<128x256xbf16>, vector<8x256xf32> -> vector<8x256xf32>
    %131 = arith.addf %123, %130 : vector<8x256xf32>
    %c2_100 = arith.constant 2 : index
    %c0_101 = arith.constant 0 : index
    %c0_102 = arith.constant 0 : index
    %132 = vector.load %arg10[%c2_100, %c0_101, %c0_102] : memref<9x8x32xbf16, #tpu.memory_space<vmem>>, vector<1x8x32xbf16>
    %133 = vector.shape_cast %132 : vector<1x8x32xbf16> to vector<8x32xbf16>
    %cst_103 = arith.constant dense<0.000000e+00> : vector<8x128xf32>
    %134 = tpu.matmul %133, %114, %cst_103 {dimension_numbers = #tpu.dot_dimension_numbers<[1], [0], [0], [1], [0, 0, 1, 1], [], []>} : vector<8x32xbf16>, vector<32x128xbf16>, vector<8x128xf32> -> vector<8x128xf32>
    %135 = arith.truncf %134 : vector<8x128xf32> to vector<8x128xbf16>
    %c2_104 = arith.constant 2 : index
    %c0_105 = arith.constant 0 : index
    %c0_106 = arith.constant 0 : index
    %136 = vector.load %arg7[%c2_104, %c0_105, %c0_106] : memref<9x128x256xbf16, #tpu.memory_space<vmem>>, vector<1x128x256xbf16>
    %137 = vector.shape_cast %136 : vector<1x128x256xbf16> to vector<128x256xbf16>
    %cst_107 = arith.constant dense<0.000000e+00> : vector<8x256xf32>
    %138 = tpu.matmul %135, %137, %cst_107 {dimension_numbers = #tpu.dot_dimension_numbers<[1], [0], [0], [1], [0, 0, 1, 1], [], []>} : vector<8x128xbf16>, vector<128x256xbf16>, vector<8x256xf32> -> vector<8x256xf32>
    %139 = arith.addf %131, %138 : vector<8x256xf32>
    %c3_108 = arith.constant 3 : index
    %c0_109 = arith.constant 0 : index
    %c0_110 = arith.constant 0 : index
    %140 = vector.load %arg10[%c3_108, %c0_109, %c0_110] : memref<9x8x32xbf16, #tpu.memory_space<vmem>>, vector<1x8x32xbf16>
    %141 = vector.shape_cast %140 : vector<1x8x32xbf16> to vector<8x32xbf16>
    %cst_111 = arith.constant dense<0.000000e+00> : vector<8x128xf32>
    %142 = tpu.matmul %141, %114, %cst_111 {dimension_numbers = #tpu.dot_dimension_numbers<[1], [0], [0], [1], [0, 0, 1, 1], [], []>} : vector<8x32xbf16>, vector<32x128xbf16>, vector<8x128xf32> -> vector<8x128xf32>
    %143 = arith.truncf %142 : vector<8x128xf32> to vector<8x128xbf16>
    %c3_112 = arith.constant 3 : index
    %c0_113 = arith.constant 0 : index
    %c0_114 = arith.constant 0 : index
    %144 = vector.load %arg7[%c3_112, %c0_113, %c0_114] : memref<9x128x256xbf16, #tpu.memory_space<vmem>>, vector<1x128x256xbf16>
    %145 = vector.shape_cast %144 : vector<1x128x256xbf16> to vector<128x256xbf16>
    %cst_115 = arith.constant dense<0.000000e+00> : vector<8x256xf32>
    %146 = tpu.matmul %143, %145, %cst_115 {dimension_numbers = #tpu.dot_dimension_numbers<[1], [0], [0], [1], [0, 0, 1, 1], [], []>} : vector<8x128xbf16>, vector<128x256xbf16>, vector<8x256xf32> -> vector<8x256xf32>
    %147 = arith.addf %139, %146 : vector<8x256xf32>
    %c4_116 = arith.constant 4 : index
    %c0_117 = arith.constant 0 : index
    %c0_118 = arith.constant 0 : index
    %148 = vector.load %arg10[%c4_116, %c0_117, %c0_118] : memref<9x8x32xbf16, #tpu.memory_space<vmem>>, vector<1x8x32xbf16>
    %149 = vector.shape_cast %148 : vector<1x8x32xbf16> to vector<8x32xbf16>
    %cst_119 = arith.constant dense<0.000000e+00> : vector<8x128xf32>
    %150 = tpu.matmul %149, %114, %cst_119 {dimension_numbers = #tpu.dot_dimension_numbers<[1], [0], [0], [1], [0, 0, 1, 1], [], []>} : vector<8x32xbf16>, vector<32x128xbf16>, vector<8x128xf32> -> vector<8x128xf32>
    %151 = arith.truncf %150 : vector<8x128xf32> to vector<8x128xbf16>
    %c4_120 = arith.constant 4 : index
    %c0_121 = arith.constant 0 : index
    %c0_122 = arith.constant 0 : index
    %152 = vector.load %arg7[%c4_120, %c0_121, %c0_122] : memref<9x128x256xbf16, #tpu.memory_space<vmem>>, vector<1x128x256xbf16>
    %153 = vector.shape_cast %152 : vector<1x128x256xbf16> to vector<128x256xbf16>
    %cst_123 = arith.constant dense<0.000000e+00> : vector<8x256xf32>
    %154 = tpu.matmul %151, %153, %cst_123 {dimension_numbers = #tpu.dot_dimension_numbers<[1], [0], [0], [1], [0, 0, 1, 1], [], []>} : vector<8x128xbf16>, vector<128x256xbf16>, vector<8x256xf32> -> vector<8x256xf32>
    %155 = arith.addf %147, %154 : vector<8x256xf32>
    %c5_124 = arith.constant 5 : index
    %c0_125 = arith.constant 0 : index
    %c0_126 = arith.constant 0 : index
    %156 = vector.load %arg10[%c5_124, %c0_125, %c0_126] : memref<9x8x32xbf16, #tpu.memory_space<vmem>>, vector<1x8x32xbf16>
    %157 = vector.shape_cast %156 : vector<1x8x32xbf16> to vector<8x32xbf16>
    %cst_127 = arith.constant dense<0.000000e+00> : vector<8x128xf32>
    %158 = tpu.matmul %157, %114, %cst_127 {dimension_numbers = #tpu.dot_dimension_numbers<[1], [0], [0], [1], [0, 0, 1, 1], [], []>} : vector<8x32xbf16>, vector<32x128xbf16>, vector<8x128xf32> -> vector<8x128xf32>
    %159 = arith.truncf %158 : vector<8x128xf32> to vector<8x128xbf16>
    %c5_128 = arith.constant 5 : index
    %c0_129 = arith.constant 0 : index
    %c0_130 = arith.constant 0 : index
    %160 = vector.load %arg7[%c5_128, %c0_129, %c0_130] : memref<9x128x256xbf16, #tpu.memory_space<vmem>>, vector<1x128x256xbf16>
    %161 = vector.shape_cast %160 : vector<1x128x256xbf16> to vector<128x256xbf16>
    %cst_131 = arith.constant dense<0.000000e+00> : vector<8x256xf32>
    %162 = tpu.matmul %159, %161, %cst_131 {dimension_numbers = #tpu.dot_dimension_numbers<[1], [0], [0], [1], [0, 0, 1, 1], [], []>} : vector<8x128xbf16>, vector<128x256xbf16>, vector<8x256xf32> -> vector<8x256xf32>
    %163 = arith.addf %155, %162 : vector<8x256xf32>
    %c6_132 = arith.constant 6 : index
    %c0_133 = arith.constant 0 : index
    %c0_134 = arith.constant 0 : index
    %164 = vector.load %arg10[%c6_132, %c0_133, %c0_134] : memref<9x8x32xbf16, #tpu.memory_space<vmem>>, vector<1x8x32xbf16>
    %165 = vector.shape_cast %164 : vector<1x8x32xbf16> to vector<8x32xbf16>
    %cst_135 = arith.constant dense<0.000000e+00> : vector<8x128xf32>
    %166 = tpu.matmul %165, %114, %cst_135 {dimension_numbers = #tpu.dot_dimension_numbers<[1], [0], [0], [1], [0, 0, 1, 1], [], []>} : vector<8x32xbf16>, vector<32x128xbf16>, vector<8x128xf32> -> vector<8x128xf32>
    %167 = arith.truncf %166 : vector<8x128xf32> to vector<8x128xbf16>
    %c6_136 = arith.constant 6 : index
    %c0_137 = arith.constant 0 : index
    %c0_138 = arith.constant 0 : index
    %168 = vector.load %arg7[%c6_136, %c0_137, %c0_138] : memref<9x128x256xbf16, #tpu.memory_space<vmem>>, vector<1x128x256xbf16>
    %169 = vector.shape_cast %168 : vector<1x128x256xbf16> to vector<128x256xbf16>
    %cst_139 = arith.constant dense<0.000000e+00> : vector<8x256xf32>
    %170 = tpu.matmul %167, %169, %cst_139 {dimension_numbers = #tpu.dot_dimension_numbers<[1], [0], [0], [1], [0, 0, 1, 1], [], []>} : vector<8x128xbf16>, vector<128x256xbf16>, vector<8x256xf32> -> vector<8x256xf32>
    %171 = arith.addf %163, %170 : vector<8x256xf32>
    %c7_140 = arith.constant 7 : index
    %c0_141 = arith.constant 0 : index
    %c0_142 = arith.constant 0 : index
    %172 = vector.load %arg10[%c7_140, %c0_141, %c0_142] : memref<9x8x32xbf16, #tpu.memory_space<vmem>>, vector<1x8x32xbf16>
    %173 = vector.shape_cast %172 : vector<1x8x32xbf16> to vector<8x32xbf16>
    %cst_143 = arith.constant dense<0.000000e+00> : vector<8x128xf32>
    %174 = tpu.matmul %173, %114, %cst_143 {dimension_numbers = #tpu.dot_dimension_numbers<[1], [0], [0], [1], [0, 0, 1, 1], [], []>} : vector<8x32xbf16>, vector<32x128xbf16>, vector<8x128xf32> -> vector<8x128xf32>
    %175 = arith.truncf %174 : vector<8x128xf32> to vector<8x128xbf16>
    %c7_144 = arith.constant 7 : index
    %c0_145 = arith.constant 0 : index
    %c0_146 = arith.constant 0 : index
    %176 = vector.load %arg7[%c7_144, %c0_145, %c0_146] : memref<9x128x256xbf16, #tpu.memory_space<vmem>>, vector<1x128x256xbf16>
    %177 = vector.shape_cast %176 : vector<1x128x256xbf16> to vector<128x256xbf16>
    %cst_147 = arith.constant dense<0.000000e+00> : vector<8x256xf32>
    %178 = tpu.matmul %175, %177, %cst_147 {dimension_numbers = #tpu.dot_dimension_numbers<[1], [0], [0], [1], [0, 0, 1, 1], [], []>} : vector<8x128xbf16>, vector<128x256xbf16>, vector<8x256xf32> -> vector<8x256xf32>
    %179 = arith.addf %171, %178 : vector<8x256xf32>
    %c8_148 = arith.constant 8 : index
    %c0_149 = arith.constant 0 : index
    %c0_150 = arith.constant 0 : index
    %180 = vector.load %arg10[%c8_148, %c0_149, %c0_150] : memref<9x8x32xbf16, #tpu.memory_space<vmem>>, vector<1x8x32xbf16>
    %181 = vector.shape_cast %180 : vector<1x8x32xbf16> to vector<8x32xbf16>
    %cst_151 = arith.constant dense<0.000000e+00> : vector<8x128xf32>
    %182 = tpu.matmul %181, %114, %cst_151 {dimension_numbers = #tpu.dot_dimension_numbers<[1], [0], [0], [1], [0, 0, 1, 1], [], []>} : vector<8x32xbf16>, vector<32x128xbf16>, vector<8x128xf32> -> vector<8x128xf32>
    %183 = arith.truncf %182 : vector<8x128xf32> to vector<8x128xbf16>
    %c8_152 = arith.constant 8 : index
    %c0_153 = arith.constant 0 : index
    %c0_154 = arith.constant 0 : index
    %184 = vector.load %arg7[%c8_152, %c0_153, %c0_154] : memref<9x128x256xbf16, #tpu.memory_space<vmem>>, vector<1x128x256xbf16>
    %185 = vector.shape_cast %184 : vector<1x128x256xbf16> to vector<128x256xbf16>
    %cst_155 = arith.constant dense<0.000000e+00> : vector<8x256xf32>
    %186 = tpu.matmul %183, %185, %cst_155 {dimension_numbers = #tpu.dot_dimension_numbers<[1], [0], [0], [1], [0, 0, 1, 1], [], []>} : vector<8x128xbf16>, vector<128x256xbf16>, vector<8x256xf32> -> vector<8x256xf32>
    %187 = arith.addf %179, %186 : vector<8x256xf32>
    %cst_156 = arith.constant dense<0.000000e+00> : vector<256xf32>
    %188 = vector.multi_reduction <add>, %187, %cst_156 [0] : vector<8x256xf32> to vector<256xf32>
    %189 = vector.shape_cast %188 : vector<256xf32> to vector<1x256xf32>
    %cst_157 = arith.constant 1.250000e-01 : f32
    %190 = vector.broadcast %cst_157 : f32 to vector<1x256xf32>
    %191 = arith.mulf %189, %190 : vector<1x256xf32>
    %192 = arith.mulf %187, %187 : vector<8x256xf32>
    %cst_158 = arith.constant dense<0.000000e+00> : vector<256xf32>
    %193 = vector.multi_reduction <add>, %192, %cst_158 [0] : vector<8x256xf32> to vector<256xf32>
    %194 = vector.shape_cast %193 : vector<256xf32> to vector<1x256xf32>
    %cst_159 = arith.constant 1.250000e-01 : f32
    %195 = vector.broadcast %cst_159 : f32 to vector<1x256xf32>
    %196 = arith.mulf %194, %195 : vector<1x256xf32>
    %197 = arith.mulf %191, %191 : vector<1x256xf32>
    %198 = arith.subf %196, %197 : vector<1x256xf32>
    %199 = vector.broadcast %191 : vector<1x256xf32> to vector<8x256xf32>
    %200 = arith.subf %187, %199 : vector<8x256xf32>
    %cst_160 = arith.constant 9.99999974E-6 : f32
    %201 = vector.broadcast %cst_160 : f32 to vector<1x256xf32>
    %202 = arith.addf %198, %201 : vector<1x256xf32>
    %203 = math.rsqrt %202 : vector<1x256xf32>
    %204 = vector.broadcast %203 : vector<1x256xf32> to vector<8x256xf32>
    %205 = arith.mulf %200, %204 : vector<8x256xf32>
    %c0_161 = arith.constant 0 : index
    %c0_162 = arith.constant 0 : index
    %206 = vector.load %arg8[%c0_161, %c0_162] : memref<1x256xf32, #tpu.memory_space<vmem>>, vector<1x256xf32>
    %207 = vector.broadcast %206 : vector<1x256xf32> to vector<8x256xf32>
    %208 = arith.mulf %205, %207 : vector<8x256xf32>
    %c0_163 = arith.constant 0 : index
    %c0_164 = arith.constant 0 : index
    %209 = vector.load %arg9[%c0_163, %c0_164] : memref<1x256xf32, #tpu.memory_space<vmem>>, vector<1x256xf32>
    %210 = vector.broadcast %209 : vector<1x256xf32> to vector<8x256xf32>
    %211 = arith.addf %208, %210 : vector<8x256xf32>
    %cst_165 = arith.constant 0.000000e+00 : f32
    %212 = vector.broadcast %cst_165 : f32 to vector<8x256xf32>
    %213 = arith.cmpf oge, %211, %212 : vector<8x256xf32>
    %cst_166 = arith.constant 2.000000e-01 : f32
    %214 = vector.broadcast %cst_166 : f32 to vector<8x256xf32>
    %215 = arith.mulf %214, %211 : vector<8x256xf32>
    %216 = arith.select %213, %211, %215 : vector<8x256xi1>, vector<8x256xf32>
    %217 = arith.truncf %216 : vector<8x256xf32> to vector<8x256xbf16>
    %cst_167 = arith.constant 0.000000e+00 : f32
    %218 = vector.broadcast %cst_167 : f32 to vector<2x512xf32>
    %c0_168 = arith.constant 0 : index
    %c0_169 = arith.constant 0 : index
    %c0_170 = arith.constant 0 : index
    %219 = vector.load %arg14[%c0_168, %c0_169, %c0_170] : memref<9x2x8xbf16, #tpu.memory_space<vmem>>, vector<1x2x8xbf16>
    %220 = vector.shape_cast %219 : vector<1x2x8xbf16> to vector<2x8xbf16>
    %cst_171 = arith.constant dense<0.000000e+00> : vector<2x256xf32>
    %221 = tpu.matmul %220, %217, %cst_171 {dimension_numbers = #tpu.dot_dimension_numbers<[1], [0], [0], [1], [0, 0, 1, 1], [], []>} : vector<2x8xbf16>, vector<8x256xbf16>, vector<2x256xf32> -> vector<2x256xf32>
    %222 = arith.truncf %221 : vector<2x256xf32> to vector<2x256xbf16>
    %c0_172 = arith.constant 0 : index
    %c0_173 = arith.constant 0 : index
    %c0_174 = arith.constant 0 : index
    %223 = vector.load %arg11[%c0_172, %c0_173, %c0_174] : memref<9x256x512xbf16, #tpu.memory_space<vmem>>, vector<1x256x512xbf16>
    %224 = vector.shape_cast %223 : vector<1x256x512xbf16> to vector<256x512xbf16>
    %cst_175 = arith.constant dense<0.000000e+00> : vector<2x512xf32>
    %225 = tpu.matmul %222, %224, %cst_175 {dimension_numbers = #tpu.dot_dimension_numbers<[1], [0], [0], [1], [0, 0, 1, 1], [], []>} : vector<2x256xbf16>, vector<256x512xbf16>, vector<2x512xf32> -> vector<2x512xf32>
    %226 = arith.addf %218, %225 : vector<2x512xf32>
    %c1_176 = arith.constant 1 : index
    %c0_177 = arith.constant 0 : index
    %c0_178 = arith.constant 0 : index
    %227 = vector.load %arg14[%c1_176, %c0_177, %c0_178] : memref<9x2x8xbf16, #tpu.memory_space<vmem>>, vector<1x2x8xbf16>
    %228 = vector.shape_cast %227 : vector<1x2x8xbf16> to vector<2x8xbf16>
    %cst_179 = arith.constant dense<0.000000e+00> : vector<2x256xf32>
    %229 = tpu.matmul %228, %217, %cst_179 {dimension_numbers = #tpu.dot_dimension_numbers<[1], [0], [0], [1], [0, 0, 1, 1], [], []>} : vector<2x8xbf16>, vector<8x256xbf16>, vector<2x256xf32> -> vector<2x256xf32>
    %230 = arith.truncf %229 : vector<2x256xf32> to vector<2x256xbf16>
    %c1_180 = arith.constant 1 : index
    %c0_181 = arith.constant 0 : index
    %c0_182 = arith.constant 0 : index
    %231 = vector.load %arg11[%c1_180, %c0_181, %c0_182] : memref<9x256x512xbf16, #tpu.memory_space<vmem>>, vector<1x256x512xbf16>
    %232 = vector.shape_cast %231 : vector<1x256x512xbf16> to vector<256x512xbf16>
    %cst_183 = arith.constant dense<0.000000e+00> : vector<2x512xf32>
    %233 = tpu.matmul %230, %232, %cst_183 {dimension_numbers = #tpu.dot_dimension_numbers<[1], [0], [0], [1], [0, 0, 1, 1], [], []>} : vector<2x256xbf16>, vector<256x512xbf16>, vector<2x512xf32> -> vector<2x512xf32>
    %234 = arith.addf %226, %233 : vector<2x512xf32>
    %c2_184 = arith.constant 2 : index
    %c0_185 = arith.constant 0 : index
    %c0_186 = arith.constant 0 : index
    %235 = vector.load %arg14[%c2_184, %c0_185, %c0_186] : memref<9x2x8xbf16, #tpu.memory_space<vmem>>, vector<1x2x8xbf16>
    %236 = vector.shape_cast %235 : vector<1x2x8xbf16> to vector<2x8xbf16>
    %cst_187 = arith.constant dense<0.000000e+00> : vector<2x256xf32>
    %237 = tpu.matmul %236, %217, %cst_187 {dimension_numbers = #tpu.dot_dimension_numbers<[1], [0], [0], [1], [0, 0, 1, 1], [], []>} : vector<2x8xbf16>, vector<8x256xbf16>, vector<2x256xf32> -> vector<2x256xf32>
    %238 = arith.truncf %237 : vector<2x256xf32> to vector<2x256xbf16>
    %c2_188 = arith.constant 2 : index
    %c0_189 = arith.constant 0 : index
    %c0_190 = arith.constant 0 : index
    %239 = vector.load %arg11[%c2_188, %c0_189, %c0_190] : memref<9x256x512xbf16, #tpu.memory_space<vmem>>, vector<1x256x512xbf16>
    %240 = vector.shape_cast %239 : vector<1x256x512xbf16> to vector<256x512xbf16>
    %cst_191 = arith.constant dense<0.000000e+00> : vector<2x512xf32>
    %241 = tpu.matmul %238, %240, %cst_191 {dimension_numbers = #tpu.dot_dimension_numbers<[1], [0], [0], [1], [0, 0, 1, 1], [], []>} : vector<2x256xbf16>, vector<256x512xbf16>, vector<2x512xf32> -> vector<2x512xf32>
    %242 = arith.addf %234, %241 : vector<2x512xf32>
    %c3_192 = arith.constant 3 : index
    %c0_193 = arith.constant 0 : index
    %c0_194 = arith.constant 0 : index
    %243 = vector.load %arg14[%c3_192, %c0_193, %c0_194] : memref<9x2x8xbf16, #tpu.memory_space<vmem>>, vector<1x2x8xbf16>
    %244 = vector.shape_cast %243 : vector<1x2x8xbf16> to vector<2x8xbf16>
    %cst_195 = arith.constant dense<0.000000e+00> : vector<2x256xf32>
    %245 = tpu.matmul %244, %217, %cst_195 {dimension_numbers = #tpu.dot_dimension_numbers<[1], [0], [0], [1], [0, 0, 1, 1], [], []>} : vector<2x8xbf16>, vector<8x256xbf16>, vector<2x256xf32> -> vector<2x256xf32>
    %246 = arith.truncf %245 : vector<2x256xf32> to vector<2x256xbf16>
    %c3_196 = arith.constant 3 : index
    %c0_197 = arith.constant 0 : index
    %c0_198 = arith.constant 0 : index
    %247 = vector.load %arg11[%c3_196, %c0_197, %c0_198] : memref<9x256x512xbf16, #tpu.memory_space<vmem>>, vector<1x256x512xbf16>
    %248 = vector.shape_cast %247 : vector<1x256x512xbf16> to vector<256x512xbf16>
    %cst_199 = arith.constant dense<0.000000e+00> : vector<2x512xf32>
    %249 = tpu.matmul %246, %248, %cst_199 {dimension_numbers = #tpu.dot_dimension_numbers<[1], [0], [0], [1], [0, 0, 1, 1], [], []>} : vector<2x256xbf16>, vector<256x512xbf16>, vector<2x512xf32> -> vector<2x512xf32>
    %250 = arith.addf %242, %249 : vector<2x512xf32>
    %c4_200 = arith.constant 4 : index
    %c0_201 = arith.constant 0 : index
    %c0_202 = arith.constant 0 : index
    %251 = vector.load %arg14[%c4_200, %c0_201, %c0_202] : memref<9x2x8xbf16, #tpu.memory_space<vmem>>, vector<1x2x8xbf16>
    %252 = vector.shape_cast %251 : vector<1x2x8xbf16> to vector<2x8xbf16>
    %cst_203 = arith.constant dense<0.000000e+00> : vector<2x256xf32>
    %253 = tpu.matmul %252, %217, %cst_203 {dimension_numbers = #tpu.dot_dimension_numbers<[1], [0], [0], [1], [0, 0, 1, 1], [], []>} : vector<2x8xbf16>, vector<8x256xbf16>, vector<2x256xf32> -> vector<2x256xf32>
    %254 = arith.truncf %253 : vector<2x256xf32> to vector<2x256xbf16>
    %c4_204 = arith.constant 4 : index
    %c0_205 = arith.constant 0 : index
    %c0_206 = arith.constant 0 : index
    %255 = vector.load %arg11[%c4_204, %c0_205, %c0_206] : memref<9x256x512xbf16, #tpu.memory_space<vmem>>, vector<1x256x512xbf16>
    %256 = vector.shape_cast %255 : vector<1x256x512xbf16> to vector<256x512xbf16>
    %cst_207 = arith.constant dense<0.000000e+00> : vector<2x512xf32>
    %257 = tpu.matmul %254, %256, %cst_207 {dimension_numbers = #tpu.dot_dimension_numbers<[1], [0], [0], [1], [0, 0, 1, 1], [], []>} : vector<2x256xbf16>, vector<256x512xbf16>, vector<2x512xf32> -> vector<2x512xf32>
    %258 = arith.addf %250, %257 : vector<2x512xf32>
    %c5_208 = arith.constant 5 : index
    %c0_209 = arith.constant 0 : index
    %c0_210 = arith.constant 0 : index
    %259 = vector.load %arg14[%c5_208, %c0_209, %c0_210] : memref<9x2x8xbf16, #tpu.memory_space<vmem>>, vector<1x2x8xbf16>
    %260 = vector.shape_cast %259 : vector<1x2x8xbf16> to vector<2x8xbf16>
    %cst_211 = arith.constant dense<0.000000e+00> : vector<2x256xf32>
    %261 = tpu.matmul %260, %217, %cst_211 {dimension_numbers = #tpu.dot_dimension_numbers<[1], [0], [0], [1], [0, 0, 1, 1], [], []>} : vector<2x8xbf16>, vector<8x256xbf16>, vector<2x256xf32> -> vector<2x256xf32>
    %262 = arith.truncf %261 : vector<2x256xf32> to vector<2x256xbf16>
    %c5_212 = arith.constant 5 : index
    %c0_213 = arith.constant 0 : index
    %c0_214 = arith.constant 0 : index
    %263 = vector.load %arg11[%c5_212, %c0_213, %c0_214] : memref<9x256x512xbf16, #tpu.memory_space<vmem>>, vector<1x256x512xbf16>
    %264 = vector.shape_cast %263 : vector<1x256x512xbf16> to vector<256x512xbf16>
    %cst_215 = arith.constant dense<0.000000e+00> : vector<2x512xf32>
    %265 = tpu.matmul %262, %264, %cst_215 {dimension_numbers = #tpu.dot_dimension_numbers<[1], [0], [0], [1], [0, 0, 1, 1], [], []>} : vector<2x256xbf16>, vector<256x512xbf16>, vector<2x512xf32> -> vector<2x512xf32>
    %266 = arith.addf %258, %265 : vector<2x512xf32>
    %c6_216 = arith.constant 6 : index
    %c0_217 = arith.constant 0 : index
    %c0_218 = arith.constant 0 : index
    %267 = vector.load %arg14[%c6_216, %c0_217, %c0_218] : memref<9x2x8xbf16, #tpu.memory_space<vmem>>, vector<1x2x8xbf16>
    %268 = vector.shape_cast %267 : vector<1x2x8xbf16> to vector<2x8xbf16>
    %cst_219 = arith.constant dense<0.000000e+00> : vector<2x256xf32>
    %269 = tpu.matmul %268, %217, %cst_219 {dimension_numbers = #tpu.dot_dimension_numbers<[1], [0], [0], [1], [0, 0, 1, 1], [], []>} : vector<2x8xbf16>, vector<8x256xbf16>, vector<2x256xf32> -> vector<2x256xf32>
    %270 = arith.truncf %269 : vector<2x256xf32> to vector<2x256xbf16>
    %c6_220 = arith.constant 6 : index
    %c0_221 = arith.constant 0 : index
    %c0_222 = arith.constant 0 : index
    %271 = vector.load %arg11[%c6_220, %c0_221, %c0_222] : memref<9x256x512xbf16, #tpu.memory_space<vmem>>, vector<1x256x512xbf16>
    %272 = vector.shape_cast %271 : vector<1x256x512xbf16> to vector<256x512xbf16>
    %cst_223 = arith.constant dense<0.000000e+00> : vector<2x512xf32>
    %273 = tpu.matmul %270, %272, %cst_223 {dimension_numbers = #tpu.dot_dimension_numbers<[1], [0], [0], [1], [0, 0, 1, 1], [], []>} : vector<2x256xbf16>, vector<256x512xbf16>, vector<2x512xf32> -> vector<2x512xf32>
    %274 = arith.addf %266, %273 : vector<2x512xf32>
    %c7_224 = arith.constant 7 : index
    %c0_225 = arith.constant 0 : index
    %c0_226 = arith.constant 0 : index
    %275 = vector.load %arg14[%c7_224, %c0_225, %c0_226] : memref<9x2x8xbf16, #tpu.memory_space<vmem>>, vector<1x2x8xbf16>
    %276 = vector.shape_cast %275 : vector<1x2x8xbf16> to vector<2x8xbf16>
    %cst_227 = arith.constant dense<0.000000e+00> : vector<2x256xf32>
    %277 = tpu.matmul %276, %217, %cst_227 {dimension_numbers = #tpu.dot_dimension_numbers<[1], [0], [0], [1], [0, 0, 1, 1], [], []>} : vector<2x8xbf16>, vector<8x256xbf16>, vector<2x256xf32> -> vector<2x256xf32>
    %278 = arith.truncf %277 : vector<2x256xf32> to vector<2x256xbf16>
    %c7_228 = arith.constant 7 : index
    %c0_229 = arith.constant 0 : index
    %c0_230 = arith.constant 0 : index
    %279 = vector.load %arg11[%c7_228, %c0_229, %c0_230] : memref<9x256x512xbf16, #tpu.memory_space<vmem>>, vector<1x256x512xbf16>
    %280 = vector.shape_cast %279 : vector<1x256x512xbf16> to vector<256x512xbf16>
    %cst_231 = arith.constant dense<0.000000e+00> : vector<2x512xf32>
    %281 = tpu.matmul %278, %280, %cst_231 {dimension_numbers = #tpu.dot_dimension_numbers<[1], [0], [0], [1], [0, 0, 1, 1], [], []>} : vector<2x256xbf16>, vector<256x512xbf16>, vector<2x512xf32> -> vector<2x512xf32>
    %282 = arith.addf %274, %281 : vector<2x512xf32>
    %c8_232 = arith.constant 8 : index
    %c0_233 = arith.constant 0 : index
    %c0_234 = arith.constant 0 : index
    %283 = vector.load %arg14[%c8_232, %c0_233, %c0_234] : memref<9x2x8xbf16, #tpu.memory_space<vmem>>, vector<1x2x8xbf16>
    %284 = vector.shape_cast %283 : vector<1x2x8xbf16> to vector<2x8xbf16>
    %cst_235 = arith.constant dense<0.000000e+00> : vector<2x256xf32>
    %285 = tpu.matmul %284, %217, %cst_235 {dimension_numbers = #tpu.dot_dimension_numbers<[1], [0], [0], [1], [0, 0, 1, 1], [], []>} : vector<2x8xbf16>, vector<8x256xbf16>, vector<2x256xf32> -> vector<2x256xf32>
    %286 = arith.truncf %285 : vector<2x256xf32> to vector<2x256xbf16>
    %c8_236 = arith.constant 8 : index
    %c0_237 = arith.constant 0 : index
    %c0_238 = arith.constant 0 : index
    %287 = vector.load %arg11[%c8_236, %c0_237, %c0_238] : memref<9x256x512xbf16, #tpu.memory_space<vmem>>, vector<1x256x512xbf16>
    %288 = vector.shape_cast %287 : vector<1x256x512xbf16> to vector<256x512xbf16>
    %cst_239 = arith.constant dense<0.000000e+00> : vector<2x512xf32>
    %289 = tpu.matmul %286, %288, %cst_239 {dimension_numbers = #tpu.dot_dimension_numbers<[1], [0], [0], [1], [0, 0, 1, 1], [], []>} : vector<2x256xbf16>, vector<256x512xbf16>, vector<2x512xf32> -> vector<2x512xf32>
    %290 = arith.addf %282, %289 : vector<2x512xf32>
    %cst_240 = arith.constant dense<0.000000e+00> : vector<512xf32>
    %291 = vector.multi_reduction <add>, %290, %cst_240 [0] : vector<2x512xf32> to vector<512xf32>
    %292 = vector.shape_cast %291 : vector<512xf32> to vector<1x512xf32>
    %cst_241 = arith.constant 5.000000e-01 : f32
    %293 = vector.broadcast %cst_241 : f32 to vector<1x512xf32>
    %294 = arith.mulf %292, %293 : vector<1x512xf32>
    %295 = arith.mulf %290, %290 : vector<2x512xf32>
    %cst_242 = arith.constant dense<0.000000e+00> : vector<512xf32>
    %296 = vector.multi_reduction <add>, %295, %cst_242 [0] : vector<2x512xf32> to vector<512xf32>
    %297 = vector.shape_cast %296 : vector<512xf32> to vector<1x512xf32>
    %cst_243 = arith.constant 5.000000e-01 : f32
    %298 = vector.broadcast %cst_243 : f32 to vector<1x512xf32>
    %299 = arith.mulf %297, %298 : vector<1x512xf32>
    %300 = arith.mulf %294, %294 : vector<1x512xf32>
    %301 = arith.subf %299, %300 : vector<1x512xf32>
    %302 = vector.broadcast %294 : vector<1x512xf32> to vector<2x512xf32>
    %303 = arith.subf %290, %302 : vector<2x512xf32>
    %cst_244 = arith.constant 9.99999974E-6 : f32
    %304 = vector.broadcast %cst_244 : f32 to vector<1x512xf32>
    %305 = arith.addf %301, %304 : vector<1x512xf32>
    %306 = math.rsqrt %305 : vector<1x512xf32>
    %307 = vector.broadcast %306 : vector<1x512xf32> to vector<2x512xf32>
    %308 = arith.mulf %303, %307 : vector<2x512xf32>
    %c0_245 = arith.constant 0 : index
    %c0_246 = arith.constant 0 : index
    %309 = vector.load %arg12[%c0_245, %c0_246] : memref<1x512xf32, #tpu.memory_space<vmem>>, vector<1x512xf32>
    %310 = vector.broadcast %309 : vector<1x512xf32> to vector<2x512xf32>
    %311 = arith.mulf %308, %310 : vector<2x512xf32>
    %c0_247 = arith.constant 0 : index
    %c0_248 = arith.constant 0 : index
    %312 = vector.load %arg13[%c0_247, %c0_248] : memref<1x512xf32, #tpu.memory_space<vmem>>, vector<1x512xf32>
    %313 = vector.broadcast %312 : vector<1x512xf32> to vector<2x512xf32>
    %314 = arith.addf %311, %313 : vector<2x512xf32>
    %cst_249 = arith.constant 0.000000e+00 : f32
    %315 = vector.broadcast %cst_249 : f32 to vector<2x512xf32>
    %316 = arith.cmpf oge, %314, %315 : vector<2x512xf32>
    %cst_250 = arith.constant 2.000000e-01 : f32
    %317 = vector.broadcast %cst_250 : f32 to vector<2x512xf32>
    %318 = arith.mulf %317, %314 : vector<2x512xf32>
    %319 = arith.select %316, %314, %318 : vector<2x512xi1>, vector<2x512xf32>
    %c0_251 = arith.constant 0 : index
    %c0_252 = arith.constant 0 : index
    %320 = vector.load %arg15[%c0_251, %c0_252] : memref<1x512xf32, #tpu.memory_space<vmem>>, vector<1x512xf32>
    %321 = vector.broadcast %320 : vector<1x512xf32> to vector<2x512xf32>
    %322 = arith.mulf %319, %321 : vector<2x512xf32>
    %cst_253 = arith.constant dense<0.000000e+00> : vector<2xf32>
    %323 = vector.multi_reduction <add>, %322, %cst_253 [1] : vector<2x512xf32> to vector<2xf32>
    %324 = vector.shape_cast %323 : vector<2xf32> to vector<2x1xf32>
    %c0_254 = arith.constant 0 : index
    %c0_255 = arith.constant 0 : index
    %325 = vector.load %arg16[%c0_254, %c0_255] : memref<1x1xf32, #tpu.memory_space<vmem>>, vector<1x1xf32>
    %326 = vector.broadcast %325 : vector<1x1xf32> to vector<2x1xf32>
    %327 = arith.addf %324, %326 : vector<2x1xf32>
    %328 = arith.negf %327 : vector<2x1xf32>
    %329 = math.exp %328 : vector<2x1xf32>
    %cst_256 = arith.constant 1.000000e+00 : f32
    %330 = vector.broadcast %cst_256 : f32 to vector<2x1xf32>
    %331 = arith.addf %330, %329 : vector<2x1xf32>
    %332 = arith.divf %330, %331 : vector<2x1xf32>
    %c0_257 = arith.constant 0 : index
    %c0_258 = arith.constant 0 : index
    %333 = vector.load %arg17[%c0_257, %c0_258] : memref<2x1xf32, #tpu.memory_space<vmem>>, vector<2x1xf32>
    tpu.vector_store %arg17[%c0_257, %c0_258], %332 {strides = array<i32>} : memref<2x1xf32, #tpu.memory_space<vmem>>, vector<2x1xf32>,
    return
  }
}

</mosaic_0001>

<llo_original>
// kernel: discriminator_forward.1
$region0: #{discriminator_forward.1}
  #allocation0 [shape = 'u32[]', space=smem, size = 0x4, offset = 0x4, fixed_abs, tag = 'smem constant byte address 0x4 - core index']
  #allocation1 [shape = 'u32[144,128]{1,0:T(1,128)}', space=vmem, size = 0x12000, scoped, tag = 'internal scratch']
  #allocation2 [shape = 'f32[1,1]{1,0:T(1,128)S(1)}', space=vmem, size = 0x200, scoped, tag = 'scoped memory for discriminator_forward.1']
  %s0 = inlined_call_operand.vmem [shape: bf16[128,32], index: 0, kind: input, shape index: {}]
  %s1 = inlined_call_operand.hbm [shape: bf16[32,64], index: 1, kind: input, shape index: {}]
  %s2 = inlined_call_operand.hbm [shape: f32[1,64], index: 2, kind: input, shape index: {}]
  %s3 = inlined_call_operand.hbm [shape: bf16[9,64,128], index: 3, kind: input, shape index: {}]
  %s4 = inlined_call_operand.hbm [shape: f32[1,128], index: 4, kind: input, shape index: {}]
  %s5 = inlined_call_operand.hbm [shape: f32[1,128], index: 5, kind: input, shape index: {}]
  %s6 = inlined_call_operand.hbm [shape: bf16[9,32,128], index: 6, kind: input, shape index: {}]
  %s7 = inlined_call_operand.hbm [shape: bf16[9,128,256], index: 7, kind: input, shape index: {}]
  %s8 = inlined_call_operand.hbm [shape: f32[1,256], index: 8, kind: input, shape index: {}]
  %s9 = inlined_call_operand.hbm [shape: f32[1,256], index: 9, kind: input, shape index: {}]
  %s10 = inlined_call_operand.hbm [shape: bf16[9,8,32], index: 10, kind: input, shape index: {}]
  %s11 = inlined_call_operand.hbm [shape: bf16[9,256,512], index: 11, kind: input, shape index: {}]
  %s12 = inlined_call_operand.hbm [shape: f32[1,512], index: 12, kind: input, shape index: {}]
  %s13 = inlined_call_operand.hbm [shape: f32[1,512], index: 13, kind: input, shape index: {}]
  %s14 = inlined_call_operand.hbm [shape: bf16[9,2,8], index: 14, kind: input, shape index: {}]
  %s15 = inlined_call_operand.hbm [shape: f32[1,512], index: 15, kind: input, shape index: {}]
  %s16 = inlined_call_operand.<no memory space> [shape: f32[1,1], index: 16, kind: input, shape index: {}]
  %s17 = inlined_call_operand.vmem [shape: f32[2,1], index: 17, kind: output, shape index: {}]
  %s18 = sld [smem:[#allocation0]]
  $region138: #{discriminator_forward.1} parent=0
    _
  %s20 = ssub.s32 1, %s18
  %s21 = scalar_select 0, %s20, %s18
  %v22 = vstv %s16
  %23 = vst [vmem:[#allocation2] sm:$0x1] %v22
  $region1: #{discriminator_forward.1} parent=0
    #allocation3 [shape = 'u8[8192]{0}', space=vmem, size = 0x2000, scoped, tag = 'input window, operand 1, single buffered']
    #allocation4 [shape = 's32[1]{0}', space=sflag, size = 0x4, scoped, tag = 'scoped memory for discriminator_forward.1']
    #allocation5 [shape = 'u8[512]{0}', space=vmem, size = 0x400, scoped, tag = 'input window, operand 2, single buffered']
    #allocation6 [shape = 's32[1]{0}', space=sflag, size = 0x4, scoped, tag = 'scoped memory for discriminator_forward.1']
    #allocation7 [shape = 'u8[147456]{0}', space=vmem, size = 0x24000, scoped, tag = 'input window, operand 3, single buffered']
    #allocation8 [shape = 'u8[512]{0}', space=vmem, size = 0x400, scoped, tag = 'input window, operand 4, single buffered']
    #allocation9 [shape = 's32[1]{0}', space=sflag, size = 0x4, scoped, tag = 'scoped memory for discriminator_forward.1']
    #allocation10 [shape = 'u8[512]{0}', space=vmem, size = 0x400, scoped, tag = 'input window, operand 5, single buffered']
    #allocation11 [shape = 'u8[73728]{0}', space=vmem, size = 0x12000, scoped, tag = 'input window, operand 6, single buffered']
    #allocation12 [shape = 's32[1]{0}', space=sflag, size = 0x4, scoped, tag = 'scoped memory for discriminator_forward.1']
    #allocation13 [shape = 'u8[589824]{0}', space=vmem, size = 0x90000, scoped, tag = 'input window, operand 7, single buffered']
    #allocation14 [shape = 'u8[1024]{0}', space=vmem, size = 0x400, scoped, tag = 'input window, operand 8, single buffered']
    #allocation15 [shape = 's32[1]{0}', space=sflag, size = 0x4, scoped, tag = 'scoped memory for discriminator_forward.1']
    #allocation16 [shape = 'u8[1024]{0}', space=vmem, size = 0x400, scoped, tag = 'input window, operand 9, single buffered']
    #allocation17 [shape = 'u8[18432]{0}', space=vmem, size = 0x4800, scoped, tag = 'input window, operand 10, single buffered']
    #allocation18 [shape = 's32[1]{0}', space=sflag, size = 0x4, scoped, tag = 'scoped memory for discriminator_forward.1']
    #allocation19 [shape = 'u8[2359296]{0}', space=vmem, size = 0x240000, scoped, tag = 'input window, operand 11, single buffered']
    #allocation20 [shape = 'u8[2048]{0}', space=vmem, size = 0x800, scoped, tag = 'input window, operand 12, single buffered']
    #allocation21 [shape = 's32[1]{0}', space=sflag, size = 0x4, scoped, tag = 'scoped memory for discriminator_forward.1']
    #allocation22 [shape = 'u8[2048]{0}', space=vmem, size = 0x800, scoped, tag = 'input window, operand 13, single buffered']
    #allocation23 [shape = 'u8[4608]{0}', space=vmem, size = 0x1400, scoped, tag = 'input window, operand 14, single buffered']
    #allocation24 [shape = 's32[1]{0}', space=sflag, size = 0x4, scoped, tag = 'scoped memory for discriminator_forward.1']
    #allocation25 [shape = 'u8[2048]{0}', space=vmem, size = 0x800, scoped, tag = 'input window, operand 15, single buffered']
    %24 = vsyncpa [#allocation4], 0
    %25 = vsyncpa [#allocation6], 0
    %26 = vsyncpa [#allocation9], 0
    %27 = vsyncpa [#allocation12], 0
    %28 = vsyncpa [#allocation15], 0
    %29 = vsyncpa [#allocation18], 0
    %30 = vsyncpa [#allocation21], 0
    %31 = vsyncpa [#allocation24], 0
    // Predicated region
    $region2: #{discriminator_forward.1} parent=1 // pred_check
      _
    $region3: #{discriminator_forward.1} parent=1 // pred_check_branch
      %33 = sbr.rel (0) target = $region5
    $region4: #{discriminator_forward.1} parent=1 // pred_region
      _
    $region5: #{discriminator_forward.1} parent=1 // pred_fallthru
      _
    // Predicated region
    $region6: #{discriminator_forward.1} parent=1 // pred_check
      _
    $region7: #{discriminator_forward.1} parent=1 // pred_check_branch
      %35 = sbr.rel (0) target = $region9
    $region8: #{discriminator_forward.1} parent=1 // pred_region
      %s37 = ssub.s32 256, 256
      %38 = vsyncadd [#allocation4], %s37
      %s39 = sshll.u32 [#allocation3], 4
      %s40 = int_to_ptr.vmem [resolvable:$true] %s39
      %45 = dma.hbm_to_vmem [thread:$0]  %s1, 256, %s40, [#allocation4], 64, 64, 4
    $region9: #{discriminator_forward.1} parent=1 // pred_fallthru
      _
    // Predicated region
    $region10: #{discriminator_forward.1} parent=1 // pred_check
      _
    $region11: #{discriminator_forward.1} parent=1 // pred_check_branch
      %47 = sbr.rel (0) target = $region13
    $region12: #{discriminator_forward.1} parent=1 // pred_region
      %s49 = ssub.s32 16, 16
      %50 = vsyncadd [#allocation6], %s49
      %s52 = sshll.u32 [#allocation5], 4
      %s53 = int_to_ptr.vmem [resolvable:$true] %s52
      %55 = dma.hbm_to_vmem [thread:$0]  %s2, 16, %s53, [#allocation6]
    $region13: #{discriminator_forward.1} parent=1 // pred_fallthru
      _
    // Predicated region
    $region14: #{discriminator_forward.1} parent=1 // pred_check
      _
    $region15: #{discriminator_forward.1} parent=1 // pred_check_branch
      %57 = sbr.rel (0) target = $region17
    $region16: #{discriminator_forward.1} parent=1 // pred_region
      %s59 = ssub.s32 4608, 4608
      %60 = vsyncadd [#allocation6], %s59
      %s61 = sshll.u32 [#allocation7], 4
      %s62 = int_to_ptr.vmem [resolvable:$true] %s61
      %67 = dma.hbm_to_vmem [thread:$0]  %s3, 4608, %s62, [#allocation6], 64, 64, 4
    $region17: #{discriminator_forward.1} parent=1 // pred_fallthru
      _
    // Predicated region
    $region18: #{discriminator_forward.1} parent=1 // pred_check
      _
    $region19: #{discriminator_forward.1} parent=1 // pred_check_branch
      %69 = sbr.rel (0) target = $region21
    $region20: #{discriminator_forward.1} parent=1 // pred_region
      %s71 = ssub.s32 16, 16
      %72 = vsyncadd [#allocation9], %s71
      %s74 = sshll.u32 [#allocation8], 4
      %s75 = int_to_ptr.vmem [resolvable:$true] %s74
      %77 = dma.hbm_to_vmem [thread:$0]  %s4, 16, %s75, [#allocation9]
    $region21: #{discriminator_forward.1} parent=1 // pred_fallthru
      _
    // Predicated region
    $region22: #{discriminator_forward.1} parent=1 // pred_check
      _
    $region23: #{discriminator_forward.1} parent=1 // pred_check_branch
      %79 = sbr.rel (0) target = $region25
    $region24: #{discriminator_forward.1} parent=1 // pred_region
      %s81 = ssub.s32 16, 16
      %82 = vsyncadd [#allocation9], %s81
      %s84 = sshll.u32 [#allocation10], 4
      %s85 = int_to_ptr.vmem [resolvable:$true] %s84
      %87 = dma.hbm_to_vmem [thread:$0]  %s5, 16, %s85, [#allocation9]
    $region25: #{discriminator_forward.1} parent=1 // pred_fallthru
      _
    // Predicated region
    $region26: #{discriminator_forward.1} parent=1 // pred_check
      _
    $region27: #{discriminator_forward.1} parent=1 // pred_check_branch
      %89 = sbr.rel (0) target = $region29
    $region28: #{discriminator_forward.1} parent=1 // pred_region
      %s91 = ssub.s32 2304, 2304
      %92 = vsyncadd [#allocation12], %s91
      %s93 = sshll.u32 [#allocation11], 4
      %s94 = int_to_ptr.vmem [resolvable:$true] %s93
      %99 = dma.hbm_to_vmem [thread:$0]  %s6, 2304, %s94, [#allocation12], 64, 64, 4
    $region29: #{discriminator_forward.1} parent=1 // pred_fallthru
      _
    // Predicated region
    $region30: #{discriminator_forward.1} parent=1 // pred_check
      _
    $region31: #{discriminator_forward.1} parent=1 // pred_check_branch
      %101 = sbr.rel (0) target = $region33
    $region32: #{discriminator_forward.1} parent=1 // pred_region
      %s103 = ssub.s32 18432, 18432
      %104 = vsyncadd [#allocation12], %s103
      %s105 = sshll.u32 [#allocation13], 4
      %s106 = int_to_ptr.vmem [resolvable:$true] %s105
      %111 = dma.hbm_to_vmem [thread:$0]  %s7, 18432, %s106, [#allocation12], 128, 128, 8
    $region33: #{discriminator_forward.1} parent=1 // pred_fallthru
      _
    // Predicated region
    $region34: #{discriminator_forward.1} parent=1 // pred_check
      _
    $region35: #{discriminator_forward.1} parent=1 // pred_check_branch
      %113 = sbr.rel (0) target = $region37
    $region36: #{discriminator_forward.1} parent=1 // pred_region
      %s115 = ssub.s32 32, 32
      %116 = vsyncadd [#allocation15], %s115
      %s118 = sshll.u32 [#allocation14], 4
      %s119 = int_to_ptr.vmem [resolvable:$true] %s118
      %121 = dma.hbm_to_vmem [thread:$0]  %s8, 32, %s119, [#allocation15]
    $region37: #{discriminator_forward.1} parent=1 // pred_fallthru
      _
    // Predicated region
    $region38: #{discriminator_forward.1} parent=1 // pred_check
      _
    $region39: #{discriminator_forward.1} parent=1 // pred_check_branch
      %123 = sbr.rel (0) target = $region41
    $region40: #{discriminator_forward.1} parent=1 // pred_region
      %s125 = ssub.s32 32, 32
      %126 = vsyncadd [#allocation15], %s125
      %s128 = sshll.u32 [#allocation16], 4
      %s129 = int_to_ptr.vmem [resolvable:$true] %s128
      %131 = dma.hbm_to_vmem [thread:$0]  %s9, 32, %s129, [#allocation15]
    $region41: #{discriminator_forward.1} parent=1 // pred_fallthru
      _
    // Predicated region
    $region42: #{discriminator_forward.1} parent=1 // pred_check
      _
    $region43: #{discriminator_forward.1} parent=1 // pred_check_branch
      %133 = sbr.rel (0) target = $region45
    $region44: #{discriminator_forward.1} parent=1 // pred_region
      %s135 = ssub.s32 576, 576
      %136 = vsyncadd [#allocation18], %s135
      %s137 = sshll.u32 [#allocation17], 4
      %s138 = int_to_ptr.vmem [resolvable:$true] %s137
      %143 = dma.hbm_to_vmem [thread:$0]  %s10, 576, %s138, [#allocation18], 64, 64, 4
    $region45: #{discriminator_forward.1} parent=1 // pred_fallthru
      _
    // Predicated region
    $region46: #{discriminator_forward.1} parent=1 // pred_check
      _
    $region47: #{discriminator_forward.1} parent=1 // pred_check_branch
      %145 = sbr.rel (0) target = $region49
    $region48: #{discriminator_forward.1} parent=1 // pred_region
      %s147 = ssub.s32 73728, 73728
      %148 = vsyncadd [#allocation18], %s147
      %s149 = sshll.u32 [#allocation19], 4
      %s150 = int_to_ptr.vmem [resolvable:$true] %s149
      %155 = dma.hbm_to_vmem [thread:$0]  %s11, 73728, %s150, [#allocation18], 256, 256, 16
    $region49: #{discriminator_forward.1} parent=1 // pred_fallthru
      _
    // Predicated region
    $region50: #{discriminator_forward.1} parent=1 // pred_check
      _
    $region51: #{discriminator_forward.1} parent=1 // pred_check_branch
      %157 = sbr.rel (0) target = $region53
    $region52: #{discriminator_forward.1} parent=1 // pred_region
      %s159 = ssub.s32 64, 64
      %160 = vsyncadd [#allocation21], %s159
      %s162 = sshll.u32 [#allocation20], 4
      %s163 = int_to_ptr.vmem [resolvable:$true] %s162
      %165 = dma.hbm_to_vmem [thread:$0]  %s12, 64, %s163, [#allocation21]
    $region53: #{discriminator_forward.1} parent=1 // pred_fallthru
      _
    // Predicated region
    $region54: #{discriminator_forward.1} parent=1 // pred_check
      _
    $region55: #{discriminator_forward.1} parent=1 // pred_check_branch
      %167 = sbr.rel (0) target = $region57
    $region56: #{discriminator_forward.1} parent=1 // pred_region
      %s169 = ssub.s32 64, 64
      %170 = vsyncadd [#allocation21], %s169
      %s172 = sshll.u32 [#allocation22], 4
      %s173 = int_to_ptr.vmem [resolvable:$true] %s172
      %175 = dma.hbm_to_vmem [thread:$0]  %s13, 64, %s173, [#allocation21]
    $region57: #{discriminator_forward.1} parent=1 // pred_fallthru
      _
    // Predicated region
    $region58: #{discriminator_forward.1} parent=1 // pred_check
      _
    $region59: #{discriminator_forward.1} parent=1 // pred_check_branch
      %177 = sbr.rel (0) target = $region61
    $region60: #{discriminator_forward.1} parent=1 // pred_region
      %s179 = ssub.s32 144, 144
      %180 = vsyncadd [#allocation24], %s179
      %s181 = sshll.u32 [#allocation23], 4
      %s182 = int_to_ptr.vmem [resolvable:$true] %s181
      %187 = dma.hbm_to_vmem [thread:$0]  %s14, 144, %s182, [#allocation24], 16, 16, 1
    $region61: #{discriminator_forward.1} parent=1 // pred_fallthru
      _
    // Predicated region
    $region62: #{discriminator_forward.1} parent=1 // pred_check
      _
    $region63: #{discriminator_forward.1} parent=1 // pred_check_branch
      %189 = sbr.rel (0) target = $region65
    $region64: #{discriminator_forward.1} parent=1 // pred_region
      %s191 = ssub.s32 64, 64
      %192 = vsyncadd [#allocation24], %s191
      %s194 = sshll.u32 [#allocation25], 4
      %s195 = int_to_ptr.vmem [resolvable:$true] %s194
      %197 = dma.hbm_to_vmem [thread:$0]  %s15, 64, %s195, [#allocation24]
    $region65: #{discriminator_forward.1} parent=1 // pred_fallthru
      _
    // Predicated region
    $region66: #{discriminator_forward.1} parent=1 // pred_check
      _
    $region67: #{discriminator_forward.1} parent=1 // pred_check_branch
      %199 = sbr.rel (0) target = $region69
    $region68: #{discriminator_forward.1} parent=1 // pred_region
      _
    $region69: #{discriminator_forward.1} parent=1 // pred_fallthru
      _
    // Predicated region
    $region70: #{discriminator_forward.1} parent=1 // pred_check
      _
    $region71: #{discriminator_forward.1} parent=1 // pred_check_branch
      %201 = sbr.rel (0) target = $region73
    $region72: #{discriminator_forward.1} parent=1 // pred_region
      %202 = dma.done [#allocation4], 256
    $region73: #{discriminator_forward.1} parent=1 // pred_fallthru
      _
    // Predicated region
    $region74: #{discriminator_forward.1} parent=1 // pred_check
      _
    $region75: #{discriminator_forward.1} parent=1 // pred_check_branch
      %204 = sbr.rel (0) target = $region77
    $region76: #{discriminator_forward.1} parent=1 // pred_region
      %205 = dma.done [#allocation6], 16
    $region77: #{discriminator_forward.1} parent=1 // pred_fallthru
      _
    // Predicated region
    $region78: #{discriminator_forward.1} parent=1 // pred_check
      _
    $region79: #{discriminator_forward.1} parent=1 // pred_check_branch
      %207 = sbr.rel (0) target = $region81
    $region80: #{discriminator_forward.1} parent=1 // pred_region
      %208 = dma.done [#allocation6], 4608
    $region81: #{discriminator_forward.1} parent=1 // pred_fallthru
      _
    // Predicated region
    $region82: #{discriminator_forward.1} parent=1 // pred_check
      _
    $region83: #{discriminator_forward.1} parent=1 // pred_check_branch
      %210 = sbr.rel (0) target = $region85
    $region84: #{discriminator_forward.1} parent=1 // pred_region
      %211 = dma.done [#allocation9], 16
    $region85: #{discriminator_forward.1} parent=1 // pred_fallthru
      _
    // Predicated region
    $region86: #{discriminator_forward.1} parent=1 // pred_check
      _
    $region87: #{discriminator_forward.1} parent=1 // pred_check_branch
      %213 = sbr.rel (0) target = $region89
    $region88: #{discriminator_forward.1} parent=1 // pred_region
      %214 = dma.done [#allocation9], 16
    $region89: #{discriminator_forward.1} parent=1 // pred_fallthru
      _
    // Predicated region
    $region90: #{discriminator_forward.1} parent=1 // pred_check
      _
    $region91: #{discriminator_forward.1} parent=1 // pred_check_branch
      %216 = sbr.rel (0) target = $region93
    $region92: #{discriminator_forward.1} parent=1 // pred_region
      %217 = dma.done [#allocation12], 2304
    $region93: #{discriminator_forward.1} parent=1 // pred_fallthru
      _
    // Predicated region
    $region94: #{discriminator_forward.1} parent=1 // pred_check
      _
    $region95: #{discriminator_forward.1} parent=1 // pred_check_branch
      %219 = sbr.rel (0) target = $region97
    $region96: #{discriminator_forward.1} parent=1 // pred_region
      %220 = dma.done [#allocation12], 18432
    $region97: #{discriminator_forward.1} parent=1 // pred_fallthru
      _
    // Predicated region
    $region98: #{discriminator_forward.1} parent=1 // pred_check
      _
    $region99: #{discriminator_forward.1} parent=1 // pred_check_branch
      %222 = sbr.rel (0) target = $region101
    $region100: #{discriminator_forward.1} parent=1 // pred_region
      %223 = dma.done [#allocation15], 32
    $region101: #{discriminator_forward.1} parent=1 // pred_fallthru
      _
    // Predicated region
    $region102: #{discriminator_forward.1} parent=1 // pred_check
      _
    $region103: #{discriminator_forward.1} parent=1 // pred_check_branch
      %225 = sbr.rel (0) target = $region105
    $region104: #{discriminator_forward.1} parent=1 // pred_region
      %226 = dma.done [#allocation15], 32
    $region105: #{discriminator_forward.1} parent=1 // pred_fallthru
      _
    // Predicated region
    $region106: #{discriminator_forward.1} parent=1 // pred_check
      _
    $region107: #{discriminator_forward.1} parent=1 // pred_check_branch
      %228 = sbr.rel (0) target = $region109
    $region108: #{discriminator_forward.1} parent=1 // pred_region
      %229 = dma.done [#allocation18], 576
    $region109: #{discriminator_forward.1} parent=1 // pred_fallthru
      _
    // Predicated region
    $region110: #{discriminator_forward.1} parent=1 // pred_check
      _
    $region111: #{discriminator_forward.1} parent=1 // pred_check_branch
      %231 = sbr.rel (0) target = $region113
    $region112: #{discriminator_forward.1} parent=1 // pred_region
      %232 = dma.done [#allocation18], 73728
    $region113: #{discriminator_forward.1} parent=1 // pred_fallthru
      _
    // Predicated region
    $region114: #{discriminator_forward.1} parent=1 // pred_check
      _
    $region115: #{discriminator_forward.1} parent=1 // pred_check_branch
      %234 = sbr.rel (0) target = $region117
    $region116: #{discriminator_forward.1} parent=1 // pred_region
      %235 = dma.done [#allocation21], 64
    $region117: #{discriminator_forward.1} parent=1 // pred_fallthru
      _
    // Predicated region
    $region118: #{discriminator_forward.1} parent=1 // pred_check
      _
    $region119: #{discriminator_forward.1} parent=1 // pred_check_branch
      %237 = sbr.rel (0) target = $region121
    $region120: #{discriminator_forward.1} parent=1 // pred_region
      %238 = dma.done [#allocation21], 64
    $region121: #{discriminator_forward.1} parent=1 // pred_fallthru
      _
    // Predicated region
    $region122: #{discriminator_forward.1} parent=1 // pred_check
      _
    $region123: #{discriminator_forward.1} parent=1 // pred_check_branch
      %240 = sbr.rel (0) target = $region125
    $region124: #{discriminator_forward.1} parent=1 // pred_region
      %241 = dma.done [#allocation24], 144
    $region125: #{discriminator_forward.1} parent=1 // pred_fallthru
      _
    // Predicated region
    $region126: #{discriminator_forward.1} parent=1 // pred_check
      _
    $region127: #{discriminator_forward.1} parent=1 // pred_check_branch
      %243 = sbr.rel (0) target = $region129
    $region128: #{discriminator_forward.1} parent=1 // pred_region
      %244 = dma.done [#allocation24], 64
    $region129: #{discriminator_forward.1} parent=1 // pred_fallthru
      _
    %v246 = vld [vmem:[%s0] sm:$0xf]
    %v247 = vld [vmem:[%s0 + $0x4] sm:$0xf]
    %v248 = vld [vmem:[%s0 + $0x8] sm:$0xf]
    %v249 = vld [vmem:[%s0 + $0xc] sm:$0xf]
    %v250 = vld [vmem:[%s0 + $0x10] sm:$0xf]
    %v251 = vld [vmem:[%s0 + $0x14] sm:$0xf]
    %v252 = vld [vmem:[%s0 + $0x18] sm:$0xf]
    %v253 = vld [vmem:[%s0 + $0x1c] sm:$0xf]
    %v254 = vld [vmem:[%s0 + $0x20] sm:$0xf]
    %v255 = vld [vmem:[%s0 + $0x24] sm:$0xf]
    %v256 = vld [vmem:[%s0 + $0x28] sm:$0xf]
    %v257 = vld [vmem:[%s0 + $0x2c] sm:$0xf]
    %v258 = vld [vmem:[%s0 + $0x30] sm:$0xf]
    %v259 = vld [vmem:[%s0 + $0x34] sm:$0xf]
    %v260 = vld [vmem:[%s0 + $0x38] sm:$0xf]
    %v261 = vld [vmem:[%s0 + $0x3c] sm:$0xf]
    %v262 = vld [vmem:[#allocation3] sm:$0xf]
    %v263 = vld [vmem:[#allocation3 + $0x4] sm:$0xf]
    %v264 = vld [vmem:[#allocation3 + $0x8] sm:$0xf]
    %v265 = vld [vmem:[#allocation3 + $0xc] sm:$0xf]
    %v266 = vld [vmem:[#allocation5] sm:$0x1]
    %v268 = vlaneseq
    %v269 = vshrl.u32 %v268, 7
    %v270 = vsub.s32 0, %v269
    %v271 = vrot.slane %v266, %v270
    %v289 = vunpack.c.l.b16 %v246
    %v290 = vunpack.c.l.b16 %v247
    %v291 = vunpack.c.l.b16 %v248
    %v292 = vunpack.c.l.b16 %v249
    %v293 = vunpack.c.l.b16 %v250
    %v294 = vunpack.c.l.b16 %v251
    %v295 = vunpack.c.l.b16 %v252
    %v296 = vunpack.c.l.b16 %v253
    %v297 = vunpack.c.l.b16 %v254
    %v298 = vunpack.c.l.b16 %v255
    %v299 = vunpack.c.l.b16 %v256
    %v300 = vunpack.c.l.b16 %v257
    %v301 = vunpack.c.l.b16 %v258
    %v302 = vunpack.c.l.b16 %v259
    %v303 = vunpack.c.l.b16 %v260
    %v304 = vunpack.c.l.b16 %v261
    %v305 = vpack.c.b16 %v290, %v289
    %v306 = vpack.c.b16 %v292, %v291
    %v307 = vpack.c.b16 %v294, %v293
    %v308 = vpack.c.b16 %v296, %v295
    %v309 = vpack.c.b16 %v298, %v297
    %v310 = vpack.c.b16 %v300, %v299
    %v311 = vpack.c.b16 %v302, %v301
    %v312 = vpack.c.b16 %v304, %v303
    %v317 = vunpack.c.l.b16 %v262
    %v318 = vunpack.c.l.b16 %v263
    %v319 = vunpack.c.l.b16 %v264
    %v320 = vunpack.c.l.b16 %v265
    %v321 = vpack.c.b16 %v318, %v317
    %v322 = vpack.c.b16 %v320, %v319
    %vm325 = vcmask 261120
    %v327 = vsel %vm325, %v305, 0
    %v330 = vsel %vm325, %v306, 0
    %v333 = vsel %vm325, %v307, 0
    %v336 = vsel %vm325, %v308, 0
    %v339 = vsel %vm325, %v309, 0
    %v342 = vsel %vm325, %v310, 0
    %v345 = vsel %vm325, %v311, 0
    %v348 = vsel %vm325, %v312, 0
    %350 = vmatprep.subr.bf16.mxu0 0
    %351 = vmatpush1.bf16.msra.mxu0 %v321
    %352 = vmatprep.subr.bf16.mxu0 0
    %353 = vmatpush1.bf16.msra.mxu0 %v322
    %354 = vmatprep.subr.bf16.mxu0 0
    %355 = vmatpush1.bf16.msra.mxu0 0
    %356 = vmatprep.subr.bf16.mxu0 0
    %357 = vmatpush1.bf16.msra.mxu0 0
    %358 = vmatprep.subr.bf16.mxu0 0
    %359 = vmatpush1.bf16.msra.mxu0 0
    %360 = vmatprep.subr.bf16.mxu0 0
    %361 = vmatpush1.bf16.msra.mxu0 0
    %362 = vmatprep.subr.bf16.mxu0 0
    %363 = vmatpush1.bf16.msra.mxu0 0
    %364 = vmatprep.subr.bf16.mxu0 0
    %365 = vmatpush1.bf16.msra.mxu0 0
    %366 = vmatprep.subr.bf16.mxu0 0
    %367 = vmatpush1.bf16.msra.mxu0 0
    %368 = vmatprep.subr.bf16.mxu0 0
    %369 = vmatpush1.bf16.msra.mxu0 0
    %370 = vmatprep.subr.bf16.mxu0 0
    %371 = vmatpush1.bf16.msra.mxu0 0
    %372 = vmatprep.subr.bf16.mxu0 0
    %373 = vmatpush1.bf16.msra.mxu0 0
    %374 = vmatprep.subr.bf16.mxu0 0
    %375 = vmatpush1.bf16.msra.mxu0 0
    %376 = vmatprep.subr.bf16.mxu0 0
    %377 = vmatpush1.bf16.msra.mxu0 0
    %378 = vmatprep.subr.bf16.mxu0 0
    %379 = vmatpush1.bf16.msra.mxu0 0
    %380 = vmatprep.subr.bf16.mxu0 0
    %381 = vmatpush1.bf16.msra.mxu0 0
    %382 = vmatprep.mubr.bf16.mxu0 0
    %383 = vmatmul.mubr.bf16.gmra.mrb[0].mxu0 %v327
    %v384 = vpop.f32.mrb[0].mxu0
    %v385 = vadd.f32 %v271, %v384
    %v386 = vpop.f32.mrb[0].mxu0
    %v387 = vpop.f32.mrb[0].mxu0
    %v388 = vadd.f32 %v271, %v387
    %v389 = vpop.f32.mrb[0].mxu0
    %390 = vmatprep.mubr.bf16.mxu0 0
    %391 = vmatmul.mubr.bf16.gmra.mrb[0].mxu0 %v330
    %v392 = vpop.f32.mrb[0].mxu0
    %v393 = vadd.f32 %v271, %v392
    %v394 = vpop.f32.mrb[0].mxu0
    %v395 = vpop.f32.mrb[0].mxu0
    %v396 = vadd.f32 %v271, %v395
    %v397 = vpop.f32.mrb[0].mxu0
    %398 = vmatprep.mubr.bf16.mxu0 0
    %399 = vmatmul.mubr.bf16.gmra.mrb[0].mxu0 %v333
    %v400 = vpop.f32.mrb[0].mxu0
    %v401 = vadd.f32 %v271, %v400
    %v402 = vpop.f32.mrb[0].mxu0
    %v403 = vpop.f32.mrb[0].mxu0
    %v404 = vadd.f32 %v271, %v403
    %v405 = vpop.f32.mrb[0].mxu0
    %406 = vmatprep.mubr.bf16.mxu0 0
    %407 = vmatmul.mubr.bf16.gmra.mrb[0].mxu0 %v336
    %v408 = vpop.f32.mrb[0].mxu0
    %v409 = vadd.f32 %v271, %v408
    %v410 = vpop.f32.mrb[0].mxu0
    %v411 = vpop.f32.mrb[0].mxu0
    %v412 = vadd.f32 %v271, %v411
    %v413 = vpop.f32.mrb[0].mxu0
    %414 = vmatprep.mubr.bf16.mxu0 0
    %415 = vmatmul.mubr.bf16.gmra.mrb[0].mxu0 %v339
    %v416 = vpop.f32.mrb[0].mxu0
    %v417 = vadd.f32 %v271, %v416
    %v418 = vpop.f32.mrb[0].mxu0
    %v419 = vpop.f32.mrb[0].mxu0
    %v420 = vadd.f32 %v271, %v419
    %v421 = vpop.f32.mrb[0].mxu0
    %422 = vmatprep.mubr.bf16.mxu0 0
    %423 = vmatmul.mubr.bf16.gmra.mrb[0].mxu0 %v342
    %v424 = vpop.f32.mrb[0].mxu0
    %v425 = vadd.f32 %v271, %v424
    %v426 = vpop.f32.mrb[0].mxu0
    %v427 = vpop.f32.mrb[0].mxu0
    %v428 = vadd.f32 %v271, %v427
    %v429 = vpop.f32.mrb[0].mxu0
    %430 = vmatprep.mubr.bf16.mxu0 0
    %431 = vmatmul.mubr.bf16.gmra.mrb[0].mxu0 %v345
    %v432 = vpop.f32.mrb[0].mxu0
    %v433 = vadd.f32 %v271, %v432
    %v434 = vpop.f32.mrb[0].mxu0
    %v435 = vpop.f32.mrb[0].mxu0
    %v436 = vadd.f32 %v271, %v435
    %v437 = vpop.f32.mrb[0].mxu0
    %438 = vmatprep.mubr.bf16.mxu0 0
    %439 = vmatmul.mubr.bf16.gmra.mrb[0].mxu0 %v348
    %v440 = vpop.f32.mrb[0].mxu0
    %v441 = vadd.f32 %v271, %v440
    %v442 = vpop.f32.mrb[0].mxu0
    %v443 = vpop.f32.mrb[0].mxu0
    %v444 = vadd.f32 %v271, %v443
    %v445 = vpop.f32.mrb[0].mxu0
    %446 = vdwg.mxu0
    %vm447 = vcmp.ge.f32.partialorder %v385, 0.0
    %vm448 = vcmp.ge.f32.partialorder %v388, 0.0
    %vm449 = vcmp.ge.f32.partialorder %v393, 0.0
    %vm450 = vcmp.ge.f32.partialorder %v396, 0.0
    %vm451 = vcmp.ge.f32.partialorder %v401, 0.0
    %vm452 = vcmp.ge.f32.partialorder %v404, 0.0
    %vm453 = vcmp.ge.f32.partialorder %v409, 0.0
    %vm454 = vcmp.ge.f32.partialorder %v412, 0.0
    %vm455 = vcmp.ge.f32.partialorder %v417, 0.0
    %vm456 = vcmp.ge.f32.partialorder %v420, 0.0
    %vm457 = vcmp.ge.f32.partialorder %v425, 0.0
    %vm458 = vcmp.ge.f32.partialorder %v428, 0.0
    %vm459 = vcmp.ge.f32.partialorder %v433, 0.0
    %vm460 = vcmp.ge.f32.partialorder %v436, 0.0
    %vm461 = vcmp.ge.f32.partialorder %v441, 0.0
    %vm462 = vcmp.ge.f32.partialorder %v444, 0.0
    %v463 = vmul.f32 %v385, 0.2
    %v464 = vmul.f32 %v388, 0.2
    %v465 = vmul.f32 %v393, 0.2
    %v466 = vmul.f32 %v396, 0.2
    %v467 = vmul.f32 %v401, 0.2
    %v468 = vmul.f32 %v404, 0.2
    %v469 = vmul.f32 %v409, 0.2
    %v470 = vmul.f32 %v412, 0.2
    %v471 = vmul.f32 %v417, 0.2
    %v472 = vmul.f32 %v420, 0.2
    %v473 = vmul.f32 %v425, 0.2
    %v474 = vmul.f32 %v428, 0.2
    %v475 = vmul.f32 %v433, 0.2
    %v476 = vmul.f32 %v436, 0.2
    %v477 = vmul.f32 %v441, 0.2
    %v478 = vmul.f32 %v444, 0.2
    %v479 = vsel %vm447, %v385, %v463
    %v480 = vsel %vm448, %v388, %v464
    %v481 = vsel %vm449, %v393, %v465
    %v482 = vsel %vm450, %v396, %v466
    %v483 = vsel %vm451, %v401, %v467
    %v484 = vsel %vm452, %v404, %v468
    %v485 = vsel %vm453, %v409, %v469
    %v486 = vsel %vm454, %v412, %v470
    %v487 = vsel %vm455, %v417, %v471
    %v488 = vsel %vm456, %v420, %v472
    %v489 = vsel %vm457, %v425, %v473
    %v490 = vsel %vm458, %v428, %v474
    %v491 = vsel %vm459, %v433, %v475
    %v492 = vsel %vm460, %v436, %v476
    %v493 = vsel %vm461, %v441, %v477
    %v494 = vsel %vm462, %v444, %v478
    %v495 = vpack.c.bf16 %v480, %v479
    %v496 = vpack.c.bf16 %v482, %v481
    %v497 = vpack.c.bf16 %v484, %v483
    %v498 = vpack.c.bf16 %v486, %v485
    %v499 = vpack.c.bf16 %v488, %v487
    %v500 = vpack.c.bf16 %v490, %v489
    %v501 = vpack.c.bf16 %v492, %v491
    %v502 = vpack.c.bf16 %v494, %v493
    %v503 = vld [vmem:[#allocation11] sm:$0xf]
    %v504 = vld [vmem:[#allocation11 + $0x4] sm:$0xf]
    %v505 = vld [vmem:[#allocation11 + $0x8] sm:$0xf]
    %v506 = vld [vmem:[#allocation11 + $0xc] sm:$0xf]
    %v511 = vunpack.c.l.b16 %v503
    %v512 = vunpack.c.l.b16 %v504
    %v513 = vunpack.c.l.b16 %v505
    %v514 = vunpack.c.l.b16 %v506
    %v515 = vpack.c.b16 %v512, %v511
    %v516 = vpack.c.b16 %v514, %v513
    %519 = vmatprep.subr.bf16.mxu0 0
    %520 = vmatpush1.bf16.msra.mxu0 %v495
    %521 = vmatprep.subr.bf16.mxu0 0
    %522 = vmatpush1.bf16.msra.mxu0 %v496
    %523 = vmatprep.subr.bf16.mxu0 0
    %524 = vmatpush1.bf16.msra.mxu0 %v497
    %525 = vmatprep.subr.bf16.mxu0 0
    %526 = vmatpush1.bf16.msra.mxu0 %v498
    %527 = vmatprep.subr.bf16.mxu0 0
    %528 = vmatpush1.bf16.msra.mxu0 %v499
    %529 = vmatprep.subr.bf16.mxu0 0
    %530 = vmatpush1.bf16.msra.mxu0 %v500
    %531 = vmatprep.subr.bf16.mxu0 0
    %532 = vmatpush1.bf16.msra.mxu0 %v501
    %533 = vmatprep.subr.bf16.mxu0 0
    %534 = vmatpush1.bf16.msra.mxu0 %v502
    %535 = vmatprep.subr.bf16.mxu0 0
    %536 = vmatpush1.bf16.msra.mxu0 0
    %537 = vmatprep.subr.bf16.mxu0 0
    %538 = vmatpush1.bf16.msra.mxu0 0
    %539 = vmatprep.subr.bf16.mxu0 0
    %540 = vmatpush1.bf16.msra.mxu0 0
    %541 = vmatprep.subr.bf16.mxu0 0
    %542 = vmatpush1.bf16.msra.mxu0 0
    %543 = vmatprep.subr.bf16.mxu0 0
    %544 = vmatpush1.bf16.msra.mxu0 0
    %545 = vmatprep.subr.bf16.mxu0 0
    %546 = vmatpush1.bf16.msra.mxu0 0
    %547 = vmatprep.subr.bf16.mxu0 0
    %548 = vmatpush1.bf16.msra.mxu0 0
    %549 = vmatprep.subr.bf16.mxu0 0
    %550 = vmatpush1.bf16.msra.mxu0 0
    %551 = vmatprep.mubr.bf16.mxu0 0
    %552 = vmatmul.mubr.bf16.gmra.mrb[0].mxu0 %v515
    %v553 = vpop.f32.mrb[0].mxu0
    %v554 = vadd.f32 0.0, %v553
    %v555 = vpop.f32.mrb[0].mxu0
    %v556 = vpop.f32.mrb[0].mxu0
    %v557 = vadd.f32 0.0, %v556
    %v558 = vpop.f32.mrb[0].mxu0
    %559 = vmatprep.mubr.bf16.mxu0 0
    %560 = vmatmul.mubr.bf16.gmra.mrb[0].mxu0 %v516
    %v561 = vpop.f32.mrb[0].mxu0
    %v562 = vadd.f32 0.0, %v561
    %v563 = vpop.f32.mrb[0].mxu0
    %v564 = vpop.f32.mrb[0].mxu0
    %v565 = vadd.f32 0.0, %v564
    %v566 = vpop.f32.mrb[0].mxu0
    %567 = vdwg.mxu0
    %v568 = vpack.c.bf16 %v557, %v554
    %v569 = vpack.c.bf16 %v565, %v562
    %v570 = vld [vmem:[#allocation7] sm:$0xf]
    %v571 = vld [vmem:[#allocation7 + $0x4] sm:$0xf]
    %v572 = vld [vmem:[#allocation7 + $0x8] sm:$0xf]
    %v573 = vld [vmem:[#allocation7 + $0xc] sm:$0xf]
    %v574 = vld [vmem:[#allocation7 + $0x10] sm:$0xf]
    %v575 = vld [vmem:[#allocation7 + $0x14] sm:$0xf]
    %v576 = vld [vmem:[#allocation7 + $0x18] sm:$0xf]
    %v577 = vld [vmem:[#allocation7 + $0x1c] sm:$0xf]
    %s578 = scalar_lea.vmem [#allocation11], 16
    %v579 = vld [vmem:[%s578] sm:$0xf]
    %v580 = vld [vmem:[%s578 + $0x4] sm:$0xf]
    %v581 = vld [vmem:[%s578 + $0x8] sm:$0xf]
    %v582 = vld [vmem:[%s578 + $0xc] sm:$0xf]
    %v587 = vunpack.c.l.b16 %v579
    %v588 = vunpack.c.l.b16 %v580
    %v589 = vunpack.c.l.b16 %v581
    %v590 = vunpack.c.l.b16 %v582
    %v591 = vpack.c.b16 %v588, %v587
    %v592 = vpack.c.b16 %v590, %v589
    %595 = vmatprep.subr.bf16.mxu0 0
    %596 = vmatpush1.bf16.msra.mxu0 %v495
    %597 = vmatprep.subr.bf16.mxu0 0
    %598 = vmatpush1.bf16.msra.mxu0 %v496
    %599 = vmatprep.subr.bf16.mxu0 0
    %600 = vmatpush1.bf16.msra.mxu0 %v497
    %601 = vmatprep.subr.bf16.mxu0 0
    %602 = vmatpush1.bf16.msra.mxu0 %v498
    %603 = vmatprep.subr.bf16.mxu0 0
    %604 = vmatpush1.bf16.msra.mxu0 %v499
    %605 = vmatprep.subr.bf16.mxu0 0
    %606 = vmatpush1.bf16.msra.mxu0 %v500
    %607 = vmatprep.subr.bf16.mxu0 0
    %608 = vmatpush1.bf16.msra.mxu0 %v501
    %609 = vmatprep.subr.bf16.mxu0 0
    %610 = vmatpush1.bf16.msra.mxu0 %v502
    %611 = vmatprep.subr.bf16.mxu0 0
    %612 = vmatpush1.bf16.msra.mxu0 0
    %613 = vmatprep.subr.bf16.mxu0 0
    %614 = vmatpush1.bf16.msra.mxu0 0
    %615 = vmatprep.subr.bf16.mxu0 0
    %616 = vmatpush1.bf16.msra.mxu0 0
    %617 = vmatprep.subr.bf16.mxu0 0
    %618 = vmatpush1.bf16.msra.mxu0 0
    %619 = vmatprep.subr.bf16.mxu0 0
    %620 = vmatpush1.bf16.msra.mxu0 0
    %621 = vmatprep.subr.bf16.mxu0 0
    %622 = vmatpush1.bf16.msra.mxu0 0
    %623 = vmatprep.subr.bf16.mxu0 0
    %624 = vmatpush1.bf16.msra.mxu0 0
    %625 = vmatprep.subr.bf16.mxu0 0
    %626 = vmatpush1.bf16.msra.mxu0 0
    %627 = vmatprep.mubr.bf16.mxu0 0
    %628 = vmatmul.mubr.bf16.gmra.mrb[0].mxu0 %v591
    %v629 = vpop.f32.mrb[0].mxu0
    %v630 = vadd.f32 0.0, %v629
    %v631 = vpop.f32.mrb[0].mxu0
    %v632 = vpop.f32.mrb[0].mxu0
    %v633 = vadd.f32 0.0, %v632
    %v634 = vpop.f32.mrb[0].mxu0
    %635 = vmatprep.mubr.bf16.mxu0 0
    %636 = vmatmul.mubr.bf16.gmra.mrb[0].mxu0 %v592
    %v637 = vpop.f32.mrb[0].mxu0
    %v638 = vadd.f32 0.0, %v637
    %v639 = vpop.f32.mrb[0].mxu0
    %v640 = vpop.f32.mrb[0].mxu0
    %v641 = vadd.f32 0.0, %v640
    %v642 = vpop.f32.mrb[0].mxu0
    %643 = vdwg.mxu0
    %v644 = vpack.c.bf16 %v633, %v630
    %v645 = vpack.c.bf16 %v641, %v638
    %s646 = scalar_lea.vmem [#allocation7], 32
    %v647 = vld [vmem:[%s646] sm:$0xf]
    %v648 = vld [vmem:[%s646 + $0x4] sm:$0xf]
    %v649 = vld [vmem:[%s646 + $0x8] sm:$0xf]
    %v650 = vld [vmem:[%s646 + $0xc] sm:$0xf]
    %v651 = vld [vmem:[%s646 + $0x10] sm:$0xf]
    %v652 = vld [vmem:[%s646 + $0x14] sm:$0xf]
    %v653 = vld [vmem:[%s646 + $0x18] sm:$0xf]
    %v654 = vld [vmem:[%s646 + $0x1c] sm:$0xf]
    %v663 = vunpack.c.l.b16 %v647
    %v664 = vunpack.c.l.b16 %v648
    %v665 = vunpack.c.l.b16 %v649
    %v666 = vunpack.c.l.b16 %v650
    %v667 = vunpack.c.l.b16 %v651
    %v668 = vunpack.c.l.b16 %v652
    %v669 = vunpack.c.l.b16 %v653
    %v670 = vunpack.c.l.b16 %v654
    %v671 = vpack.c.b16 %v664, %v663
    %v672 = vpack.c.b16 %v666, %v665
    %v673 = vpack.c.b16 %v668, %v667
    %v674 = vpack.c.b16 %v670, %v669
    %vm679 = vcmask 523264
    %v681 = vsel %vm679, %v644, 0
    %v684 = vsel %vm679, %v645, 0
    %686 = vmatprep.subr.bf16.mxu0 0
    %687 = vmatpush1.bf16.msra.mxu0 %v671
    %688 = vmatprep.subr.bf16.mxu0 0
    %689 = vmatpush1.bf16.msra.mxu0 %v672
    %690 = vmatprep.subr.bf16.mxu0 0
    %691 = vmatpush1.bf16.msra.mxu0 %v673
    %692 = vmatprep.subr.bf16.mxu0 0
    %693 = vmatpush1.bf16.msra.mxu0 %v674
    %694 = vmatprep.subr.bf16.mxu0 0
    %695 = vmatpush1.bf16.msra.mxu0 0
    %696 = vmatprep.subr.bf16.mxu0 0
    %697 = vmatpush1.bf16.msra.mxu0 0
    %698 = vmatprep.subr.bf16.mxu0 0
    %699 = vmatpush1.bf16.msra.mxu0 0
    %700 = vmatprep.subr.bf16.mxu0 0
    %701 = vmatpush1.bf16.msra.mxu0 0
    %702 = vmatprep.subr.bf16.mxu0 0
    %703 = vmatpush1.bf16.msra.mxu0 0
    %704 = vmatprep.subr.bf16.mxu0 0
    %705 = vmatpush1.bf16.msra.mxu0 0
    %706 = vmatprep.subr.bf16.mxu0 0
    %707 = vmatpush1.bf16.msra.mxu0 0
    %708 = vmatprep.subr.bf16.mxu0 0
    %709 = vmatpush1.bf16.msra.mxu0 0
    %710 = vmatprep.subr.bf16.mxu0 0
    %711 = vmatpush1.bf16.msra.mxu0 0
    %712 = vmatprep.subr.bf16.mxu0 0
    %713 = vmatpush1.bf16.msra.mxu0 0
    %714 = vmatprep.subr.bf16.mxu0 0
    %715 = vmatpush1.bf16.msra.mxu0 0
    %716 = vmatprep.subr.bf16.mxu0 0
    %717 = vmatpush1.bf16.msra.mxu0 0
    %718 = vmatprep.mubr.bf16.mxu0 0
    %719 = vmatmul.mubr.bf16.gmra.mrb[0].mxu0 %v681
    %v720 = vpop.f32.mrb[0].mxu0
    %v721 = vadd.f32 0.0, %v720
    %v722 = vpop.f32.mrb[0].mxu0
    %v723 = vpop.f32.mrb[0].mxu0
    %v724 = vadd.f32 0.0, %v723
    %v725 = vpop.f32.mrb[0].mxu0
    %726 = vmatprep.mubr.bf16.mxu0 0
    %727 = vmatmul.mubr.bf16.gmra.mrb[0].mxu0 %v684
    %v728 = vpop.f32.mrb[0].mxu0
    %v729 = vadd.f32 0.0, %v728
    %v730 = vpop.f32.mrb[0].mxu0
    %v731 = vpop.f32.mrb[0].mxu0
    %v732 = vadd.f32 0.0, %v731
    %v733 = vpop.f32.mrb[0].mxu0
    %734 = vdwg.mxu0
    %v743 = vunpack.c.l.b16 %v570
    %v744 = vunpack.c.l.b16 %v571
    %v745 = vunpack.c.l.b16 %v572
    %v746 = vunpack.c.l.b16 %v573
    %v747 = vunpack.c.l.b16 %v574
    %v748 = vunpack.c.l.b16 %v575
    %v749 = vunpack.c.l.b16 %v576
    %v750 = vunpack.c.l.b16 %v577
    %v751 = vpack.c.b16 %v744, %v743
    %v752 = vpack.c.b16 %v746, %v745
    %v753 = vpack.c.b16 %v748, %v747
    %v754 = vpack.c.b16 %v750, %v749
    %v760 = vsel %vm679, %v568, 0
    %v763 = vsel %vm679, %v569, 0
    %765 = vmatprep.subr.bf16.mxu0 0
    %766 = vmatpush1.bf16.msra.mxu0 %v751
    %767 = vmatprep.subr.bf16.mxu0 0
    %768 = vmatpush1.bf16.msra.mxu0 %v752
    %769 = vmatprep.subr.bf16.mxu0 0
    %770 = vmatpush1.bf16.msra.mxu0 %v753
    %771 = vmatprep.subr.bf16.mxu0 0
    %772 = vmatpush1.bf16.msra.mxu0 %v754
    %773 = vmatprep.subr.bf16.mxu0 0
    %774 = vmatpush1.bf16.msra.mxu0 0
    %775 = vmatprep.subr.bf16.mxu0 0
    %776 = vmatpush1.bf16.msra.mxu0 0
    %777 = vmatprep.subr.bf16.mxu0 0
    %778 = vmatpush1.bf16.msra.mxu0 0
    %779 = vmatprep.subr.bf16.mxu0 0
    %780 = vmatpush1.bf16.msra.mxu0 0
    %781 = vmatprep.subr.bf16.mxu0 0
    %782 = vmatpush1.bf16.msra.mxu0 0
    %783 = vmatprep.subr.bf16.mxu0 0
    %784 = vmatpush1.bf16.msra.mxu0 0
    %785 = vmatprep.subr.bf16.mxu0 0
    %786 = vmatpush1.bf16.msra.mxu0 0
    %787 = vmatprep.subr.bf16.mxu0 0
    %788 = vmatpush1.bf16.msra.mxu0 0
    %789 = vmatprep.subr.bf16.mxu0 0
    %790 = vmatpush1.bf16.msra.mxu0 0
    %791 = vmatprep.subr.bf16.mxu0 0
    %792 = vmatpush1.bf16.msra.mxu0 0
    %793 = vmatprep.subr.bf16.mxu0 0
    %794 = vmatpush1.bf16.msra.mxu0 0
    %795 = vmatprep.subr.bf16.mxu0 0
    %796 = vmatpush1.bf16.msra.mxu0 0
    %797 = vmatprep.mubr.bf16.mxu0 0
    %798 = vmatmul.mubr.bf16.gmra.mrb[0].mxu0 %v760
    %v799 = vpop.f32.mrb[0].mxu0
    %v800 = vadd.f32 %v721, %v799
    %v801 = vpop.f32.mrb[0].mxu0
    %v802 = vpop.f32.mrb[0].mxu0
    %v803 = vadd.f32 %v724, %v802
    %v804 = vpop.f32.mrb[0].mxu0
    %805 = vmatprep.mubr.bf16.mxu0 0
    %806 = vmatmul.mubr.bf16.gmra.mrb[0].mxu0 %v763
    %v807 = vpop.f32.mrb[0].mxu0
    %v808 = vadd.f32 %v729, %v807
    %v809 = vpop.f32.mrb[0].mxu0
    %v810 = vpop.f32.mrb[0].mxu0
    %v811 = vadd.f32 %v732, %v810
    %v812 = vpop.f32.mrb[0].mxu0
    %813 = vdwg.mxu0
    %s814 = scalar_lea.vmem [#allocation11], 32
    %v815 = vld [vmem:[%s814] sm:$0xf]
    %v816 = vld [vmem:[%s814 + $0x4] sm:$0xf]
    %v817 = vld [vmem:[%s814 + $0x8] sm:$0xf]
    %v818 = vld [vmem:[%s814 + $0xc] sm:$0xf]
    %v823 = vunpack.c.l.b16 %v815
    %v824 = vunpack.c.l.b16 %v816
    %v825 = vunpack.c.l.b16 %v817
    %v826 = vunpack.c.l.b16 %v818
    %v827 = vpack.c.b16 %v824, %v823
    %v828 = vpack.c.b16 %v826, %v825
    %831 = vmatprep.subr.bf16.mxu0 0
    %832 = vmatpush1.bf16.msra.mxu0 %v495
    %833 = vmatprep.subr.bf16.mxu0 0
    %834 = vmatpush1.bf16.msra.mxu0 %v496
    %835 = vmatprep.subr.bf16.mxu0 0
    %836 = vmatpush1.bf16.msra.mxu0 %v497
    %837 = vmatprep.subr.bf16.mxu0 0
    %838 = vmatpush1.bf16.msra.mxu0 %v498
    %839 = vmatprep.subr.bf16.mxu0 0
    %840 = vmatpush1.bf16.msra.mxu0 %v499
    %841 = vmatprep.subr.bf16.mxu0 0
    %842 = vmatpush1.bf16.msra.mxu0 %v500
    %843 = vmatprep.subr.bf16.mxu0 0
    %844 = vmatpush1.bf16.msra.mxu0 %v501
    %845 = vmatprep.subr.bf16.mxu0 0
    %846 = vmatpush1.bf16.msra.mxu0 %v502
    %847 = vmatprep.subr.bf16.mxu0 0
    %848 = vmatpush1.bf16.msra.mxu0 0
    %849 = vmatprep.subr.bf16.mxu0 0
    %850 = vmatpush1.bf16.msra.mxu0 0
    %851 = vmatprep.subr.bf16.mxu0 0
    %852 = vmatpush1.bf16.msra.mxu0 0
    %853 = vmatprep.subr.bf16.mxu0 0
    %854 = vmatpush1.bf16.msra.mxu0 0
    %855 = vmatprep.subr.bf16.mxu0 0
    %856 = vmatpush1.bf16.msra.mxu0 0
    %857 = vmatprep.subr.bf16.mxu0 0
    %858 = vmatpush1.bf16.msra.mxu0 0
    %859 = vmatprep.subr.bf16.mxu0 0
    %860 = vmatpush1.bf16.msra.mxu0 0
    %861 = vmatprep.subr.bf16.mxu0 0
    %862 = vmatpush1.bf16.msra.mxu0 0
    %863 = vmatprep.mubr.bf16.mxu0 0
    %864 = vmatmul.mubr.bf16.gmra.mrb[0].mxu0 %v827
    %v865 = vpop.f32.mrb[0].mxu0
    %v866 = vadd.f32 0.0, %v865
    %v867 = vpop.f32.mrb[0].mxu0
    %v868 = vpop.f32.mrb[0].mxu0
    %v869 = vadd.f32 0.0, %v868
    %v870 = vpop.f32.mrb[0].mxu0
    %871 = vmatprep.mubr.bf16.mxu0 0
    %872 = vmatmul.mubr.bf16.gmra.mrb[0].mxu0 %v828
    %v873 = vpop.f32.mrb[0].mxu0
    %v874 = vadd.f32 0.0, %v873
    %v875 = vpop.f32.mrb[0].mxu0
    %v876 = vpop.f32.mrb[0].mxu0
    %v877 = vadd.f32 0.0, %v876
    %v878 = vpop.f32.mrb[0].mxu0
    %879 = vdwg.mxu0
    %v880 = vpack.c.bf16 %v869, %v866
    %v881 = vpack.c.bf16 %v877, %v874
    %s882 = scalar_lea.vmem [#allocation7], 64
    %v883 = vld [vmem:[%s882] sm:$0xf]
    %v884 = vld [vmem:[%s882 + $0x4] sm:$0xf]
    %v885 = vld [vmem:[%s882 + $0x8] sm:$0xf]
    %v886 = vld [vmem:[%s882 + $0xc] sm:$0xf]
    %v887 = vld [vmem:[%s882 + $0x10] sm:$0xf]
    %v888 = vld [vmem:[%s882 + $0x14] sm:$0xf]
    %v889 = vld [vmem:[%s882 + $0x18] sm:$0xf]
    %v890 = vld [vmem:[%s882 + $0x1c] sm:$0xf]
    %v899 = vunpack.c.l.b16 %v883
    %v900 = vunpack.c.l.b16 %v884
    %v901 = vunpack.c.l.b16 %v885
    %v902 = vunpack.c.l.b16 %v886
    %v903 = vunpack.c.l.b16 %v887
    %v904 = vunpack.c.l.b16 %v888
    %v905 = vunpack.c.l.b16 %v889
    %v906 = vunpack.c.l.b16 %v890
    %v907 = vpack.c.b16 %v900, %v899
    %v908 = vpack.c.b16 %v902, %v901
    %v909 = vpack.c.b16 %v904, %v903
    %v910 = vpack.c.b16 %v906, %v905
    %v916 = vsel %vm679, %v880, 0
    %v919 = vsel %vm679, %v881, 0
    %921 = vmatprep.subr.bf16.mxu0 0
    %922 = vmatpush1.bf16.msra.mxu0 %v907
    %923 = vmatprep.subr.bf16.mxu0 0
    %924 = vmatpush1.bf16.msra.mxu0 %v908
    %925 = vmatprep.subr.bf16.mxu0 0
    %926 = vmatpush1.bf16.msra.mxu0 %v909
    %927 = vmatprep.subr.bf16.mxu0 0
    %928 = vmatpush1.bf16.msra.mxu0 %v910
    %929 = vmatprep.subr.bf16.mxu0 0
    %930 = vmatpush1.bf16.msra.mxu0 0
    %931 = vmatprep.subr.bf16.mxu0 0
    %932 = vmatpush1.bf16.msra.mxu0 0
    %933 = vmatprep.subr.bf16.mxu0 0
    %934 = vmatpush1.bf16.msra.mxu0 0
    %935 = vmatprep.subr.bf16.mxu0 0
    %936 = vmatpush1.bf16.msra.mxu0 0
    %937 = vmatprep.subr.bf16.mxu0 0
    %938 = vmatpush1.bf16.msra.mxu0 0
    %939 = vmatprep.subr.bf16.mxu0 0
    %940 = vmatpush1.bf16.msra.mxu0 0
    %941 = vmatprep.subr.bf16.mxu0 0
    %942 = vmatpush1.bf16.msra.mxu0 0
    %943 = vmatprep.subr.bf16.mxu0 0
    %944 = vmatpush1.bf16.msra.mxu0 0
    %945 = vmatprep.subr.bf16.mxu0 0
    %946 = vmatpush1.bf16.msra.mxu0 0
    %947 = vmatprep.subr.bf16.mxu0 0
    %948 = vmatpush1.bf16.msra.mxu0 0
    %949 = vmatprep.subr.bf16.mxu0 0
    %950 = vmatpush1.bf16.msra.mxu0 0
    %951 = vmatprep.subr.bf16.mxu0 0
    %952 = vmatpush1.bf16.msra.mxu0 0
    %953 = vmatprep.mubr.bf16.mxu0 0
    %954 = vmatmul.mubr.bf16.gmra.mrb[0].mxu0 %v916
    %v955 = vpop.f32.mrb[0].mxu0
    %v956 = vadd.f32 0.0, %v955
    %v957 = vpop.f32.mrb[0].mxu0
    %v958 = vpop.f32.mrb[0].mxu0
    %v959 = vadd.f32 0.0, %v958
    %v960 = vpop.f32.mrb[0].mxu0
    %961 = vmatprep.mubr.bf16.mxu0 0
    %962 = vmatmul.mubr.bf16.gmra.mrb[0].mxu0 %v919
    %v963 = vpop.f32.mrb[0].mxu0
    %v964 = vadd.f32 0.0, %v963
    %v965 = vpop.f32.mrb[0].mxu0
    %v966 = vpop.f32.mrb[0].mxu0
    %v967 = vadd.f32 0.0, %v966
    %v968 = vpop.f32.mrb[0].mxu0
    %969 = vdwg.mxu0
    %v970 = vadd.f32 %v800, %v956
    %v971 = vadd.f32 %v803, %v959
    %v972 = vadd.f32 %v808, %v964
    %v973 = vadd.f32 %v811, %v967
    %s974 = scalar_lea.vmem [#allocation11], 48
    %v975 = vld [vmem:[%s974] sm:$0xf]
    %v976 = vld [vmem:[%s974 + $0x4] sm:$0xf]
    %v977 = vld [vmem:[%s974 + $0x8] sm:$0xf]
    %v978 = vld [vmem:[%s974 + $0xc] sm:$0xf]
    %v983 = vunpack.c.l.b16 %v975
    %v984 = vunpack.c.l.b16 %v976
    %v985 = vunpack.c.l.b16 %v977
    %v986 = vunpack.c.l.b16 %v978
    %v987 = vpack.c.b16 %v984, %v983
    %v988 = vpack.c.b16 %v986, %v985
    %991 = vmatprep.subr.bf16.mxu0 0
    %992 = vmatpush1.bf16.msra.mxu0 %v495
    %993 = vmatprep.subr.bf16.mxu0 0
    %994 = vmatpush1.bf16.msra.mxu0 %v496
    %995 = vmatprep.subr.bf16.mxu0 0
    %996 = vmatpush1.bf16.msra.mxu0 %v497
    %997 = vmatprep.subr.bf16.mxu0 0
    %998 = vmatpush1.bf16.msra.mxu0 %v498
    %999 = vmatprep.subr.bf16.mxu0 0
    %1000 = vmatpush1.bf16.msra.mxu0 %v499
    %1001 = vmatprep.subr.bf16.mxu0 0
    %1002 = vmatpush1.bf16.msra.mxu0 %v500
    %1003 = vmatprep.subr.bf16.mxu0 0
    %1004 = vmatpush1.bf16.msra.mxu0 %v501
    %1005 = vmatprep.subr.bf16.mxu0 0
    %1006 = vmatpush1.bf16.msra.mxu0 %v502
    %1007 = vmatprep.subr.bf16.mxu0 0
    %1008 = vmatpush1.bf16.msra.mxu0 0
    %1009 = vmatprep.subr.bf16.mxu0 0
    %1010 = vmatpush1.bf16.msra.mxu0 0
    %1011 = vmatprep.subr.bf16.mxu0 0
    %1012 = vmatpush1.bf16.msra.mxu0 0
    %1013 = vmatprep.subr.bf16.mxu0 0
    %1014 = vmatpush1.bf16.msra.mxu0 0
    %1015 = vmatprep.subr.bf16.mxu0 0
    %1016 = vmatpush1.bf16.msra.mxu0 0
    %1017 = vmatprep.subr.bf16.mxu0 0
    %1018 = vmatpush1.bf16.msra.mxu0 0
    %1019 = vmatprep.subr.bf16.mxu0 0
    %1020 = vmatpush1.bf16.msra.mxu0 0
    %1021 = vmatprep.subr.bf16.mxu0 0
    %1022 = vmatpush1.bf16.msra.mxu0 0
    %1023 = vmatprep.mubr.bf16.mxu0 0
    %1024 = vmatmul.mubr.bf16.gmra.mrb[0].mxu0 %v987
    %v1025 = vpop.f32.mrb[0].mxu0
    %v1026 = vadd.f32 0.0, %v1025
    %v1027 = vpop.f32.mrb[0].mxu0
    %v1028 = vpop.f32.mrb[0].mxu0
    %v1029 = vadd.f32 0.0, %v1028
    %v1030 = vpop.f32.mrb[0].mxu0
    %1031 = vmatprep.mubr.bf16.mxu0 0
    %1032 = vmatmul.mubr.bf16.gmra.mrb[0].mxu0 %v988
    %v1033 = vpop.f32.mrb[0].mxu0
    %v1034 = vadd.f32 0.0, %v1033
    %v1035 = vpop.f32.mrb[0].mxu0
    %v1036 = vpop.f32.mrb[0].mxu0
    %v1037 = vadd.f32 0.0, %v1036
    %v1038 = vpop.f32.mrb[0].mxu0
    %1039 = vdwg.mxu0
    %v1040 = vpack.c.bf16 %v1029, %v1026
    %v1041 = vpack.c.bf16 %v1037, %v1034
    %s1042 = scalar_lea.vmem [#allocation7], 96
    %v1043 = vld [vmem:[%s1042] sm:$0xf]
    %v1044 = vld [vmem:[%s1042 + $0x4] sm:$0xf]
    %v1045 = vld [vmem:[%s1042 + $0x8] sm:$0xf]
    %v1046 = vld [vmem:[%s1042 + $0xc] sm:$0xf]
    %v1047 = vld [vmem:[%s1042 + $0x10] sm:$0xf]
    %v1048 = vld [vmem:[%s1042 + $0x14] sm:$0xf]
    %v1049 = vld [vmem:[%s1042 + $0x18] sm:$0xf]
    %v1050 = vld [vmem:[%s1042 + $0x1c] sm:$0xf]
    %v1059 = vunpack.c.l.b16 %v1043
    %v1060 = vunpack.c.l.b16 %v1044
    %v1061 = vunpack.c.l.b16 %v1045
    %v1062 = vunpack.c.l.b16 %v1046
    %v1063 = vunpack.c.l.b16 %v1047
    %v1064 = vunpack.c.l.b16 %v1048
    %v1065 = vunpack.c.l.b16 %v1049
    %v1066 = vunpack.c.l.b16 %v1050
    %v1067 = vpack.c.b16 %v1060, %v1059
    %v1068 = vpack.c.b16 %v1062, %v1061
    %v1069 = vpack.c.b16 %v1064, %v1063
    %v1070 = vpack.c.b16 %v1066, %v1065
    %v1076 = vsel %vm679, %v1040, 0
    %v1079 = vsel %vm679, %v1041, 0
    %1081 = vmatprep.subr.bf16.mxu0 0
    %1082 = vmatpush1.bf16.msra.mxu0 %v1067
    %1083 = vmatprep.subr.bf16.mxu0 0
    %1084 = vmatpush1.bf16.msra.mxu0 %v1068
    %1085 = vmatprep.subr.bf16.mxu0 0
    %1086 = vmatpush1.bf16.msra.mxu0 %v1069
    %1087 = vmatprep.subr.bf16.mxu0 0
    %1088 = vmatpush1.bf16.msra.mxu0 %v1070
    %1089 = vmatprep.subr.bf16.mxu0 0
    %1090 = vmatpush1.bf16.msra.mxu0 0
    %1091 = vmatprep.subr.bf16.mxu0 0
    %1092 = vmatpush1.bf16.msra.mxu0 0
    %1093 = vmatprep.subr.bf16.mxu0 0
    %1094 = vmatpush1.bf16.msra.mxu0 0
    %1095 = vmatprep.subr.bf16.mxu0 0
    %1096 = vmatpush1.bf16.msra.mxu0 0
    %1097 = vmatprep.subr.bf16.mxu0 0
    %1098 = vmatpush1.bf16.msra.mxu0 0
    %1099 = vmatprep.subr.bf16.mxu0 0
    %1100 = vmatpush1.bf16.msra.mxu0 0
    %1101 = vmatprep.subr.bf16.mxu0 0
    %1102 = vmatpush1.bf16.msra.mxu0 0
    %1103 = vmatprep.subr.bf16.mxu0 0
    %1104 = vmatpush1.bf16.msra.mxu0 0
    %1105 = vmatprep.subr.bf16.mxu0 0
    %1106 = vmatpush1.bf16.msra.mxu0 0
    %1107 = vmatprep.subr.bf16.mxu0 0
    %1108 = vmatpush1.bf16.msra.mxu0 0
    %1109 = vmatprep.subr.bf16.mxu0 0
    %1110 = vmatpush1.bf16.msra.mxu0 0
    %1111 = vmatprep.subr.bf16.mxu0 0
    %1112 = vmatpush1.bf16.msra.mxu0 0
    %1113 = vmatprep.mubr.bf16.mxu0 0
    %1114 = vmatmul.mubr.bf16.gmra.mrb[0].mxu0 %v1076
    %v1115 = vpop.f32.mrb[0].mxu0
    %v1116 = vadd.f32 0.0, %v1115
    %v1117 = vpop.f32.mrb[0].mxu0
    %v1118 = vpop.f32.mrb[0].mxu0
    %v1119 = vadd.f32 0.0, %v1118
    %v1120 = vpop.f32.mrb[0].mxu0
    %1121 = vmatprep.mubr.bf16.mxu0 0
    %1122 = vmatmul.mubr.bf16.gmra.mrb[0].mxu0 %v1079
    %v1123 = vpop.f32.mrb[0].mxu0
    %v1124 = vadd.f32 0.0, %v1123
    %v1125 = vpop.f32.mrb[0].mxu0
    %v1126 = vpop.f32.mrb[0].mxu0
    %v1127 = vadd.f32 0.0, %v1126
    %v1128 = vpop.f32.mrb[0].mxu0
    %1129 = vdwg.mxu0
    %v1130 = vadd.f32 %v970, %v1116
    %v1131 = vadd.f32 %v971, %v1119
    %v1132 = vadd.f32 %v972, %v1124
    %v1133 = vadd.f32 %v973, %v1127
    %s1134 = scalar_lea.vmem [#allocation11], 64
    %v1135 = vld [vmem:[%s1134] sm:$0xf]
    %v1136 = vld [vmem:[%s1134 + $0x4] sm:$0xf]
    %v1137 = vld [vmem:[%s1134 + $0x8] sm:$0xf]
    %v1138 = vld [vmem:[%s1134 + $0xc] sm:$0xf]
    %v1143 = vunpack.c.l.b16 %v1135
    %v1144 = vunpack.c.l.b16 %v1136
    %v1145 = vunpack.c.l.b16 %v1137
    %v1146 = vunpack.c.l.b16 %v1138
    %v1147 = vpack.c.b16 %v1144, %v1143
    %v1148 = vpack.c.b16 %v1146, %v1145
    %1151 = vmatprep.subr.bf16.mxu0 0
    %1152 = vmatpush1.bf16.msra.mxu0 %v495
    %1153 = vmatprep.subr.bf16.mxu0 0
    %1154 = vmatpush1.bf16.msra.mxu0 %v496
    %1155 = vmatprep.subr.bf16.mxu0 0
    %1156 = vmatpush1.bf16.msra.mxu0 %v497
    %1157 = vmatprep.subr.bf16.mxu0 0
    %1158 = vmatpush1.bf16.msra.mxu0 %v498
    %1159 = vmatprep.subr.bf16.mxu0 0
    %1160 = vmatpush1.bf16.msra.mxu0 %v499
    %1161 = vmatprep.subr.bf16.mxu0 0
    %1162 = vmatpush1.bf16.msra.mxu0 %v500
    %1163 = vmatprep.subr.bf16.mxu0 0
    %1164 = vmatpush1.bf16.msra.mxu0 %v501
    %1165 = vmatprep.subr.bf16.mxu0 0
    %1166 = vmatpush1.bf16.msra.mxu0 %v502
    %1167 = vmatprep.subr.bf16.mxu0 0
    %1168 = vmatpush1.bf16.msra.mxu0 0
    %1169 = vmatprep.subr.bf16.mxu0 0
    %1170 = vmatpush1.bf16.msra.mxu0 0
    %1171 = vmatprep.subr.bf16.mxu0 0
    %1172 = vmatpush1.bf16.msra.mxu0 0
    %1173 = vmatprep.subr.bf16.mxu0 0
    %1174 = vmatpush1.bf16.msra.mxu0 0
    %1175 = vmatprep.subr.bf16.mxu0 0
    %1176 = vmatpush1.bf16.msra.mxu0 0
    %1177 = vmatprep.subr.bf16.mxu0 0
    %1178 = vmatpush1.bf16.msra.mxu0 0
    %1179 = vmatprep.subr.bf16.mxu0 0
    %1180 = vmatpush1.bf16.msra.mxu0 0
    %1181 = vmatprep.subr.bf16.mxu0 0
    %1182 = vmatpush1.bf16.msra.mxu0 0
    %1183 = vmatprep.mubr.bf16.mxu0 0
    %1184 = vmatmul.mubr.bf16.gmra.mrb[0].mxu0 %v1147
    %v1185 = vpop.f32.mrb[0].mxu0
    %v1186 = vadd.f32 0.0, %v1185
    %v1187 = vpop.f32.mrb[0].mxu0
    %v1188 = vpop.f32.mrb[0].mxu0
    %v1189 = vadd.f32 0.0, %v1188
    %v1190 = vpop.f32.mrb[0].mxu0
    %1191 = vmatprep.mubr.bf16.mxu0 0
    %1192 = vmatmul.mubr.bf16.gmra.mrb[0].mxu0 %v1148
    %v1193 = vpop.f32.mrb[0].mxu0
    %v1194 = vadd.f32 0.0, %v1193
    %v1195 = vpop.f32.mrb[0].mxu0
    %v1196 = vpop.f32.mrb[0].mxu0
    %v1197 = vadd.f32 0.0, %v1196
    %v1198 = vpop.f32.mrb[0].mxu0
    %1199 = vdwg.mxu0
    %v1200 = vpack.c.bf16 %v1189, %v1186
    %v1201 = vpack.c.bf16 %v1197, %v1194
    %s1202 = scalar_lea.vmem [#allocation7], 128
    %v1203 = vld [vmem:[%s1202] sm:$0xf]
    %v1204 = vld [vmem:[%s1202 + $0x4] sm:$0xf]
    %v1205 = vld [vmem:[%s1202 + $0x8] sm:$0xf]
    %v1206 = vld [vmem:[%s1202 + $0xc] sm:$0xf]
    %v1207 = vld [vmem:[%s1202 + $0x10] sm:$0xf]
    %v1208 = vld [vmem:[%s1202 + $0x14] sm:$0xf]
    %v1209 = vld [vmem:[%s1202 + $0x18] sm:$0xf]
    %v1210 = vld [vmem:[%s1202 + $0x1c] sm:$0xf]
    %v1219 = vunpack.c.l.b16 %v1203
    %v1220 = vunpack.c.l.b16 %v1204
    %v1221 = vunpack.c.l.b16 %v1205
    %v1222 = vunpack.c.l.b16 %v1206
    %v1223 = vunpack.c.l.b16 %v1207
    %v1224 = vunpack.c.l.b16 %v1208
    %v1225 = vunpack.c.l.b16 %v1209
    %v1226 = vunpack.c.l.b16 %v1210
    %v1227 = vpack.c.b16 %v1220, %v1219
    %v1228 = vpack.c.b16 %v1222, %v1221
    %v1229 = vpack.c.b16 %v1224, %v1223
    %v1230 = vpack.c.b16 %v1226, %v1225
    %v1236 = vsel %vm679, %v1200, 0
    %v1239 = vsel %vm679, %v1201, 0
    %1241 = vmatprep.subr.bf16.mxu0 0
    %1242 = vmatpush1.bf16.msra.mxu0 %v1227
    %1243 = vmatprep.subr.bf16.mxu0 0
    %1244 = vmatpush1.bf16.msra.mxu0 %v1228
    %1245 = vmatprep.subr.bf16.mxu0 0
    %1246 = vmatpush1.bf16.msra.mxu0 %v1229
    %1247 = vmatprep.subr.bf16.mxu0 0
    %1248 = vmatpush1.bf16.msra.mxu0 %v1230
    %1249 = vmatprep.subr.bf16.mxu0 0
    %1250 = vmatpush1.bf16.msra.mxu0 0
    %1251 = vmatprep.subr.bf16.mxu0 0
    %1252 = vmatpush1.bf16.msra.mxu0 0
    %1253 = vmatprep.subr.bf16.mxu0 0
    %1254 = vmatpush1.bf16.msra.mxu0 0
    %1255 = vmatprep.subr.bf16.mxu0 0
    %1256 = vmatpush1.bf16.msra.mxu0 0
    %1257 = vmatprep.subr.bf16.mxu0 0
    %1258 = vmatpush1.bf16.msra.mxu0 0
    %1259 = vmatprep.subr.bf16.mxu0 0
    %1260 = vmatpush1.bf16.msra.mxu0 0
    %1261 = vmatprep.subr.bf16.mxu0 0
    %1262 = vmatpush1.bf16.msra.mxu0 0
    %1263 = vmatprep.subr.bf16.mxu0 0
    %1264 = vmatpush1.bf16.msra.mxu0 0
    %1265 = vmatprep.subr.bf16.mxu0 0
    %1266 = vmatpush1.bf16.msra.mxu0 0
    %1267 = vmatprep.subr.bf16.mxu0 0
    %1268 = vmatpush1.bf16.msra.mxu0 0
    %1269 = vmatprep.subr.bf16.mxu0 0
    %1270 = vmatpush1.bf16.msra.mxu0 0
    %1271 = vmatprep.subr.bf16.mxu0 0
    %1272 = vmatpush1.bf16.msra.mxu0 0
    %1273 = vmatprep.mubr.bf16.mxu0 0
    %1274 = vmatmul.mubr.bf16.gmra.mrb[0].mxu0 %v1236
    %v1275 = vpop.f32.mrb[0].mxu0
    %v1276 = vadd.f32 0.0, %v1275
    %v1277 = vpop.f32.mrb[0].mxu0
    %v1278 = vpop.f32.mrb[0].mxu0
    %v1279 = vadd.f32 0.0, %v1278
    %v1280 = vpop.f32.mrb[0].mxu0
    %1281 = vmatprep.mubr.bf16.mxu0 0
    %1282 = vmatmul.mubr.bf16.gmra.mrb[0].mxu0 %v1239
    %v1283 = vpop.f32.mrb[0].mxu0
    %v1284 = vadd.f32 0.0, %v1283
    %v1285 = vpop.f32.mrb[0].mxu0
    %v1286 = vpop.f32.mrb[0].mxu0
    %v1287 = vadd.f32 0.0, %v1286
    %v1288 = vpop.f32.mrb[0].mxu0
    %1289 = vdwg.mxu0
    %v1290 = vadd.f32 %v1130, %v1276
    %v1291 = vadd.f32 %v1131, %v1279
    %v1292 = vadd.f32 %v1132, %v1284
    %v1293 = vadd.f32 %v1133, %v1287
    %s1294 = scalar_lea.vmem [#allocation11], 80
    %v1295 = vld [vmem:[%s1294] sm:$0xf]
    %v1296 = vld [vmem:[%s1294 + $0x4] sm:$0xf]
    %v1297 = vld [vmem:[%s1294 + $0x8] sm:$0xf]
    %v1298 = vld [vmem:[%s1294 + $0xc] sm:$0xf]
    %v1303 = vunpack.c.l.b16 %v1295
    %v1304 = vunpack.c.l.b16 %v1296
    %v1305 = vunpack.c.l.b16 %v1297
    %v1306 = vunpack.c.l.b16 %v1298
    %v1307 = vpack.c.b16 %v1304, %v1303
    %v1308 = vpack.c.b16 %v1306, %v1305
    %1311 = vmatprep.subr.bf16.mxu0 0
    %1312 = vmatpush1.bf16.msra.mxu0 %v495
    %1313 = vmatprep.subr.bf16.mxu0 0
    %1314 = vmatpush1.bf16.msra.mxu0 %v496
    %1315 = vmatprep.subr.bf16.mxu0 0
    %1316 = vmatpush1.bf16.msra.mxu0 %v497
    %1317 = vmatprep.subr.bf16.mxu0 0
    %1318 = vmatpush1.bf16.msra.mxu0 %v498
    %1319 = vmatprep.subr.bf16.mxu0 0
    %1320 = vmatpush1.bf16.msra.mxu0 %v499
    %1321 = vmatprep.subr.bf16.mxu0 0
    %1322 = vmatpush1.bf16.msra.mxu0 %v500
    %1323 = vmatprep.subr.bf16.mxu0 0
    %1324 = vmatpush1.bf16.msra.mxu0 %v501
    %1325 = vmatprep.subr.bf16.mxu0 0
    %1326 = vmatpush1.bf16.msra.mxu0 %v502
    %1327 = vmatprep.subr.bf16.mxu0 0
    %1328 = vmatpush1.bf16.msra.mxu0 0
    %1329 = vmatprep.subr.bf16.mxu0 0
    %1330 = vmatpush1.bf16.msra.mxu0 0
    %1331 = vmatprep.subr.bf16.mxu0 0
    %1332 = vmatpush1.bf16.msra.mxu0 0
    %1333 = vmatprep.subr.bf16.mxu0 0
    %1334 = vmatpush1.bf16.msra.mxu0 0
    %1335 = vmatprep.subr.bf16.mxu0 0
    %1336 = vmatpush1.bf16.msra.mxu0 0
    %1337 = vmatprep.subr.bf16.mxu0 0
    %1338 = vmatpush1.bf16.msra.mxu0 0
    %1339 = vmatprep.subr.bf16.mxu0 0
    %1340 = vmatpush1.bf16.msra.mxu0 0
    %1341 = vmatprep.subr.bf16.mxu0 0
    %1342 = vmatpush1.bf16.msra.mxu0 0
    %1343 = vmatprep.mubr.bf16.mxu0 0
    %1344 = vmatmul.mubr.bf16.gmra.mrb[0].mxu0 %v1307
    %v1345 = vpop.f32.mrb[0].mxu0
    %v1346 = vadd.f32 0.0, %v1345
    %v1347 = vpop.f32.mrb[0].mxu0
    %v1348 = vpop.f32.mrb[0].mxu0
    %v1349 = vadd.f32 0.0, %v1348
    %v1350 = vpop.f32.mrb[0].mxu0
    %1351 = vmatprep.mubr.bf16.mxu0 0
    %1352 = vmatmul.mubr.bf16.gmra.mrb[0].mxu0 %v1308
    %v1353 = vpop.f32.mrb[0].mxu0
    %v1354 = vadd.f32 0.0, %v1353
    %v1355 = vpop.f32.mrb[0].mxu0
    %v1356 = vpop.f32.mrb[0].mxu0
    %v1357 = vadd.f32 0.0, %v1356
    %v1358 = vpop.f32.mrb[0].mxu0
    %1359 = vdwg.mxu0
    %v1360 = vpack.c.bf16 %v1349, %v1346
    %v1361 = vpack.c.bf16 %v1357, %v1354
    %s1362 = scalar_lea.vmem [#allocation7], 160
    %v1363 = vld [vmem:[%s1362] sm:$0xf]
    %v1364 = vld [vmem:[%s1362 + $0x4] sm:$0xf]
    %v1365 = vld [vmem:[%s1362 + $0x8] sm:$0xf]
    %v1366 = vld [vmem:[%s1362 + $0xc] sm:$0xf]
    %v1367 = vld [vmem:[%s1362 + $0x10] sm:$0xf]
    %v1368 = vld [vmem:[%s1362 + $0x14] sm:$0xf]
    %v1369 = vld [vmem:[%s1362 + $0x18] sm:$0xf]
    %v1370 = vld [vmem:[%s1362 + $0x1c] sm:$0xf]
    %v1379 = vunpack.c.l.b16 %v1363
    %v1380 = vunpack.c.l.b16 %v1364
    %v1381 = vunpack.c.l.b16 %v1365
    %v1382 = vunpack.c.l.b16 %v1366
    %v1383 = vunpack.c.l.b16 %v1367
    %v1384 = vunpack.c.l.b16 %v1368
    %v1385 = vunpack.c.l.b16 %v1369
    %v1386 = vunpack.c.l.b16 %v1370
    %v1387 = vpack.c.b16 %v1380, %v1379
    %v1388 = vpack.c.b16 %v1382, %v1381
    %v1389 = vpack.c.b16 %v1384, %v1383
    %v1390 = vpack.c.b16 %v1386, %v1385
    %v1396 = vsel %vm679, %v1360, 0
    %v1399 = vsel %vm679, %v1361, 0
    %1401 = vmatprep.subr.bf16.mxu0 0
    %1402 = vmatpush1.bf16.msra.mxu0 %v1387
    %1403 = vmatprep.subr.bf16.mxu0 0
    %1404 = vmatpush1.bf16.msra.mxu0 %v1388
    %1405 = vmatprep.subr.bf16.mxu0 0
    %1406 = vmatpush1.bf16.msra.mxu0 %v1389
    %1407 = vmatprep.subr.bf16.mxu0 0
    %1408 = vmatpush1.bf16.msra.mxu0 %v1390
    %1409 = vmatprep.subr.bf16.mxu0 0
    %1410 = vmatpush1.bf16.msra.mxu0 0
    %1411 = vmatprep.subr.bf16.mxu0 0
    %1412 = vmatpush1.bf16.msra.mxu0 0
    %1413 = vmatprep.subr.bf16.mxu0 0
    %1414 = vmatpush1.bf16.msra.mxu0 0
    %1415 = vmatprep.subr.bf16.mxu0 0
    %1416 = vmatpush1.bf16.msra.mxu0 0
    %1417 = vmatprep.subr.bf16.mxu0 0
    %1418 = vmatpush1.bf16.msra.mxu0 0
    %1419 = vmatprep.subr.bf16.mxu0 0
    %1420 = vmatpush1.bf16.msra.mxu0 0
    %1421 = vmatprep.subr.bf16.mxu0 0
    %1422 = vmatpush1.bf16.msra.mxu0 0
    %1423 = vmatprep.subr.bf16.mxu0 0
    %1424 = vmatpush1.bf16.msra.mxu0 0
    %1425 = vmatprep.subr.bf16.mxu0 0
    %1426 = vmatpush1.bf16.msra.mxu0 0
    %1427 = vmatprep.subr.bf16.mxu0 0
    %1428 = vmatpush1.bf16.msra.mxu0 0
    %1429 = vmatprep.subr.bf16.mxu0 0
    %1430 = vmatpush1.bf16.msra.mxu0 0
    %1431 = vmatprep.subr.bf16.mxu0 0
    %1432 = vmatpush1.bf16.msra.mxu0 0
    %1433 = vmatprep.mubr.bf16.mxu0 0
    %1434 = vmatmul.mubr.bf16.gmra.mrb[0].mxu0 %v1396
    %v1435 = vpop.f32.mrb[0].mxu0
    %v1436 = vadd.f32 0.0, %v1435
    %v1437 = vpop.f32.mrb[0].mxu0
    %v1438 = vpop.f32.mrb[0].mxu0
    %v1439 = vadd.f32 0.0, %v1438
    %v1440 = vpop.f32.mrb[0].mxu0
    %1441 = vmatprep.mubr.bf16.mxu0 0
    %1442 = vmatmul.mubr.bf16.gmra.mrb[0].mxu0 %v1399
    %v1443 = vpop.f32.mrb[0].mxu0
    %v1444 = vadd.f32 0.0, %v1443
    %v1445 = vpop.f32.mrb[0].mxu0
    %v1446 = vpop.f32.mrb[0].mxu0
    %v1447 = vadd.f32 0.0, %v1446
    %v1448 = vpop.f32.mrb[0].mxu0
    %1449 = vdwg.mxu0
    %v1450 = vadd.f32 %v1290, %v1436
    %v1451 = vadd.f32 %v1291, %v1439
    %v1452 = vadd.f32 %v1292, %v1444
    %v1453 = vadd.f32 %v1293, %v1447
    %s1454 = scalar_lea.vmem [#allocation11], 96
    %v1455 = vld [vmem:[%s1454] sm:$0xf]
    %v1456 = vld [vmem:[%s1454 + $0x4] sm:$0xf]
    %v1457 = vld [vmem:[%s1454 + $0x8] sm:$0xf]
    %v1458 = vld [vmem:[%s1454 + $0xc] sm:$0xf]
    %v1463 = vunpack.c.l.b16 %v1455
    %v1464 = vunpack.c.l.b16 %v1456
    %v1465 = vunpack.c.l.b16 %v1457
    %v1466 = vunpack.c.l.b16 %v1458
    %v1467 = vpack.c.b16 %v1464, %v1463
    %v1468 = vpack.c.b16 %v1466, %v1465
    %1471 = vmatprep.subr.bf16.mxu0 0
    %1472 = vmatpush1.bf16.msra.mxu0 %v495
    %1473 = vmatprep.subr.bf16.mxu0 0
    %1474 = vmatpush1.bf16.msra.mxu0 %v496
    %1475 = vmatprep.subr.bf16.mxu0 0
    %1476 = vmatpush1.bf16.msra.mxu0 %v497
    %1477 = vmatprep.subr.bf16.mxu0 0
    %1478 = vmatpush1.bf16.msra.mxu0 %v498
    %1479 = vmatprep.subr.bf16.mxu0 0
    %1480 = vmatpush1.bf16.msra.mxu0 %v499
    %1481 = vmatprep.subr.bf16.mxu0 0
    %1482 = vmatpush1.bf16.msra.mxu0 %v500
    %1483 = vmatprep.subr.bf16.mxu0 0
    %1484 = vmatpush1.bf16.msra.mxu0 %v501
    %1485 = vmatprep.subr.bf16.mxu0 0
    %1486 = vmatpush1.bf16.msra.mxu0 %v502
    %1487 = vmatprep.subr.bf16.mxu0 0
    %1488 = vmatpush1.bf16.msra.mxu0 0
    %1489 = vmatprep.subr.bf16.mxu0 0
    %1490 = vmatpush1.bf16.msra.mxu0 0
    %1491 = vmatprep.subr.bf16.mxu0 0
    %1492 = vmatpush1.bf16.msra.mxu0 0
    %1493 = vmatprep.subr.bf16.mxu0 0
    %1494 = vmatpush1.bf16.msra.mxu0 0
    %1495 = vmatprep.subr.bf16.mxu0 0
    %1496 = vmatpush1.bf16.msra.mxu0 0
    %1497 = vmatprep.subr.bf16.mxu0 0
    %1498 = vmatpush1.bf16.msra.mxu0 0
    %1499 = vmatprep.subr.bf16.mxu0 0
    %1500 = vmatpush1.bf16.msra.mxu0 0
    %1501 = vmatprep.subr.bf16.mxu0 0
    %1502 = vmatpush1.bf16.msra.mxu0 0
    %1503 = vmatprep.mubr.bf16.mxu0 0
    %1504 = vmatmul.mubr.bf16.gmra.mrb[0].mxu0 %v1467
    %v1505 = vpop.f32.mrb[0].mxu0
    %v1506 = vadd.f32 0.0, %v1505
    %v1507 = vpop.f32.mrb[0].mxu0
    %v1508 = vpop.f32.mrb[0].mxu0
    %v1509 = vadd.f32 0.0, %v1508
    %v1510 = vpop.f32.mrb[0].mxu0
    %1511 = vmatprep.mubr.bf16.mxu0 0
    %1512 = vmatmul.mubr.bf16.gmra.mrb[0].mxu0 %v1468
    %v1513 = vpop.f32.mrb[0].mxu0
    %v1514 = vadd.f32 0.0, %v1513
    %v1515 = vpop.f32.mrb[0].mxu0
    %v1516 = vpop.f32.mrb[0].mxu0
    %v1517 = vadd.f32 0.0, %v1516
    %v1518 = vpop.f32.mrb[0].mxu0
    %1519 = vdwg.mxu0
    %v1520 = vpack.c.bf16 %v1509, %v1506
    %v1521 = vpack.c.bf16 %v1517, %v1514
    %s1522 = scalar_lea.vmem [#allocation7], 192
    %v1523 = vld [vmem:[%s1522] sm:$0xf]
    %v1524 = vld [vmem:[%s1522 + $0x4] sm:$0xf]
    %v1525 = vld [vmem:[%s1522 + $0x8] sm:$0xf]
    %v1526 = vld [vmem:[%s1522 + $0xc] sm:$0xf]
    %v1527 = vld [vmem:[%s1522 + $0x10] sm:$0xf]
    %v1528 = vld [vmem:[%s1522 + $0x14] sm:$0xf]
    %v1529 = vld [vmem:[%s1522 + $0x18] sm:$0xf]
    %v1530 = vld [vmem:[%s1522 + $0x1c] sm:$0xf]
    %v1539 = vunpack.c.l.b16 %v1523
    %v1540 = vunpack.c.l.b16 %v1524
    %v1541 = vunpack.c.l.b16 %v1525
    %v1542 = vunpack.c.l.b16 %v1526
    %v1543 = vunpack.c.l.b16 %v1527
    %v1544 = vunpack.c.l.b16 %v1528
    %v1545 = vunpack.c.l.b16 %v1529
    %v1546 = vunpack.c.l.b16 %v1530
    %v1547 = vpack.c.b16 %v1540, %v1539
    %v1548 = vpack.c.b16 %v1542, %v1541
    %v1549 = vpack.c.b16 %v1544, %v1543
    %v1550 = vpack.c.b16 %v1546, %v1545
    %v1556 = vsel %vm679, %v1520, 0
    %v1559 = vsel %vm679, %v1521, 0
    %1561 = vmatprep.subr.bf16.mxu0 0
    %1562 = vmatpush1.bf16.msra.mxu0 %v1547
    %1563 = vmatprep.subr.bf16.mxu0 0
    %1564 = vmatpush1.bf16.msra.mxu0 %v1548
    %1565 = vmatprep.subr.bf16.mxu0 0
    %1566 = vmatpush1.bf16.msra.mxu0 %v1549
    %1567 = vmatprep.subr.bf16.mxu0 0
    %1568 = vmatpush1.bf16.msra.mxu0 %v1550
    %1569 = vmatprep.subr.bf16.mxu0 0
    %1570 = vmatpush1.bf16.msra.mxu0 0
    %1571 = vmatprep.subr.bf16.mxu0 0
    %1572 = vmatpush1.bf16.msra.mxu0 0
    %1573 = vmatprep.subr.bf16.mxu0 0
    %1574 = vmatpush1.bf16.msra.mxu0 0
    %1575 = vmatprep.subr.bf16.mxu0 0
    %1576 = vmatpush1.bf16.msra.mxu0 0
    %1577 = vmatprep.subr.bf16.mxu0 0
    %1578 = vmatpush1.bf16.msra.mxu0 0
    %1579 = vmatprep.subr.bf16.mxu0 0
    %1580 = vmatpush1.bf16.msra.mxu0 0
    %1581 = vmatprep.subr.bf16.mxu0 0
    %1582 = vmatpush1.bf16.msra.mxu0 0
    %1583 = vmatprep.subr.bf16.mxu0 0
    %1584 = vmatpush1.bf16.msra.mxu0 0
    %1585 = vmatprep.subr.bf16.mxu0 0
    %1586 = vmatpush1.bf16.msra.mxu0 0
    %1587 = vmatprep.subr.bf16.mxu0 0
    %1588 = vmatpush1.bf16.msra.mxu0 0
    %1589 = vmatprep.subr.bf16.mxu0 0
    %1590 = vmatpush1.bf16.msra.mxu0 0
    %1591 = vmatprep.subr.bf16.mxu0 0
    %1592 = vmatpush1.bf16.msra.mxu0 0
    %1593 = vmatprep.mubr.bf16.mxu0 0
    %1594 = vmatmul.mubr.bf16.gmra.mrb[0].mxu0 %v1556
    %v1595 = vpop.f32.mrb[0].mxu0
    %v1596 = vadd.f32 0.0, %v1595
    %v1597 = vpop.f32.mrb[0].mxu0
    %v1598 = vpop.f32.mrb[0].mxu0
    %v1599 = vadd.f32 0.0, %v1598
    %v1600 = vpop.f32.mrb[0].mxu0
    %1601 = vmatprep.mubr.bf16.mxu0 0
    %1602 = vmatmul.mubr.bf16.gmra.mrb[0].mxu0 %v1559
    %v1603 = vpop.f32.mrb[0].mxu0
    %v1604 = vadd.f32 0.0, %v1603
    %v1605 = vpop.f32.mrb[0].mxu0
    %v1606 = vpop.f32.mrb[0].mxu0
    %v1607 = vadd.f32 0.0, %v1606
    %v1608 = vpop.f32.mrb[0].mxu0
    %1609 = vdwg.mxu0
    %v1610 = vadd.f32 %v1450, %v1596
    %v1611 = vadd.f32 %v1451, %v1599
    %v1612 = vadd.f32 %v1452, %v1604
    %v1613 = vadd.f32 %v1453, %v1607
    %s1614 = scalar_lea.vmem [#allocation11], 112
    %v1615 = vld [vmem:[%s1614] sm:$0xf]
    %v1616 = vld [vmem:[%s1614 + $0x4] sm:$0xf]
    %v1617 = vld [vmem:[%s1614 + $0x8] sm:$0xf]
    %v1618 = vld [vmem:[%s1614 + $0xc] sm:$0xf]
    %v1623 = vunpack.c.l.b16 %v1615
    %v1624 = vunpack.c.l.b16 %v1616
    %v1625 = vunpack.c.l.b16 %v1617
    %v1626 = vunpack.c.l.b16 %v1618
    %v1627 = vpack.c.b16 %v1624, %v1623
    %v1628 = vpack.c.b16 %v1626, %v1625
    %1631 = vmatprep.subr.bf16.mxu0 0
    %1632 = vmatpush1.bf16.msra.mxu0 %v495
    %1633 = vmatprep.subr.bf16.mxu0 0
    %1634 = vmatpush1.bf16.msra.mxu0 %v496
    %1635 = vmatprep.subr.bf16.mxu0 0
    %1636 = vmatpush1.bf16.msra.mxu0 %v497
    %1637 = vmatprep.subr.bf16.mxu0 0
    %1638 = vmatpush1.bf16.msra.mxu0 %v498
    %1639 = vmatprep.subr.bf16.mxu0 0
    %1640 = vmatpush1.bf16.msra.mxu0 %v499
    %1641 = vmatprep.subr.bf16.mxu0 0
    %1642 = vmatpush1.bf16.msra.mxu0 %v500
    %1643 = vmatprep.subr.bf16.mxu0 0
    %1644 = vmatpush1.bf16.msra.mxu0 %v501
    %1645 = vmatprep.subr.bf16.mxu0 0
    %1646 = vmatpush1.bf16.msra.mxu0 %v502
    %1647 = vmatprep.subr.bf16.mxu0 0
    %1648 = vmatpush1.bf16.msra.mxu0 0
    %1649 = vmatprep.subr.bf16.mxu0 0
    %1650 = vmatpush1.bf16.msra.mxu0 0
    %1651 = vmatprep.subr.bf16.mxu0 0
    %1652 = vmatpush1.bf16.msra.mxu0 0
    %1653 = vmatprep.subr.bf16.mxu0 0
    %1654 = vmatpush1.bf16.msra.mxu0 0
    %1655 = vmatprep.subr.bf16.mxu0 0
    %1656 = vmatpush1.bf16.msra.mxu0 0
    %1657 = vmatprep.subr.bf16.mxu0 0
    %1658 = vmatpush1.bf16.msra.mxu0 0
    %1659 = vmatprep.subr.bf16.mxu0 0
    %1660 = vmatpush1.bf16.msra.mxu0 0
    %1661 = vmatprep.subr.bf16.mxu0 0
    %1662 = vmatpush1.bf16.msra.mxu0 0
    %1663 = vmatprep.mubr.bf16.mxu0 0
    %1664 = vmatmul.mubr.bf16.gmra.mrb[0].mxu0 %v1627
    %v1665 = vpop.f32.mrb[0].mxu0
    %v1666 = vadd.f32 0.0, %v1665
    %v1667 = vpop.f32.mrb[0].mxu0
    %v1668 = vpop.f32.mrb[0].mxu0
    %v1669 = vadd.f32 0.0, %v1668
    %v1670 = vpop.f32.mrb[0].mxu0
    %1671 = vmatprep.mubr.bf16.mxu0 0
    %1672 = vmatmul.mubr.bf16.gmra.mrb[0].mxu0 %v1628
    %v1673 = vpop.f32.mrb[0].mxu0
    %v1674 = vadd.f32 0.0, %v1673
    %v1675 = vpop.f32.mrb[0].mxu0
    %v1676 = vpop.f32.mrb[0].mxu0
    %v1677 = vadd.f32 0.0, %v1676
    %v1678 = vpop.f32.mrb[0].mxu0
    %1679 = vdwg.mxu0
    %v1680 = vpack.c.bf16 %v1669, %v1666
    %v1681 = vpack.c.bf16 %v1677, %v1674
    %s1682 = scalar_lea.vmem [#allocation7], 224
    %v1683 = vld [vmem:[%s1682] sm:$0xf]
    %v1684 = vld [vmem:[%s1682 + $0x4] sm:$0xf]
    %v1685 = vld [vmem:[%s1682 + $0x8] sm:$0xf]
    %v1686 = vld [vmem:[%s1682 + $0xc] sm:$0xf]
    %v1687 = vld [vmem:[%s1682 + $0x10] sm:$0xf]
    %v1688 = vld [vmem:[%s1682 + $0x14] sm:$0xf]
    %v1689 = vld [vmem:[%s1682 + $0x18] sm:$0xf]
    %v1690 = vld [vmem:[%s1682 + $0x1c] sm:$0xf]
    %v1699 = vunpack.c.l.b16 %v1683
    %v1700 = vunpack.c.l.b16 %v1684
    %v1701 = vunpack.c.l.b16 %v1685
    %v1702 = vunpack.c.l.b16 %v1686
    %v1703 = vunpack.c.l.b16 %v1687
    %v1704 = vunpack.c.l.b16 %v1688
    %v1705 = vunpack.c.l.b16 %v1689
    %v1706 = vunpack.c.l.b16 %v1690
    %v1707 = vpack.c.b16 %v1700, %v1699
    %v1708 = vpack.c.b16 %v1702, %v1701
    %v1709 = vpack.c.b16 %v1704, %v1703
    %v1710 = vpack.c.b16 %v1706, %v1705
    %v1716 = vsel %vm679, %v1680, 0
    %v1719 = vsel %vm679, %v1681, 0
    %1721 = vmatprep.subr.bf16.mxu0 0
    %1722 = vmatpush1.bf16.msra.mxu0 %v1707
    %1723 = vmatprep.subr.bf16.mxu0 0
    %1724 = vmatpush1.bf16.msra.mxu0 %v1708
    %1725 = vmatprep.subr.bf16.mxu0 0
    %1726 = vmatpush1.bf16.msra.mxu0 %v1709
    %1727 = vmatprep.subr.bf16.mxu0 0
    %1728 = vmatpush1.bf16.msra.mxu0 %v1710
    %1729 = vmatprep.subr.bf16.mxu0 0
    %1730 = vmatpush1.bf16.msra.mxu0 0
    %1731 = vmatprep.subr.bf16.mxu0 0
    %1732 = vmatpush1.bf16.msra.mxu0 0
    %1733 = vmatprep.subr.bf16.mxu0 0
    %1734 = vmatpush1.bf16.msra.mxu0 0
    %1735 = vmatprep.subr.bf16.mxu0 0
    %1736 = vmatpush1.bf16.msra.mxu0 0
    %1737 = vmatprep.subr.bf16.mxu0 0
    %1738 = vmatpush1.bf16.msra.mxu0 0
    %1739 = vmatprep.subr.bf16.mxu0 0
    %1740 = vmatpush1.bf16.msra.mxu0 0
    %1741 = vmatprep.subr.bf16.mxu0 0
    %1742 = vmatpush1.bf16.msra.mxu0 0
    %1743 = vmatprep.subr.bf16.mxu0 0
    %1744 = vmatpush1.bf16.msra.mxu0 0
    %1745 = vmatprep.subr.bf16.mxu0 0
    %1746 = vmatpush1.bf16.msra.mxu0 0
    %1747 = vmatprep.subr.bf16.mxu0 0
    %1748 = vmatpush1.bf16.msra.mxu0 0
    %1749 = vmatprep.subr.bf16.mxu0 0
    %1750 = vmatpush1.bf16.msra.mxu0 0
    %1751 = vmatprep.subr.bf16.mxu0 0
    %1752 = vmatpush1.bf16.msra.mxu0 0
    %1753 = vmatprep.mubr.bf16.mxu0 0
    %1754 = vmatmul.mubr.bf16.gmra.mrb[0].mxu0 %v1716
    %v1755 = vpop.f32.mrb[0].mxu0
    %v1756 = vadd.f32 0.0, %v1755
    %v1757 = vpop.f32.mrb[0].mxu0
    %v1758 = vpop.f32.mrb[0].mxu0
    %v1759 = vadd.f32 0.0, %v1758
    %v1760 = vpop.f32.mrb[0].mxu0
    %1761 = vmatprep.mubr.bf16.mxu0 0
    %1762 = vmatmul.mubr.bf16.gmra.mrb[0].mxu0 %v1719
    %v1763 = vpop.f32.mrb[0].mxu0
    %v1764 = vadd.f32 0.0, %v1763
    %v1765 = vpop.f32.mrb[0].mxu0
    %v1766 = vpop.f32.mrb[0].mxu0
    %v1767 = vadd.f32 0.0, %v1766
    %v1768 = vpop.f32.mrb[0].mxu0
    %1769 = vdwg.mxu0
    %v1770 = vadd.f32 %v1610, %v1756
    %v1771 = vadd.f32 %v1611, %v1759
    %v1772 = vadd.f32 %v1612, %v1764
    %v1773 = vadd.f32 %v1613, %v1767
    %s1774 = scalar_lea.vmem [#allocation11], 128
    %v1775 = vld [vmem:[%s1774] sm:$0xf]
    %v1776 = vld [vmem:[%s1774 + $0x4] sm:$0xf]
    %v1777 = vld [vmem:[%s1774 + $0x8] sm:$0xf]
    %v1778 = vld [vmem:[%s1774 + $0xc] sm:$0xf]
    %v1783 = vunpack.c.l.b16 %v1775
    %v1784 = vunpack.c.l.b16 %v1776
    %v1785 = vunpack.c.l.b16 %v1777
    %v1786 = vunpack.c.l.b16 %v1778
    %v1787 = vpack.c.b16 %v1784, %v1783
    %v1788 = vpack.c.b16 %v1786, %v1785
    %1791 = vmatprep.subr.bf16.mxu0 0
    %1792 = vmatpush1.bf16.msra.mxu0 %v495
    %1793 = vmatprep.subr.bf16.mxu0 0
    %1794 = vmatpush1.bf16.msra.mxu0 %v496
    %1795 = vmatprep.subr.bf16.mxu0 0
    %1796 = vmatpush1.bf16.msra.mxu0 %v497
    %1797 = vmatprep.subr.bf16.mxu0 0
    %1798 = vmatpush1.bf16.msra.mxu0 %v498
    %1799 = vmatprep.subr.bf16.mxu0 0
    %1800 = vmatpush1.bf16.msra.mxu0 %v499
    %1801 = vmatprep.subr.bf16.mxu0 0
    %1802 = vmatpush1.bf16.msra.mxu0 %v500
    %1803 = vmatprep.subr.bf16.mxu0 0
    %1804 = vmatpush1.bf16.msra.mxu0 %v501
    %1805 = vmatprep.subr.bf16.mxu0 0
    %1806 = vmatpush1.bf16.msra.mxu0 %v502
    %1807 = vmatprep.subr.bf16.mxu0 0
    %1808 = vmatpush1.bf16.msra.mxu0 0
    %1809 = vmatprep.subr.bf16.mxu0 0
    %1810 = vmatpush1.bf16.msra.mxu0 0
    %1811 = vmatprep.subr.bf16.mxu0 0
    %1812 = vmatpush1.bf16.msra.mxu0 0
    %1813 = vmatprep.subr.bf16.mxu0 0
    %1814 = vmatpush1.bf16.msra.mxu0 0
    %1815 = vmatprep.subr.bf16.mxu0 0
    %1816 = vmatpush1.bf16.msra.mxu0 0
    %1817 = vmatprep.subr.bf16.mxu0 0
    %1818 = vmatpush1.bf16.msra.mxu0 0
    %1819 = vmatprep.subr.bf16.mxu0 0
    %1820 = vmatpush1.bf16.msra.mxu0 0
    %1821 = vmatprep.subr.bf16.mxu0 0
    %1822 = vmatpush1.bf16.msra.mxu0 0
    %1823 = vmatprep.mubr.bf16.mxu0 0
    %1824 = vmatmul.mubr.bf16.gmra.mrb[0].mxu0 %v1787
    %v1825 = vpop.f32.mrb[0].mxu0
    %v1826 = vadd.f32 0.0, %v1825
    %v1827 = vpop.f32.mrb[0].mxu0
    %v1828 = vpop.f32.mrb[0].mxu0
    %v1829 = vadd.f32 0.0, %v1828
    %v1830 = vpop.f32.mrb[0].mxu0
    %1831 = vmatprep.mubr.bf16.mxu0 0
    %1832 = vmatmul.mubr.bf16.gmra.mrb[0].mxu0 %v1788
    %v1833 = vpop.f32.mrb[0].mxu0
    %v1834 = vadd.f32 0.0, %v1833
    %v1835 = vpop.f32.mrb[0].mxu0
    %v1836 = vpop.f32.mrb[0].mxu0
    %v1837 = vadd.f32 0.0, %v1836
    %v1838 = vpop.f32.mrb[0].mxu0
    %1839 = vdwg.mxu0
    %v1840 = vpack.c.bf16 %v1829, %v1826
    %v1841 = vpack.c.bf16 %v1837, %v1834
    %s1842 = scalar_lea.vmem [#allocation7], 256
    %v1843 = vld [vmem:[%s1842] sm:$0xf]
    %v1844 = vld [vmem:[%s1842 + $0x4] sm:$0xf]
    %v1845 = vld [vmem:[%s1842 + $0x8] sm:$0xf]
    %v1846 = vld [vmem:[%s1842 + $0xc] sm:$0xf]
    %v1847 = vld [vmem:[%s1842 + $0x10] sm:$0xf]
    %v1848 = vld [vmem:[%s1842 + $0x14] sm:$0xf]
    %v1849 = vld [vmem:[%s1842 + $0x18] sm:$0xf]
    %v1850 = vld [vmem:[%s1842 + $0x1c] sm:$0xf]
    %v1859 = vunpack.c.l.b16 %v1843
    %v1860 = vunpack.c.l.b16 %v1844
    %v1861 = vunpack.c.l.b16 %v1845
    %v1862 = vunpack.c.l.b16 %v1846
    %v1863 = vunpack.c.l.b16 %v1847
    %v1864 = vunpack.c.l.b16 %v1848
    %v1865 = vunpack.c.l.b16 %v1849
    %v1866 = vunpack.c.l.b16 %v1850
    %v1867 = vpack.c.b16 %v1860, %v1859
    %v1868 = vpack.c.b16 %v1862, %v1861
    %v1869 = vpack.c.b16 %v1864, %v1863
    %v1870 = vpack.c.b16 %v1866, %v1865
    %v1876 = vsel %vm679, %v1840, 0
    %v1879 = vsel %vm679, %v1841, 0
    %1881 = vmatprep.subr.bf16.mxu0 0
    %1882 = vmatpush1.bf16.msra.mxu0 %v1867
    %1883 = vmatprep.subr.bf16.mxu0 0
    %1884 = vmatpush1.bf16.msra.mxu0 %v1868
    %1885 = vmatprep.subr.bf16.mxu0 0
    %1886 = vmatpush1.bf16.msra.mxu0 %v1869
    %1887 = vmatprep.subr.bf16.mxu0 0
    %1888 = vmatpush1.bf16.msra.mxu0 %v1870
    %1889 = vmatprep.subr.bf16.mxu0 0
    %1890 = vmatpush1.bf16.msra.mxu0 0
    %1891 = vmatprep.subr.bf16.mxu0 0
    %1892 = vmatpush1.bf16.msra.mxu0 0
    %1893 = vmatprep.subr.bf16.mxu0 0
    %1894 = vmatpush1.bf16.msra.mxu0 0
    %1895 = vmatprep.subr.bf16.mxu0 0
    %1896 = vmatpush1.bf16.msra.mxu0 0
    %1897 = vmatprep.subr.bf16.mxu0 0
    %1898 = vmatpush1.bf16.msra.mxu0 0
    %1899 = vmatprep.subr.bf16.mxu0 0
    %1900 = vmatpush1.bf16.msra.mxu0 0
    %1901 = vmatprep.subr.bf16.mxu0 0
    %1902 = vmatpush1.bf16.msra.mxu0 0
    %1903 = vmatprep.subr.bf16.mxu0 0
    %1904 = vmatpush1.bf16.msra.mxu0 0
    %1905 = vmatprep.subr.bf16.mxu0 0
    %1906 = vmatpush1.bf16.msra.mxu0 0
    %1907 = vmatprep.subr.bf16.mxu0 0
    %1908 = vmatpush1.bf16.msra.mxu0 0
    %1909 = vmatprep.subr.bf16.mxu0 0
    %1910 = vmatpush1.bf16.msra.mxu0 0
    %1911 = vmatprep.subr.bf16.mxu0 0
    %1912 = vmatpush1.bf16.msra.mxu0 0
    %1913 = vmatprep.mubr.bf16.mxu0 0
    %1914 = vmatmul.mubr.bf16.gmra.mrb[0].mxu0 %v1876
    %v1915 = vpop.f32.mrb[0].mxu0
    %v1916 = vadd.f32 0.0, %v1915
    %v1917 = vpop.f32.mrb[0].mxu0
    %v1918 = vpop.f32.mrb[0].mxu0
    %v1919 = vadd.f32 0.0, %v1918
    %v1920 = vpop.f32.mrb[0].mxu0
    %1921 = vmatprep.mubr.bf16.mxu0 0
    %1922 = vmatmul.mubr.bf16.gmra.mrb[0].mxu0 %v1879
    %v1923 = vpop.f32.mrb[0].mxu0
    %v1924 = vadd.f32 0.0, %v1923
    %v1925 = vpop.f32.mrb[0].mxu0
    %v1926 = vpop.f32.mrb[0].mxu0
    %v1927 = vadd.f32 0.0, %v1926
    %v1928 = vpop.f32.mrb[0].mxu0
    %1929 = vdwg.mxu0
    %v1930 = vadd.f32 %v1770, %v1916
    %v1931 = vadd.f32 %v1771, %v1919
    %v1932 = vadd.f32 %v1772, %v1924
    %v1933 = vadd.f32 %v1773, %v1927
    %v1934 = vadd.f32 %v1930, %v1931
    %v1935 = vadd.f32 %v1934, %v1932
    %v1936 = vadd.f32 %v1935, %v1933
    %v1937 = vrot.slane %v1936, 4
    %v1938 = vadd.f32 %v1936, %v1937
    %v1939 = vrot.slane %v1938, 2
    %v1940 = vadd.f32 %v1938, %v1939
    %v1941 = vrot.slane %v1940, 1
    %v1942 = vadd.f32 %v1940, %v1941
    %v1943 = vmul.f32 %v1942, 0.03125
    %v1944 = vmul.f32 %v1930, %v1930
    %v1945 = vmul.f32 %v1931, %v1931
    %v1946 = vmul.f32 %v1932, %v1932
    %v1947 = vmul.f32 %v1933, %v1933
    %v1948 = vadd.f32 %v1944, %v1945
    %v1949 = vadd.f32 %v1948, %v1946
    %v1950 = vadd.f32 %v1949, %v1947
    %v1951 = vrot.slane %v1950, 4
    %v1952 = vadd.f32 %v1950, %v1951
    %v1953 = vrot.slane %v1952, 2
    %v1954 = vadd.f32 %v1952, %v1953
    %v1955 = vrot.slane %v1954, 1
    %v1956 = vadd.f32 %v1954, %v1955
    %v1957 = vmul.f32 %v1956, 0.03125
    %v1958 = vmul.f32 %v1943, %v1943
    %v1959 = vsub.f32 %v1957, %v1958
    %v1960 = vsub.f32 %v1930, %v1943
    %v1961 = vsub.f32 %v1931, %v1943
    %v1962 = vsub.f32 %v1932, %v1943
    %v1963 = vsub.f32 %v1933, %v1943
    %v1964 = vadd.f32 %v1959, 1e-05
    %v1965 = vrsqrt.pop %v1964
    %v1966 = vmul.f32 %v1960, %v1965
    %v1967 = vmul.f32 %v1961, %v1965
    %v1968 = vmul.f32 %v1962, %v1965
    %v1969 = vmul.f32 %v1963, %v1965
    %v1970 = vld [vmem:[#allocation8] sm:$0x1]
    %v1972 = vlaneseq
    %v1973 = vshrl.u32 %v1972, 7
    %v1974 = vsub.s32 0, %v1973
    %v1975 = vrot.slane %v1970, %v1974
    %v1977 = vmul.f32 %v1966, %v1975
    %v1978 = vmul.f32 %v1967, %v1975
    %v1979 = vmul.f32 %v1968, %v1975
    %v1980 = vmul.f32 %v1969, %v1975
    %v1981 = vld [vmem:[#allocation10] sm:$0x1]
    %v1983 = vlaneseq
    %v1984 = vshrl.u32 %v1983, 7
    %v1985 = vsub.s32 0, %v1984
    %v1986 = vrot.slane %v1981, %v1985
    %v1988 = vadd.f32 %v1977, %v1986
    %v1989 = vadd.f32 %v1978, %v1986
    %v1990 = vadd.f32 %v1979, %v1986
    %v1991 = vadd.f32 %v1980, %v1986
    %vm1992 = vcmp.ge.f32.partialorder %v1988, 0.0
    %vm1993 = vcmp.ge.f32.partialorder %v1989, 0.0
    %vm1994 = vcmp.ge.f32.partialorder %v1990, 0.0
    %vm1995 = vcmp.ge.f32.partialorder %v1991, 0.0
    %v1996 = vmul.f32 %v1988, 0.2
    %v1997 = vmul.f32 %v1989, 0.2
    %v1998 = vmul.f32 %v1990, 0.2
    %v1999 = vmul.f32 %v1991, 0.2
    %v2000 = vsel %vm1992, %v1988, %v1996
    %v2001 = vsel %vm1993, %v1989, %v1997
    %v2002 = vsel %vm1994, %v1990, %v1998
    %v2003 = vsel %vm1995, %v1991, %v1999
    %v2004 = vpack.c.bf16 %v2001, %v2000
    %v2005 = vpack.c.bf16 %v2003, %v2002
    %v2006 = vld [vmem:[#allocation17] sm:$0xf]
    %v2008 = vsel %vm325, %v2006, 0
    %2010 = vmatprep.subr.bf16.mxu0 0
    %2011 = vmatpush1.bf16.msra.mxu0 %v2004
    %2012 = vmatprep.subr.bf16.mxu0 0
    %2013 = vmatpush1.bf16.msra.mxu0 %v2005
    %2014 = vmatprep.subr.bf16.mxu0 0
    %2015 = vmatpush1.bf16.msra.mxu0 0
    %2016 = vmatprep.subr.bf16.mxu0 0
    %2017 = vmatpush1.bf16.msra.mxu0 0
    %2018 = vmatprep.subr.bf16.mxu0 0
    %2019 = vmatpush1.bf16.msra.mxu0 0
    %2020 = vmatprep.subr.bf16.mxu0 0
    %2021 = vmatpush1.bf16.msra.mxu0 0
    %2022 = vmatprep.subr.bf16.mxu0 0
    %2023 = vmatpush1.bf16.msra.mxu0 0
    %2024 = vmatprep.subr.bf16.mxu0 0
    %2025 = vmatpush1.bf16.msra.mxu0 0
    %2026 = vmatprep.subr.bf16.mxu0 0
    %2027 = vmatpush1.bf16.msra.mxu0 0
    %2028 = vmatprep.subr.bf16.mxu0 0
    %2029 = vmatpush1.bf16.msra.mxu0 0
    %2030 = vmatprep.subr.bf16.mxu0 0
    %2031 = vmatpush1.bf16.msra.mxu0 0
    %2032 = vmatprep.subr.bf16.mxu0 0
    %2033 = vmatpush1.bf16.msra.mxu0 0
    %2034 = vmatprep.subr.bf16.mxu0 0
    %2035 = vmatpush1.bf16.msra.mxu0 0
    %2036 = vmatprep.subr.bf16.mxu0 0
    %2037 = vmatpush1.bf16.msra.mxu0 0
    %2038 = vmatprep.subr.bf16.mxu0 0
    %2039 = vmatpush1.bf16.msra.mxu0 0
    %2040 = vmatprep.subr.bf16.mxu0 0
    %2041 = vmatpush1.bf16.msra.mxu0 0
    %2042 = vmatprep.mubr.bf16.mxu0 0
    %2043 = vmatmul.mubr.bf16.gmra.mrb[0].mxu0 %v2008
    %v2044 = vpop.f32.mrb[0].mxu0
    %v2045 = vadd.f32 0.0, %v2044
    %v2046 = vpop.f32.mrb[0].mxu0
    %v2047 = vpop.f32.mrb[0].mxu0
    %v2048 = vpop.f32.mrb[0].mxu0
    %2049 = vdwg.mxu0
    %v2050 = vpack.c.bf16 %v2045, %v2045
    %v2051 = vld [vmem:[#allocation13] sm:$0xff]
    %v2052 = vld [vmem:[#allocation13 + $0x8] sm:$0xff]
    %v2053 = vld [vmem:[#allocation13 + $0x10] sm:$0xff]
    %v2054 = vld [vmem:[#allocation13 + $0x18] sm:$0xff]
    %v2055 = vld [vmem:[#allocation13 + $0x20] sm:$0xff]
    %v2056 = vld [vmem:[#allocation13 + $0x28] sm:$0xff]
    %v2057 = vld [vmem:[#allocation13 + $0x30] sm:$0xff]
    %v2058 = vld [vmem:[#allocation13 + $0x38] sm:$0xff]
    %v2059 = vld [vmem:[#allocation13 + $0x40] sm:$0xff]
    %v2060 = vld [vmem:[#allocation13 + $0x48] sm:$0xff]
    %v2061 = vld [vmem:[#allocation13 + $0x50] sm:$0xff]
    %v2062 = vld [vmem:[#allocation13 + $0x58] sm:$0xff]
    %v2063 = vld [vmem:[#allocation13 + $0x60] sm:$0xff]
    %v2064 = vld [vmem:[#allocation13 + $0x68] sm:$0xff]
    %v2065 = vld [vmem:[#allocation13 + $0x70] sm:$0xff]
    %v2066 = vld [vmem:[#allocation13 + $0x78] sm:$0xff]
    %s2067 = scalar_lea.vmem [#allocation17], 4
    %v2068 = vld [vmem:[%s2067] sm:$0xf]
    %v2070 = vsel %vm325, %v2068, 0
    %2072 = vmatprep.subr.bf16.mxu0 0
    %2073 = vmatpush1.bf16.msra.mxu0 %v2004
    %2074 = vmatprep.subr.bf16.mxu0 0
    %2075 = vmatpush1.bf16.msra.mxu0 %v2005
    %2076 = vmatprep.subr.bf16.mxu0 0
    %2077 = vmatpush1.bf16.msra.mxu0 0
    %2078 = vmatprep.subr.bf16.mxu0 0
    %2079 = vmatpush1.bf16.msra.mxu0 0
    %2080 = vmatprep.subr.bf16.mxu0 0
    %2081 = vmatpush1.bf16.msra.mxu0 0
    %2082 = vmatprep.subr.bf16.mxu0 0
    %2083 = vmatpush1.bf16.msra.mxu0 0
    %2084 = vmatprep.subr.bf16.mxu0 0
    %2085 = vmatpush1.bf16.msra.mxu0 0
    %2086 = vmatprep.subr.bf16.mxu0 0
    %2087 = vmatpush1.bf16.msra.mxu0 0
    %2088 = vmatprep.subr.bf16.mxu0 0
    %2089 = vmatpush1.bf16.msra.mxu0 0
    %2090 = vmatprep.subr.bf16.mxu0 0
    %2091 = vmatpush1.bf16.msra.mxu0 0
    %2092 = vmatprep.subr.bf16.mxu0 0
    %2093 = vmatpush1.bf16.msra.mxu0 0
    %2094 = vmatprep.subr.bf16.mxu0 0
    %2095 = vmatpush1.bf16.msra.mxu0 0
    %2096 = vmatprep.subr.bf16.mxu0 0
    %2097 = vmatpush1.bf16.msra.mxu0 0
    %2098 = vmatprep.subr.bf16.mxu0 0
    %2099 = vmatpush1.bf16.msra.mxu0 0
    %2100 = vmatprep.subr.bf16.mxu0 0
    %2101 = vmatpush1.bf16.msra.mxu0 0
    %2102 = vmatprep.subr.bf16.mxu0 0
    %2103 = vmatpush1.bf16.msra.mxu0 0
    %2104 = vmatprep.mubr.bf16.mxu0 0
    %2105 = vmatmul.mubr.bf16.gmra.mrb[0].mxu0 %v2070
    %v2106 = vpop.f32.mrb[0].mxu0
    %v2107 = vadd.f32 0.0, %v2106
    %v2108 = vpop.f32.mrb[0].mxu0
    %v2109 = vpop.f32.mrb[0].mxu0
    %v2110 = vpop.f32.mrb[0].mxu0
    %2111 = vdwg.mxu0
    %v2112 = vpack.c.bf16 %v2107, %v2107
    %s2113 = scalar_lea.vmem [#allocation13], 128
    %v2114 = vld [vmem:[%s2113] sm:$0xff]
    %v2115 = vld [vmem:[%s2113 + $0x8] sm:$0xff]
    %v2116 = vld [vmem:[%s2113 + $0x10] sm:$0xff]
    %v2117 = vld [vmem:[%s2113 + $0x18] sm:$0xff]
    %v2118 = vld [vmem:[%s2113 + $0x20] sm:$0xff]
    %v2119 = vld [vmem:[%s2113 + $0x28] sm:$0xff]
    %v2120 = vld [vmem:[%s2113 + $0x30] sm:$0xff]
    %v2121 = vld [vmem:[%s2113 + $0x38] sm:$0xff]
    %v2122 = vld [vmem:[%s2113 + $0x40] sm:$0xff]
    %v2123 = vld [vmem:[%s2113 + $0x48] sm:$0xff]
    %v2124 = vld [vmem:[%s2113 + $0x50] sm:$0xff]
    %v2125 = vld [vmem:[%s2113 + $0x58] sm:$0xff]
    %v2126 = vld [vmem:[%s2113 + $0x60] sm:$0xff]
    %v2127 = vld [vmem:[%s2113 + $0x68] sm:$0xff]
    %v2128 = vld [vmem:[%s2113 + $0x70] sm:$0xff]
    %v2129 = vld [vmem:[%s2113 + $0x78] sm:$0xff]
    %v2146 = vunpack.c.l.b16 %v2114
    %v2147 = vunpack.c.h.b16 %v2114
    %v2148 = vunpack.c.l.b16 %v2115
    %v2149 = vunpack.c.h.b16 %v2115
    %v2150 = vunpack.c.l.b16 %v2116
    %v2151 = vunpack.c.h.b16 %v2116
    %v2152 = vunpack.c.l.b16 %v2117
    %v2153 = vunpack.c.h.b16 %v2117
    %v2154 = vunpack.c.l.b16 %v2118
    %v2155 = vunpack.c.h.b16 %v2118
    %v2156 = vunpack.c.l.b16 %v2119
    %v2157 = vunpack.c.h.b16 %v2119
    %v2158 = vunpack.c.l.b16 %v2120
    %v2159 = vunpack.c.h.b16 %v2120
    %v2160 = vunpack.c.l.b16 %v2121
    %v2161 = vunpack.c.h.b16 %v2121
    %v2162 = vunpack.c.l.b16 %v2122
    %v2163 = vunpack.c.h.b16 %v2122
    %v2164 = vunpack.c.l.b16 %v2123
    %v2165 = vunpack.c.h.b16 %v2123
    %v2166 = vunpack.c.l.b16 %v2124
    %v2167 = vunpack.c.h.b16 %v2124
    %v2168 = vunpack.c.l.b16 %v2125
    %v2169 = vunpack.c.h.b16 %v2125
    %v2170 = vunpack.c.l.b16 %v2126
    %v2171 = vunpack.c.h.b16 %v2126
    %v2172 = vunpack.c.l.b16 %v2127
    %v2173 = vunpack.c.h.b16 %v2127
    %v2174 = vunpack.c.l.b16 %v2128
    %v2175 = vunpack.c.h.b16 %v2128
    %v2176 = vunpack.c.l.b16 %v2129
    %v2177 = vunpack.c.h.b16 %v2129
    %v2178 = vpack.c.b16 %v2148, %v2146
    %v2179 = vpack.c.b16 %v2149, %v2147
    %v2180 = vpack.c.b16 %v2152, %v2150
    %v2181 = vpack.c.b16 %v2153, %v2151
    %v2182 = vpack.c.b16 %v2156, %v2154
    %v2183 = vpack.c.b16 %v2157, %v2155
    %v2184 = vpack.c.b16 %v2160, %v2158
    %v2185 = vpack.c.b16 %v2161, %v2159
    %v2186 = vpack.c.b16 %v2164, %v2162
    %v2187 = vpack.c.b16 %v2165, %v2163
    %v2188 = vpack.c.b16 %v2168, %v2166
    %v2189 = vpack.c.b16 %v2169, %v2167
    %v2190 = vpack.c.b16 %v2172, %v2170
    %v2191 = vpack.c.b16 %v2173, %v2171
    %v2192 = vpack.c.b16 %v2176, %v2174
    %v2193 = vpack.c.b16 %v2177, %v2175
    %2210 = vmatprep.subr.bf16.mxu0 %v2179
    %2211 = vmatpush1.bf16.msra.mxu0 %v2178
    %2212 = vmatprep.subr.bf16.mxu0 %v2181
    %2213 = vmatpush1.bf16.msra.mxu0 %v2180
    %2214 = vmatprep.subr.bf16.mxu0 %v2183
    %2215 = vmatpush1.bf16.msra.mxu0 %v2182
    %2216 = vmatprep.subr.bf16.mxu0 %v2185
    %2217 = vmatpush1.bf16.msra.mxu0 %v2184
    %2218 = vmatprep.subr.bf16.mxu0 %v2187
    %2219 = vmatpush1.bf16.msra.mxu0 %v2186
    %2220 = vmatprep.subr.bf16.mxu0 %v2189
    %2221 = vmatpush1.bf16.msra.mxu0 %v2188
    %2222 = vmatprep.subr.bf16.mxu0 %v2191
    %2223 = vmatpush1.bf16.msra.mxu0 %v2190
    %2224 = vmatprep.subr.bf16.mxu0 %v2193
    %2225 = vmatpush1.bf16.msra.mxu0 %v2192
    %2226 = vmatprep.subr.bf16.mxu0 0
    %2227 = vmatpush1.bf16.msra.mxu0 0
    %2228 = vmatprep.subr.bf16.mxu0 0
    %2229 = vmatpush1.bf16.msra.mxu0 0
    %2230 = vmatprep.subr.bf16.mxu0 0
    %2231 = vmatpush1.bf16.msra.mxu0 0
    %2232 = vmatprep.subr.bf16.mxu0 0
    %2233 = vmatpush1.bf16.msra.mxu0 0
    %2234 = vmatprep.subr.bf16.mxu0 0
    %2235 = vmatpush1.bf16.msra.mxu0 0
    %2236 = vmatprep.subr.bf16.mxu0 0
    %2237 = vmatpush1.bf16.msra.mxu0 0
    %2238 = vmatprep.subr.bf16.mxu0 0
    %2239 = vmatpush1.bf16.msra.mxu0 0
    %2240 = vmatprep.subr.bf16.mxu0 0
    %2241 = vmatpush1.bf16.msra.mxu0 0
    %2242 = vmatprep.mubr.bf16.mxu0 0
    %2243 = vmatmul.mubr.bf16.gmra.mrb[0].mxu0 %v2112
    %v2244 = vpop.f32.mrb[0].mxu0
    %v2245 = vadd.f32 0.0, %v2244
    %v2246 = vpop.f32.mrb[0].mxu0
    %v2247 = vadd.f32 0.0, %v2246
    %v2248 = vpop.f32.mrb[0].mxu0
    %v2249 = vpop.f32.mrb[0].mxu0
    %2250 = vdwg.mxu0
    %v2267 = vunpack.c.l.b16 %v2051
    %v2268 = vunpack.c.h.b16 %v2051
    %v2269 = vunpack.c.l.b16 %v2052
    %v2270 = vunpack.c.h.b16 %v2052
    %v2271 = vunpack.c.l.b16 %v2053
    %v2272 = vunpack.c.h.b16 %v2053
    %v2273 = vunpack.c.l.b16 %v2054
    %v2274 = vunpack.c.h.b16 %v2054
    %v2275 = vunpack.c.l.b16 %v2055
    %v2276 = vunpack.c.h.b16 %v2055
    %v2277 = vunpack.c.l.b16 %v2056
    %v2278 = vunpack.c.h.b16 %v2056
    %v2279 = vunpack.c.l.b16 %v2057
    %v2280 = vunpack.c.h.b16 %v2057
    %v2281 = vunpack.c.l.b16 %v2058
    %v2282 = vunpack.c.h.b16 %v2058
    %v2283 = vunpack.c.l.b16 %v2059
    %v2284 = vunpack.c.h.b16 %v2059
    %v2285 = vunpack.c.l.b16 %v2060
    %v2286 = vunpack.c.h.b16 %v2060
    %v2287 = vunpack.c.l.b16 %v2061
    %v2288 = vunpack.c.h.b16 %v2061
    %v2289 = vunpack.c.l.b16 %v2062
    %v2290 = vunpack.c.h.b16 %v2062
    %v2291 = vunpack.c.l.b16 %v2063
    %v2292 = vunpack.c.h.b16 %v2063
    %v2293 = vunpack.c.l.b16 %v2064
    %v2294 = vunpack.c.h.b16 %v2064
    %v2295 = vunpack.c.l.b16 %v2065
    %v2296 = vunpack.c.h.b16 %v2065
    %v2297 = vunpack.c.l.b16 %v2066
    %v2298 = vunpack.c.h.b16 %v2066
    %v2299 = vpack.c.b16 %v2269, %v2267
    %v2300 = vpack.c.b16 %v2270, %v2268
    %v2301 = vpack.c.b16 %v2273, %v2271
    %v2302 = vpack.c.b16 %v2274, %v2272
    %v2303 = vpack.c.b16 %v2277, %v2275
    %v2304 = vpack.c.b16 %v2278, %v2276
    %v2305 = vpack.c.b16 %v2281, %v2279
    %v2306 = vpack.c.b16 %v2282, %v2280
    %v2307 = vpack.c.b16 %v2285, %v2283
    %v2308 = vpack.c.b16 %v2286, %v2284
    %v2309 = vpack.c.b16 %v2289, %v2287
    %v2310 = vpack.c.b16 %v2290, %v2288
    %v2311 = vpack.c.b16 %v2293, %v2291
    %v2312 = vpack.c.b16 %v2294, %v2292
    %v2313 = vpack.c.b16 %v2297, %v2295
    %v2314 = vpack.c.b16 %v2298, %v2296
    %2331 = vmatprep.subr.bf16.mxu0 %v2300
    %2332 = vmatpush1.bf16.msra.mxu0 %v2299
    %2333 = vmatprep.subr.bf16.mxu0 %v2302
    %2334 = vmatpush1.bf16.msra.mxu0 %v2301
    %2335 = vmatprep.subr.bf16.mxu0 %v2304
    %2336 = vmatpush1.bf16.msra.mxu0 %v2303
    %2337 = vmatprep.subr.bf16.mxu0 %v2306
    %2338 = vmatpush1.bf16.msra.mxu0 %v2305
    %2339 = vmatprep.subr.bf16.mxu0 %v2308
    %2340 = vmatpush1.bf16.msra.mxu0 %v2307
    %2341 = vmatprep.subr.bf16.mxu0 %v2310
    %2342 = vmatpush1.bf16.msra.mxu0 %v2309
    %2343 = vmatprep.subr.bf16.mxu0 %v2312
    %2344 = vmatpush1.bf16.msra.mxu0 %v2311
    %2345 = vmatprep.subr.bf16.mxu0 %v2314
    %2346 = vmatpush1.bf16.msra.mxu0 %v2313
    %2347 = vmatprep.subr.bf16.mxu0 0
    %2348 = vmatpush1.bf16.msra.mxu0 0
    %2349 = vmatprep.subr.bf16.mxu0 0
    %2350 = vmatpush1.bf16.msra.mxu0 0
    %2351 = vmatprep.subr.bf16.mxu0 0
    %2352 = vmatpush1.bf16.msra.mxu0 0
    %2353 = vmatprep.subr.bf16.mxu0 0
    %2354 = vmatpush1.bf16.msra.mxu0 0
    %2355 = vmatprep.subr.bf16.mxu0 0
    %2356 = vmatpush1.bf16.msra.mxu0 0
    %2357 = vmatprep.subr.bf16.mxu0 0
    %2358 = vmatpush1.bf16.msra.mxu0 0
    %2359 = vmatprep.subr.bf16.mxu0 0
    %2360 = vmatpush1.bf16.msra.mxu0 0
    %2361 = vmatprep.subr.bf16.mxu0 0
    %2362 = vmatpush1.bf16.msra.mxu0 0
    %2363 = vmatprep.mubr.bf16.mxu0 0
    %2364 = vmatmul.mubr.bf16.gmra.mrb[0].mxu0 %v2050
    %v2365 = vpop.f32.mrb[0].mxu0
    %v2366 = vadd.f32 %v2245, %v2365
    %v2367 = vpop.f32.mrb[0].mxu0
    %v2368 = vadd.f32 %v2247, %v2367
    %v2369 = vpop.f32.mrb[0].mxu0
    %v2370 = vpop.f32.mrb[0].mxu0
    %2371 = vdwg.mxu0
    %s2372 = scalar_lea.vmem [#allocation17], 8
    %v2373 = vld [vmem:[%s2372] sm:$0xf]
    %v2375 = vsel %vm325, %v2373, 0
    %2377 = vmatprep.subr.bf16.mxu0 0
    %2378 = vmatpush1.bf16.msra.mxu0 %v2004
    %2379 = vmatprep.subr.bf16.mxu0 0
    %2380 = vmatpush1.bf16.msra.mxu0 %v2005
    %2381 = vmatprep.subr.bf16.mxu0 0
    %2382 = vmatpush1.bf16.msra.mxu0 0
    %2383 = vmatprep.subr.bf16.mxu0 0
    %2384 = vmatpush1.bf16.msra.mxu0 0
    %2385 = vmatprep.subr.bf16.mxu0 0
    %2386 = vmatpush1.bf16.msra.mxu0 0
    %2387 = vmatprep.subr.bf16.mxu0 0
    %2388 = vmatpush1.bf16.msra.mxu0 0
    %2389 = vmatprep.subr.bf16.mxu0 0
    %2390 = vmatpush1.bf16.msra.mxu0 0
    %2391 = vmatprep.subr.bf16.mxu0 0
    %2392 = vmatpush1.bf16.msra.mxu0 0
    %2393 = vmatprep.subr.bf16.mxu0 0
    %2394 = vmatpush1.bf16.msra.mxu0 0
    %2395 = vmatprep.subr.bf16.mxu0 0
    %2396 = vmatpush1.bf16.msra.mxu0 0
    %2397 = vmatprep.subr.bf16.mxu0 0
    %2398 = vmatpush1.bf16.msra.mxu0 0
    %2399 = vmatprep.subr.bf16.mxu0 0
    %2400 = vmatpush1.bf16.msra.mxu0 0
    %2401 = vmatprep.subr.bf16.mxu0 0
    %2402 = vmatpush1.bf16.msra.mxu0 0
    %2403 = vmatprep.subr.bf16.mxu0 0
    %2404 = vmatpush1.bf16.msra.mxu0 0
    %2405 = vmatprep.subr.bf16.mxu0 0
    %2406 = vmatpush1.bf16.msra.mxu0 0
    %2407 = vmatprep.subr.bf16.mxu0 0
    %2408 = vmatpush1.bf16.msra.mxu0 0
    %2409 = vmatprep.mubr.bf16.mxu0 0
    %2410 = vmatmul.mubr.bf16.gmra.mrb[0].mxu0 %v2375
    %v2411 = vpop.f32.mrb[0].mxu0
    %v2412 = vadd.f32 0.0, %v2411
    %v2413 = vpop.f32.mrb[0].mxu0
    %v2414 = vpop.f32.mrb[0].mxu0
    %v2415 = vpop.f32.mrb[0].mxu0
    %2416 = vdwg.mxu0
    %v2417 = vpack.c.bf16 %v2412, %v2412
    %s2418 = scalar_lea.vmem [#allocation13], 256
    %v2419 = vld [vmem:[%s2418] sm:$0xff]
    %v2420 = vld [vmem:[%s2418 + $0x8] sm:$0xff]
    %v2421 = vld [vmem:[%s2418 + $0x10] sm:$0xff]
    %v2422 = vld [vmem:[%s2418 + $0x18] sm:$0xff]
    %v2423 = vld [vmem:[%s2418 + $0x20] sm:$0xff]
    %v2424 = vld [vmem:[%s2418 + $0x28] sm:$0xff]
    %v2425 = vld [vmem:[%s2418 + $0x30] sm:$0xff]
    %v2426 = vld [vmem:[%s2418 + $0x38] sm:$0xff]
    %v2427 = vld [vmem:[%s2418 + $0x40] sm:$0xff]
    %v2428 = vld [vmem:[%s2418 + $0x48] sm:$0xff]
    %v2429 = vld [vmem:[%s2418 + $0x50] sm:$0xff]
    %v2430 = vld [vmem:[%s2418 + $0x58] sm:$0xff]
    %v2431 = vld [vmem:[%s2418 + $0x60] sm:$0xff]
    %v2432 = vld [vmem:[%s2418 + $0x68] sm:$0xff]
    %v2433 = vld [vmem:[%s2418 + $0x70] sm:$0xff]
    %v2434 = vld [vmem:[%s2418 + $0x78] sm:$0xff]
    %v2451 = vunpack.c.l.b16 %v2419
    %v2452 = vunpack.c.h.b16 %v2419
    %v2453 = vunpack.c.l.b16 %v2420
    %v2454 = vunpack.c.h.b16 %v2420
    %v2455 = vunpack.c.l.b16 %v2421
    %v2456 = vunpack.c.h.b16 %v2421
    %v2457 = vunpack.c.l.b16 %v2422
    %v2458 = vunpack.c.h.b16 %v2422
    %v2459 = vunpack.c.l.b16 %v2423
    %v2460 = vunpack.c.h.b16 %v2423
    %v2461 = vunpack.c.l.b16 %v2424
    %v2462 = vunpack.c.h.b16 %v2424
    %v2463 = vunpack.c.l.b16 %v2425
    %v2464 = vunpack.c.h.b16 %v2425
    %v2465 = vunpack.c.l.b16 %v2426
    %v2466 = vunpack.c.h.b16 %v2426
    %v2467 = vunpack.c.l.b16 %v2427
    %v2468 = vunpack.c.h.b16 %v2427
    %v2469 = vunpack.c.l.b16 %v2428
    %v2470 = vunpack.c.h.b16 %v2428
    %v2471 = vunpack.c.l.b16 %v2429
    %v2472 = vunpack.c.h.b16 %v2429
    %v2473 = vunpack.c.l.b16 %v2430
    %v2474 = vunpack.c.h.b16 %v2430
    %v2475 = vunpack.c.l.b16 %v2431
    %v2476 = vunpack.c.h.b16 %v2431
    %v2477 = vunpack.c.l.b16 %v2432
    %v2478 = vunpack.c.h.b16 %v2432
    %v2479 = vunpack.c.l.b16 %v2433
    %v2480 = vunpack.c.h.b16 %v2433
    %v2481 = vunpack.c.l.b16 %v2434
    %v2482 = vunpack.c.h.b16 %v2434
    %v2483 = vpack.c.b16 %v2453, %v2451
    %v2484 = vpack.c.b16 %v2454, %v2452
    %v2485 = vpack.c.b16 %v2457, %v2455
    %v2486 = vpack.c.b16 %v2458, %v2456
    %v2487 = vpack.c.b16 %v2461, %v2459
    %v2488 = vpack.c.b16 %v2462, %v2460
    %v2489 = vpack.c.b16 %v2465, %v2463
    %v2490 = vpack.c.b16 %v2466, %v2464
    %v2491 = vpack.c.b16 %v2469, %v2467
    %v2492 = vpack.c.b16 %v2470, %v2468
    %v2493 = vpack.c.b16 %v2473, %v2471
    %v2494 = vpack.c.b16 %v2474, %v2472
    %v2495 = vpack.c.b16 %v2477, %v2475
    %v2496 = vpack.c.b16 %v2478, %v2476
    %v2497 = vpack.c.b16 %v2481, %v2479
    %v2498 = vpack.c.b16 %v2482, %v2480
    %2515 = vmatprep.subr.bf16.mxu0 %v2484
    %2516 = vmatpush1.bf16.msra.mxu0 %v2483
    %2517 = vmatprep.subr.bf16.mxu0 %v2486
    %2518 = vmatpush1.bf16.msra.mxu0 %v2485
    %2519 = vmatprep.subr.bf16.mxu0 %v2488
    %2520 = vmatpush1.bf16.msra.mxu0 %v2487
    %2521 = vmatprep.subr.bf16.mxu0 %v2490
    %2522 = vmatpush1.bf16.msra.mxu0 %v2489
    %2523 = vmatprep.subr.bf16.mxu0 %v2492
    %2524 = vmatpush1.bf16.msra.mxu0 %v2491
    %2525 = vmatprep.subr.bf16.mxu0 %v2494
    %2526 = vmatpush1.bf16.msra.mxu0 %v2493
    %2527 = vmatprep.subr.bf16.mxu0 %v2496
    %2528 = vmatpush1.bf16.msra.mxu0 %v2495
    %2529 = vmatprep.subr.bf16.mxu0 %v2498
    %2530 = vmatpush1.bf16.msra.mxu0 %v2497
    %2531 = vmatprep.subr.bf16.mxu0 0
    %2532 = vmatpush1.bf16.msra.mxu0 0
    %2533 = vmatprep.subr.bf16.mxu0 0
    %2534 = vmatpush1.bf16.msra.mxu0 0
    %2535 = vmatprep.subr.bf16.mxu0 0
    %2536 = vmatpush1.bf16.msra.mxu0 0
    %2537 = vmatprep.subr.bf16.mxu0 0
    %2538 = vmatpush1.bf16.msra.mxu0 0
    %2539 = vmatprep.subr.bf16.mxu0 0
    %2540 = vmatpush1.bf16.msra.mxu0 0
    %2541 = vmatprep.subr.bf16.mxu0 0
    %2542 = vmatpush1.bf16.msra.mxu0 0
    %2543 = vmatprep.subr.bf16.mxu0 0
    %2544 = vmatpush1.bf16.msra.mxu0 0
    %2545 = vmatprep.subr.bf16.mxu0 0
    %2546 = vmatpush1.bf16.msra.mxu0 0
    %2547 = vmatprep.mubr.bf16.mxu0 0
    %2548 = vmatmul.mubr.bf16.gmra.mrb[0].mxu0 %v2417
    %v2549 = vpop.f32.mrb[0].mxu0
    %v2550 = vadd.f32 0.0, %v2549
    %v2551 = vpop.f32.mrb[0].mxu0
    %v2552 = vadd.f32 0.0, %v2551
    %v2553 = vpop.f32.mrb[0].mxu0
    %v2554 = vpop.f32.mrb[0].mxu0
    %2555 = vdwg.mxu0
    %v2556 = vadd.f32 %v2366, %v2550
    %v2557 = vadd.f32 %v2368, %v2552
    %s2558 = scalar_lea.vmem [#allocation17], 12
    %v2559 = vld [vmem:[%s2558] sm:$0xf]
    %v2561 = vsel %vm325, %v2559, 0
    %2563 = vmatprep.subr.bf16.mxu0 0
    %2564 = vmatpush1.bf16.msra.mxu0 %v2004
    %2565 = vmatprep.subr.bf16.mxu0 0
    %2566 = vmatpush1.bf16.msra.mxu0 %v2005
    %2567 = vmatprep.subr.bf16.mxu0 0
    %2568 = vmatpush1.bf16.msra.mxu0 0
    %2569 = vmatprep.subr.bf16.mxu0 0
    %2570 = vmatpush1.bf16.msra.mxu0 0
    %2571 = vmatprep.subr.bf16.mxu0 0
    %2572 = vmatpush1.bf16.msra.mxu0 0
    %2573 = vmatprep.subr.bf16.mxu0 0
    %2574 = vmatpush1.bf16.msra.mxu0 0
    %2575 = vmatprep.subr.bf16.mxu0 0
    %2576 = vmatpush1.bf16.msra.mxu0 0
    %2577 = vmatprep.subr.bf16.mxu0 0
    %2578 = vmatpush1.bf16.msra.mxu0 0
    %2579 = vmatprep.subr.bf16.mxu0 0
    %2580 = vmatpush1.bf16.msra.mxu0 0
    %2581 = vmatprep.subr.bf16.mxu0 0
    %2582 = vmatpush1.bf16.msra.mxu0 0
    %2583 = vmatprep.subr.bf16.mxu0 0
    %2584 = vmatpush1.bf16.msra.mxu0 0
    %2585 = vmatprep.subr.bf16.mxu0 0
    %2586 = vmatpush1.bf16.msra.mxu0 0
    %2587 = vmatprep.subr.bf16.mxu0 0
    %2588 = vmatpush1.bf16.msra.mxu0 0
    %2589 = vmatprep.subr.bf16.mxu0 0
    %2590 = vmatpush1.bf16.msra.mxu0 0
    %2591 = vmatprep.subr.bf16.mxu0 0
    %2592 = vmatpush1.bf16.msra.mxu0 0
    %2593 = vmatprep.subr.bf16.mxu0 0
    %2594 = vmatpush1.bf16.msra.mxu0 0
    %2595 = vmatprep.mubr.bf16.mxu0 0
    %2596 = vmatmul.mubr.bf16.gmra.mrb[0].mxu0 %v2561
    %v2597 = vpop.f32.mrb[0].mxu0
    %v2598 = vadd.f32 0.0, %v2597
    %v2599 = vpop.f32.mrb[0].mxu0
    %v2600 = vpop.f32.mrb[0].mxu0
    %v2601 = vpop.f32.mrb[0].mxu0
    %2602 = vdwg.mxu0
    %v2603 = vpack.c.bf16 %v2598, %v2598
    %s2604 = scalar_lea.vmem [#allocation13], 384
    %v2605 = vld [vmem:[%s2604] sm:$0xff]
    %v2606 = vld [vmem:[%s2604 + $0x8] sm:$0xff]
    %v2607 = vld [vmem:[%s2604 + $0x10] sm:$0xff]
    %v2608 = vld [vmem:[%s2604 + $0x18] sm:$0xff]
    %v2609 = vld [vmem:[%s2604 + $0x20] sm:$0xff]
    %v2610 = vld [vmem:[%s2604 + $0x28] sm:$0xff]
    %v2611 = vld [vmem:[%s2604 + $0x30] sm:$0xff]
    %v2612 = vld [vmem:[%s2604 + $0x38] sm:$0xff]
    %v2613 = vld [vmem:[%s2604 + $0x40] sm:$0xff]
    %v2614 = vld [vmem:[%s2604 + $0x48] sm:$0xff]
    %v2615 = vld [vmem:[%s2604 + $0x50] sm:$0xff]
    %v2616 = vld [vmem:[%s2604 + $0x58] sm:$0xff]
    %v2617 = vld [vmem:[%s2604 + $0x60] sm:$0xff]
    %v2618 = vld [vmem:[%s2604 + $0x68] sm:$0xff]
    %v2619 = vld [vmem:[%s2604 + $0x70] sm:$0xff]
    %v2620 = vld [vmem:[%s2604 + $0x78] sm:$0xff]
    %v2637 = vunpack.c.l.b16 %v2605
    %v2638 = vunpack.c.h.b16 %v2605
    %v2639 = vunpack.c.l.b16 %v2606
    %v2640 = vunpack.c.h.b16 %v2606
    %v2641 = vunpack.c.l.b16 %v2607
    %v2642 = vunpack.c.h.b16 %v2607
    %v2643 = vunpack.c.l.b16 %v2608
    %v2644 = vunpack.c.h.b16 %v2608
    %v2645 = vunpack.c.l.b16 %v2609
    %v2646 = vunpack.c.h.b16 %v2609
    %v2647 = vunpack.c.l.b16 %v2610
    %v2648 = vunpack.c.h.b16 %v2610
    %v2649 = vunpack.c.l.b16 %v2611
    %v2650 = vunpack.c.h.b16 %v2611
    %v2651 = vunpack.c.l.b16 %v2612
    %v2652 = vunpack.c.h.b16 %v2612
    %v2653 = vunpack.c.l.b16 %v2613
    %v2654 = vunpack.c.h.b16 %v2613
    %v2655 = vunpack.c.l.b16 %v2614
    %v2656 = vunpack.c.h.b16 %v2614
    %v2657 = vunpack.c.l.b16 %v2615
    %v2658 = vunpack.c.h.b16 %v2615
    %v2659 = vunpack.c.l.b16 %v2616
    %v2660 = vunpack.c.h.b16 %v2616
    %v2661 = vunpack.c.l.b16 %v2617
    %v2662 = vunpack.c.h.b16 %v2617
    %v2663 = vunpack.c.l.b16 %v2618
    %v2664 = vunpack.c.h.b16 %v2618
    %v2665 = vunpack.c.l.b16 %v2619
    %v2666 = vunpack.c.h.b16 %v2619
    %v2667 = vunpack.c.l.b16 %v2620
    %v2668 = vunpack.c.h.b16 %v2620
    %v2669 = vpack.c.b16 %v2639, %v2637
    %v2670 = vpack.c.b16 %v2640, %v2638
    %v2671 = vpack.c.b16 %v2643, %v2641
    %v2672 = vpack.c.b16 %v2644, %v2642
    %v2673 = vpack.c.b16 %v2647, %v2645
    %v2674 = vpack.c.b16 %v2648, %v2646
    %v2675 = vpack.c.b16 %v2651, %v2649
    %v2676 = vpack.c.b16 %v2652, %v2650
    %v2677 = vpack.c.b16 %v2655, %v2653
    %v2678 = vpack.c.b16 %v2656, %v2654
    %v2679 = vpack.c.b16 %v2659, %v2657
    %v2680 = vpack.c.b16 %v2660, %v2658
    %v2681 = vpack.c.b16 %v2663, %v2661
    %v2682 = vpack.c.b16 %v2664, %v2662
    %v2683 = vpack.c.b16 %v2667, %v2665
    %v2684 = vpack.c.b16 %v2668, %v2666
    %2701 = vmatprep.subr.bf16.mxu0 %v2670
    %2702 = vmatpush1.bf16.msra.mxu0 %v2669
    %2703 = vmatprep.subr.bf16.mxu0 %v2672
    %2704 = vmatpush1.bf16.msra.mxu0 %v2671
    %2705 = vmatprep.subr.bf16.mxu0 %v2674
    %2706 = vmatpush1.bf16.msra.mxu0 %v2673
    %2707 = vmatprep.subr.bf16.mxu0 %v2676
    %2708 = vmatpush1.bf16.msra.mxu0 %v2675
    %2709 = vmatprep.subr.bf16.mxu0 %v2678
    %2710 = vmatpush1.bf16.msra.mxu0 %v2677
    %2711 = vmatprep.subr.bf16.mxu0 %v2680
    %2712 = vmatpush1.bf16.msra.mxu0 %v2679
    %2713 = vmatprep.subr.bf16.mxu0 %v2682
    %2714 = vmatpush1.bf16.msra.mxu0 %v2681
    %2715 = vmatprep.subr.bf16.mxu0 %v2684
    %2716 = vmatpush1.bf16.msra.mxu0 %v2683
    %2717 = vmatprep.subr.bf16.mxu0 0
    %2718 = vmatpush1.bf16.msra.mxu0 0
    %2719 = vmatprep.subr.bf16.mxu0 0
    %2720 = vmatpush1.bf16.msra.mxu0 0
    %2721 = vmatprep.subr.bf16.mxu0 0
    %2722 = vmatpush1.bf16.msra.mxu0 0
    %2723 = vmatprep.subr.bf16.mxu0 0
    %2724 = vmatpush1.bf16.msra.mxu0 0
    %2725 = vmatprep.subr.bf16.mxu0 0
    %2726 = vmatpush1.bf16.msra.mxu0 0
    %2727 = vmatprep.subr.bf16.mxu0 0
    %2728 = vmatpush1.bf16.msra.mxu0 0
    %2729 = vmatprep.subr.bf16.mxu0 0
    %2730 = vmatpush1.bf16.msra.mxu0 0
    %2731 = vmatprep.subr.bf16.mxu0 0
    %2732 = vmatpush1.bf16.msra.mxu0 0
    %2733 = vmatprep.mubr.bf16.mxu0 0
    %2734 = vmatmul.mubr.bf16.gmra.mrb[0].mxu0 %v2603
    %v2735 = vpop.f32.mrb[0].mxu0
    %v2736 = vadd.f32 0.0, %v2735
    %v2737 = vpop.f32.mrb[0].mxu0
    %v2738 = vadd.f32 0.0, %v2737
    %v2739 = vpop.f32.mrb[0].mxu0
    %v2740 = vpop.f32.mrb[0].mxu0
    %2741 = vdwg.mxu0
    %v2742 = vadd.f32 %v2556, %v2736
    %v2743 = vadd.f32 %v2557, %v2738
    %s2744 = scalar_lea.vmem [#allocation17], 16
    %v2745 = vld [vmem:[%s2744] sm:$0xf]
    %v2747 = vsel %vm325, %v2745, 0
    %2749 = vmatprep.subr.bf16.mxu0 0
    %2750 = vmatpush1.bf16.msra.mxu0 %v2004
    %2751 = vmatprep.subr.bf16.mxu0 0
    %2752 = vmatpush1.bf16.msra.mxu0 %v2005
    %2753 = vmatprep.subr.bf16.mxu0 0
    %2754 = vmatpush1.bf16.msra.mxu0 0
    %2755 = vmatprep.subr.bf16.mxu0 0
    %2756 = vmatpush1.bf16.msra.mxu0 0
    %2757 = vmatprep.subr.bf16.mxu0 0
    %2758 = vmatpush1.bf16.msra.mxu0 0
    %2759 = vmatprep.subr.bf16.mxu0 0
    %2760 = vmatpush1.bf16.msra.mxu0 0
    %2761 = vmatprep.subr.bf16.mxu0 0
    %2762 = vmatpush1.bf16.msra.mxu0 0
    %2763 = vmatprep.subr.bf16.mxu0 0
    %2764 = vmatpush1.bf16.msra.mxu0 0
    %2765 = vmatprep.subr.bf16.mxu0 0
    %2766 = vmatpush1.bf16.msra.mxu0 0
    %2767 = vmatprep.subr.bf16.mxu0 0
    %2768 = vmatpush1.bf16.msra.mxu0 0
    %2769 = vmatprep.subr.bf16.mxu0 0
    %2770 = vmatpush1.bf16.msra.mxu0 0
    %2771 = vmatprep.subr.bf16.mxu0 0
    %2772 = vmatpush1.bf16.msra.mxu0 0
    %2773 = vmatprep.subr.bf16.mxu0 0
    %2774 = vmatpush1.bf16.msra.mxu0 0
    %2775 = vmatprep.subr.bf16.mxu0 0
    %2776 = vmatpush1.bf16.msra.mxu0 0
    %2777 = vmatprep.subr.bf16.mxu0 0
    %2778 = vmatpush1.bf16.msra.mxu0 0
    %2779 = vmatprep.subr.bf16.mxu0 0
    %2780 = vmatpush1.bf16.msra.mxu0 0
    %2781 = vmatprep.mubr.bf16.mxu0 0
    %2782 = vmatmul.mubr.bf16.gmra.mrb[0].mxu0 %v2747
    %v2783 = vpop.f32.mrb[0].mxu0
    %v2784 = vadd.f32 0.0, %v2783
    %v2785 = vpop.f32.mrb[0].mxu0
    %v2786 = vpop.f32.mrb[0].mxu0
    %v2787 = vpop.f32.mrb[0].mxu0
    %2788 = vdwg.mxu0
    %v2789 = vpack.c.bf16 %v2784, %v2784
    %s2790 = scalar_lea.vmem [#allocation13], 512
    %v2791 = vld [vmem:[%s2790] sm:$0xff]
    %v2792 = vld [vmem:[%s2790 + $0x8] sm:$0xff]
    %v2793 = vld [vmem:[%s2790 + $0x10] sm:$0xff]
    %v2794 = vld [vmem:[%s2790 + $0x18] sm:$0xff]
    %v2795 = vld [vmem:[%s2790 + $0x20] sm:$0xff]
    %v2796 = vld [vmem:[%s2790 + $0x28] sm:$0xff]
    %v2797 = vld [vmem:[%s2790 + $0x30] sm:$0xff]
    %v2798 = vld [vmem:[%s2790 + $0x38] sm:$0xff]
    %v2799 = vld [vmem:[%s2790 + $0x40] sm:$0xff]
    %v2800 = vld [vmem:[%s2790 + $0x48] sm:$0xff]
    %v2801 = vld [vmem:[%s2790 + $0x50] sm:$0xff]
    %v2802 = vld [vmem:[%s2790 + $0x58] sm:$0xff]
    %v2803 = vld [vmem:[%s2790 + $0x60] sm:$0xff]
    %v2804 = vld [vmem:[%s2790 + $0x68] sm:$0xff]
    %v2805 = vld [vmem:[%s2790 + $0x70] sm:$0xff]
    %v2806 = vld [vmem:[%s2790 + $0x78] sm:$0xff]
    %v2823 = vunpack.c.l.b16 %v2791
    %v2824 = vunpack.c.h.b16 %v2791
    %v2825 = vunpack.c.l.b16 %v2792
    %v2826 = vunpack.c.h.b16 %v2792
    %v2827 = vunpack.c.l.b16 %v2793
    %v2828 = vunpack.c.h.b16 %v2793
    %v2829 = vunpack.c.l.b16 %v2794
    %v2830 = vunpack.c.h.b16 %v2794
    %v2831 = vunpack.c.l.b16 %v2795
    %v2832 = vunpack.c.h.b16 %v2795
    %v2833 = vunpack.c.l.b16 %v2796
    %v2834 = vunpack.c.h.b16 %v2796
    %v2835 = vunpack.c.l.b16 %v2797
    %v2836 = vunpack.c.h.b16 %v2797
    %v2837 = vunpack.c.l.b16 %v2798
    %v2838 = vunpack.c.h.b16 %v2798
    %v2839 = vunpack.c.l.b16 %v2799
    %v2840 = vunpack.c.h.b16 %v2799
    %v2841 = vunpack.c.l.b16 %v2800
    %v2842 = vunpack.c.h.b16 %v2800
    %v2843 = vunpack.c.l.b16 %v2801
    %v2844 = vunpack.c.h.b16 %v2801
    %v2845 = vunpack.c.l.b16 %v2802
    %v2846 = vunpack.c.h.b16 %v2802
    %v2847 = vunpack.c.l.b16 %v2803
    %v2848 = vunpack.c.h.b16 %v2803
    %v2849 = vunpack.c.l.b16 %v2804
    %v2850 = vunpack.c.h.b16 %v2804
    %v2851 = vunpack.c.l.b16 %v2805
    %v2852 = vunpack.c.h.b16 %v2805
    %v2853 = vunpack.c.l.b16 %v2806
    %v2854 = vunpack.c.h.b16 %v2806
    %v2855 = vpack.c.b16 %v2825, %v2823
    %v2856 = vpack.c.b16 %v2826, %v2824
    %v2857 = vpack.c.b16 %v2829, %v2827
    %v2858 = vpack.c.b16 %v2830, %v2828
    %v2859 = vpack.c.b16 %v2833, %v2831
    %v2860 = vpack.c.b16 %v2834, %v2832
    %v2861 = vpack.c.b16 %v2837, %v2835
    %v2862 = vpack.c.b16 %v2838, %v2836
    %v2863 = vpack.c.b16 %v2841, %v2839
    %v2864 = vpack.c.b16 %v2842, %v2840
    %v2865 = vpack.c.b16 %v2845, %v2843
    %v2866 = vpack.c.b16 %v2846, %v2844
    %v2867 = vpack.c.b16 %v2849, %v2847
    %v2868 = vpack.c.b16 %v2850, %v2848
    %v2869 = vpack.c.b16 %v2853, %v2851
    %v2870 = vpack.c.b16 %v2854, %v2852
    %2887 = vmatprep.subr.bf16.mxu0 %v2856
    %2888 = vmatpush1.bf16.msra.mxu0 %v2855
    %2889 = vmatprep.subr.bf16.mxu0 %v2858
    %2890 = vmatpush1.bf16.msra.mxu0 %v2857
    %2891 = vmatprep.subr.bf16.mxu0 %v2860
    %2892 = vmatpush1.bf16.msra.mxu0 %v2859
    %2893 = vmatprep.subr.bf16.mxu0 %v2862
    %2894 = vmatpush1.bf16.msra.mxu0 %v2861
    %2895 = vmatprep.subr.bf16.mxu0 %v2864
    %2896 = vmatpush1.bf16.msra.mxu0 %v2863
    %2897 = vmatprep.subr.bf16.mxu0 %v2866
    %2898 = vmatpush1.bf16.msra.mxu0 %v2865
    %2899 = vmatprep.subr.bf16.mxu0 %v2868
    %2900 = vmatpush1.bf16.msra.mxu0 %v2867
    %2901 = vmatprep.subr.bf16.mxu0 %v2870
    %2902 = vmatpush1.bf16.msra.mxu0 %v2869
    %2903 = vmatprep.subr.bf16.mxu0 0
    %2904 = vmatpush1.bf16.msra.mxu0 0
    %2905 = vmatprep.subr.bf16.mxu0 0
    %2906 = vmatpush1.bf16.msra.mxu0 0
    %2907 = vmatprep.subr.bf16.mxu0 0
    %2908 = vmatpush1.bf16.msra.mxu0 0
    %2909 = vmatprep.subr.bf16.mxu0 0
    %2910 = vmatpush1.bf16.msra.mxu0 0
    %2911 = vmatprep.subr.bf16.mxu0 0
    %2912 = vmatpush1.bf16.msra.mxu0 0
    %2913 = vmatprep.subr.bf16.mxu0 0
    %2914 = vmatpush1.bf16.msra.mxu0 0
    %2915 = vmatprep.subr.bf16.mxu0 0
    %2916 = vmatpush1.bf16.msra.mxu0 0
    %2917 = vmatprep.subr.bf16.mxu0 0
    %2918 = vmatpush1.bf16.msra.mxu0 0
    %2919 = vmatprep.mubr.bf16.mxu0 0
    %2920 = vmatmul.mubr.bf16.gmra.mrb[0].mxu0 %v2789
    %v2921 = vpop.f32.mrb[0].mxu0
    %v2922 = vadd.f32 0.0, %v2921
    %v2923 = vpop.f32.mrb[0].mxu0
    %v2924 = vadd.f32 0.0, %v2923
    %v2925 = vpop.f32.mrb[0].mxu0
    %v2926 = vpop.f32.mrb[0].mxu0
    %2927 = vdwg.mxu0
    %v2928 = vadd.f32 %v2742, %v2922
    %v2929 = vadd.f32 %v2743, %v2924
    %s2930 = scalar_lea.vmem [#allocation17], 20
    %v2931 = vld [vmem:[%s2930] sm:$0xf]
    %v2933 = vsel %vm325, %v2931, 0
    %2935 = vmatprep.subr.bf16.mxu0 0
    %2936 = vmatpush1.bf16.msra.mxu0 %v2004
    %2937 = vmatprep.subr.bf16.mxu0 0
    %2938 = vmatpush1.bf16.msra.mxu0 %v2005
    %2939 = vmatprep.subr.bf16.mxu0 0
    %2940 = vmatpush1.bf16.msra.mxu0 0
    %2941 = vmatprep.subr.bf16.mxu0 0
    %2942 = vmatpush1.bf16.msra.mxu0 0
    %2943 = vmatprep.subr.bf16.mxu0 0
    %2944 = vmatpush1.bf16.msra.mxu0 0
    %2945 = vmatprep.subr.bf16.mxu0 0
    %2946 = vmatpush1.bf16.msra.mxu0 0
    %2947 = vmatprep.subr.bf16.mxu0 0
    %2948 = vmatpush1.bf16.msra.mxu0 0
    %2949 = vmatprep.subr.bf16.mxu0 0
    %2950 = vmatpush1.bf16.msra.mxu0 0
    %2951 = vmatprep.subr.bf16.mxu0 0
    %2952 = vmatpush1.bf16.msra.mxu0 0
    %2953 = vmatprep.subr.bf16.mxu0 0
    %2954 = vmatpush1.bf16.msra.mxu0 0
    %2955 = vmatprep.subr.bf16.mxu0 0
    %2956 = vmatpush1.bf16.msra.mxu0 0
    %2957 = vmatprep.subr.bf16.mxu0 0
    %2958 = vmatpush1.bf16.msra.mxu0 0
    %2959 = vmatprep.subr.bf16.mxu0 0
    %2960 = vmatpush1.bf16.msra.mxu0 0
    %2961 = vmatprep.subr.bf16.mxu0 0
    %2962 = vmatpush1.bf16.msra.mxu0 0
    %2963 = vmatprep.subr.bf16.mxu0 0
    %2964 = vmatpush1.bf16.msra.mxu0 0
    %2965 = vmatprep.subr.bf16.mxu0 0
    %2966 = vmatpush1.bf16.msra.mxu0 0
    %2967 = vmatprep.mubr.bf16.mxu0 0
    %2968 = vmatmul.mubr.bf16.gmra.mrb[0].mxu0 %v2933
    %v2969 = vpop.f32.mrb[0].mxu0
    %v2970 = vadd.f32 0.0, %v2969
    %v2971 = vpop.f32.mrb[0].mxu0
    %v2972 = vpop.f32.mrb[0].mxu0
    %v2973 = vpop.f32.mrb[0].mxu0
    %2974 = vdwg.mxu0
    %v2975 = vpack.c.bf16 %v2970, %v2970
    %s2976 = scalar_lea.vmem [#allocation13], 640
    %v2977 = vld [vmem:[%s2976] sm:$0xff]
    %v2978 = vld [vmem:[%s2976 + $0x8] sm:$0xff]
    %v2979 = vld [vmem:[%s2976 + $0x10] sm:$0xff]
    %v2980 = vld [vmem:[%s2976 + $0x18] sm:$0xff]
    %v2981 = vld [vmem:[%s2976 + $0x20] sm:$0xff]
    %v2982 = vld [vmem:[%s2976 + $0x28] sm:$0xff]
    %v2983 = vld [vmem:[%s2976 + $0x30] sm:$0xff]
    %v2984 = vld [vmem:[%s2976 + $0x38] sm:$0xff]
    %v2985 = vld [vmem:[%s2976 + $0x40] sm:$0xff]
    %v2986 = vld [vmem:[%s2976 + $0x48] sm:$0xff]
    %v2987 = vld [vmem:[%s2976 + $0x50] sm:$0xff]
    %v2988 = vld [vmem:[%s2976 + $0x58] sm:$0xff]
    %v2989 = vld [vmem:[%s2976 + $0x60] sm:$0xff]
    %v2990 = vld [vmem:[%s2976 + $0x68] sm:$0xff]
    %v2991 = vld [vmem:[%s2976 + $0x70] sm:$0xff]
    %v2992 = vld [vmem:[%s2976 + $0x78] sm:$0xff]
    %v3009 = vunpack.c.l.b16 %v2977
    %v3010 = vunpack.c.h.b16 %v2977
    %v3011 = vunpack.c.l.b16 %v2978
    %v3012 = vunpack.c.h.b16 %v2978
    %v3013 = vunpack.c.l.b16 %v2979
    %v3014 = vunpack.c.h.b16 %v2979
    %v3015 = vunpack.c.l.b16 %v2980
    %v3016 = vunpack.c.h.b16 %v2980
    %v3017 = vunpack.c.l.b16 %v2981
    %v3018 = vunpack.c.h.b16 %v2981
    %v3019 = vunpack.c.l.b16 %v2982
    %v3020 = vunpack.c.h.b16 %v2982
    %v3021 = vunpack.c.l.b16 %v2983
    %v3022 = vunpack.c.h.b16 %v2983
    %v3023 = vunpack.c.l.b16 %v2984
    %v3024 = vunpack.c.h.b16 %v2984
    %v3025 = vunpack.c.l.b16 %v2985
    %v3026 = vunpack.c.h.b16 %v2985
    %v3027 = vunpack.c.l.b16 %v2986
    %v3028 = vunpack.c.h.b16 %v2986
    %v3029 = vunpack.c.l.b16 %v2987
    %v3030 = vunpack.c.h.b16 %v2987
    %v3031 = vunpack.c.l.b16 %v2988
    %v3032 = vunpack.c.h.b16 %v2988
    %v3033 = vunpack.c.l.b16 %v2989
    %v3034 = vunpack.c.h.b16 %v2989
    %v3035 = vunpack.c.l.b16 %v2990
    %v3036 = vunpack.c.h.b16 %v2990
    %v3037 = vunpack.c.l.b16 %v2991
    %v3038 = vunpack.c.h.b16 %v2991
    %v3039 = vunpack.c.l.b16 %v2992
    %v3040 = vunpack.c.h.b16 %v2992
    %v3041 = vpack.c.b16 %v3011, %v3009
    %v3042 = vpack.c.b16 %v3012, %v3010
    %v3043 = vpack.c.b16 %v3015, %v3013
    %v3044 = vpack.c.b16 %v3016, %v3014
    %v3045 = vpack.c.b16 %v3019, %v3017
    %v3046 = vpack.c.b16 %v3020, %v3018
    %v3047 = vpack.c.b16 %v3023, %v3021
    %v3048 = vpack.c.b16 %v3024, %v3022
    %v3049 = vpack.c.b16 %v3027, %v3025
    %v3050 = vpack.c.b16 %v3028, %v3026
    %v3051 = vpack.c.b16 %v3031, %v3029
    %v3052 = vpack.c.b16 %v3032, %v3030
    %v3053 = vpack.c.b16 %v3035, %v3033
    %v3054 = vpack.c.b16 %v3036, %v3034
    %v3055 = vpack.c.b16 %v3039, %v3037
    %v3056 = vpack.c.b16 %v3040, %v3038
    %3073 = vmatprep.subr.bf16.mxu0 %v3042
    %3074 = vmatpush1.bf16.msra.mxu0 %v3041
    %3075 = vmatprep.subr.bf16.mxu0 %v3044
    %3076 = vmatpush1.bf16.msra.mxu0 %v3043
    %3077 = vmatprep.subr.bf16.mxu0 %v3046
    %3078 = vmatpush1.bf16.msra.mxu0 %v3045
    %3079 = vmatprep.subr.bf16.mxu0 %v3048
    %3080 = vmatpush1.bf16.msra.mxu0 %v3047
    %3081 = vmatprep.subr.bf16.mxu0 %v3050
    %3082 = vmatpush1.bf16.msra.mxu0 %v3049
    %3083 = vmatprep.subr.bf16.mxu0 %v3052
    %3084 = vmatpush1.bf16.msra.mxu0 %v3051
    %3085 = vmatprep.subr.bf16.mxu0 %v3054
    %3086 = vmatpush1.bf16.msra.mxu0 %v3053
    %3087 = vmatprep.subr.bf16.mxu0 %v3056
    %3088 = vmatpush1.bf16.msra.mxu0 %v3055
    %3089 = vmatprep.subr.bf16.mxu0 0
    %3090 = vmatpush1.bf16.msra.mxu0 0
    %3091 = vmatprep.subr.bf16.mxu0 0
    %3092 = vmatpush1.bf16.msra.mxu0 0
    %3093 = vmatprep.subr.bf16.mxu0 0
    %3094 = vmatpush1.bf16.msra.mxu0 0
    %3095 = vmatprep.subr.bf16.mxu0 0
    %3096 = vmatpush1.bf16.msra.mxu0 0
    %3097 = vmatprep.subr.bf16.mxu0 0
    %3098 = vmatpush1.bf16.msra.mxu0 0
    %3099 = vmatprep.subr.bf16.mxu0 0
    %3100 = vmatpush1.bf16.msra.mxu0 0
    %3101 = vmatprep.subr.bf16.mxu0 0
    %3102 = vmatpush1.bf16.msra.mxu0 0
    %3103 = vmatprep.subr.bf16.mxu0 0
    %3104 = vmatpush1.bf16.msra.mxu0 0
    %3105 = vmatprep.mubr.bf16.mxu0 0
    %3106 = vmatmul.mubr.bf16.gmra.mrb[0].mxu0 %v2975
    %v3107 = vpop.f32.mrb[0].mxu0
    %v3108 = vadd.f32 0.0, %v3107
    %v3109 = vpop.f32.mrb[0].mxu0
    %v3110 = vadd.f32 0.0, %v3109
    %v3111 = vpop.f32.mrb[0].mxu0
    %v3112 = vpop.f32.mrb[0].mxu0
    %3113 = vdwg.mxu0
    %v3114 = vadd.f32 %v2928, %v3108
    %v3115 = vadd.f32 %v2929, %v3110
    %s3116 = scalar_lea.vmem [#allocation17], 24
    %v3117 = vld [vmem:[%s3116] sm:$0xf]
    %v3119 = vsel %vm325, %v3117, 0
    %3121 = vmatprep.subr.bf16.mxu0 0
    %3122 = vmatpush1.bf16.msra.mxu0 %v2004
    %3123 = vmatprep.subr.bf16.mxu0 0
    %3124 = vmatpush1.bf16.msra.mxu0 %v2005
    %3125 = vmatprep.subr.bf16.mxu0 0
    %3126 = vmatpush1.bf16.msra.mxu0 0
    %3127 = vmatprep.subr.bf16.mxu0 0
    %3128 = vmatpush1.bf16.msra.mxu0 0
    %3129 = vmatprep.subr.bf16.mxu0 0
    %3130 = vmatpush1.bf16.msra.mxu0 0
    %3131 = vmatprep.subr.bf16.mxu0 0
    %3132 = vmatpush1.bf16.msra.mxu0 0
    %3133 = vmatprep.subr.bf16.mxu0 0
    %3134 = vmatpush1.bf16.msra.mxu0 0
    %3135 = vmatprep.subr.bf16.mxu0 0
    %3136 = vmatpush1.bf16.msra.mxu0 0
    %3137 = vmatprep.subr.bf16.mxu0 0
    %3138 = vmatpush1.bf16.msra.mxu0 0
    %3139 = vmatprep.subr.bf16.mxu0 0
    %3140 = vmatpush1.bf16.msra.mxu0 0
    %3141 = vmatprep.subr.bf16.mxu0 0
    %3142 = vmatpush1.bf16.msra.mxu0 0
    %3143 = vmatprep.subr.bf16.mxu0 0
    %3144 = vmatpush1.bf16.msra.mxu0 0
    %3145 = vmatprep.subr.bf16.mxu0 0
    %3146 = vmatpush1.bf16.msra.mxu0 0
    %3147 = vmatprep.subr.bf16.mxu0 0
    %3148 = vmatpush1.bf16.msra.mxu0 0
    %3149 = vmatprep.subr.bf16.mxu0 0
    %3150 = vmatpush1.bf16.msra.mxu0 0
    %3151 = vmatprep.subr.bf16.mxu0 0
    %3152 = vmatpush1.bf16.msra.mxu0 0
    %3153 = vmatprep.mubr.bf16.mxu0 0
    %3154 = vmatmul.mubr.bf16.gmra.mrb[0].mxu0 %v3119
    %v3155 = vpop.f32.mrb[0].mxu0
    %v3156 = vadd.f32 0.0, %v3155
    %v3157 = vpop.f32.mrb[0].mxu0
    %v3158 = vpop.f32.mrb[0].mxu0
    %v3159 = vpop.f32.mrb[0].mxu0
    %3160 = vdwg.mxu0
    %v3161 = vpack.c.bf16 %v3156, %v3156
    %s3162 = scalar_lea.vmem [#allocation13], 768
    %v3163 = vld [vmem:[%s3162] sm:$0xff]
    %v3164 = vld [vmem:[%s3162 + $0x8] sm:$0xff]
    %v3165 = vld [vmem:[%s3162 + $0x10] sm:$0xff]
    %v3166 = vld [vmem:[%s3162 + $0x18] sm:$0xff]
    %v3167 = vld [vmem:[%s3162 + $0x20] sm:$0xff]
    %v3168 = vld [vmem:[%s3162 + $0x28] sm:$0xff]
    %v3169 = vld [vmem:[%s3162 + $0x30] sm:$0xff]
    %v3170 = vld [vmem:[%s3162 + $0x38] sm:$0xff]
    %v3171 = vld [vmem:[%s3162 + $0x40] sm:$0xff]
    %v3172 = vld [vmem:[%s3162 + $0x48] sm:$0xff]
    %v3173 = vld [vmem:[%s3162 + $0x50] sm:$0xff]
    %v3174 = vld [vmem:[%s3162 + $0x58] sm:$0xff]
    %v3175 = vld [vmem:[%s3162 + $0x60] sm:$0xff]
    %v3176 = vld [vmem:[%s3162 + $0x68] sm:$0xff]
    %v3177 = vld [vmem:[%s3162 + $0x70] sm:$0xff]
    %v3178 = vld [vmem:[%s3162 + $0x78] sm:$0xff]
    %v3195 = vunpack.c.l.b16 %v3163
    %v3196 = vunpack.c.h.b16 %v3163
    %v3197 = vunpack.c.l.b16 %v3164
    %v3198 = vunpack.c.h.b16 %v3164
    %v3199 = vunpack.c.l.b16 %v3165
    %v3200 = vunpack.c.h.b16 %v3165
    %v3201 = vunpack.c.l.b16 %v3166
    %v3202 = vunpack.c.h.b16 %v3166
    %v3203 = vunpack.c.l.b16 %v3167
    %v3204 = vunpack.c.h.b16 %v3167
    %v3205 = vunpack.c.l.b16 %v3168
    %v3206 = vunpack.c.h.b16 %v3168
    %v3207 = vunpack.c.l.b16 %v3169
    %v3208 = vunpack.c.h.b16 %v3169
    %v3209 = vunpack.c.l.b16 %v3170
    %v3210 = vunpack.c.h.b16 %v3170
    %v3211 = vunpack.c.l.b16 %v3171
    %v3212 = vunpack.c.h.b16 %v3171
    %v3213 = vunpack.c.l.b16 %v3172
    %v3214 = vunpack.c.h.b16 %v3172
    %v3215 = vunpack.c.l.b16 %v3173
    %v3216 = vunpack.c.h.b16 %v3173
    %v3217 = vunpack.c.l.b16 %v3174
    %v3218 = vunpack.c.h.b16 %v3174
    %v3219 = vunpack.c.l.b16 %v3175
    %v3220 = vunpack.c.h.b16 %v3175
    %v3221 = vunpack.c.l.b16 %v3176
    %v3222 = vunpack.c.h.b16 %v3176
    %v3223 = vunpack.c.l.b16 %v3177
    %v3224 = vunpack.c.h.b16 %v3177
    %v3225 = vunpack.c.l.b16 %v3178
    %v3226 = vunpack.c.h.b16 %v3178
    %v3227 = vpack.c.b16 %v3197, %v3195
    %v3228 = vpack.c.b16 %v3198, %v3196
    %v3229 = vpack.c.b16 %v3201, %v3199
    %v3230 = vpack.c.b16 %v3202, %v3200
    %v3231 = vpack.c.b16 %v3205, %v3203
    %v3232 = vpack.c.b16 %v3206, %v3204
    %v3233 = vpack.c.b16 %v3209, %v3207
    %v3234 = vpack.c.b16 %v3210, %v3208
    %v3235 = vpack.c.b16 %v3213, %v3211
    %v3236 = vpack.c.b16 %v3214, %v3212
    %v3237 = vpack.c.b16 %v3217, %v3215
    %v3238 = vpack.c.b16 %v3218, %v3216
    %v3239 = vpack.c.b16 %v3221, %v3219
    %v3240 = vpack.c.b16 %v3222, %v3220
    %v3241 = vpack.c.b16 %v3225, %v3223
    %v3242 = vpack.c.b16 %v3226, %v3224
    %3259 = vmatprep.subr.bf16.mxu0 %v3228
    %3260 = vmatpush1.bf16.msra.mxu0 %v3227
    %3261 = vmatprep.subr.bf16.mxu0 %v3230
    %3262 = vmatpush1.bf16.msra.mxu0 %v3229
    %3263 = vmatprep.subr.bf16.mxu0 %v3232
    %3264 = vmatpush1.bf16.msra.mxu0 %v3231
    %3265 = vmatprep.subr.bf16.mxu0 %v3234
    %3266 = vmatpush1.bf16.msra.mxu0 %v3233
    %3267 = vmatprep.subr.bf16.mxu0 %v3236
    %3268 = vmatpush1.bf16.msra.mxu0 %v3235
    %3269 = vmatprep.subr.bf16.mxu0 %v3238
    %3270 = vmatpush1.bf16.msra.mxu0 %v3237
    %3271 = vmatprep.subr.bf16.mxu0 %v3240
    %3272 = vmatpush1.bf16.msra.mxu0 %v3239
    %3273 = vmatprep.subr.bf16.mxu0 %v3242
    %3274 = vmatpush1.bf16.msra.mxu0 %v3241
    %3275 = vmatprep.subr.bf16.mxu0 0
    %3276 = vmatpush1.bf16.msra.mxu0 0
    %3277 = vmatprep.subr.bf16.mxu0 0
    %3278 = vmatpush1.bf16.msra.mxu0 0
    %3279 = vmatprep.subr.bf16.mxu0 0
    %3280 = vmatpush1.bf16.msra.mxu0 0
    %3281 = vmatprep.subr.bf16.mxu0 0
    %3282 = vmatpush1.bf16.msra.mxu0 0
    %3283 = vmatprep.subr.bf16.mxu0 0
    %3284 = vmatpush1.bf16.msra.mxu0 0
    %3285 = vmatprep.subr.bf16.mxu0 0
    %3286 = vmatpush1.bf16.msra.mxu0 0
    %3287 = vmatprep.subr.bf16.mxu0 0
    %3288 = vmatpush1.bf16.msra.mxu0 0
    %3289 = vmatprep.subr.bf16.mxu0 0
    %3290 = vmatpush1.bf16.msra.mxu0 0
    %3291 = vmatprep.mubr.bf16.mxu0 0
    %3292 = vmatmul.mubr.bf16.gmra.mrb[0].mxu0 %v3161
    %v3293 = vpop.f32.mrb[0].mxu0
    %v3294 = vadd.f32 0.0, %v3293
    %v3295 = vpop.f32.mrb[0].mxu0
    %v3296 = vadd.f32 0.0, %v3295
    %v3297 = vpop.f32.mrb[0].mxu0
    %v3298 = vpop.f32.mrb[0].mxu0
    %3299 = vdwg.mxu0
    %v3300 = vadd.f32 %v3114, %v3294
    %v3301 = vadd.f32 %v3115, %v3296
    %s3302 = scalar_lea.vmem [#allocation17], 28
    %v3303 = vld [vmem:[%s3302] sm:$0xf]
    %v3305 = vsel %vm325, %v3303, 0
    %3307 = vmatprep.subr.bf16.mxu0 0
    %3308 = vmatpush1.bf16.msra.mxu0 %v2004
    %3309 = vmatprep.subr.bf16.mxu0 0
    %3310 = vmatpush1.bf16.msra.mxu0 %v2005
    %3311 = vmatprep.subr.bf16.mxu0 0
    %3312 = vmatpush1.bf16.msra.mxu0 0
    %3313 = vmatprep.subr.bf16.mxu0 0
    %3314 = vmatpush1.bf16.msra.mxu0 0
    %3315 = vmatprep.subr.bf16.mxu0 0
    %3316 = vmatpush1.bf16.msra.mxu0 0
    %3317 = vmatprep.subr.bf16.mxu0 0
    %3318 = vmatpush1.bf16.msra.mxu0 0
    %3319 = vmatprep.subr.bf16.mxu0 0
    %3320 = vmatpush1.bf16.msra.mxu0 0
    %3321 = vmatprep.subr.bf16.mxu0 0
    %3322 = vmatpush1.bf16.msra.mxu0 0
    %3323 = vmatprep.subr.bf16.mxu0 0
    %3324 = vmatpush1.bf16.msra.mxu0 0
    %3325 = vmatprep.subr.bf16.mxu0 0
    %3326 = vmatpush1.bf16.msra.mxu0 0
    %3327 = vmatprep.subr.bf16.mxu0 0
    %3328 = vmatpush1.bf16.msra.mxu0 0
    %3329 = vmatprep.subr.bf16.mxu0 0
    %3330 = vmatpush1.bf16.msra.mxu0 0
    %3331 = vmatprep.subr.bf16.mxu0 0
    %3332 = vmatpush1.bf16.msra.mxu0 0
    %3333 = vmatprep.subr.bf16.mxu0 0
    %3334 = vmatpush1.bf16.msra.mxu0 0
    %3335 = vmatprep.subr.bf16.mxu0 0
    %3336 = vmatpush1.bf16.msra.mxu0 0
    %3337 = vmatprep.subr.bf16.mxu0 0
    %3338 = vmatpush1.bf16.msra.mxu0 0
    %3339 = vmatprep.mubr.bf16.mxu0 0
    %3340 = vmatmul.mubr.bf16.gmra.mrb[0].mxu0 %v3305
    %v3341 = vpop.f32.mrb[0].mxu0
    %v3342 = vadd.f32 0.0, %v3341
    %v3343 = vpop.f32.mrb[0].mxu0
    %v3344 = vpop.f32.mrb[0].mxu0
    %v3345 = vpop.f32.mrb[0].mxu0
    %3346 = vdwg.mxu0
    %v3347 = vpack.c.bf16 %v3342, %v3342
    %s3348 = scalar_lea.vmem [#allocation13], 896
    %v3349 = vld [vmem:[%s3348] sm:$0xff]
    %v3350 = vld [vmem:[%s3348 + $0x8] sm:$0xff]
    %v3351 = vld [vmem:[%s3348 + $0x10] sm:$0xff]
    %v3352 = vld [vmem:[%s3348 + $0x18] sm:$0xff]
    %v3353 = vld [vmem:[%s3348 + $0x20] sm:$0xff]
    %v3354 = vld [vmem:[%s3348 + $0x28] sm:$0xff]
    %v3355 = vld [vmem:[%s3348 + $0x30] sm:$0xff]
    %v3356 = vld [vmem:[%s3348 + $0x38] sm:$0xff]
    %v3357 = vld [vmem:[%s3348 + $0x40] sm:$0xff]
    %v3358 = vld [vmem:[%s3348 + $0x48] sm:$0xff]
    %v3359 = vld [vmem:[%s3348 + $0x50] sm:$0xff]
    %v3360 = vld [vmem:[%s3348 + $0x58] sm:$0xff]
    %v3361 = vld [vmem:[%s3348 + $0x60] sm:$0xff]
    %v3362 = vld [vmem:[%s3348 + $0x68] sm:$0xff]
    %v3363 = vld [vmem:[%s3348 + $0x70] sm:$0xff]
    %v3364 = vld [vmem:[%s3348 + $0x78] sm:$0xff]
    %v3381 = vunpack.c.l.b16 %v3349
    %v3382 = vunpack.c.h.b16 %v3349
    %v3383 = vunpack.c.l.b16 %v3350
    %v3384 = vunpack.c.h.b16 %v3350
    %v3385 = vunpack.c.l.b16 %v3351
    %v3386 = vunpack.c.h.b16 %v3351
    %v3387 = vunpack.c.l.b16 %v3352
    %v3388 = vunpack.c.h.b16 %v3352
    %v3389 = vunpack.c.l.b16 %v3353
    %v3390 = vunpack.c.h.b16 %v3353
    %v3391 = vunpack.c.l.b16 %v3354
    %v3392 = vunpack.c.h.b16 %v3354
    %v3393 = vunpack.c.l.b16 %v3355
    %v3394 = vunpack.c.h.b16 %v3355
    %v3395 = vunpack.c.l.b16 %v3356
    %v3396 = vunpack.c.h.b16 %v3356
    %v3397 = vunpack.c.l.b16 %v3357
    %v3398 = vunpack.c.h.b16 %v3357
    %v3399 = vunpack.c.l.b16 %v3358
    %v3400 = vunpack.c.h.b16 %v3358
    %v3401 = vunpack.c.l.b16 %v3359
    %v3402 = vunpack.c.h.b16 %v3359
    %v3403 = vunpack.c.l.b16 %v3360
    %v3404 = vunpack.c.h.b16 %v3360
    %v3405 = vunpack.c.l.b16 %v3361
    %v3406 = vunpack.c.h.b16 %v3361
    %v3407 = vunpack.c.l.b16 %v3362
    %v3408 = vunpack.c.h.b16 %v3362
    %v3409 = vunpack.c.l.b16 %v3363
    %v3410 = vunpack.c.h.b16 %v3363
    %v3411 = vunpack.c.l.b16 %v3364
    %v3412 = vunpack.c.h.b16 %v3364
    %v3413 = vpack.c.b16 %v3383, %v3381
    %v3414 = vpack.c.b16 %v3384, %v3382
    %v3415 = vpack.c.b16 %v3387, %v3385
    %v3416 = vpack.c.b16 %v3388, %v3386
    %v3417 = vpack.c.b16 %v3391, %v3389
    %v3418 = vpack.c.b16 %v3392, %v3390
    %v3419 = vpack.c.b16 %v3395, %v3393
    %v3420 = vpack.c.b16 %v3396, %v3394
    %v3421 = vpack.c.b16 %v3399, %v3397
    %v3422 = vpack.c.b16 %v3400, %v3398
    %v3423 = vpack.c.b16 %v3403, %v3401
    %v3424 = vpack.c.b16 %v3404, %v3402
    %v3425 = vpack.c.b16 %v3407, %v3405
    %v3426 = vpack.c.b16 %v3408, %v3406
    %v3427 = vpack.c.b16 %v3411, %v3409
    %v3428 = vpack.c.b16 %v3412, %v3410
    %3445 = vmatprep.subr.bf16.mxu0 %v3414
    %3446 = vmatpush1.bf16.msra.mxu0 %v3413
    %3447 = vmatprep.subr.bf16.mxu0 %v3416
    %3448 = vmatpush1.bf16.msra.mxu0 %v3415
    %3449 = vmatprep.subr.bf16.mxu0 %v3418
    %3450 = vmatpush1.bf16.msra.mxu0 %v3417
    %3451 = vmatprep.subr.bf16.mxu0 %v3420
    %3452 = vmatpush1.bf16.msra.mxu0 %v3419
    %3453 = vmatprep.subr.bf16.mxu0 %v3422
    %3454 = vmatpush1.bf16.msra.mxu0 %v3421
    %3455 = vmatprep.subr.bf16.mxu0 %v3424
    %3456 = vmatpush1.bf16.msra.mxu0 %v3423
    %3457 = vmatprep.subr.bf16.mxu0 %v3426
    %3458 = vmatpush1.bf16.msra.mxu0 %v3425
    %3459 = vmatprep.subr.bf16.mxu0 %v3428
    %3460 = vmatpush1.bf16.msra.mxu0 %v3427
    %3461 = vmatprep.subr.bf16.mxu0 0
    %3462 = vmatpush1.bf16.msra.mxu0 0
    %3463 = vmatprep.subr.bf16.mxu0 0
    %3464 = vmatpush1.bf16.msra.mxu0 0
    %3465 = vmatprep.subr.bf16.mxu0 0
    %3466 = vmatpush1.bf16.msra.mxu0 0
    %3467 = vmatprep.subr.bf16.mxu0 0
    %3468 = vmatpush1.bf16.msra.mxu0 0
    %3469 = vmatprep.subr.bf16.mxu0 0
    %3470 = vmatpush1.bf16.msra.mxu0 0
    %3471 = vmatprep.subr.bf16.mxu0 0
    %3472 = vmatpush1.bf16.msra.mxu0 0
    %3473 = vmatprep.subr.bf16.mxu0 0
    %3474 = vmatpush1.bf16.msra.mxu0 0
    %3475 = vmatprep.subr.bf16.mxu0 0
    %3476 = vmatpush1.bf16.msra.mxu0 0
    %3477 = vmatprep.mubr.bf16.mxu0 0
    %3478 = vmatmul.mubr.bf16.gmra.mrb[0].mxu0 %v3347
    %v3479 = vpop.f32.mrb[0].mxu0
    %v3480 = vadd.f32 0.0, %v3479
    %v3481 = vpop.f32.mrb[0].mxu0
    %v3482 = vadd.f32 0.0, %v3481
    %v3483 = vpop.f32.mrb[0].mxu0
    %v3484 = vpop.f32.mrb[0].mxu0
    %3485 = vdwg.mxu0
    %v3486 = vadd.f32 %v3300, %v3480
    %v3487 = vadd.f32 %v3301, %v3482
    %s3488 = scalar_lea.vmem [#allocation17], 32
    %v3489 = vld [vmem:[%s3488] sm:$0xf]
    %v3491 = vsel %vm325, %v3489, 0
    %3493 = vmatprep.subr.bf16.mxu0 0
    %3494 = vmatpush1.bf16.msra.mxu0 %v2004
    %3495 = vmatprep.subr.bf16.mxu0 0
    %3496 = vmatpush1.bf16.msra.mxu0 %v2005
    %3497 = vmatprep.subr.bf16.mxu0 0
    %3498 = vmatpush1.bf16.msra.mxu0 0
    %3499 = vmatprep.subr.bf16.mxu0 0
    %3500 = vmatpush1.bf16.msra.mxu0 0
    %3501 = vmatprep.subr.bf16.mxu0 0
    %3502 = vmatpush1.bf16.msra.mxu0 0
    %3503 = vmatprep.subr.bf16.mxu0 0
    %3504 = vmatpush1.bf16.msra.mxu0 0
    %3505 = vmatprep.subr.bf16.mxu0 0
    %3506 = vmatpush1.bf16.msra.mxu0 0
    %3507 = vmatprep.subr.bf16.mxu0 0
    %3508 = vmatpush1.bf16.msra.mxu0 0
    %3509 = vmatprep.subr.bf16.mxu0 0
    %3510 = vmatpush1.bf16.msra.mxu0 0
    %3511 = vmatprep.subr.bf16.mxu0 0
    %3512 = vmatpush1.bf16.msra.mxu0 0
    %3513 = vmatprep.subr.bf16.mxu0 0
    %3514 = vmatpush1.bf16.msra.mxu0 0
    %3515 = vmatprep.subr.bf16.mxu0 0
    %3516 = vmatpush1.bf16.msra.mxu0 0
    %3517 = vmatprep.subr.bf16.mxu0 0
    %3518 = vmatpush1.bf16.msra.mxu0 0
    %3519 = vmatprep.subr.bf16.mxu0 0
    %3520 = vmatpush1.bf16.msra.mxu0 0
    %3521 = vmatprep.subr.bf16.mxu0 0
    %3522 = vmatpush1.bf16.msra.mxu0 0
    %3523 = vmatprep.subr.bf16.mxu0 0
    %3524 = vmatpush1.bf16.msra.mxu0 0
    %3525 = vmatprep.mubr.bf16.mxu0 0
    %3526 = vmatmul.mubr.bf16.gmra.mrb[0].mxu0 %v3491
    %v3527 = vpop.f32.mrb[0].mxu0
    %v3528 = vadd.f32 0.0, %v3527
    %v3529 = vpop.f32.mrb[0].mxu0
    %v3530 = vpop.f32.mrb[0].mxu0
    %v3531 = vpop.f32.mrb[0].mxu0
    %3532 = vdwg.mxu0
    %v3533 = vpack.c.bf16 %v3528, %v3528
    %s3534 = scalar_lea.vmem [#allocation13], 1024
    %v3535 = vld [vmem:[%s3534] sm:$0xff]
    %v3536 = vld [vmem:[%s3534 + $0x8] sm:$0xff]
    %v3537 = vld [vmem:[%s3534 + $0x10] sm:$0xff]
    %v3538 = vld [vmem:[%s3534 + $0x18] sm:$0xff]
    %v3539 = vld [vmem:[%s3534 + $0x20] sm:$0xff]
    %v3540 = vld [vmem:[%s3534 + $0x28] sm:$0xff]
    %v3541 = vld [vmem:[%s3534 + $0x30] sm:$0xff]
    %v3542 = vld [vmem:[%s3534 + $0x38] sm:$0xff]
    %v3543 = vld [vmem:[%s3534 + $0x40] sm:$0xff]
    %v3544 = vld [vmem:[%s3534 + $0x48] sm:$0xff]
    %v3545 = vld [vmem:[%s3534 + $0x50] sm:$0xff]
    %v3546 = vld [vmem:[%s3534 + $0x58] sm:$0xff]
    %v3547 = vld [vmem:[%s3534 + $0x60] sm:$0xff]
    %v3548 = vld [vmem:[%s3534 + $0x68] sm:$0xff]
    %v3549 = vld [vmem:[%s3534 + $0x70] sm:$0xff]
    %v3550 = vld [vmem:[%s3534 + $0x78] sm:$0xff]
    %v3567 = vunpack.c.l.b16 %v3535
    %v3568 = vunpack.c.h.b16 %v3535
    %v3569 = vunpack.c.l.b16 %v3536
    %v3570 = vunpack.c.h.b16 %v3536
    %v3571 = vunpack.c.l.b16 %v3537
    %v3572 = vunpack.c.h.b16 %v3537
    %v3573 = vunpack.c.l.b16 %v3538
    %v3574 = vunpack.c.h.b16 %v3538
    %v3575 = vunpack.c.l.b16 %v3539
    %v3576 = vunpack.c.h.b16 %v3539
    %v3577 = vunpack.c.l.b16 %v3540
    %v3578 = vunpack.c.h.b16 %v3540
    %v3579 = vunpack.c.l.b16 %v3541
    %v3580 = vunpack.c.h.b16 %v3541
    %v3581 = vunpack.c.l.b16 %v3542
    %v3582 = vunpack.c.h.b16 %v3542
    %v3583 = vunpack.c.l.b16 %v3543
    %v3584 = vunpack.c.h.b16 %v3543
    %v3585 = vunpack.c.l.b16 %v3544
    %v3586 = vunpack.c.h.b16 %v3544
    %v3587 = vunpack.c.l.b16 %v3545
    %v3588 = vunpack.c.h.b16 %v3545
    %v3589 = vunpack.c.l.b16 %v3546
    %v3590 = vunpack.c.h.b16 %v3546
    %v3591 = vunpack.c.l.b16 %v3547
    %v3592 = vunpack.c.h.b16 %v3547
    %v3593 = vunpack.c.l.b16 %v3548
    %v3594 = vunpack.c.h.b16 %v3548
    %v3595 = vunpack.c.l.b16 %v3549
    %v3596 = vunpack.c.h.b16 %v3549
    %v3597 = vunpack.c.l.b16 %v3550
    %v3598 = vunpack.c.h.b16 %v3550
    %v3599 = vpack.c.b16 %v3569, %v3567
    %v3600 = vpack.c.b16 %v3570, %v3568
    %v3601 = vpack.c.b16 %v3573, %v3571
    %v3602 = vpack.c.b16 %v3574, %v3572
    %v3603 = vpack.c.b16 %v3577, %v3575
    %v3604 = vpack.c.b16 %v3578, %v3576
    %v3605 = vpack.c.b16 %v3581, %v3579
    %v3606 = vpack.c.b16 %v3582, %v3580
    %v3607 = vpack.c.b16 %v3585, %v3583
    %v3608 = vpack.c.b16 %v3586, %v3584
    %v3609 = vpack.c.b16 %v3589, %v3587
    %v3610 = vpack.c.b16 %v3590, %v3588
    %v3611 = vpack.c.b16 %v3593, %v3591
    %v3612 = vpack.c.b16 %v3594, %v3592
    %v3613 = vpack.c.b16 %v3597, %v3595
    %v3614 = vpack.c.b16 %v3598, %v3596
    %3631 = vmatprep.subr.bf16.mxu0 %v3600
    %3632 = vmatpush1.bf16.msra.mxu0 %v3599
    %3633 = vmatprep.subr.bf16.mxu0 %v3602
    %3634 = vmatpush1.bf16.msra.mxu0 %v3601
    %3635 = vmatprep.subr.bf16.mxu0 %v3604
    %3636 = vmatpush1.bf16.msra.mxu0 %v3603
    %3637 = vmatprep.subr.bf16.mxu0 %v3606
    %3638 = vmatpush1.bf16.msra.mxu0 %v3605
    %3639 = vmatprep.subr.bf16.mxu0 %v3608
    %3640 = vmatpush1.bf16.msra.mxu0 %v3607
    %3641 = vmatprep.subr.bf16.mxu0 %v3610
    %3642 = vmatpush1.bf16.msra.mxu0 %v3609
    %3643 = vmatprep.subr.bf16.mxu0 %v3612
    %3644 = vmatpush1.bf16.msra.mxu0 %v3611
    %3645 = vmatprep.subr.bf16.mxu0 %v3614
    %3646 = vmatpush1.bf16.msra.mxu0 %v3613
    %3647 = vmatprep.subr.bf16.mxu0 0
    %3648 = vmatpush1.bf16.msra.mxu0 0
    %3649 = vmatprep.subr.bf16.mxu0 0
    %3650 = vmatpush1.bf16.msra.mxu0 0
    %3651 = vmatprep.subr.bf16.mxu0 0
    %3652 = vmatpush1.bf16.msra.mxu0 0
    %3653 = vmatprep.subr.bf16.mxu0 0
    %3654 = vmatpush1.bf16.msra.mxu0 0
    %3655 = vmatprep.subr.bf16.mxu0 0
    %3656 = vmatpush1.bf16.msra.mxu0 0
    %3657 = vmatprep.subr.bf16.mxu0 0
    %3658 = vmatpush1.bf16.msra.mxu0 0
    %3659 = vmatprep.subr.bf16.mxu0 0
    %3660 = vmatpush1.bf16.msra.mxu0 0
    %3661 = vmatprep.subr.bf16.mxu0 0
    %3662 = vmatpush1.bf16.msra.mxu0 0
    %3663 = vmatprep.mubr.bf16.mxu0 0
    %3664 = vmatmul.mubr.bf16.gmra.mrb[0].mxu0 %v3533
    %v3665 = vpop.f32.mrb[0].mxu0
    %v3666 = vadd.f32 0.0, %v3665
    %v3667 = vpop.f32.mrb[0].mxu0
    %v3668 = vadd.f32 0.0, %v3667
    %v3669 = vpop.f32.mrb[0].mxu0
    %v3670 = vpop.f32.mrb[0].mxu0
    %3671 = vdwg.mxu0
    %v3672 = vadd.f32 %v3486, %v3666
    %v3673 = vadd.f32 %v3487, %v3668
    %v3674 = vrot.slane %v3672, 4
    %v3675 = vadd.f32 %v3672, %v3674
    %v3676 = vrot.slane %v3675, 2
    %v3677 = vadd.f32 %v3675, %v3676
    %v3678 = vrot.slane %v3677, 1
    %v3679 = vadd.f32 %v3677, %v3678
    %v3680 = vrot.slane %v3673, 4
    %v3681 = vadd.f32 %v3673, %v3680
    %v3682 = vrot.slane %v3681, 2
    %v3683 = vadd.f32 %v3681, %v3682
    %v3684 = vrot.slane %v3683, 1
    %v3685 = vadd.f32 %v3683, %v3684
    %v3686 = vmul.f32 %v3679, 0.125
    %v3687 = vmul.f32 %v3685, 0.125
    %v3688 = vmul.f32 %v3672, %v3672
    %v3689 = vmul.f32 %v3673, %v3673
    %v3690 = vrot.slane %v3688, 4
    %v3691 = vadd.f32 %v3688, %v3690
    %v3692 = vrot.slane %v3691, 2
    %v3693 = vadd.f32 %v3691, %v3692
    %v3694 = vrot.slane %v3693, 1
    %v3695 = vadd.f32 %v3693, %v3694
    %v3696 = vrot.slane %v3689, 4
    %v3697 = vadd.f32 %v3689, %v3696
    %v3698 = vrot.slane %v3697, 2
    %v3699 = vadd.f32 %v3697, %v3698
    %v3700 = vrot.slane %v3699, 1
    %v3701 = vadd.f32 %v3699, %v3700
    %v3702 = vmul.f32 %v3695, 0.125
    %v3703 = vmul.f32 %v3701, 0.125
    %v3704 = vmul.f32 %v3686, %v3686
    %v3705 = vmul.f32 %v3687, %v3687
    %v3706 = vsub.f32 %v3702, %v3704
    %v3707 = vsub.f32 %v3703, %v3705
    %v3708 = vsub.f32 %v3672, %v3686
    %v3709 = vsub.f32 %v3673, %v3687
    %v3710 = vadd.f32 %v3706, 1e-05
    %v3711 = vadd.f32 %v3707, 1e-05
    %v3712 = vrsqrt.pop %v3710
    %v3713 = vrsqrt.pop %v3711
    %v3714 = vmul.f32 %v3708, %v3712
    %v3715 = vmul.f32 %v3709, %v3713
    %v3716 = vld [vmem:[#allocation14] sm:$0x3]
    %v3718 = vlaneseq
    %v3719 = vshrl.u32 %v3718, 7
    %v3720 = vsub.s32 0, %v3719
    %v3721 = vrot.slane %v3716, %v3720
    %v3722 = vlaneseq
    %v3723 = vshrl.u32 %v3722, 7
    %v3724 = vsub.s32 1, %v3723
    %v3725 = vrot.slane %v3716, %v3724
    %v3728 = vmul.f32 %v3714, %v3721
    %v3729 = vmul.f32 %v3715, %v3725
    %v3730 = vld [vmem:[#allocation16] sm:$0x3]
    %v3732 = vlaneseq
    %v3733 = vshrl.u32 %v3732, 7
    %v3734 = vsub.s32 0, %v3733
    %v3735 = vrot.slane %v3730, %v3734
    %v3736 = vlaneseq
    %v3737 = vshrl.u32 %v3736, 7
    %v3738 = vsub.s32 1, %v3737
    %v3739 = vrot.slane %v3730, %v3738
    %v3742 = vadd.f32 %v3728, %v3735
    %v3743 = vadd.f32 %v3729, %v3739
    %vm3744 = vcmp.ge.f32.partialorder %v3742, 0.0
    %vm3745 = vcmp.ge.f32.partialorder %v3743, 0.0
    %v3746 = vmul.f32 %v3742, 0.2
    %v3747 = vmul.f32 %v3743, 0.2
    %v3748 = vsel %vm3744, %v3742, %v3746
    %v3749 = vsel %vm3745, %v3743, %v3747
    %v3750 = vpack.c.bf16 %v3748, %v3748
    %v3751 = vpack.c.bf16 %v3749, %v3749
    %v3752 = vld [vmem:[#allocation23] sm:$0x1]
    %vm3753 = vcmask 64512
    %v3755 = vsel %vm3753, %v3752, 0
    %vm3757 = vcmask 1043456
    %v3759 = vsel %vm3757, %v3750, 0
    %v3762 = vsel %vm3757, %v3751, 0
    %3764 = vmatprep.subr.bf16.mxu0 %v3762
    %3765 = vmatpush1.bf16.msra.mxu0 %v3759
    %3766 = vmatprep.subr.bf16.mxu0 0
    %3767 = vmatpush1.bf16.msra.mxu0 0
    %3768 = vmatprep.subr.bf16.mxu0 0
    %3769 = vmatpush1.bf16.msra.mxu0 0
    %3770 = vmatprep.subr.bf16.mxu0 0
    %3771 = vmatpush1.bf16.msra.mxu0 0
    %3772 = vmatprep.subr.bf16.mxu0 0
    %3773 = vmatpush1.bf16.msra.mxu0 0
    %3774 = vmatprep.subr.bf16.mxu0 0
    %3775 = vmatpush1.bf16.msra.mxu0 0
    %3776 = vmatprep.subr.bf16.mxu0 0
    %3777 = vmatpush1.bf16.msra.mxu0 0
    %3778 = vmatprep.subr.bf16.mxu0 0
    %3779 = vmatpush1.bf16.msra.mxu0 0
    %3780 = vmatprep.subr.bf16.mxu0 0
    %3781 = vmatpush1.bf16.msra.mxu0 0
    %3782 = vmatprep.subr.bf16.mxu0 0
    %3783 = vmatpush1.bf16.msra.mxu0 0
    %3784 = vmatprep.subr.bf16.mxu0 0
    %3785 = vmatpush1.bf16.msra.mxu0 0
    %3786 = vmatprep.subr.bf16.mxu0 0
    %3787 = vmatpush1.bf16.msra.mxu0 0
    %3788 = vmatprep.subr.bf16.mxu0 0
    %3789 = vmatpush1.bf16.msra.mxu0 0
    %3790 = vmatprep.subr.bf16.mxu0 0
    %3791 = vmatpush1.bf16.msra.mxu0 0
    %3792 = vmatprep.subr.bf16.mxu0 0
    %3793 = vmatpush1.bf16.msra.mxu0 0
    %3794 = vmatprep.subr.bf16.mxu0 0
    %3795 = vmatpush1.bf16.msra.mxu0 0
    %3796 = vmatprep.mubr.bf16.mxu0 0
    %3797 = vmatmul.mubr.bf16.gmra.mrb[0].mxu0 %v3755
    %v3798 = vpop.f32.mrb[0].mxu0
    %v3799 = vadd.f32 0.0, %v3798
    %v3800 = vpop.f32.mrb[0].mxu0
    %v3801 = vadd.f32 0.0, %v3800
    %v3802 = vpop.f32.mrb[0].mxu0
    %v3803 = vpop.f32.mrb[0].mxu0
    %3804 = vdwg.mxu0
    %v3805 = vpack.c.bf16 %v3799, %v3799
    %v3806 = vpack.c.bf16 %v3801, %v3801
    %v3807 = vld [vmem:[#allocation19] sm:$0xff]
    %v3808 = vld [vmem:[#allocation19 + $0x8] sm:$0xff]
    %v3809 = vld [vmem:[#allocation19 + $0x10] sm:$0xff]
    %v3810 = vld [vmem:[#allocation19 + $0x18] sm:$0xff]
    %v3811 = vld [vmem:[#allocation19 + $0x20] sm:$0xff]
    %v3812 = vld [vmem:[#allocation19 + $0x28] sm:$0xff]
    %v3813 = vld [vmem:[#allocation19 + $0x30] sm:$0xff]
    %v3814 = vld [vmem:[#allocation19 + $0x38] sm:$0xff]
    %v3815 = vld [vmem:[#allocation19 + $0x40] sm:$0xff]
    %v3816 = vld [vmem:[#allocation19 + $0x48] sm:$0xff]
    %v3817 = vld [vmem:[#allocation19 + $0x50] sm:$0xff]
    %v3818 = vld [vmem:[#allocation19 + $0x58] sm:$0xff]
    %v3819 = vld [vmem:[#allocation19 + $0x60] sm:$0xff]
    %v3820 = vld [vmem:[#allocation19 + $0x68] sm:$0xff]
    %v3821 = vld [vmem:[#allocation19 + $0x70] sm:$0xff]
    %v3822 = vld [vmem:[#allocation19 + $0x78] sm:$0xff]
    %v3823 = vld [vmem:[#allocation19 + $0x80] sm:$0xff]
    %v3824 = vld [vmem:[#allocation19 + $0x88] sm:$0xff]
    %v3825 = vld [vmem:[#allocation19 + $0x90] sm:$0xff]
    %v3826 = vld [vmem:[#allocation19 + $0x98] sm:$0xff]
    %v3827 = vld [vmem:[#allocation19 + $0xa0] sm:$0xff]
    %v3828 = vld [vmem:[#allocation19 + $0xa8] sm:$0xff]
    %v3829 = vld [vmem:[#allocation19 + $0xb0] sm:$0xff]
    %v3830 = vld [vmem:[#allocation19 + $0xb8] sm:$0xff]
    %v3831 = vld [vmem:[#allocation19 + $0xc0] sm:$0xff]
    %v3832 = vld [vmem:[#allocation19 + $0xc8] sm:$0xff]
    %v3833 = vld [vmem:[#allocation19 + $0xd0] sm:$0xff]
    %v3834 = vld [vmem:[#allocation19 + $0xd8] sm:$0xff]
    %v3835 = vld [vmem:[#allocation19 + $0xe0] sm:$0xff]
    %v3836 = vld [vmem:[#allocation19 + $0xe8] sm:$0xff]
    %v3837 = vld [vmem:[#allocation19 + $0xf0] sm:$0xff]
    %v3838 = vld [vmem:[#allocation19 + $0xf8] sm:$0xff]
    %v3839 = vld [vmem:[#allocation19 + $0x100] sm:$0xff]
    %v3840 = vld [vmem:[#allocation19 + $0x108] sm:$0xff]
    %v3841 = vld [vmem:[#allocation19 + $0x110] sm:$0xff]
    %v3842 = vld [vmem:[#allocation19 + $0x118] sm:$0xff]
    %v3843 = vld [vmem:[#allocation19 + $0x120] sm:$0xff]
    %v3844 = vld [vmem:[#allocation19 + $0x128] sm:$0xff]
    %v3845 = vld [vmem:[#allocation19 + $0x130] sm:$0xff]
    %v3846 = vld [vmem:[#allocation19 + $0x138] sm:$0xff]
    %v3847 = vld [vmem:[#allocation19 + $0x140] sm:$0xff]
    %v3848 = vld [vmem:[#allocation19 + $0x148] sm:$0xff]
    %v3849 = vld [vmem:[#allocation19 + $0x150] sm:$0xff]
    %v3850 = vld [vmem:[#allocation19 + $0x158] sm:$0xff]
    %v3851 = vld [vmem:[#allocation19 + $0x160] sm:$0xff]
    %v3852 = vld [vmem:[#allocation19 + $0x168] sm:$0xff]
    %v3853 = vld [vmem:[#allocation19 + $0x170] sm:$0xff]
    %v3854 = vld [vmem:[#allocation19 + $0x178] sm:$0xff]
    %v3855 = vld [vmem:[#allocation19 + $0x180] sm:$0xff]
    %v3856 = vld [vmem:[#allocation19 + $0x188] sm:$0xff]
    %v3857 = vld [vmem:[#allocation19 + $0x190] sm:$0xff]
    %v3858 = vld [vmem:[#allocation19 + $0x198] sm:$0xff]
    %v3859 = vld [vmem:[#allocation19 + $0x1a0] sm:$0xff]
    %v3860 = vld [vmem:[#allocation19 + $0x1a8] sm:$0xff]
    %v3861 = vld [vmem:[#allocation19 + $0x1b0] sm:$0xff]
    %v3862 = vld [vmem:[#allocation19 + $0x1b8] sm:$0xff]
    %v3863 = vld [vmem:[#allocation19 + $0x1c0] sm:$0xff]
    %v3864 = vld [vmem:[#allocation19 + $0x1c8] sm:$0xff]
    %v3865 = vld [vmem:[#allocation19 + $0x1d0] sm:$0xff]
    %v3866 = vld [vmem:[#allocation19 + $0x1d8] sm:$0xff]
    %v3867 = vld [vmem:[#allocation19 + $0x1e0] sm:$0xff]
    %v3868 = vld [vmem:[#allocation19 + $0x1e8] sm:$0xff]
    %v3869 = vld [vmem:[#allocation19 + $0x1f0] sm:$0xff]
    %v3870 = vld [vmem:[#allocation19 + $0x1f8] sm:$0xff]
    %s3871 = scalar_lea.vmem [#allocation23], 1
    %v3872 = vld [vmem:[%s3871] sm:$0x1]
    %v3874 = vsel %vm3753, %v3872, 0
    %3876 = vmatprep.subr.bf16.mxu0 %v3762
    %3877 = vmatpush1.bf16.msra.mxu0 %v3759
    %3878 = vmatprep.subr.bf16.mxu0 0
    %3879 = vmatpush1.bf16.msra.mxu0 0
    %3880 = vmatprep.subr.bf16.mxu0 0
    %3881 = vmatpush1.bf16.msra.mxu0 0
    %3882 = vmatprep.subr.bf16.mxu0 0
    %3883 = vmatpush1.bf16.msra.mxu0 0
    %3884 = vmatprep.subr.bf16.mxu0 0
    %3885 = vmatpush1.bf16.msra.mxu0 0
    %3886 = vmatprep.subr.bf16.mxu0 0
    %3887 = vmatpush1.bf16.msra.mxu0 0
    %3888 = vmatprep.subr.bf16.mxu0 0
    %3889 = vmatpush1.bf16.msra.mxu0 0
    %3890 = vmatprep.subr.bf16.mxu0 0
    %3891 = vmatpush1.bf16.msra.mxu0 0
    %3892 = vmatprep.subr.bf16.mxu0 0
    %3893 = vmatpush1.bf16.msra.mxu0 0
    %3894 = vmatprep.subr.bf16.mxu0 0
    %3895 = vmatpush1.bf16.msra.mxu0 0
    %3896 = vmatprep.subr.bf16.mxu0 0
    %3897 = vmatpush1.bf16.msra.mxu0 0
    %3898 = vmatprep.subr.bf16.mxu0 0
    %3899 = vmatpush1.bf16.msra.mxu0 0
    %3900 = vmatprep.subr.bf16.mxu0 0
    %3901 = vmatpush1.bf16.msra.mxu0 0
    %3902 = vmatprep.subr.bf16.mxu0 0
    %3903 = vmatpush1.bf16.msra.mxu0 0
    %3904 = vmatprep.subr.bf16.mxu0 0
    %3905 = vmatpush1.bf16.msra.mxu0 0
    %3906 = vmatprep.subr.bf16.mxu0 0
    %3907 = vmatpush1.bf16.msra.mxu0 0
    %3908 = vmatprep.mubr.bf16.mxu0 0
    %3909 = vmatmul.mubr.bf16.gmra.mrb[0].mxu0 %v3874
    %v3910 = vpop.f32.mrb[0].mxu0
    %v3911 = vadd.f32 0.0, %v3910
    %v3912 = vpop.f32.mrb[0].mxu0
    %v3913 = vadd.f32 0.0, %v3912
    %v3914 = vpop.f32.mrb[0].mxu0
    %v3915 = vpop.f32.mrb[0].mxu0
    %3916 = vdwg.mxu0
    %v3917 = vpack.c.bf16 %v3911, %v3911
    %v3918 = vpack.c.bf16 %v3913, %v3913
    %s3919 = scalar_lea.vmem [#allocation19], 512
    %v3920 = vld [vmem:[%s3919] sm:$0xff]
    %v3921 = vld [vmem:[%s3919 + $0x8] sm:$0xff]
    %v3922 = vld [vmem:[%s3919 + $0x10] sm:$0xff]
    %v3923 = vld [vmem:[%s3919 + $0x18] sm:$0xff]
    %v3924 = vld [vmem:[%s3919 + $0x20] sm:$0xff]
    %v3925 = vld [vmem:[%s3919 + $0x28] sm:$0xff]
    %v3926 = vld [vmem:[%s3919 + $0x30] sm:$0xff]
    %v3927 = vld [vmem:[%s3919 + $0x38] sm:$0xff]
    %v3928 = vld [vmem:[%s3919 + $0x40] sm:$0xff]
    %v3929 = vld [vmem:[%s3919 + $0x48] sm:$0xff]
    %v3930 = vld [vmem:[%s3919 + $0x50] sm:$0xff]
    %v3931 = vld [vmem:[%s3919 + $0x58] sm:$0xff]
    %v3932 = vld [vmem:[%s3919 + $0x60] sm:$0xff]
    %v3933 = vld [vmem:[%s3919 + $0x68] sm:$0xff]
    %v3934 = vld [vmem:[%s3919 + $0x70] sm:$0xff]
    %v3935 = vld [vmem:[%s3919 + $0x78] sm:$0xff]
    %v3936 = vld [vmem:[%s3919 + $0x80] sm:$0xff]
    %v3937 = vld [vmem:[%s3919 + $0x88] sm:$0xff]
    %v3938 = vld [vmem:[%s3919 + $0x90] sm:$0xff]
    %v3939 = vld [vmem:[%s3919 + $0x98] sm:$0xff]
    %v3940 = vld [vmem:[%s3919 + $0xa0] sm:$0xff]
    %v3941 = vld [vmem:[%s3919 + $0xa8] sm:$0xff]
    %v3942 = vld [vmem:[%s3919 + $0xb0] sm:$0xff]
    %v3943 = vld [vmem:[%s3919 + $0xb8] sm:$0xff]
    %v3944 = vld [vmem:[%s3919 + $0xc0] sm:$0xff]
    %v3945 = vld [vmem:[%s3919 + $0xc8] sm:$0xff]
    %v3946 = vld [vmem:[%s3919 + $0xd0] sm:$0xff]
    %v3947 = vld [vmem:[%s3919 + $0xd8] sm:$0xff]
    %v3948 = vld [vmem:[%s3919 + $0xe0] sm:$0xff]
    %v3949 = vld [vmem:[%s3919 + $0xe8] sm:$0xff]
    %v3950 = vld [vmem:[%s3919 + $0xf0] sm:$0xff]
    %v3951 = vld [vmem:[%s3919 + $0xf8] sm:$0xff]
    %v3952 = vld [vmem:[%s3919 + $0x100] sm:$0xff]
    %v3953 = vld [vmem:[%s3919 + $0x108] sm:$0xff]
    %v3954 = vld [vmem:[%s3919 + $0x110] sm:$0xff]
    %v3955 = vld [vmem:[%s3919 + $0x118] sm:$0xff]
    %v3956 = vld [vmem:[%s3919 + $0x120] sm:$0xff]
    %v3957 = vld [vmem:[%s3919 + $0x128] sm:$0xff]
    %v3958 = vld [vmem:[%s3919 + $0x130] sm:$0xff]
    %v3959 = vld [vmem:[%s3919 + $0x138] sm:$0xff]
    %v3960 = vld [vmem:[%s3919 + $0x140] sm:$0xff]
    %v3961 = vld [vmem:[%s3919 + $0x148] sm:$0xff]
    %v3962 = vld [vmem:[%s3919 + $0x150] sm:$0xff]
    %v3963 = vld [vmem:[%s3919 + $0x158] sm:$0xff]
    %v3964 = vld [vmem:[%s3919 + $0x160] sm:$0xff]
    %v3965 = vld [vmem:[%s3919 + $0x168] sm:$0xff]
    %v3966 = vld [vmem:[%s3919 + $0x170] sm:$0xff]
    %v3967 = vld [vmem:[%s3919 + $0x178] sm:$0xff]
    %v3968 = vld [vmem:[%s3919 + $0x180] sm:$0xff]
    %v3969 = vld [vmem:[%s3919 + $0x188] sm:$0xff]
    %v3970 = vld [vmem:[%s3919 + $0x190] sm:$0xff]
    %v3971 = vld [vmem:[%s3919 + $0x198] sm:$0xff]
    %v3972 = vld [vmem:[%s3919 + $0x1a0] sm:$0xff]
    %v3973 = vld [vmem:[%s3919 + $0x1a8] sm:$0xff]
    %v3974 = vld [vmem:[%s3919 + $0x1b0] sm:$0xff]
    %v3975 = vld [vmem:[%s3919 + $0x1b8] sm:$0xff]
    %v3976 = vld [vmem:[%s3919 + $0x1c0] sm:$0xff]
    %v3977 = vld [vmem:[%s3919 + $0x1c8] sm:$0xff]
    %v3978 = vld [vmem:[%s3919 + $0x1d0] sm:$0xff]
    %v3979 = vld [vmem:[%s3919 + $0x1d8] sm:$0xff]
    %v3980 = vld [vmem:[%s3919 + $0x1e0] sm:$0xff]
    %v3981 = vld [vmem:[%s3919 + $0x1e8] sm:$0xff]
    %v3982 = vld [vmem:[%s3919 + $0x1f0] sm:$0xff]
    %v3983 = vld [vmem:[%s3919 + $0x1f8] sm:$0xff]
    %v4048 = vunpack.c.l.b16 %v3920
    %v4049 = vunpack.c.h.b16 %v3920
    %v4050 = vunpack.c.l.b16 %v3921
    %v4051 = vunpack.c.h.b16 %v3921
    %v4052 = vunpack.c.l.b16 %v3922
    %v4053 = vunpack.c.h.b16 %v3922
    %v4054 = vunpack.c.l.b16 %v3923
    %v4055 = vunpack.c.h.b16 %v3923
    %v4056 = vunpack.c.l.b16 %v3924
    %v4057 = vunpack.c.h.b16 %v3924
    %v4058 = vunpack.c.l.b16 %v3925
    %v4059 = vunpack.c.h.b16 %v3925
    %v4060 = vunpack.c.l.b16 %v3926
    %v4061 = vunpack.c.h.b16 %v3926
    %v4062 = vunpack.c.l.b16 %v3927
    %v4063 = vunpack.c.h.b16 %v3927
    %v4064 = vunpack.c.l.b16 %v3928
    %v4065 = vunpack.c.h.b16 %v3928
    %v4066 = vunpack.c.l.b16 %v3929
    %v4067 = vunpack.c.h.b16 %v3929
    %v4068 = vunpack.c.l.b16 %v3930
    %v4069 = vunpack.c.h.b16 %v3930
    %v4070 = vunpack.c.l.b16 %v3931
    %v4071 = vunpack.c.h.b16 %v3931
    %v4072 = vunpack.c.l.b16 %v3932
    %v4073 = vunpack.c.h.b16 %v3932
    %v4074 = vunpack.c.l.b16 %v3933
    %v4075 = vunpack.c.h.b16 %v3933
    %v4076 = vunpack.c.l.b16 %v3934
    %v4077 = vunpack.c.h.b16 %v3934
    %v4078 = vunpack.c.l.b16 %v3935
    %v4079 = vunpack.c.h.b16 %v3935
    %v4080 = vunpack.c.l.b16 %v3936
    %v4081 = vunpack.c.h.b16 %v3936
    %v4082 = vunpack.c.l.b16 %v3937
    %v4083 = vunpack.c.h.b16 %v3937
    %v4084 = vunpack.c.l.b16 %v3938
    %v4085 = vunpack.c.h.b16 %v3938
    %v4086 = vunpack.c.l.b16 %v3939
    %v4087 = vunpack.c.h.b16 %v3939
    %v4088 = vunpack.c.l.b16 %v3940
    %v4089 = vunpack.c.h.b16 %v3940
    %v4090 = vunpack.c.l.b16 %v3941
    %v4091 = vunpack.c.h.b16 %v3941
    %v4092 = vunpack.c.l.b16 %v3942
    %v4093 = vunpack.c.h.b16 %v3942
    %v4094 = vunpack.c.l.b16 %v3943
    %v4095 = vunpack.c.h.b16 %v3943
    %v4096 = vunpack.c.l.b16 %v3944
    %v4097 = vunpack.c.h.b16 %v3944
    %v4098 = vunpack.c.l.b16 %v3945
    %v4099 = vunpack.c.h.b16 %v3945
    %v4100 = vunpack.c.l.b16 %v3946
    %v4101 = vunpack.c.h.b16 %v3946
    %v4102 = vunpack.c.l.b16 %v3947
    %v4103 = vunpack.c.h.b16 %v3947
    %v4104 = vunpack.c.l.b16 %v3948
    %v4105 = vunpack.c.h.b16 %v3948
    %v4106 = vunpack.c.l.b16 %v3949
    %v4107 = vunpack.c.h.b16 %v3949
    %v4108 = vunpack.c.l.b16 %v3950
    %v4109 = vunpack.c.h.b16 %v3950
    %v4110 = vunpack.c.l.b16 %v3951
    %v4111 = vunpack.c.h.b16 %v3951
    %v4112 = vunpack.c.l.b16 %v3952
    %v4113 = vunpack.c.h.b16 %v3952
    %v4114 = vunpack.c.l.b16 %v3953
    %v4115 = vunpack.c.h.b16 %v3953
    %v4116 = vunpack.c.l.b16 %v3954
    %v4117 = vunpack.c.h.b16 %v3954
    %v4118 = vunpack.c.l.b16 %v3955
    %v4119 = vunpack.c.h.b16 %v3955
    %v4120 = vunpack.c.l.b16 %v3956
    %v4121 = vunpack.c.h.b16 %v3956
    %v4122 = vunpack.c.l.b16 %v3957
    %v4123 = vunpack.c.h.b16 %v3957
    %v4124 = vunpack.c.l.b16 %v3958
    %v4125 = vunpack.c.h.b16 %v3958
    %v4126 = vunpack.c.l.b16 %v3959
    %v4127 = vunpack.c.h.b16 %v3959
    %v4128 = vunpack.c.l.b16 %v3960
    %v4129 = vunpack.c.h.b16 %v3960
    %v4130 = vunpack.c.l.b16 %v3961
    %v4131 = vunpack.c.h.b16 %v3961
    %v4132 = vunpack.c.l.b16 %v3962
    %v4133 = vunpack.c.h.b16 %v3962
    %v4134 = vunpack.c.l.b16 %v3963
    %v4135 = vunpack.c.h.b16 %v3963
    %v4136 = vunpack.c.l.b16 %v3964
    %v4137 = vunpack.c.h.b16 %v3964
    %v4138 = vunpack.c.l.b16 %v3965
    %v4139 = vunpack.c.h.b16 %v3965
    %v4140 = vunpack.c.l.b16 %v3966
    %v4141 = vunpack.c.h.b16 %v3966
    %v4142 = vunpack.c.l.b16 %v3967
    %v4143 = vunpack.c.h.b16 %v3967
    %v4144 = vunpack.c.l.b16 %v3968
    %v4145 = vunpack.c.h.b16 %v3968
    %v4146 = vunpack.c.l.b16 %v3969
    %v4147 = vunpack.c.h.b16 %v3969
    %v4148 = vunpack.c.l.b16 %v3970
    %v4149 = vunpack.c.h.b16 %v3970
    %v4150 = vunpack.c.l.b16 %v3971
    %v4151 = vunpack.c.h.b16 %v3971
    %v4152 = vunpack.c.l.b16 %v3972
    %v4153 = vunpack.c.h.b16 %v3972
    %v4154 = vunpack.c.l.b16 %v3973
    %v4155 = vunpack.c.h.b16 %v3973
    %v4156 = vunpack.c.l.b16 %v3974
    %v4157 = vunpack.c.h.b16 %v3974
    %v4158 = vunpack.c.l.b16 %v3975
    %v4159 = vunpack.c.h.b16 %v3975
    %v4160 = vunpack.c.l.b16 %v3976
    %v4161 = vunpack.c.h.b16 %v3976
    %v4162 = vunpack.c.l.b16 %v3977
    %v4163 = vunpack.c.h.b16 %v3977
    %v4164 = vunpack.c.l.b16 %v3978
    %v4165 = vunpack.c.h.b16 %v3978
    %v4166 = vunpack.c.l.b16 %v3979
    %v4167 = vunpack.c.h.b16 %v3979
    %v4168 = vunpack.c.l.b16 %v3980
    %v4169 = vunpack.c.h.b16 %v3980
    %v4170 = vunpack.c.l.b16 %v3981
    %v4171 = vunpack.c.h.b16 %v3981
    %v4172 = vunpack.c.l.b16 %v3982
    %v4173 = vunpack.c.h.b16 %v3982
    %v4174 = vunpack.c.l.b16 %v3983
    %v4175 = vunpack.c.h.b16 %v3983
    %v4176 = vpack.c.b16 %v4052, %v4048
    %v4177 = vpack.c.b16 %v4053, %v4049
    %v4178 = vpack.c.b16 %v4054, %v4050
    %v4179 = vpack.c.b16 %v4055, %v4051
    %v4180 = vpack.c.b16 %v4060, %v4056
    %v4181 = vpack.c.b16 %v4061, %v4057
    %v4182 = vpack.c.b16 %v4062, %v4058
    %v4183 = vpack.c.b16 %v4063, %v4059
    %v4184 = vpack.c.b16 %v4068, %v4064
    %v4185 = vpack.c.b16 %v4069, %v4065
    %v4186 = vpack.c.b16 %v4070, %v4066
    %v4187 = vpack.c.b16 %v4071, %v4067
    %v4188 = vpack.c.b16 %v4076, %v4072
    %v4189 = vpack.c.b16 %v4077, %v4073
    %v4190 = vpack.c.b16 %v4078, %v4074
    %v4191 = vpack.c.b16 %v4079, %v4075
    %v4192 = vpack.c.b16 %v4084, %v4080
    %v4193 = vpack.c.b16 %v4085, %v4081
    %v4194 = vpack.c.b16 %v4086, %v4082
    %v4195 = vpack.c.b16 %v4087, %v4083
    %v4196 = vpack.c.b16 %v4092, %v4088
    %v4197 = vpack.c.b16 %v4093, %v4089
    %v4198 = vpack.c.b16 %v4094, %v4090
    %v4199 = vpack.c.b16 %v4095, %v4091
    %v4200 = vpack.c.b16 %v4100, %v4096
    %v4201 = vpack.c.b16 %v4101, %v4097
    %v4202 = vpack.c.b16 %v4102, %v4098
    %v4203 = vpack.c.b16 %v4103, %v4099
    %v4204 = vpack.c.b16 %v4108, %v4104
    %v4205 = vpack.c.b16 %v4109, %v4105
    %v4206 = vpack.c.b16 %v4110, %v4106
    %v4207 = vpack.c.b16 %v4111, %v4107
    %v4208 = vpack.c.b16 %v4116, %v4112
    %v4209 = vpack.c.b16 %v4117, %v4113
    %v4210 = vpack.c.b16 %v4118, %v4114
    %v4211 = vpack.c.b16 %v4119, %v4115
    %v4212 = vpack.c.b16 %v4124, %v4120
    %v4213 = vpack.c.b16 %v4125, %v4121
    %v4214 = vpack.c.b16 %v4126, %v4122
    %v4215 = vpack.c.b16 %v4127, %v4123
    %v4216 = vpack.c.b16 %v4132, %v4128
    %v4217 = vpack.c.b16 %v4133, %v4129
    %v4218 = vpack.c.b16 %v4134, %v4130
    %v4219 = vpack.c.b16 %v4135, %v4131
    %v4220 = vpack.c.b16 %v4140, %v4136
    %v4221 = vpack.c.b16 %v4141, %v4137
    %v4222 = vpack.c.b16 %v4142, %v4138
    %v4223 = vpack.c.b16 %v4143, %v4139
    %v4224 = vpack.c.b16 %v4148, %v4144
    %v4225 = vpack.c.b16 %v4149, %v4145
    %v4226 = vpack.c.b16 %v4150, %v4146
    %v4227 = vpack.c.b16 %v4151, %v4147
    %v4228 = vpack.c.b16 %v4156, %v4152
    %v4229 = vpack.c.b16 %v4157, %v4153
    %v4230 = vpack.c.b16 %v4158, %v4154
    %v4231 = vpack.c.b16 %v4159, %v4155
    %v4232 = vpack.c.b16 %v4164, %v4160
    %v4233 = vpack.c.b16 %v4165, %v4161
    %v4234 = vpack.c.b16 %v4166, %v4162
    %v4235 = vpack.c.b16 %v4167, %v4163
    %v4236 = vpack.c.b16 %v4172, %v4168
    %v4237 = vpack.c.b16 %v4173, %v4169
    %v4238 = vpack.c.b16 %v4174, %v4170
    %v4239 = vpack.c.b16 %v4175, %v4171
    %4304 = vmatprep.subr.bf16.mxu0 %v4177
    %4305 = vmatpush1.bf16.msra.mxu0 %v4176
    %4306 = vmatprep.subr.bf16.mxu0 %v4181
    %4307 = vmatpush1.bf16.msra.mxu0 %v4180
    %4308 = vmatprep.subr.bf16.mxu0 %v4185
    %4309 = vmatpush1.bf16.msra.mxu0 %v4184
    %4310 = vmatprep.subr.bf16.mxu0 %v4189
    %4311 = vmatpush1.bf16.msra.mxu0 %v4188
    %4312 = vmatprep.subr.bf16.mxu0 %v4193
    %4313 = vmatpush1.bf16.msra.mxu0 %v4192
    %4314 = vmatprep.subr.bf16.mxu0 %v4197
    %4315 = vmatpush1.bf16.msra.mxu0 %v4196
    %4316 = vmatprep.subr.bf16.mxu0 %v4201
    %4317 = vmatpush1.bf16.msra.mxu0 %v4200
    %4318 = vmatprep.subr.bf16.mxu0 %v4205
    %4319 = vmatpush1.bf16.msra.mxu0 %v4204
    %4320 = vmatprep.subr.bf16.mxu0 %v4209
    %4321 = vmatpush1.bf16.msra.mxu0 %v4208
    %4322 = vmatprep.subr.bf16.mxu0 %v4213
    %4323 = vmatpush1.bf16.msra.mxu0 %v4212
    %4324 = vmatprep.subr.bf16.mxu0 %v4217
    %4325 = vmatpush1.bf16.msra.mxu0 %v4216
    %4326 = vmatprep.subr.bf16.mxu0 %v4221
    %4327 = vmatpush1.bf16.msra.mxu0 %v4220
    %4328 = vmatprep.subr.bf16.mxu0 %v4225
    %4329 = vmatpush1.bf16.msra.mxu0 %v4224
    %4330 = vmatprep.subr.bf16.mxu0 %v4229
    %4331 = vmatpush1.bf16.msra.mxu0 %v4228
    %4332 = vmatprep.subr.bf16.mxu0 %v4233
    %4333 = vmatpush1.bf16.msra.mxu0 %v4232
    %4334 = vmatprep.subr.bf16.mxu0 %v4237
    %4335 = vmatpush1.bf16.msra.mxu0 %v4236
    %4336 = vmatprep.mubr.bf16.mxu0 %v3918
    %4337 = vmatmul.mubr.bf16.gmra.mrb[0].mxu0 %v3917
    %v4338 = vpop.f32.mrb[0].mxu0
    %v4339 = vadd.f32 0.0, %v4338
    %v4340 = vpop.f32.mrb[0].mxu0
    %v4341 = vadd.f32 0.0, %v4340
    %v4342 = vpop.f32.mrb[0].mxu0
    %v4343 = vpop.f32.mrb[0].mxu0
    %4344 = vdwg.mxu0
    %4345 = vmatprep.subr.bf16.mxu0 %v4179
    %4346 = vmatpush1.bf16.msra.mxu0 %v4178
    %4347 = vmatprep.subr.bf16.mxu0 %v4183
    %4348 = vmatpush1.bf16.msra.mxu0 %v4182
    %4349 = vmatprep.subr.bf16.mxu0 %v4187
    %4350 = vmatpush1.bf16.msra.mxu0 %v4186
    %4351 = vmatprep.subr.bf16.mxu0 %v4191
    %4352 = vmatpush1.bf16.msra.mxu0 %v4190
    %4353 = vmatprep.subr.bf16.mxu0 %v4195
    %4354 = vmatpush1.bf16.msra.mxu0 %v4194
    %4355 = vmatprep.subr.bf16.mxu0 %v4199
    %4356 = vmatpush1.bf16.msra.mxu0 %v4198
    %4357 = vmatprep.subr.bf16.mxu0 %v4203
    %4358 = vmatpush1.bf16.msra.mxu0 %v4202
    %4359 = vmatprep.subr.bf16.mxu0 %v4207
    %4360 = vmatpush1.bf16.msra.mxu0 %v4206
    %4361 = vmatprep.subr.bf16.mxu0 %v4211
    %4362 = vmatpush1.bf16.msra.mxu0 %v4210
    %4363 = vmatprep.subr.bf16.mxu0 %v4215
    %4364 = vmatpush1.bf16.msra.mxu0 %v4214
    %4365 = vmatprep.subr.bf16.mxu0 %v4219
    %4366 = vmatpush1.bf16.msra.mxu0 %v4218
    %4367 = vmatprep.subr.bf16.mxu0 %v4223
    %4368 = vmatpush1.bf16.msra.mxu0 %v4222
    %4369 = vmatprep.subr.bf16.mxu0 %v4227
    %4370 = vmatpush1.bf16.msra.mxu0 %v4226
    %4371 = vmatprep.subr.bf16.mxu0 %v4231
    %4372 = vmatpush1.bf16.msra.mxu0 %v4230
    %4373 = vmatprep.subr.bf16.mxu0 %v4235
    %4374 = vmatpush1.bf16.msra.mxu0 %v4234
    %4375 = vmatprep.subr.bf16.mxu0 %v4239
    %4376 = vmatpush1.bf16.msra.mxu0 %v4238
    %4377 = vmatprep.mubr.bf16.mxu0 %v3918
    %4378 = vmatmul.mubr.bf16.gmra.mrb[0].mxu0 %v3917
    %v4379 = vpop.f32.mrb[0].mxu0
    %v4380 = vadd.f32 0.0, %v4379
    %v4381 = vpop.f32.mrb[0].mxu0
    %v4382 = vadd.f32 0.0, %v4381
    %v4383 = vpop.f32.mrb[0].mxu0
    %v4384 = vpop.f32.mrb[0].mxu0
    %4385 = vdwg.mxu0
    %v4450 = vunpack.c.l.b16 %v3807
    %v4451 = vunpack.c.h.b16 %v3807
    %v4452 = vunpack.c.l.b16 %v3808
    %v4453 = vunpack.c.h.b16 %v3808
    %v4454 = vunpack.c.l.b16 %v3809
    %v4455 = vunpack.c.h.b16 %v3809
    %v4456 = vunpack.c.l.b16 %v3810
    %v4457 = vunpack.c.h.b16 %v3810
    %v4458 = vunpack.c.l.b16 %v3811
    %v4459 = vunpack.c.h.b16 %v3811
    %v4460 = vunpack.c.l.b16 %v3812
    %v4461 = vunpack.c.h.b16 %v3812
    %v4462 = vunpack.c.l.b16 %v3813
    %v4463 = vunpack.c.h.b16 %v3813
    %v4464 = vunpack.c.l.b16 %v3814
    %v4465 = vunpack.c.h.b16 %v3814
    %v4466 = vunpack.c.l.b16 %v3815
    %v4467 = vunpack.c.h.b16 %v3815
    %v4468 = vunpack.c.l.b16 %v3816
    %v4469 = vunpack.c.h.b16 %v3816
    %v4470 = vunpack.c.l.b16 %v3817
    %v4471 = vunpack.c.h.b16 %v3817
    %v4472 = vunpack.c.l.b16 %v3818
    %v4473 = vunpack.c.h.b16 %v3818
    %v4474 = vunpack.c.l.b16 %v3819
    %v4475 = vunpack.c.h.b16 %v3819
    %v4476 = vunpack.c.l.b16 %v3820
    %v4477 = vunpack.c.h.b16 %v3820
    %v4478 = vunpack.c.l.b16 %v3821
    %v4479 = vunpack.c.h.b16 %v3821
    %v4480 = vunpack.c.l.b16 %v3822
    %v4481 = vunpack.c.h.b16 %v3822
    %v4482 = vunpack.c.l.b16 %v3823
    %v4483 = vunpack.c.h.b16 %v3823
    %v4484 = vunpack.c.l.b16 %v3824
    %v4485 = vunpack.c.h.b16 %v3824
    %v4486 = vunpack.c.l.b16 %v3825
    %v4487 = vunpack.c.h.b16 %v3825
    %v4488 = vunpack.c.l.b16 %v3826
    %v4489 = vunpack.c.h.b16 %v3826
    %v4490 = vunpack.c.l.b16 %v3827
    %v4491 = vunpack.c.h.b16 %v3827
    %v4492 = vunpack.c.l.b16 %v3828
    %v4493 = vunpack.c.h.b16 %v3828
    %v4494 = vunpack.c.l.b16 %v3829
    %v4495 = vunpack.c.h.b16 %v3829
    %v4496 = vunpack.c.l.b16 %v3830
    %v4497 = vunpack.c.h.b16 %v3830
    %v4498 = vunpack.c.l.b16 %v3831
    %v4499 = vunpack.c.h.b16 %v3831
    %v4500 = vunpack.c.l.b16 %v3832
    %v4501 = vunpack.c.h.b16 %v3832
    %v4502 = vunpack.c.l.b16 %v3833
    %v4503 = vunpack.c.h.b16 %v3833
    %v4504 = vunpack.c.l.b16 %v3834
    %v4505 = vunpack.c.h.b16 %v3834
    %v4506 = vunpack.c.l.b16 %v3835
    %v4507 = vunpack.c.h.b16 %v3835
    %v4508 = vunpack.c.l.b16 %v3836
    %v4509 = vunpack.c.h.b16 %v3836
    %v4510 = vunpack.c.l.b16 %v3837
    %v4511 = vunpack.c.h.b16 %v3837
    %v4512 = vunpack.c.l.b16 %v3838
    %v4513 = vunpack.c.h.b16 %v3838
    %v4514 = vunpack.c.l.b16 %v3839
    %v4515 = vunpack.c.h.b16 %v3839
    %v4516 = vunpack.c.l.b16 %v3840
    %v4517 = vunpack.c.h.b16 %v3840
    %v4518 = vunpack.c.l.b16 %v3841
    %v4519 = vunpack.c.h.b16 %v3841
    %v4520 = vunpack.c.l.b16 %v3842
    %v4521 = vunpack.c.h.b16 %v3842
    %v4522 = vunpack.c.l.b16 %v3843
    %v4523 = vunpack.c.h.b16 %v3843
    %v4524 = vunpack.c.l.b16 %v3844
    %v4525 = vunpack.c.h.b16 %v3844
    %v4526 = vunpack.c.l.b16 %v3845
    %v4527 = vunpack.c.h.b16 %v3845
    %v4528 = vunpack.c.l.b16 %v3846
    %v4529 = vunpack.c.h.b16 %v3846
    %v4530 = vunpack.c.l.b16 %v3847
    %v4531 = vunpack.c.h.b16 %v3847
    %v4532 = vunpack.c.l.b16 %v3848
    %v4533 = vunpack.c.h.b16 %v3848
    %v4534 = vunpack.c.l.b16 %v3849
    %v4535 = vunpack.c.h.b16 %v3849
    %v4536 = vunpack.c.l.b16 %v3850
    %v4537 = vunpack.c.h.b16 %v3850
    %v4538 = vunpack.c.l.b16 %v3851
    %v4539 = vunpack.c.h.b16 %v3851
    %v4540 = vunpack.c.l.b16 %v3852
    %v4541 = vunpack.c.h.b16 %v3852
    %v4542 = vunpack.c.l.b16 %v3853
    %v4543 = vunpack.c.h.b16 %v3853
    %v4544 = vunpack.c.l.b16 %v3854
    %v4545 = vunpack.c.h.b16 %v3854
    %v4546 = vunpack.c.l.b16 %v3855
    %v4547 = vunpack.c.h.b16 %v3855
    %v4548 = vunpack.c.l.b16 %v3856
    %v4549 = vunpack.c.h.b16 %v3856
    %v4550 = vunpack.c.l.b16 %v3857
    %v4551 = vunpack.c.h.b16 %v3857
    %v4552 = vunpack.c.l.b16 %v3858
    %v4553 = vunpack.c.h.b16 %v3858
    %v4554 = vunpack.c.l.b16 %v3859
    %v4555 = vunpack.c.h.b16 %v3859
    %v4556 = vunpack.c.l.b16 %v3860
    %v4557 = vunpack.c.h.b16 %v3860
    %v4558 = vunpack.c.l.b16 %v3861
    %v4559 = vunpack.c.h.b16 %v3861
    %v4560 = vunpack.c.l.b16 %v3862
    %v4561 = vunpack.c.h.b16 %v3862
    %v4562 = vunpack.c.l.b16 %v3863
    %v4563 = vunpack.c.h.b16 %v3863
    %v4564 = vunpack.c.l.b16 %v3864
    %v4565 = vunpack.c.h.b16 %v3864
    %v4566 = vunpack.c.l.b16 %v3865
    %v4567 = vunpack.c.h.b16 %v3865
    %v4568 = vunpack.c.l.b16 %v3866
    %v4569 = vunpack.c.h.b16 %v3866
    %v4570 = vunpack.c.l.b16 %v3867
    %v4571 = vunpack.c.h.b16 %v3867
    %v4572 = vunpack.c.l.b16 %v3868
    %v4573 = vunpack.c.h.b16 %v3868
    %v4574 = vunpack.c.l.b16 %v3869
    %v4575 = vunpack.c.h.b16 %v3869
    %v4576 = vunpack.c.l.b16 %v3870
    %v4577 = vunpack.c.h.b16 %v3870
    %v4578 = vpack.c.b16 %v4454, %v4450
    %v4579 = vpack.c.b16 %v4455, %v4451
    %v4580 = vpack.c.b16 %v4456, %v4452
    %v4581 = vpack.c.b16 %v4457, %v4453
    %v4582 = vpack.c.b16 %v4462, %v4458
    %v4583 = vpack.c.b16 %v4463, %v4459
    %v4584 = vpack.c.b16 %v4464, %v4460
    %v4585 = vpack.c.b16 %v4465, %v4461
    %v4586 = vpack.c.b16 %v4470, %v4466
    %v4587 = vpack.c.b16 %v4471, %v4467
    %v4588 = vpack.c.b16 %v4472, %v4468
    %v4589 = vpack.c.b16 %v4473, %v4469
    %v4590 = vpack.c.b16 %v4478, %v4474
    %v4591 = vpack.c.b16 %v4479, %v4475
    %v4592 = vpack.c.b16 %v4480, %v4476
    %v4593 = vpack.c.b16 %v4481, %v4477
    %v4594 = vpack.c.b16 %v4486, %v4482
    %v4595 = vpack.c.b16 %v4487, %v4483
    %v4596 = vpack.c.b16 %v4488, %v4484
    %v4597 = vpack.c.b16 %v4489, %v4485
    %v4598 = vpack.c.b16 %v4494, %v4490
    %v4599 = vpack.c.b16 %v4495, %v4491
    %v4600 = vpack.c.b16 %v4496, %v4492
    %v4601 = vpack.c.b16 %v4497, %v4493
    %v4602 = vpack.c.b16 %v4502, %v4498
    %v4603 = vpack.c.b16 %v4503, %v4499
    %v4604 = vpack.c.b16 %v4504, %v4500
    %v4605 = vpack.c.b16 %v4505, %v4501
    %v4606 = vpack.c.b16 %v4510, %v4506
    %v4607 = vpack.c.b16 %v4511, %v4507
    %v4608 = vpack.c.b16 %v4512, %v4508
    %v4609 = vpack.c.b16 %v4513, %v4509
    %v4610 = vpack.c.b16 %v4518, %v4514
    %v4611 = vpack.c.b16 %v4519, %v4515
    %v4612 = vpack.c.b16 %v4520, %v4516
    %v4613 = vpack.c.b16 %v4521, %v4517
    %v4614 = vpack.c.b16 %v4526, %v4522
    %v4615 = vpack.c.b16 %v4527, %v4523
    %v4616 = vpack.c.b16 %v4528, %v4524
    %v4617 = vpack.c.b16 %v4529, %v4525
    %v4618 = vpack.c.b16 %v4534, %v4530
    %v4619 = vpack.c.b16 %v4535, %v4531
    %v4620 = vpack.c.b16 %v4536, %v4532
    %v4621 = vpack.c.b16 %v4537, %v4533
    %v4622 = vpack.c.b16 %v4542, %v4538
    %v4623 = vpack.c.b16 %v4543, %v4539
    %v4624 = vpack.c.b16 %v4544, %v4540
    %v4625 = vpack.c.b16 %v4545, %v4541
    %v4626 = vpack.c.b16 %v4550, %v4546
    %v4627 = vpack.c.b16 %v4551, %v4547
    %v4628 = vpack.c.b16 %v4552, %v4548
    %v4629 = vpack.c.b16 %v4553, %v4549
    %v4630 = vpack.c.b16 %v4558, %v4554
    %v4631 = vpack.c.b16 %v4559, %v4555
    %v4632 = vpack.c.b16 %v4560, %v4556
    %v4633 = vpack.c.b16 %v4561, %v4557
    %v4634 = vpack.c.b16 %v4566, %v4562
    %v4635 = vpack.c.b16 %v4567, %v4563
    %v4636 = vpack.c.b16 %v4568, %v4564
    %v4637 = vpack.c.b16 %v4569, %v4565
    %v4638 = vpack.c.b16 %v4574, %v4570
    %v4639 = vpack.c.b16 %v4575, %v4571
    %v4640 = vpack.c.b16 %v4576, %v4572
    %v4641 = vpack.c.b16 %v4577, %v4573
    %4706 = vmatprep.subr.bf16.mxu0 %v4579
    %4707 = vmatpush1.bf16.msra.mxu0 %v4578
    %4708 = vmatprep.subr.bf16.mxu0 %v4583
    %4709 = vmatpush1.bf16.msra.mxu0 %v4582
    %4710 = vmatprep.subr.bf16.mxu0 %v4587
    %4711 = vmatpush1.bf16.msra.mxu0 %v4586
    %4712 = vmatprep.subr.bf16.mxu0 %v4591
    %4713 = vmatpush1.bf16.msra.mxu0 %v4590
    %4714 = vmatprep.subr.bf16.mxu0 %v4595
    %4715 = vmatpush1.bf16.msra.mxu0 %v4594
    %4716 = vmatprep.subr.bf16.mxu0 %v4599
    %4717 = vmatpush1.bf16.msra.mxu0 %v4598
    %4718 = vmatprep.subr.bf16.mxu0 %v4603
    %4719 = vmatpush1.bf16.msra.mxu0 %v4602
    %4720 = vmatprep.subr.bf16.mxu0 %v4607
    %4721 = vmatpush1.bf16.msra.mxu0 %v4606
    %4722 = vmatprep.subr.bf16.mxu0 %v4611
    %4723 = vmatpush1.bf16.msra.mxu0 %v4610
    %4724 = vmatprep.subr.bf16.mxu0 %v4615
    %4725 = vmatpush1.bf16.msra.mxu0 %v4614
    %4726 = vmatprep.subr.bf16.mxu0 %v4619
    %4727 = vmatpush1.bf16.msra.mxu0 %v4618
    %4728 = vmatprep.subr.bf16.mxu0 %v4623
    %4729 = vmatpush1.bf16.msra.mxu0 %v4622
    %4730 = vmatprep.subr.bf16.mxu0 %v4627
    %4731 = vmatpush1.bf16.msra.mxu0 %v4626
    %4732 = vmatprep.subr.bf16.mxu0 %v4631
    %4733 = vmatpush1.bf16.msra.mxu0 %v4630
    %4734 = vmatprep.subr.bf16.mxu0 %v4635
    %4735 = vmatpush1.bf16.msra.mxu0 %v4634
    %4736 = vmatprep.subr.bf16.mxu0 %v4639
    %4737 = vmatpush1.bf16.msra.mxu0 %v4638
    %4738 = vmatprep.mubr.bf16.mxu0 %v3806
    %4739 = vmatmul.mubr.bf16.gmra.mrb[0].mxu0 %v3805
    %v4740 = vpop.f32.mrb[0].mxu0
    %v4741 = vadd.f32 %v4339, %v4740
    %v4742 = vpop.f32.mrb[0].mxu0
    %v4743 = vadd.f32 %v4341, %v4742
    %v4744 = vpop.f32.mrb[0].mxu0
    %v4745 = vpop.f32.mrb[0].mxu0
    %4746 = vdwg.mxu0
    %4747 = vmatprep.subr.bf16.mxu0 %v4581
    %4748 = vmatpush1.bf16.msra.mxu0 %v4580
    %4749 = vmatprep.subr.bf16.mxu0 %v4585
    %4750 = vmatpush1.bf16.msra.mxu0 %v4584
    %4751 = vmatprep.subr.bf16.mxu0 %v4589
    %4752 = vmatpush1.bf16.msra.mxu0 %v4588
    %4753 = vmatprep.subr.bf16.mxu0 %v4593
    %4754 = vmatpush1.bf16.msra.mxu0 %v4592
    %4755 = vmatprep.subr.bf16.mxu0 %v4597
    %4756 = vmatpush1.bf16.msra.mxu0 %v4596
    %4757 = vmatprep.subr.bf16.mxu0 %v4601
    %4758 = vmatpush1.bf16.msra.mxu0 %v4600
    %4759 = vmatprep.subr.bf16.mxu0 %v4605
    %4760 = vmatpush1.bf16.msra.mxu0 %v4604
    %4761 = vmatprep.subr.bf16.mxu0 %v4609
    %4762 = vmatpush1.bf16.msra.mxu0 %v4608
    %4763 = vmatprep.subr.bf16.mxu0 %v4613
    %4764 = vmatpush1.bf16.msra.mxu0 %v4612
    %4765 = vmatprep.subr.bf16.mxu0 %v4617
    %4766 = vmatpush1.bf16.msra.mxu0 %v4616
    %4767 = vmatprep.subr.bf16.mxu0 %v4621
    %4768 = vmatpush1.bf16.msra.mxu0 %v4620
    %4769 = vmatprep.subr.bf16.mxu0 %v4625
    %4770 = vmatpush1.bf16.msra.mxu0 %v4624
    %4771 = vmatprep.subr.bf16.mxu0 %v4629
    %4772 = vmatpush1.bf16.msra.mxu0 %v4628
    %4773 = vmatprep.subr.bf16.mxu0 %v4633
    %4774 = vmatpush1.bf16.msra.mxu0 %v4632
    %4775 = vmatprep.subr.bf16.mxu0 %v4637
    %4776 = vmatpush1.bf16.msra.mxu0 %v4636
    %4777 = vmatprep.subr.bf16.mxu0 %v4641
    %4778 = vmatpush1.bf16.msra.mxu0 %v4640
    %4779 = vmatprep.mubr.bf16.mxu0 %v3806
    %4780 = vmatmul.mubr.bf16.gmra.mrb[0].mxu0 %v3805
    %v4781 = vpop.f32.mrb[0].mxu0
    %v4782 = vadd.f32 %v4380, %v4781
    %v4783 = vpop.f32.mrb[0].mxu0
    %v4784 = vadd.f32 %v4382, %v4783
    %v4785 = vpop.f32.mrb[0].mxu0
    %v4786 = vpop.f32.mrb[0].mxu0
    %4787 = vdwg.mxu0
    %s4788 = scalar_lea.vmem [#allocation23], 2
    %v4789 = vld [vmem:[%s4788] sm:$0x1]
    %v4791 = vsel %vm3753, %v4789, 0
    %4793 = vmatprep.subr.bf16.mxu0 %v3762
    %4794 = vmatpush1.bf16.msra.mxu0 %v3759
    %4795 = vmatprep.subr.bf16.mxu0 0
    %4796 = vmatpush1.bf16.msra.mxu0 0
    %4797 = vmatprep.subr.bf16.mxu0 0
    %4798 = vmatpush1.bf16.msra.mxu0 0
    %4799 = vmatprep.subr.bf16.mxu0 0
    %4800 = vmatpush1.bf16.msra.mxu0 0
    %4801 = vmatprep.subr.bf16.mxu0 0
    %4802 = vmatpush1.bf16.msra.mxu0 0
    %4803 = vmatprep.subr.bf16.mxu0 0
    %4804 = vmatpush1.bf16.msra.mxu0 0
    %4805 = vmatprep.subr.bf16.mxu0 0
    %4806 = vmatpush1.bf16.msra.mxu0 0
    %4807 = vmatprep.subr.bf16.mxu0 0
    %4808 = vmatpush1.bf16.msra.mxu0 0
    %4809 = vmatprep.subr.bf16.mxu0 0
    %4810 = vmatpush1.bf16.msra.mxu0 0
    %4811 = vmatprep.subr.bf16.mxu0 0
    %4812 = vmatpush1.bf16.msra.mxu0 0
    %4813 = vmatprep.subr.bf16.mxu0 0
    %4814 = vmatpush1.bf16.msra.mxu0 0
    %4815 = vmatprep.subr.bf16.mxu0 0
    %4816 = vmatpush1.bf16.msra.mxu0 0
    %4817 = vmatprep.subr.bf16.mxu0 0
    %4818 = vmatpush1.bf16.msra.mxu0 0
    %4819 = vmatprep.subr.bf16.mxu0 0
    %4820 = vmatpush1.bf16.msra.mxu0 0
    %4821 = vmatprep.subr.bf16.mxu0 0
    %4822 = vmatpush1.bf16.msra.mxu0 0
    %4823 = vmatprep.subr.bf16.mxu0 0
    %4824 = vmatpush1.bf16.msra.mxu0 0
    %4825 = vmatprep.mubr.bf16.mxu0 0
    %4826 = vmatmul.mubr.bf16.gmra.mrb[0].mxu0 %v4791
    %v4827 = vpop.f32.mrb[0].mxu0
    %v4828 = vadd.f32 0.0, %v4827
    %v4829 = vpop.f32.mrb[0].mxu0
    %v4830 = vadd.f32 0.0, %v4829
    %v4831 = vpop.f32.mrb[0].mxu0
    %v4832 = vpop.f32.mrb[0].mxu0
    %4833 = vdwg.mxu0
    %v4834 = vpack.c.bf16 %v4828, %v4828
    %v4835 = vpack.c.bf16 %v4830, %v4830
    %s4836 = scalar_lea.vmem [#allocation19], 1024
    %v4837 = vld [vmem:[%s4836] sm:$0xff]
    %v4838 = vld [vmem:[%s4836 + $0x8] sm:$0xff]
    %v4839 = vld [vmem:[%s4836 + $0x10] sm:$0xff]
    %v4840 = vld [vmem:[%s4836 + $0x18] sm:$0xff]
    %v4841 = vld [vmem:[%s4836 + $0x20] sm:$0xff]
    %v4842 = vld [vmem:[%s4836 + $0x28] sm:$0xff]
    %v4843 = vld [vmem:[%s4836 + $0x30] sm:$0xff]
    %v4844 = vld [vmem:[%s4836 + $0x38] sm:$0xff]
    %v4845 = vld [vmem:[%s4836 + $0x40] sm:$0xff]
    %v4846 = vld [vmem:[%s4836 + $0x48] sm:$0xff]
    %v4847 = vld [vmem:[%s4836 + $0x50] sm:$0xff]
    %v4848 = vld [vmem:[%s4836 + $0x58] sm:$0xff]
    %v4849 = vld [vmem:[%s4836 + $0x60] sm:$0xff]
    %v4850 = vld [vmem:[%s4836 + $0x68] sm:$0xff]
    %v4851 = vld [vmem:[%s4836 + $0x70] sm:$0xff]
    %v4852 = vld [vmem:[%s4836 + $0x78] sm:$0xff]
    %v4853 = vld [vmem:[%s4836 + $0x80] sm:$0xff]
    %v4854 = vld [vmem:[%s4836 + $0x88] sm:$0xff]
    %v4855 = vld [vmem:[%s4836 + $0x90] sm:$0xff]
    %v4856 = vld [vmem:[%s4836 + $0x98] sm:$0xff]
    %v4857 = vld [vmem:[%s4836 + $0xa0] sm:$0xff]
    %v4858 = vld [vmem:[%s4836 + $0xa8] sm:$0xff]
    %v4859 = vld [vmem:[%s4836 + $0xb0] sm:$0xff]
    %v4860 = vld [vmem:[%s4836 + $0xb8] sm:$0xff]
    %v4861 = vld [vmem:[%s4836 + $0xc0] sm:$0xff]
    %v4862 = vld [vmem:[%s4836 + $0xc8] sm:$0xff]
    %v4863 = vld [vmem:[%s4836 + $0xd0] sm:$0xff]
    %v4864 = vld [vmem:[%s4836 + $0xd8] sm:$0xff]
    %v4865 = vld [vmem:[%s4836 + $0xe0] sm:$0xff]
    %v4866 = vld [vmem:[%s4836 + $0xe8] sm:$0xff]
    %v4867 = vld [vmem:[%s4836 + $0xf0] sm:$0xff]
    %v4868 = vld [vmem:[%s4836 + $0xf8] sm:$0xff]
    %v4869 = vld [vmem:[%s4836 + $0x100] sm:$0xff]
    %v4870 = vld [vmem:[%s4836 + $0x108] sm:$0xff]
    %v4871 = vld [vmem:[%s4836 + $0x110] sm:$0xff]
    %v4872 = vld [vmem:[%s4836 + $0x118] sm:$0xff]
    %v4873 = vld [vmem:[%s4836 + $0x120] sm:$0xff]
    %v4874 = vld [vmem:[%s4836 + $0x128] sm:$0xff]
    %v4875 = vld [vmem:[%s4836 + $0x130] sm:$0xff]
    %v4876 = vld [vmem:[%s4836 + $0x138] sm:$0xff]
    %v4877 = vld [vmem:[%s4836 + $0x140] sm:$0xff]
    %v4878 = vld [vmem:[%s4836 + $0x148] sm:$0xff]
    %v4879 = vld [vmem:[%s4836 + $0x150] sm:$0xff]
    %v4880 = vld [vmem:[%s4836 + $0x158] sm:$0xff]
    %v4881 = vld [vmem:[%s4836 + $0x160] sm:$0xff]
    %v4882 = vld [vmem:[%s4836 + $0x168] sm:$0xff]
    %v4883 = vld [vmem:[%s4836 + $0x170] sm:$0xff]
    %v4884 = vld [vmem:[%s4836 + $0x178] sm:$0xff]
    %v4885 = vld [vmem:[%s4836 + $0x180] sm:$0xff]
    %v4886 = vld [vmem:[%s4836 + $0x188] sm:$0xff]
    %v4887 = vld [vmem:[%s4836 + $0x190] sm:$0xff]
    %v4888 = vld [vmem:[%s4836 + $0x198] sm:$0xff]
    %v4889 = vld [vmem:[%s4836 + $0x1a0] sm:$0xff]
    %v4890 = vld [vmem:[%s4836 + $0x1a8] sm:$0xff]
    %v4891 = vld [vmem:[%s4836 + $0x1b0] sm:$0xff]
    %v4892 = vld [vmem:[%s4836 + $0x1b8] sm:$0xff]
    %v4893 = vld [vmem:[%s4836 + $0x1c0] sm:$0xff]
    %v4894 = vld [vmem:[%s4836 + $0x1c8] sm:$0xff]
    %v4895 = vld [vmem:[%s4836 + $0x1d0] sm:$0xff]
    %v4896 = vld [vmem:[%s4836 + $0x1d8] sm:$0xff]
    %v4897 = vld [vmem:[%s4836 + $0x1e0] sm:$0xff]
    %v4898 = vld [vmem:[%s4836 + $0x1e8] sm:$0xff]
    %v4899 = vld [vmem:[%s4836 + $0x1f0] sm:$0xff]
    %v4900 = vld [vmem:[%s4836 + $0x1f8] sm:$0xff]
    %v4965 = vunpack.c.l.b16 %v4837
    %v4966 = vunpack.c.h.b16 %v4837
    %v4967 = vunpack.c.l.b16 %v4838
    %v4968 = vunpack.c.h.b16 %v4838
    %v4969 = vunpack.c.l.b16 %v4839
    %v4970 = vunpack.c.h.b16 %v4839
    %v4971 = vunpack.c.l.b16 %v4840
    %v4972 = vunpack.c.h.b16 %v4840
    %v4973 = vunpack.c.l.b16 %v4841
    %v4974 = vunpack.c.h.b16 %v4841
    %v4975 = vunpack.c.l.b16 %v4842
    %v4976 = vunpack.c.h.b16 %v4842
    %v4977 = vunpack.c.l.b16 %v4843
    %v4978 = vunpack.c.h.b16 %v4843
    %v4979 = vunpack.c.l.b16 %v4844
    %v4980 = vunpack.c.h.b16 %v4844
    %v4981 = vunpack.c.l.b16 %v4845
    %v4982 = vunpack.c.h.b16 %v4845
    %v4983 = vunpack.c.l.b16 %v4846
    %v4984 = vunpack.c.h.b16 %v4846
    %v4985 = vunpack.c.l.b16 %v4847
    %v4986 = vunpack.c.h.b16 %v4847
    %v4987 = vunpack.c.l.b16 %v4848
    %v4988 = vunpack.c.h.b16 %v4848
    %v4989 = vunpack.c.l.b16 %v4849
    %v4990 = vunpack.c.h.b16 %v4849
    %v4991 = vunpack.c.l.b16 %v4850
    %v4992 = vunpack.c.h.b16 %v4850
    %v4993 = vunpack.c.l.b16 %v4851
    %v4994 = vunpack.c.h.b16 %v4851
    %v4995 = vunpack.c.l.b16 %v4852
    %v4996 = vunpack.c.h.b16 %v4852
    %v4997 = vunpack.c.l.b16 %v4853
    %v4998 = vunpack.c.h.b16 %v4853
    %v4999 = vunpack.c.l.b16 %v4854
    %v5000 = vunpack.c.h.b16 %v4854
    %v5001 = vunpack.c.l.b16 %v4855
    %v5002 = vunpack.c.h.b16 %v4855
    %v5003 = vunpack.c.l.b16 %v4856
    %v5004 = vunpack.c.h.b16 %v4856
    %v5005 = vunpack.c.l.b16 %v4857
    %v5006 = vunpack.c.h.b16 %v4857
    %v5007 = vunpack.c.l.b16 %v4858
    %v5008 = vunpack.c.h.b16 %v4858
    %v5009 = vunpack.c.l.b16 %v4859
    %v5010 = vunpack.c.h.b16 %v4859
    %v5011 = vunpack.c.l.b16 %v4860
    %v5012 = vunpack.c.h.b16 %v4860
    %v5013 = vunpack.c.l.b16 %v4861
    %v5014 = vunpack.c.h.b16 %v4861
    %v5015 = vunpack.c.l.b16 %v4862
    %v5016 = vunpack.c.h.b16 %v4862
    %v5017 = vunpack.c.l.b16 %v4863
    %v5018 = vunpack.c.h.b16 %v4863
    %v5019 = vunpack.c.l.b16 %v4864
    %v5020 = vunpack.c.h.b16 %v4864
    %v5021 = vunpack.c.l.b16 %v4865
    %v5022 = vunpack.c.h.b16 %v4865
    %v5023 = vunpack.c.l.b16 %v4866
    %v5024 = vunpack.c.h.b16 %v4866
    %v5025 = vunpack.c.l.b16 %v4867
    %v5026 = vunpack.c.h.b16 %v4867
    %v5027 = vunpack.c.l.b16 %v4868
    %v5028 = vunpack.c.h.b16 %v4868
    %v5029 = vunpack.c.l.b16 %v4869
    %v5030 = vunpack.c.h.b16 %v4869
    %v5031 = vunpack.c.l.b16 %v4870
    %v5032 = vunpack.c.h.b16 %v4870
    %v5033 = vunpack.c.l.b16 %v4871
    %v5034 = vunpack.c.h.b16 %v4871
    %v5035 = vunpack.c.l.b16 %v4872
    %v5036 = vunpack.c.h.b16 %v4872
    %v5037 = vunpack.c.l.b16 %v4873
    %v5038 = vunpack.c.h.b16 %v4873
    %v5039 = vunpack.c.l.b16 %v4874
    %v5040 = vunpack.c.h.b16 %v4874
    %v5041 = vunpack.c.l.b16 %v4875
    %v5042 = vunpack.c.h.b16 %v4875
    %v5043 = vunpack.c.l.b16 %v4876
    %v5044 = vunpack.c.h.b16 %v4876
    %v5045 = vunpack.c.l.b16 %v4877
    %v5046 = vunpack.c.h.b16 %v4877
    %v5047 = vunpack.c.l.b16 %v4878
    %v5048 = vunpack.c.h.b16 %v4878
    %v5049 = vunpack.c.l.b16 %v4879
    %v5050 = vunpack.c.h.b16 %v4879
    %v5051 = vunpack.c.l.b16 %v4880
    %v5052 = vunpack.c.h.b16 %v4880
    %v5053 = vunpack.c.l.b16 %v4881
    %v5054 = vunpack.c.h.b16 %v4881
    %v5055 = vunpack.c.l.b16 %v4882
    %v5056 = vunpack.c.h.b16 %v4882
    %v5057 = vunpack.c.l.b16 %v4883
    %v5058 = vunpack.c.h.b16 %v4883
    %v5059 = vunpack.c.l.b16 %v4884
    %v5060 = vunpack.c.h.b16 %v4884
    %v5061 = vunpack.c.l.b16 %v4885
    %v5062 = vunpack.c.h.b16 %v4885
    %v5063 = vunpack.c.l.b16 %v4886
    %v5064 = vunpack.c.h.b16 %v4886
    %v5065 = vunpack.c.l.b16 %v4887
    %v5066 = vunpack.c.h.b16 %v4887
    %v5067 = vunpack.c.l.b16 %v4888
    %v5068 = vunpack.c.h.b16 %v4888
    %v5069 = vunpack.c.l.b16 %v4889
    %v5070 = vunpack.c.h.b16 %v4889
    %v5071 = vunpack.c.l.b16 %v4890
    %v5072 = vunpack.c.h.b16 %v4890
    %v5073 = vunpack.c.l.b16 %v4891
    %v5074 = vunpack.c.h.b16 %v4891
    %v5075 = vunpack.c.l.b16 %v4892
    %v5076 = vunpack.c.h.b16 %v4892
    %v5077 = vunpack.c.l.b16 %v4893
    %v5078 = vunpack.c.h.b16 %v4893
    %v5079 = vunpack.c.l.b16 %v4894
    %v5080 = vunpack.c.h.b16 %v4894
    %v5081 = vunpack.c.l.b16 %v4895
    %v5082 = vunpack.c.h.b16 %v4895
    %v5083 = vunpack.c.l.b16 %v4896
    %v5084 = vunpack.c.h.b16 %v4896
    %v5085 = vunpack.c.l.b16 %v4897
    %v5086 = vunpack.c.h.b16 %v4897
    %v5087 = vunpack.c.l.b16 %v4898
    %v5088 = vunpack.c.h.b16 %v4898
    %v5089 = vunpack.c.l.b16 %v4899
    %v5090 = vunpack.c.h.b16 %v4899
    %v5091 = vunpack.c.l.b16 %v4900
    %v5092 = vunpack.c.h.b16 %v4900
    %v5093 = vpack.c.b16 %v4969, %v4965
    %v5094 = vpack.c.b16 %v4970, %v4966
    %v5095 = vpack.c.b16 %v4971, %v4967
    %v5096 = vpack.c.b16 %v4972, %v4968
    %v5097 = vpack.c.b16 %v4977, %v4973
    %v5098 = vpack.c.b16 %v4978, %v4974
    %v5099 = vpack.c.b16 %v4979, %v4975
    %v5100 = vpack.c.b16 %v4980, %v4976
    %v5101 = vpack.c.b16 %v4985, %v4981
    %v5102 = vpack.c.b16 %v4986, %v4982
    %v5103 = vpack.c.b16 %v4987, %v4983
    %v5104 = vpack.c.b16 %v4988, %v4984
    %v5105 = vpack.c.b16 %v4993, %v4989
    %v5106 = vpack.c.b16 %v4994, %v4990
    %v5107 = vpack.c.b16 %v4995, %v4991
    %v5108 = vpack.c.b16 %v4996, %v4992
    %v5109 = vpack.c.b16 %v5001, %v4997
    %v5110 = vpack.c.b16 %v5002, %v4998
    %v5111 = vpack.c.b16 %v5003, %v4999
    %v5112 = vpack.c.b16 %v5004, %v5000
    %v5113 = vpack.c.b16 %v5009, %v5005
    %v5114 = vpack.c.b16 %v5010, %v5006
    %v5115 = vpack.c.b16 %v5011, %v5007
    %v5116 = vpack.c.b16 %v5012, %v5008
    %v5117 = vpack.c.b16 %v5017, %v5013
    %v5118 = vpack.c.b16 %v5018, %v5014
    %v5119 = vpack.c.b16 %v5019, %v5015
    %v5120 = vpack.c.b16 %v5020, %v5016
    %v5121 = vpack.c.b16 %v5025, %v5021
    %v5122 = vpack.c.b16 %v5026, %v5022
    %v5123 = vpack.c.b16 %v5027, %v5023
    %v5124 = vpack.c.b16 %v5028, %v5024
    %v5125 = vpack.c.b16 %v5033, %v5029
    %v5126 = vpack.c.b16 %v5034, %v5030
    %v5127 = vpack.c.b16 %v5035, %v5031
    %v5128 = vpack.c.b16 %v5036, %v5032
    %v5129 = vpack.c.b16 %v5041, %v5037
    %v5130 = vpack.c.b16 %v5042, %v5038
    %v5131 = vpack.c.b16 %v5043, %v5039
    %v5132 = vpack.c.b16 %v5044, %v5040
    %v5133 = vpack.c.b16 %v5049, %v5045
    %v5134 = vpack.c.b16 %v5050, %v5046
    %v5135 = vpack.c.b16 %v5051, %v5047
    %v5136 = vpack.c.b16 %v5052, %v5048
    %v5137 = vpack.c.b16 %v5057, %v5053
    %v5138 = vpack.c.b16 %v5058, %v5054
    %v5139 = vpack.c.b16 %v5059, %v5055
    %v5140 = vpack.c.b16 %v5060, %v5056
    %v5141 = vpack.c.b16 %v5065, %v5061
    %v5142 = vpack.c.b16 %v5066, %v5062
    %v5143 = vpack.c.b16 %v5067, %v5063
    %v5144 = vpack.c.b16 %v5068, %v5064
    %v5145 = vpack.c.b16 %v5073, %v5069
    %v5146 = vpack.c.b16 %v5074, %v5070
    %v5147 = vpack.c.b16 %v5075, %v5071
    %v5148 = vpack.c.b16 %v5076, %v5072
    %v5149 = vpack.c.b16 %v5081, %v5077
    %v5150 = vpack.c.b16 %v5082, %v5078
    %v5151 = vpack.c.b16 %v5083, %v5079
    %v5152 = vpack.c.b16 %v5084, %v5080
    %v5153 = vpack.c.b16 %v5089, %v5085
    %v5154 = vpack.c.b16 %v5090, %v5086
    %v5155 = vpack.c.b16 %v5091, %v5087
    %v5156 = vpack.c.b16 %v5092, %v5088
    %5221 = vmatprep.subr.bf16.mxu0 %v5094
    %5222 = vmatpush1.bf16.msra.mxu0 %v5093
    %5223 = vmatprep.subr.bf16.mxu0 %v5098
    %5224 = vmatpush1.bf16.msra.mxu0 %v5097
    %5225 = vmatprep.subr.bf16.mxu0 %v5102
    %5226 = vmatpush1.bf16.msra.mxu0 %v5101
    %5227 = vmatprep.subr.bf16.mxu0 %v5106
    %5228 = vmatpush1.bf16.msra.mxu0 %v5105
    %5229 = vmatprep.subr.bf16.mxu0 %v5110
    %5230 = vmatpush1.bf16.msra.mxu0 %v5109
    %5231 = vmatprep.subr.bf16.mxu0 %v5114
    %5232 = vmatpush1.bf16.msra.mxu0 %v5113
    %5233 = vmatprep.subr.bf16.mxu0 %v5118
    %5234 = vmatpush1.bf16.msra.mxu0 %v5117
    %5235 = vmatprep.subr.bf16.mxu0 %v5122
    %5236 = vmatpush1.bf16.msra.mxu0 %v5121
    %5237 = vmatprep.subr.bf16.mxu0 %v5126
    %5238 = vmatpush1.bf16.msra.mxu0 %v5125
    %5239 = vmatprep.subr.bf16.mxu0 %v5130
    %5240 = vmatpush1.bf16.msra.mxu0 %v5129
    %5241 = vmatprep.subr.bf16.mxu0 %v5134
    %5242 = vmatpush1.bf16.msra.mxu0 %v5133
    %5243 = vmatprep.subr.bf16.mxu0 %v5138
    %5244 = vmatpush1.bf16.msra.mxu0 %v5137
    %5245 = vmatprep.subr.bf16.mxu0 %v5142
    %5246 = vmatpush1.bf16.msra.mxu0 %v5141
    %5247 = vmatprep.subr.bf16.mxu0 %v5146
    %5248 = vmatpush1.bf16.msra.mxu0 %v5145
    %5249 = vmatprep.subr.bf16.mxu0 %v5150
    %5250 = vmatpush1.bf16.msra.mxu0 %v5149
    %5251 = vmatprep.subr.bf16.mxu0 %v5154
    %5252 = vmatpush1.bf16.msra.mxu0 %v5153
    %5253 = vmatprep.mubr.bf16.mxu0 %v4835
    %5254 = vmatmul.mubr.bf16.gmra.mrb[0].mxu0 %v4834
    %v5255 = vpop.f32.mrb[0].mxu0
    %v5256 = vadd.f32 0.0, %v5255
    %v5257 = vpop.f32.mrb[0].mxu0
    %v5258 = vadd.f32 0.0, %v5257
    %v5259 = vpop.f32.mrb[0].mxu0
    %v5260 = vpop.f32.mrb[0].mxu0
    %5261 = vdwg.mxu0
    %5262 = vmatprep.subr.bf16.mxu0 %v5096
    %5263 = vmatpush1.bf16.msra.mxu0 %v5095
    %5264 = vmatprep.subr.bf16.mxu0 %v5100
    %5265 = vmatpush1.bf16.msra.mxu0 %v5099
    %5266 = vmatprep.subr.bf16.mxu0 %v5104
    %5267 = vmatpush1.bf16.msra.mxu0 %v5103
    %5268 = vmatprep.subr.bf16.mxu0 %v5108
    %5269 = vmatpush1.bf16.msra.mxu0 %v5107
    %5270 = vmatprep.subr.bf16.mxu0 %v5112
    %5271 = vmatpush1.bf16.msra.mxu0 %v5111
    %5272 = vmatprep.subr.bf16.mxu0 %v5116
    %5273 = vmatpush1.bf16.msra.mxu0 %v5115
    %5274 = vmatprep.subr.bf16.mxu0 %v5120
    %5275 = vmatpush1.bf16.msra.mxu0 %v5119
    %5276 = vmatprep.subr.bf16.mxu0 %v5124
    %5277 = vmatpush1.bf16.msra.mxu0 %v5123
    %5278 = vmatprep.subr.bf16.mxu0 %v5128
    %5279 = vmatpush1.bf16.msra.mxu0 %v5127
    %5280 = vmatprep.subr.bf16.mxu0 %v5132
    %5281 = vmatpush1.bf16.msra.mxu0 %v5131
    %5282 = vmatprep.subr.bf16.mxu0 %v5136
    %5283 = vmatpush1.bf16.msra.mxu0 %v5135
    %5284 = vmatprep.subr.bf16.mxu0 %v5140
    %5285 = vmatpush1.bf16.msra.mxu0 %v5139
    %5286 = vmatprep.subr.bf16.mxu0 %v5144
    %5287 = vmatpush1.bf16.msra.mxu0 %v5143
    %5288 = vmatprep.subr.bf16.mxu0 %v5148
    %5289 = vmatpush1.bf16.msra.mxu0 %v5147
    %5290 = vmatprep.subr.bf16.mxu0 %v5152
    %5291 = vmatpush1.bf16.msra.mxu0 %v5151
    %5292 = vmatprep.subr.bf16.mxu0 %v5156
    %5293 = vmatpush1.bf16.msra.mxu0 %v5155
    %5294 = vmatprep.mubr.bf16.mxu0 %v4835
    %5295 = vmatmul.mubr.bf16.gmra.mrb[0].mxu0 %v4834
    %v5296 = vpop.f32.mrb[0].mxu0
    %v5297 = vadd.f32 0.0, %v5296
    %v5298 = vpop.f32.mrb[0].mxu0
    %v5299 = vadd.f32 0.0, %v5298
    %v5300 = vpop.f32.mrb[0].mxu0
    %v5301 = vpop.f32.mrb[0].mxu0
    %5302 = vdwg.mxu0
    %v5303 = vadd.f32 %v4741, %v5256
    %v5304 = vadd.f32 %v4743, %v5258
    %v5305 = vadd.f32 %v4782, %v5297
    %v5306 = vadd.f32 %v4784, %v5299
    %s5307 = scalar_lea.vmem [#allocation23], 3
    %v5308 = vld [vmem:[%s5307] sm:$0x1]
    %v5310 = vsel %vm3753, %v5308, 0
    %5312 = vmatprep.subr.bf16.mxu0 %v3762
    %5313 = vmatpush1.bf16.msra.mxu0 %v3759
    %5314 = vmatprep.subr.bf16.mxu0 0
    %5315 = vmatpush1.bf16.msra.mxu0 0
    %5316 = vmatprep.subr.bf16.mxu0 0
    %5317 = vmatpush1.bf16.msra.mxu0 0
    %5318 = vmatprep.subr.bf16.mxu0 0
    %5319 = vmatpush1.bf16.msra.mxu0 0
    %5320 = vmatprep.subr.bf16.mxu0 0
    %5321 = vmatpush1.bf16.msra.mxu0 0
    %5322 = vmatprep.subr.bf16.mxu0 0
    %5323 = vmatpush1.bf16.msra.mxu0 0
    %5324 = vmatprep.subr.bf16.mxu0 0
    %5325 = vmatpush1.bf16.msra.mxu0 0
    %5326 = vmatprep.subr.bf16.mxu0 0
    %5327 = vmatpush1.bf16.msra.mxu0 0
    %5328 = vmatprep.subr.bf16.mxu0 0
    %5329 = vmatpush1.bf16.msra.mxu0 0
    %5330 = vmatprep.subr.bf16.mxu0 0
    %5331 = vmatpush1.bf16.msra.mxu0 0
    %5332 = vmatprep.subr.bf16.mxu0 0
    %5333 = vmatpush1.bf16.msra.mxu0 0
    %5334 = vmatprep.subr.bf16.mxu0 0
    %5335 = vmatpush1.bf16.msra.mxu0 0
    %5336 = vmatprep.subr.bf16.mxu0 0
    %5337 = vmatpush1.bf16.msra.mxu0 0
    %5338 = vmatprep.subr.bf16.mxu0 0
    %5339 = vmatpush1.bf16.msra.mxu0 0
    %5340 = vmatprep.subr.bf16.mxu0 0
    %5341 = vmatpush1.bf16.msra.mxu0 0
    %5342 = vmatprep.subr.bf16.mxu0 0
    %5343 = vmatpush1.bf16.msra.mxu0 0
    %5344 = vmatprep.mubr.bf16.mxu0 0
    %5345 = vmatmul.mubr.bf16.gmra.mrb[0].mxu0 %v5310
    %v5346 = vpop.f32.mrb[0].mxu0
    %v5347 = vadd.f32 0.0, %v5346
    %v5348 = vpop.f32.mrb[0].mxu0
    %v5349 = vadd.f32 0.0, %v5348
    %v5350 = vpop.f32.mrb[0].mxu0
    %v5351 = vpop.f32.mrb[0].mxu0
    %5352 = vdwg.mxu0
    %v5353 = vpack.c.bf16 %v5347, %v5347
    %v5354 = vpack.c.bf16 %v5349, %v5349
    %s5355 = scalar_lea.vmem [#allocation19], 1536
    %v5356 = vld [vmem:[%s5355] sm:$0xff]
    %v5357 = vld [vmem:[%s5355 + $0x8] sm:$0xff]
    %v5358 = vld [vmem:[%s5355 + $0x10] sm:$0xff]
    %v5359 = vld [vmem:[%s5355 + $0x18] sm:$0xff]
    %v5360 = vld [vmem:[%s5355 + $0x20] sm:$0xff]
    %v5361 = vld [vmem:[%s5355 + $0x28] sm:$0xff]
    %v5362 = vld [vmem:[%s5355 + $0x30] sm:$0xff]
    %v5363 = vld [vmem:[%s5355 + $0x38] sm:$0xff]
    %v5364 = vld [vmem:[%s5355 + $0x40] sm:$0xff]
    %v5365 = vld [vmem:[%s5355 + $0x48] sm:$0xff]
    %v5366 = vld [vmem:[%s5355 + $0x50] sm:$0xff]
    %v5367 = vld [vmem:[%s5355 + $0x58] sm:$0xff]
    %v5368 = vld [vmem:[%s5355 + $0x60] sm:$0xff]
    %v5369 = vld [vmem:[%s5355 + $0x68] sm:$0xff]
    %v5370 = vld [vmem:[%s5355 + $0x70] sm:$0xff]
    %v5371 = vld [vmem:[%s5355 + $0x78] sm:$0xff]
    %v5372 = vld [vmem:[%s5355 + $0x80] sm:$0xff]
    %v5373 = vld [vmem:[%s5355 + $0x88] sm:$0xff]
    %v5374 = vld [vmem:[%s5355 + $0x90] sm:$0xff]
    %v5375 = vld [vmem:[%s5355 + $0x98] sm:$0xff]
    %v5376 = vld [vmem:[%s5355 + $0xa0] sm:$0xff]
    %v5377 = vld [vmem:[%s5355 + $0xa8] sm:$0xff]
    %v5378 = vld [vmem:[%s5355 + $0xb0] sm:$0xff]
    %v5379 = vld [vmem:[%s5355 + $0xb8] sm:$0xff]
    %v5380 = vld [vmem:[%s5355 + $0xc0] sm:$0xff]
    %v5381 = vld [vmem:[%s5355 + $0xc8] sm:$0xff]
    %v5382 = vld [vmem:[%s5355 + $0xd0] sm:$0xff]
    %v5383 = vld [vmem:[%s5355 + $0xd8] sm:$0xff]
    %v5384 = vld [vmem:[%s5355 + $0xe0] sm:$0xff]
    %v5385 = vld [vmem:[%s5355 + $0xe8] sm:$0xff]
    %v5386 = vld [vmem:[%s5355 + $0xf0] sm:$0xff]
    %v5387 = vld [vmem:[%s5355 + $0xf8] sm:$0xff]
    %v5388 = vld [vmem:[%s5355 + $0x100] sm:$0xff]
    %v5389 = vld [vmem:[%s5355 + $0x108] sm:$0xff]
    %v5390 = vld [vmem:[%s5355 + $0x110] sm:$0xff]
    %v5391 = vld [vmem:[%s5355 + $0x118] sm:$0xff]
    %v5392 = vld [vmem:[%s5355 + $0x120] sm:$0xff]
    %v5393 = vld [vmem:[%s5355 + $0x128] sm:$0xff]
    %v5394 = vld [vmem:[%s5355 + $0x130] sm:$0xff]
    %v5395 = vld [vmem:[%s5355 + $0x138] sm:$0xff]
    %v5396 = vld [vmem:[%s5355 + $0x140] sm:$0xff]
    %v5397 = vld [vmem:[%s5355 + $0x148] sm:$0xff]
    %v5398 = vld [vmem:[%s5355 + $0x150] sm:$0xff]
    %v5399 = vld [vmem:[%s5355 + $0x158] sm:$0xff]
    %v5400 = vld [vmem:[%s5355 + $0x160] sm:$0xff]
    %v5401 = vld [vmem:[%s5355 + $0x168] sm:$0xff]
    %v5402 = vld [vmem:[%s5355 + $0x170] sm:$0xff]
    %v5403 = vld [vmem:[%s5355 + $0x178] sm:$0xff]
    %v5404 = vld [vmem:[%s5355 + $0x180] sm:$0xff]
    %v5405 = vld [vmem:[%s5355 + $0x188] sm:$0xff]
    %v5406 = vld [vmem:[%s5355 + $0x190] sm:$0xff]
    %v5407 = vld [vmem:[%s5355 + $0x198] sm:$0xff]
    %v5408 = vld [vmem:[%s5355 + $0x1a0] sm:$0xff]
    %v5409 = vld [vmem:[%s5355 + $0x1a8] sm:$0xff]
    %v5410 = vld [vmem:[%s5355 + $0x1b0] sm:$0xff]
    %v5411 = vld [vmem:[%s5355 + $0x1b8] sm:$0xff]
    %v5412 = vld [vmem:[%s5355 + $0x1c0] sm:$0xff]
    %v5413 = vld [vmem:[%s5355 + $0x1c8] sm:$0xff]
    %v5414 = vld [vmem:[%s5355 + $0x1d0] sm:$0xff]
    %v5415 = vld [vmem:[%s5355 + $0x1d8] sm:$0xff]
    %v5416 = vld [vmem:[%s5355 + $0x1e0] sm:$0xff]
    %v5417 = vld [vmem:[%s5355 + $0x1e8] sm:$0xff]
    %v5418 = vld [vmem:[%s5355 + $0x1f0] sm:$0xff]
    %v5419 = vld [vmem:[%s5355 + $0x1f8] sm:$0xff]
    %v5484 = vunpack.c.l.b16 %v5356
    %v5485 = vunpack.c.h.b16 %v5356
    %v5486 = vunpack.c.l.b16 %v5357
    %v5487 = vunpack.c.h.b16 %v5357
    %v5488 = vunpack.c.l.b16 %v5358
    %v5489 = vunpack.c.h.b16 %v5358
    %v5490 = vunpack.c.l.b16 %v5359
    %v5491 = vunpack.c.h.b16 %v5359
    %v5492 = vunpack.c.l.b16 %v5360
    %v5493 = vunpack.c.h.b16 %v5360
    %v5494 = vunpack.c.l.b16 %v5361
    %v5495 = vunpack.c.h.b16 %v5361
    %v5496 = vunpack.c.l.b16 %v5362
    %v5497 = vunpack.c.h.b16 %v5362
    %v5498 = vunpack.c.l.b16 %v5363
    %v5499 = vunpack.c.h.b16 %v5363
    %v5500 = vunpack.c.l.b16 %v5364
    %v5501 = vunpack.c.h.b16 %v5364
    %v5502 = vunpack.c.l.b16 %v5365
    %v5503 = vunpack.c.h.b16 %v5365
    %v5504 = vunpack.c.l.b16 %v5366
    %v5505 = vunpack.c.h.b16 %v5366
    %v5506 = vunpack.c.l.b16 %v5367
    %v5507 = vunpack.c.h.b16 %v5367
    %v5508 = vunpack.c.l.b16 %v5368
    %v5509 = vunpack.c.h.b16 %v5368
    %v5510 = vunpack.c.l.b16 %v5369
    %v5511 = vunpack.c.h.b16 %v5369
    %v5512 = vunpack.c.l.b16 %v5370
    %v5513 = vunpack.c.h.b16 %v5370
    %v5514 = vunpack.c.l.b16 %v5371
    %v5515 = vunpack.c.h.b16 %v5371
    %v5516 = vunpack.c.l.b16 %v5372
    %v5517 = vunpack.c.h.b16 %v5372
    %v5518 = vunpack.c.l.b16 %v5373
    %v5519 = vunpack.c.h.b16 %v5373
    %v5520 = vunpack.c.l.b16 %v5374
    %v5521 = vunpack.c.h.b16 %v5374
    %v5522 = vunpack.c.l.b16 %v5375
    %v5523 = vunpack.c.h.b16 %v5375
    %v5524 = vunpack.c.l.b16 %v5376
    %v5525 = vunpack.c.h.b16 %v5376
    %v5526 = vunpack.c.l.b16 %v5377
    %v5527 = vunpack.c.h.b16 %v5377
    %v5528 = vunpack.c.l.b16 %v5378
    %v5529 = vunpack.c.h.b16 %v5378
    %v5530 = vunpack.c.l.b16 %v5379
    %v5531 = vunpack.c.h.b16 %v5379
    %v5532 = vunpack.c.l.b16 %v5380
    %v5533 = vunpack.c.h.b16 %v5380
    %v5534 = vunpack.c.l.b16 %v5381
    %v5535 = vunpack.c.h.b16 %v5381
    %v5536 = vunpack.c.l.b16 %v5382
    %v5537 = vunpack.c.h.b16 %v5382
    %v5538 = vunpack.c.l.b16 %v5383
    %v5539 = vunpack.c.h.b16 %v5383
    %v5540 = vunpack.c.l.b16 %v5384
    %v5541 = vunpack.c.h.b16 %v5384
    %v5542 = vunpack.c.l.b16 %v5385
    %v5543 = vunpack.c.h.b16 %v5385
    %v5544 = vunpack.c.l.b16 %v5386
    %v5545 = vunpack.c.h.b16 %v5386
    %v5546 = vunpack.c.l.b16 %v5387
    %v5547 = vunpack.c.h.b16 %v5387
    %v5548 = vunpack.c.l.b16 %v5388
    %v5549 = vunpack.c.h.b16 %v5388
    %v5550 = vunpack.c.l.b16 %v5389
    %v5551 = vunpack.c.h.b16 %v5389
    %v5552 = vunpack.c.l.b16 %v5390
    %v5553 = vunpack.c.h.b16 %v5390
    %v5554 = vunpack.c.l.b16 %v5391
    %v5555 = vunpack.c.h.b16 %v5391
    %v5556 = vunpack.c.l.b16 %v5392
    %v5557 = vunpack.c.h.b16 %v5392
    %v5558 = vunpack.c.l.b16 %v5393
    %v5559 = vunpack.c.h.b16 %v5393
    %v5560 = vunpack.c.l.b16 %v5394
    %v5561 = vunpack.c.h.b16 %v5394
    %v5562 = vunpack.c.l.b16 %v5395
    %v5563 = vunpack.c.h.b16 %v5395
    %v5564 = vunpack.c.l.b16 %v5396
    %v5565 = vunpack.c.h.b16 %v5396
    %v5566 = vunpack.c.l.b16 %v5397
    %v5567 = vunpack.c.h.b16 %v5397
    %v5568 = vunpack.c.l.b16 %v5398
    %v5569 = vunpack.c.h.b16 %v5398
    %v5570 = vunpack.c.l.b16 %v5399
    %v5571 = vunpack.c.h.b16 %v5399
    %v5572 = vunpack.c.l.b16 %v5400
    %v5573 = vunpack.c.h.b16 %v5400
    %v5574 = vunpack.c.l.b16 %v5401
    %v5575 = vunpack.c.h.b16 %v5401
    %v5576 = vunpack.c.l.b16 %v5402
    %v5577 = vunpack.c.h.b16 %v5402
    %v5578 = vunpack.c.l.b16 %v5403
    %v5579 = vunpack.c.h.b16 %v5403
    %v5580 = vunpack.c.l.b16 %v5404
    %v5581 = vunpack.c.h.b16 %v5404
    %v5582 = vunpack.c.l.b16 %v5405
    %v5583 = vunpack.c.h.b16 %v5405
    %v5584 = vunpack.c.l.b16 %v5406
    %v5585 = vunpack.c.h.b16 %v5406
    %v5586 = vunpack.c.l.b16 %v5407
    %v5587 = vunpack.c.h.b16 %v5407
    %v5588 = vunpack.c.l.b16 %v5408
    %v5589 = vunpack.c.h.b16 %v5408
    %v5590 = vunpack.c.l.b16 %v5409
    %v5591 = vunpack.c.h.b16 %v5409
    %v5592 = vunpack.c.l.b16 %v5410
    %v5593 = vunpack.c.h.b16 %v5410
    %v5594 = vunpack.c.l.b16 %v5411
    %v5595 = vunpack.c.h.b16 %v5411
    %v5596 = vunpack.c.l.b16 %v5412
    %v5597 = vunpack.c.h.b16 %v5412
    %v5598 = vunpack.c.l.b16 %v5413
    %v5599 = vunpack.c.h.b16 %v5413
    %v5600 = vunpack.c.l.b16 %v5414
    %v5601 = vunpack.c.h.b16 %v5414
    %v5602 = vunpack.c.l.b16 %v5415
    %v5603 = vunpack.c.h.b16 %v5415
    %v5604 = vunpack.c.l.b16 %v5416
    %v5605 = vunpack.c.h.b16 %v5416
    %v5606 = vunpack.c.l.b16 %v5417
    %v5607 = vunpack.c.h.b16 %v5417
    %v5608 = vunpack.c.l.b16 %v5418
    %v5609 = vunpack.c.h.b16 %v5418
    %v5610 = vunpack.c.l.b16 %v5419
    %v5611 = vunpack.c.h.b16 %v5419
    %v5612 = vpack.c.b16 %v5488, %v5484
    %v5613 = vpack.c.b16 %v5489, %v5485
    %v5614 = vpack.c.b16 %v5490, %v5486
    %v5615 = vpack.c.b16 %v5491, %v5487
    %v5616 = vpack.c.b16 %v5496, %v5492
    %v5617 = vpack.c.b16 %v5497, %v5493
    %v5618 = vpack.c.b16 %v5498, %v5494
    %v5619 = vpack.c.b16 %v5499, %v5495
    %v5620 = vpack.c.b16 %v5504, %v5500
    %v5621 = vpack.c.b16 %v5505, %v5501
    %v5622 = vpack.c.b16 %v5506, %v5502
    %v5623 = vpack.c.b16 %v5507, %v5503
    %v5624 = vpack.c.b16 %v5512, %v5508
    %v5625 = vpack.c.b16 %v5513, %v5509
    %v5626 = vpack.c.b16 %v5514, %v5510
    %v5627 = vpack.c.b16 %v5515, %v5511
    %v5628 = vpack.c.b16 %v5520, %v5516
    %v5629 = vpack.c.b16 %v5521, %v5517
    %v5630 = vpack.c.b16 %v5522, %v5518
    %v5631 = vpack.c.b16 %v5523, %v5519
    %v5632 = vpack.c.b16 %v5528, %v5524
    %v5633 = vpack.c.b16 %v5529, %v5525
    %v5634 = vpack.c.b16 %v5530, %v5526
    %v5635 = vpack.c.b16 %v5531, %v5527
    %v5636 = vpack.c.b16 %v5536, %v5532
    %v5637 = vpack.c.b16 %v5537, %v5533
    %v5638 = vpack.c.b16 %v5538, %v5534
    %v5639 = vpack.c.b16 %v5539, %v5535
    %v5640 = vpack.c.b16 %v5544, %v5540
    %v5641 = vpack.c.b16 %v5545, %v5541
    %v5642 = vpack.c.b16 %v5546, %v5542
    %v5643 = vpack.c.b16 %v5547, %v5543
    %v5644 = vpack.c.b16 %v5552, %v5548
    %v5645 = vpack.c.b16 %v5553, %v5549
    %v5646 = vpack.c.b16 %v5554, %v5550
    %v5647 = vpack.c.b16 %v5555, %v5551
    %v5648 = vpack.c.b16 %v5560, %v5556
    %v5649 = vpack.c.b16 %v5561, %v5557
    %v5650 = vpack.c.b16 %v5562, %v5558
    %v5651 = vpack.c.b16 %v5563, %v5559
    %v5652 = vpack.c.b16 %v5568, %v5564
    %v5653 = vpack.c.b16 %v5569, %v5565
    %v5654 = vpack.c.b16 %v5570, %v5566
    %v5655 = vpack.c.b16 %v5571, %v5567
    %v5656 = vpack.c.b16 %v5576, %v5572
    %v5657 = vpack.c.b16 %v5577, %v5573
    %v5658 = vpack.c.b16 %v5578, %v5574
    %v5659 = vpack.c.b16 %v5579, %v5575
    %v5660 = vpack.c.b16 %v5584, %v5580
    %v5661 = vpack.c.b16 %v5585, %v5581
    %v5662 = vpack.c.b16 %v5586, %v5582
    %v5663 = vpack.c.b16 %v5587, %v5583
    %v5664 = vpack.c.b16 %v5592, %v5588
    %v5665 = vpack.c.b16 %v5593, %v5589
    %v5666 = vpack.c.b16 %v5594, %v5590
    %v5667 = vpack.c.b16 %v5595, %v5591
    %v5668 = vpack.c.b16 %v5600, %v5596
    %v5669 = vpack.c.b16 %v5601, %v5597
    %v5670 = vpack.c.b16 %v5602, %v5598
    %v5671 = vpack.c.b16 %v5603, %v5599
    %v5672 = vpack.c.b16 %v5608, %v5604
    %v5673 = vpack.c.b16 %v5609, %v5605
    %v5674 = vpack.c.b16 %v5610, %v5606
    %v5675 = vpack.c.b16 %v5611, %v5607
    %5740 = vmatprep.subr.bf16.mxu0 %v5613
    %5741 = vmatpush1.bf16.msra.mxu0 %v5612
    %5742 = vmatprep.subr.bf16.mxu0 %v5617
    %5743 = vmatpush1.bf16.msra.mxu0 %v5616
    %5744 = vmatprep.subr.bf16.mxu0 %v5621
    %5745 = vmatpush1.bf16.msra.mxu0 %v5620
    %5746 = vmatprep.subr.bf16.mxu0 %v5625
    %5747 = vmatpush1.bf16.msra.mxu0 %v5624
    %5748 = vmatprep.subr.bf16.mxu0 %v5629
    %5749 = vmatpush1.bf16.msra.mxu0 %v5628
    %5750 = vmatprep.subr.bf16.mxu0 %v5633
    %5751 = vmatpush1.bf16.msra.mxu0 %v5632
    %5752 = vmatprep.subr.bf16.mxu0 %v5637
    %5753 = vmatpush1.bf16.msra.mxu0 %v5636
    %5754 = vmatprep.subr.bf16.mxu0 %v5641
    %5755 = vmatpush1.bf16.msra.mxu0 %v5640
    %5756 = vmatprep.subr.bf16.mxu0 %v5645
    %5757 = vmatpush1.bf16.msra.mxu0 %v5644
    %5758 = vmatprep.subr.bf16.mxu0 %v5649
    %5759 = vmatpush1.bf16.msra.mxu0 %v5648
    %5760 = vmatprep.subr.bf16.mxu0 %v5653
    %5761 = vmatpush1.bf16.msra.mxu0 %v5652
    %5762 = vmatprep.subr.bf16.mxu0 %v5657
    %5763 = vmatpush1.bf16.msra.mxu0 %v5656
    %5764 = vmatprep.subr.bf16.mxu0 %v5661
    %5765 = vmatpush1.bf16.msra.mxu0 %v5660
    %5766 = vmatprep.subr.bf16.mxu0 %v5665
    %5767 = vmatpush1.bf16.msra.mxu0 %v5664
    %5768 = vmatprep.subr.bf16.mxu0 %v5669
    %5769 = vmatpush1.bf16.msra.mxu0 %v5668
    %5770 = vmatprep.subr.bf16.mxu0 %v5673
    %5771 = vmatpush1.bf16.msra.mxu0 %v5672
    %5772 = vmatprep.mubr.bf16.mxu0 %v5354
    %5773 = vmatmul.mubr.bf16.gmra.mrb[0].mxu0 %v5353
    %v5774 = vpop.f32.mrb[0].mxu0
    %v5775 = vadd.f32 0.0, %v5774
    %v5776 = vpop.f32.mrb[0].mxu0
    %v5777 = vadd.f32 0.0, %v5776
    %v5778 = vpop.f32.mrb[0].mxu0
    %v5779 = vpop.f32.mrb[0].mxu0
    %5780 = vdwg.mxu0
    %5781 = vmatprep.subr.bf16.mxu0 %v5615
    %5782 = vmatpush1.bf16.msra.mxu0 %v5614
    %5783 = vmatprep.subr.bf16.mxu0 %v5619
    %5784 = vmatpush1.bf16.msra.mxu0 %v5618
    %5785 = vmatprep.subr.bf16.mxu0 %v5623
    %5786 = vmatpush1.bf16.msra.mxu0 %v5622
    %5787 = vmatprep.subr.bf16.mxu0 %v5627
    %5788 = vmatpush1.bf16.msra.mxu0 %v5626
    %5789 = vmatprep.subr.bf16.mxu0 %v5631
    %5790 = vmatpush1.bf16.msra.mxu0 %v5630
    %5791 = vmatprep.subr.bf16.mxu0 %v5635
    %5792 = vmatpush1.bf16.msra.mxu0 %v5634
    %5793 = vmatprep.subr.bf16.mxu0 %v5639
    %5794 = vmatpush1.bf16.msra.mxu0 %v5638
    %5795 = vmatprep.subr.bf16.mxu0 %v5643
    %5796 = vmatpush1.bf16.msra.mxu0 %v5642
    %5797 = vmatprep.subr.bf16.mxu0 %v5647
    %5798 = vmatpush1.bf16.msra.mxu0 %v5646
    %5799 = vmatprep.subr.bf16.mxu0 %v5651
    %5800 = vmatpush1.bf16.msra.mxu0 %v5650
    %5801 = vmatprep.subr.bf16.mxu0 %v5655
    %5802 = vmatpush1.bf16.msra.mxu0 %v5654
    %5803 = vmatprep.subr.bf16.mxu0 %v5659
    %5804 = vmatpush1.bf16.msra.mxu0 %v5658
    %5805 = vmatprep.subr.bf16.mxu0 %v5663
    %5806 = vmatpush1.bf16.msra.mxu0 %v5662
    %5807 = vmatprep.subr.bf16.mxu0 %v5667
    %5808 = vmatpush1.bf16.msra.mxu0 %v5666
    %5809 = vmatprep.subr.bf16.mxu0 %v5671
    %5810 = vmatpush1.bf16.msra.mxu0 %v5670
    %5811 = vmatprep.subr.bf16.mxu0 %v5675
    %5812 = vmatpush1.bf16.msra.mxu0 %v5674
    %5813 = vmatprep.mubr.bf16.mxu0 %v5354
    %5814 = vmatmul.mubr.bf16.gmra.mrb[0].mxu0 %v5353
    %v5815 = vpop.f32.mrb[0].mxu0
    %v5816 = vadd.f32 0.0, %v5815
    %v5817 = vpop.f32.mrb[0].mxu0
    %v5818 = vadd.f32 0.0, %v5817
    %v5819 = vpop.f32.mrb[0].mxu0
    %v5820 = vpop.f32.mrb[0].mxu0
    %5821 = vdwg.mxu0
    %v5822 = vadd.f32 %v5303, %v5775
    %v5823 = vadd.f32 %v5304, %v5777
    %v5824 = vadd.f32 %v5305, %v5816
    %v5825 = vadd.f32 %v5306, %v5818
    %s5826 = scalar_lea.vmem [#allocation23], 4
    %v5827 = vld [vmem:[%s5826] sm:$0x1]
    %v5829 = vsel %vm3753, %v5827, 0
    %5831 = vmatprep.subr.bf16.mxu0 %v3762
    %5832 = vmatpush1.bf16.msra.mxu0 %v3759
    %5833 = vmatprep.subr.bf16.mxu0 0
    %5834 = vmatpush1.bf16.msra.mxu0 0
    %5835 = vmatprep.subr.bf16.mxu0 0
    %5836 = vmatpush1.bf16.msra.mxu0 0
    %5837 = vmatprep.subr.bf16.mxu0 0
    %5838 = vmatpush1.bf16.msra.mxu0 0
    %5839 = vmatprep.subr.bf16.mxu0 0
    %5840 = vmatpush1.bf16.msra.mxu0 0
    %5841 = vmatprep.subr.bf16.mxu0 0
    %5842 = vmatpush1.bf16.msra.mxu0 0
    %5843 = vmatprep.subr.bf16.mxu0 0
    %5844 = vmatpush1.bf16.msra.mxu0 0
    %5845 = vmatprep.subr.bf16.mxu0 0
    %5846 = vmatpush1.bf16.msra.mxu0 0
    %5847 = vmatprep.subr.bf16.mxu0 0
    %5848 = vmatpush1.bf16.msra.mxu0 0
    %5849 = vmatprep.subr.bf16.mxu0 0
    %5850 = vmatpush1.bf16.msra.mxu0 0
    %5851 = vmatprep.subr.bf16.mxu0 0
    %5852 = vmatpush1.bf16.msra.mxu0 0
    %5853 = vmatprep.subr.bf16.mxu0 0
    %5854 = vmatpush1.bf16.msra.mxu0 0
    %5855 = vmatprep.subr.bf16.mxu0 0
    %5856 = vmatpush1.bf16.msra.mxu0 0
    %5857 = vmatprep.subr.bf16.mxu0 0
    %5858 = vmatpush1.bf16.msra.mxu0 0
    %5859 = vmatprep.subr.bf16.mxu0 0
    %5860 = vmatpush1.bf16.msra.mxu0 0
    %5861 = vmatprep.subr.bf16.mxu0 0
    %5862 = vmatpush1.bf16.msra.mxu0 0
    %5863 = vmatprep.mubr.bf16.mxu0 0
    %5864 = vmatmul.mubr.bf16.gmra.mrb[0].mxu0 %v5829
    %v5865 = vpop.f32.mrb[0].mxu0
    %v5866 = vadd.f32 0.0, %v5865
    %v5867 = vpop.f32.mrb[0].mxu0
    %v5868 = vadd.f32 0.0, %v5867
    %v5869 = vpop.f32.mrb[0].mxu0
    %v5870 = vpop.f32.mrb[0].mxu0
    %5871 = vdwg.mxu0
    %v5872 = vpack.c.bf16 %v5866, %v5866
    %v5873 = vpack.c.bf16 %v5868, %v5868
    %s5874 = scalar_lea.vmem [#allocation19], 2048
    %v5875 = vld [vmem:[%s5874] sm:$0xff]
    %v5876 = vld [vmem:[%s5874 + $0x8] sm:$0xff]
    %v5877 = vld [vmem:[%s5874 + $0x10] sm:$0xff]
    %v5878 = vld [vmem:[%s5874 + $0x18] sm:$0xff]
    %v5879 = vld [vmem:[%s5874 + $0x20] sm:$0xff]
    %v5880 = vld [vmem:[%s5874 + $0x28] sm:$0xff]
    %v5881 = vld [vmem:[%s5874 + $0x30] sm:$0xff]
    %v5882 = vld [vmem:[%s5874 + $0x38] sm:$0xff]
    %v5883 = vld [vmem:[%s5874 + $0x40] sm:$0xff]
    %v5884 = vld [vmem:[%s5874 + $0x48] sm:$0xff]
    %v5885 = vld [vmem:[%s5874 + $0x50] sm:$0xff]
    %v5886 = vld [vmem:[%s5874 + $0x58] sm:$0xff]
    %v5887 = vld [vmem:[%s5874 + $0x60] sm:$0xff]
    %v5888 = vld [vmem:[%s5874 + $0x68] sm:$0xff]
    %v5889 = vld [vmem:[%s5874 + $0x70] sm:$0xff]
    %v5890 = vld [vmem:[%s5874 + $0x78] sm:$0xff]
    %v5891 = vld [vmem:[%s5874 + $0x80] sm:$0xff]
    %v5892 = vld [vmem:[%s5874 + $0x88] sm:$0xff]
    %v5893 = vld [vmem:[%s5874 + $0x90] sm:$0xff]
    %v5894 = vld [vmem:[%s5874 + $0x98] sm:$0xff]
    %v5895 = vld [vmem:[%s5874 + $0xa0] sm:$0xff]
    %v5896 = vld [vmem:[%s5874 + $0xa8] sm:$0xff]
    %v5897 = vld [vmem:[%s5874 + $0xb0] sm:$0xff]
    %v5898 = vld [vmem:[%s5874 + $0xb8] sm:$0xff]
    %v5899 = vld [vmem:[%s5874 + $0xc0] sm:$0xff]
    %v5900 = vld [vmem:[%s5874 + $0xc8] sm:$0xff]
    %v5901 = vld [vmem:[%s5874 + $0xd0] sm:$0xff]
    %v5902 = vld [vmem:[%s5874 + $0xd8] sm:$0xff]
    %v5903 = vld [vmem:[%s5874 + $0xe0] sm:$0xff]
    %v5904 = vld [vmem:[%s5874 + $0xe8] sm:$0xff]
    %v5905 = vld [vmem:[%s5874 + $0xf0] sm:$0xff]
    %v5906 = vld [vmem:[%s5874 + $0xf8] sm:$0xff]
    %v5907 = vld [vmem:[%s5874 + $0x100] sm:$0xff]
    %v5908 = vld [vmem:[%s5874 + $0x108] sm:$0xff]
    %v5909 = vld [vmem:[%s5874 + $0x110] sm:$0xff]
    %v5910 = vld [vmem:[%s5874 + $0x118] sm:$0xff]
    %v5911 = vld [vmem:[%s5874 + $0x120] sm:$0xff]
    %v5912 = vld [vmem:[%s5874 + $0x128] sm:$0xff]
    %v5913 = vld [vmem:[%s5874 + $0x130] sm:$0xff]
    %v5914 = vld [vmem:[%s5874 + $0x138] sm:$0xff]
    %v5915 = vld [vmem:[%s5874 + $0x140] sm:$0xff]
    %v5916 = vld [vmem:[%s5874 + $0x148] sm:$0xff]
    %v5917 = vld [vmem:[%s5874 + $0x150] sm:$0xff]
    %v5918 = vld [vmem:[%s5874 + $0x158] sm:$0xff]
    %v5919 = vld [vmem:[%s5874 + $0x160] sm:$0xff]
    %v5920 = vld [vmem:[%s5874 + $0x168] sm:$0xff]
    %v5921 = vld [vmem:[%s5874 + $0x170] sm:$0xff]
    %v5922 = vld [vmem:[%s5874 + $0x178] sm:$0xff]
    %v5923 = vld [vmem:[%s5874 + $0x180] sm:$0xff]
    %v5924 = vld [vmem:[%s5874 + $0x188] sm:$0xff]
    %v5925 = vld [vmem:[%s5874 + $0x190] sm:$0xff]
    %v5926 = vld [vmem:[%s5874 + $0x198] sm:$0xff]
    %v5927 = vld [vmem:[%s5874 + $0x1a0] sm:$0xff]
    %v5928 = vld [vmem:[%s5874 + $0x1a8] sm:$0xff]
    %v5929 = vld [vmem:[%s5874 + $0x1b0] sm:$0xff]
    %v5930 = vld [vmem:[%s5874 + $0x1b8] sm:$0xff]
    %v5931 = vld [vmem:[%s5874 + $0x1c0] sm:$0xff]
    %v5932 = vld [vmem:[%s5874 + $0x1c8] sm:$0xff]
    %v5933 = vld [vmem:[%s5874 + $0x1d0] sm:$0xff]
    %v5934 = vld [vmem:[%s5874 + $0x1d8] sm:$0xff]
    %v5935 = vld [vmem:[%s5874 + $0x1e0] sm:$0xff]
    %v5936 = vld [vmem:[%s5874 + $0x1e8] sm:$0xff]
    %v5937 = vld [vmem:[%s5874 + $0x1f0] sm:$0xff]
    %v5938 = vld [vmem:[%s5874 + $0x1f8] sm:$0xff]
    %v6003 = vunpack.c.l.b16 %v5875
    %v6004 = vunpack.c.h.b16 %v5875
    %v6005 = vunpack.c.l.b16 %v5876
    %v6006 = vunpack.c.h.b16 %v5876
    %v6007 = vunpack.c.l.b16 %v5877
    %v6008 = vunpack.c.h.b16 %v5877
    %v6009 = vunpack.c.l.b16 %v5878
    %v6010 = vunpack.c.h.b16 %v5878
    %v6011 = vunpack.c.l.b16 %v5879
    %v6012 = vunpack.c.h.b16 %v5879
    %v6013 = vunpack.c.l.b16 %v5880
    %v6014 = vunpack.c.h.b16 %v5880
    %v6015 = vunpack.c.l.b16 %v5881
    %v6016 = vunpack.c.h.b16 %v5881
    %v6017 = vunpack.c.l.b16 %v5882
    %v6018 = vunpack.c.h.b16 %v5882
    %v6019 = vunpack.c.l.b16 %v5883
    %v6020 = vunpack.c.h.b16 %v5883
    %v6021 = vunpack.c.l.b16 %v5884
    %v6022 = vunpack.c.h.b16 %v5884
    %v6023 = vunpack.c.l.b16 %v5885
    %v6024 = vunpack.c.h.b16 %v5885
    %v6025 = vunpack.c.l.b16 %v5886
    %v6026 = vunpack.c.h.b16 %v5886
    %v6027 = vunpack.c.l.b16 %v5887
    %v6028 = vunpack.c.h.b16 %v5887
    %v6029 = vunpack.c.l.b16 %v5888
    %v6030 = vunpack.c.h.b16 %v5888
    %v6031 = vunpack.c.l.b16 %v5889
    %v6032 = vunpack.c.h.b16 %v5889
    %v6033 = vunpack.c.l.b16 %v5890
    %v6034 = vunpack.c.h.b16 %v5890
    %v6035 = vunpack.c.l.b16 %v5891
    %v6036 = vunpack.c.h.b16 %v5891
    %v6037 = vunpack.c.l.b16 %v5892
    %v6038 = vunpack.c.h.b16 %v5892
    %v6039 = vunpack.c.l.b16 %v5893
    %v6040 = vunpack.c.h.b16 %v5893
    %v6041 = vunpack.c.l.b16 %v5894
    %v6042 = vunpack.c.h.b16 %v5894
    %v6043 = vunpack.c.l.b16 %v5895
    %v6044 = vunpack.c.h.b16 %v5895
    %v6045 = vunpack.c.l.b16 %v5896
    %v6046 = vunpack.c.h.b16 %v5896
    %v6047 = vunpack.c.l.b16 %v5897
    %v6048 = vunpack.c.h.b16 %v5897
    %v6049 = vunpack.c.l.b16 %v5898
    %v6050 = vunpack.c.h.b16 %v5898
    %v6051 = vunpack.c.l.b16 %v5899
    %v6052 = vunpack.c.h.b16 %v5899
    %v6053 = vunpack.c.l.b16 %v5900
    %v6054 = vunpack.c.h.b16 %v5900
    %v6055 = vunpack.c.l.b16 %v5901
    %v6056 = vunpack.c.h.b16 %v5901
    %v6057 = vunpack.c.l.b16 %v5902
    %v6058 = vunpack.c.h.b16 %v5902
    %v6059 = vunpack.c.l.b16 %v5903
    %v6060 = vunpack.c.h.b16 %v5903
    %v6061 = vunpack.c.l.b16 %v5904
    %v6062 = vunpack.c.h.b16 %v5904
    %v6063 = vunpack.c.l.b16 %v5905
    %v6064 = vunpack.c.h.b16 %v5905
    %v6065 = vunpack.c.l.b16 %v5906
    %v6066 = vunpack.c.h.b16 %v5906
    %v6067 = vunpack.c.l.b16 %v5907
    %v6068 = vunpack.c.h.b16 %v5907
    %v6069 = vunpack.c.l.b16 %v5908
    %v6070 = vunpack.c.h.b16 %v5908
    %v6071 = vunpack.c.l.b16 %v5909
    %v6072 = vunpack.c.h.b16 %v5909
    %v6073 = vunpack.c.l.b16 %v5910
    %v6074 = vunpack.c.h.b16 %v5910
    %v6075 = vunpack.c.l.b16 %v5911
    %v6076 = vunpack.c.h.b16 %v5911
    %v6077 = vunpack.c.l.b16 %v5912
    %v6078 = vunpack.c.h.b16 %v5912
    %v6079 = vunpack.c.l.b16 %v5913
    %v6080 = vunpack.c.h.b16 %v5913
    %v6081 = vunpack.c.l.b16 %v5914
    %v6082 = vunpack.c.h.b16 %v5914
    %v6083 = vunpack.c.l.b16 %v5915
    %v6084 = vunpack.c.h.b16 %v5915
    %v6085 = vunpack.c.l.b16 %v5916
    %v6086 = vunpack.c.h.b16 %v5916
    %v6087 = vunpack.c.l.b16 %v5917
    %v6088 = vunpack.c.h.b16 %v5917
    %v6089 = vunpack.c.l.b16 %v5918
    %v6090 = vunpack.c.h.b16 %v5918
    %v6091 = vunpack.c.l.b16 %v5919
    %v6092 = vunpack.c.h.b16 %v5919
    %v6093 = vunpack.c.l.b16 %v5920
    %v6094 = vunpack.c.h.b16 %v5920
    %v6095 = vunpack.c.l.b16 %v5921
    %v6096 = vunpack.c.h.b16 %v5921
    %v6097 = vunpack.c.l.b16 %v5922
    %v6098 = vunpack.c.h.b16 %v5922
    %v6099 = vunpack.c.l.b16 %v5923
    %v6100 = vunpack.c.h.b16 %v5923
    %v6101 = vunpack.c.l.b16 %v5924
    %v6102 = vunpack.c.h.b16 %v5924
    %v6103 = vunpack.c.l.b16 %v5925
    %v6104 = vunpack.c.h.b16 %v5925
    %v6105 = vunpack.c.l.b16 %v5926
    %v6106 = vunpack.c.h.b16 %v5926
    %v6107 = vunpack.c.l.b16 %v5927
    %v6108 = vunpack.c.h.b16 %v5927
    %v6109 = vunpack.c.l.b16 %v5928
    %v6110 = vunpack.c.h.b16 %v5928
    %v6111 = vunpack.c.l.b16 %v5929
    %v6112 = vunpack.c.h.b16 %v5929
    %v6113 = vunpack.c.l.b16 %v5930
    %v6114 = vunpack.c.h.b16 %v5930
    %v6115 = vunpack.c.l.b16 %v5931
    %v6116 = vunpack.c.h.b16 %v5931
    %v6117 = vunpack.c.l.b16 %v5932
    %v6118 = vunpack.c.h.b16 %v5932
    %v6119 = vunpack.c.l.b16 %v5933
    %v6120 = vunpack.c.h.b16 %v5933
    %v6121 = vunpack.c.l.b16 %v5934
    %v6122 = vunpack.c.h.b16 %v5934
    %v6123 = vunpack.c.l.b16 %v5935
    %v6124 = vunpack.c.h.b16 %v5935
    %v6125 = vunpack.c.l.b16 %v5936
    %v6126 = vunpack.c.h.b16 %v5936
    %v6127 = vunpack.c.l.b16 %v5937
    %v6128 = vunpack.c.h.b16 %v5937
    %v6129 = vunpack.c.l.b16 %v5938
    %v6130 = vunpack.c.h.b16 %v5938
    %v6131 = vpack.c.b16 %v6007, %v6003
    %v6132 = vpack.c.b16 %v6008, %v6004
    %v6133 = vpack.c.b16 %v6009, %v6005
    %v6134 = vpack.c.b16 %v6010, %v6006
    %v6135 = vpack.c.b16 %v6015, %v6011
    %v6136 = vpack.c.b16 %v6016, %v6012
    %v6137 = vpack.c.b16 %v6017, %v6013
    %v6138 = vpack.c.b16 %v6018, %v6014
    %v6139 = vpack.c.b16 %v6023, %v6019
    %v6140 = vpack.c.b16 %v6024, %v6020
    %v6141 = vpack.c.b16 %v6025, %v6021
    %v6142 = vpack.c.b16 %v6026, %v6022
    %v6143 = vpack.c.b16 %v6031, %v6027
    %v6144 = vpack.c.b16 %v6032, %v6028
    %v6145 = vpack.c.b16 %v6033, %v6029
    %v6146 = vpack.c.b16 %v6034, %v6030
    %v6147 = vpack.c.b16 %v6039, %v6035
    %v6148 = vpack.c.b16 %v6040, %v6036
    %v6149 = vpack.c.b16 %v6041, %v6037
    %v6150 = vpack.c.b16 %v6042, %v6038
    %v6151 = vpack.c.b16 %v6047, %v6043
    %v6152 = vpack.c.b16 %v6048, %v6044
    %v6153 = vpack.c.b16 %v6049, %v6045
    %v6154 = vpack.c.b16 %v6050, %v6046
    %v6155 = vpack.c.b16 %v6055, %v6051
    %v6156 = vpack.c.b16 %v6056, %v6052
    %v6157 = vpack.c.b16 %v6057, %v6053
    %v6158 = vpack.c.b16 %v6058, %v6054
    %v6159 = vpack.c.b16 %v6063, %v6059
    %v6160 = vpack.c.b16 %v6064, %v6060
    %v6161 = vpack.c.b16 %v6065, %v6061
    %v6162 = vpack.c.b16 %v6066, %v6062
    %v6163 = vpack.c.b16 %v6071, %v6067
    %v6164 = vpack.c.b16 %v6072, %v6068
    %v6165 = vpack.c.b16 %v6073, %v6069
    %v6166 = vpack.c.b16 %v6074, %v6070
    %v6167 = vpack.c.b16 %v6079, %v6075
    %v6168 = vpack.c.b16 %v6080, %v6076
    %v6169 = vpack.c.b16 %v6081, %v6077
    %v6170 = vpack.c.b16 %v6082, %v6078
    %v6171 = vpack.c.b16 %v6087, %v6083
    %v6172 = vpack.c.b16 %v6088, %v6084
    %v6173 = vpack.c.b16 %v6089, %v6085
    %v6174 = vpack.c.b16 %v6090, %v6086
    %v6175 = vpack.c.b16 %v6095, %v6091
    %v6176 = vpack.c.b16 %v6096, %v6092
    %v6177 = vpack.c.b16 %v6097, %v6093
    %v6178 = vpack.c.b16 %v6098, %v6094
    %v6179 = vpack.c.b16 %v6103, %v6099
    %v6180 = vpack.c.b16 %v6104, %v6100
    %v6181 = vpack.c.b16 %v6105, %v6101
    %v6182 = vpack.c.b16 %v6106, %v6102
    %v6183 = vpack.c.b16 %v6111, %v6107
    %v6184 = vpack.c.b16 %v6112, %v6108
    %v6185 = vpack.c.b16 %v6113, %v6109
    %v6186 = vpack.c.b16 %v6114, %v6110
    %v6187 = vpack.c.b16 %v6119, %v6115
    %v6188 = vpack.c.b16 %v6120, %v6116
    %v6189 = vpack.c.b16 %v6121, %v6117
    %v6190 = vpack.c.b16 %v6122, %v6118
    %v6191 = vpack.c.b16 %v6127, %v6123
    %v6192 = vpack.c.b16 %v6128, %v6124
    %v6193 = vpack.c.b16 %v6129, %v6125
    %v6194 = vpack.c.b16 %v6130, %v6126
    %6259 = vmatprep.subr.bf16.mxu0 %v6132
    %6260 = vmatpush1.bf16.msra.mxu0 %v6131
    %6261 = vmatprep.subr.bf16.mxu0 %v6136
    %6262 = vmatpush1.bf16.msra.mxu0 %v6135
    %6263 = vmatprep.subr.bf16.mxu0 %v6140
    %6264 = vmatpush1.bf16.msra.mxu0 %v6139
    %6265 = vmatprep.subr.bf16.mxu0 %v6144
    %6266 = vmatpush1.bf16.msra.mxu0 %v6143
    %6267 = vmatprep.subr.bf16.mxu0 %v6148
    %6268 = vmatpush1.bf16.msra.mxu0 %v6147
    %6269 = vmatprep.subr.bf16.mxu0 %v6152
    %6270 = vmatpush1.bf16.msra.mxu0 %v6151
    %6271 = vmatprep.subr.bf16.mxu0 %v6156
    %6272 = vmatpush1.bf16.msra.mxu0 %v6155
    %6273 = vmatprep.subr.bf16.mxu0 %v6160
    %6274 = vmatpush1.bf16.msra.mxu0 %v6159
    %6275 = vmatprep.subr.bf16.mxu0 %v6164
    %6276 = vmatpush1.bf16.msra.mxu0 %v6163
    %6277 = vmatprep.subr.bf16.mxu0 %v6168
    %6278 = vmatpush1.bf16.msra.mxu0 %v6167
    %6279 = vmatprep.subr.bf16.mxu0 %v6172
    %6280 = vmatpush1.bf16.msra.mxu0 %v6171
    %6281 = vmatprep.subr.bf16.mxu0 %v6176
    %6282 = vmatpush1.bf16.msra.mxu0 %v6175
    %6283 = vmatprep.subr.bf16.mxu0 %v6180
    %6284 = vmatpush1.bf16.msra.mxu0 %v6179
    %6285 = vmatprep.subr.bf16.mxu0 %v6184
    %6286 = vmatpush1.bf16.msra.mxu0 %v6183
    %6287 = vmatprep.subr.bf16.mxu0 %v6188
    %6288 = vmatpush1.bf16.msra.mxu0 %v6187
    %6289 = vmatprep.subr.bf16.mxu0 %v6192
    %6290 = vmatpush1.bf16.msra.mxu0 %v6191
    %6291 = vmatprep.mubr.bf16.mxu0 %v5873
    %6292 = vmatmul.mubr.bf16.gmra.mrb[0].mxu0 %v5872
    %v6293 = vpop.f32.mrb[0].mxu0
    %v6294 = vadd.f32 0.0, %v6293
    %v6295 = vpop.f32.mrb[0].mxu0
    %v6296 = vadd.f32 0.0, %v6295
    %v6297 = vpop.f32.mrb[0].mxu0
    %v6298 = vpop.f32.mrb[0].mxu0
    %6299 = vdwg.mxu0
    %6300 = vmatprep.subr.bf16.mxu0 %v6134
    %6301 = vmatpush1.bf16.msra.mxu0 %v6133
    %6302 = vmatprep.subr.bf16.mxu0 %v6138
    %6303 = vmatpush1.bf16.msra.mxu0 %v6137
    %6304 = vmatprep.subr.bf16.mxu0 %v6142
    %6305 = vmatpush1.bf16.msra.mxu0 %v6141
    %6306 = vmatprep.subr.bf16.mxu0 %v6146
    %6307 = vmatpush1.bf16.msra.mxu0 %v6145
    %6308 = vmatprep.subr.bf16.mxu0 %v6150
    %6309 = vmatpush1.bf16.msra.mxu0 %v6149
    %6310 = vmatprep.subr.bf16.mxu0 %v6154
    %6311 = vmatpush1.bf16.msra.mxu0 %v6153
    %6312 = vmatprep.subr.bf16.mxu0 %v6158
    %6313 = vmatpush1.bf16.msra.mxu0 %v6157
    %6314 = vmatprep.subr.bf16.mxu0 %v6162
    %6315 = vmatpush1.bf16.msra.mxu0 %v6161
    %6316 = vmatprep.subr.bf16.mxu0 %v6166
    %6317 = vmatpush1.bf16.msra.mxu0 %v6165
    %6318 = vmatprep.subr.bf16.mxu0 %v6170
    %6319 = vmatpush1.bf16.msra.mxu0 %v6169
    %6320 = vmatprep.subr.bf16.mxu0 %v6174
    %6321 = vmatpush1.bf16.msra.mxu0 %v6173
    %6322 = vmatprep.subr.bf16.mxu0 %v6178
    %6323 = vmatpush1.bf16.msra.mxu0 %v6177
    %6324 = vmatprep.subr.bf16.mxu0 %v6182
    %6325 = vmatpush1.bf16.msra.mxu0 %v6181
    %6326 = vmatprep.subr.bf16.mxu0 %v6186
    %6327 = vmatpush1.bf16.msra.mxu0 %v6185
    %6328 = vmatprep.subr.bf16.mxu0 %v6190
    %6329 = vmatpush1.bf16.msra.mxu0 %v6189
    %6330 = vmatprep.subr.bf16.mxu0 %v6194
    %6331 = vmatpush1.bf16.msra.mxu0 %v6193
    %6332 = vmatprep.mubr.bf16.mxu0 %v5873
    %6333 = vmatmul.mubr.bf16.gmra.mrb[0].mxu0 %v5872
    %v6334 = vpop.f32.mrb[0].mxu0
    %v6335 = vadd.f32 0.0, %v6334
    %v6336 = vpop.f32.mrb[0].mxu0
    %v6337 = vadd.f32 0.0, %v6336
    %v6338 = vpop.f32.mrb[0].mxu0
    %v6339 = vpop.f32.mrb[0].mxu0
    %6340 = vdwg.mxu0
    %v6341 = vadd.f32 %v5822, %v6294
    %v6342 = vadd.f32 %v5823, %v6296
    %v6343 = vadd.f32 %v5824, %v6335
    %v6344 = vadd.f32 %v5825, %v6337
    %s6345 = scalar_lea.vmem [#allocation23], 5
    %v6346 = vld [vmem:[%s6345] sm:$0x1]
    %v6348 = vsel %vm3753, %v6346, 0
    %6350 = vmatprep.subr.bf16.mxu0 %v3762
    %6351 = vmatpush1.bf16.msra.mxu0 %v3759
    %6352 = vmatprep.subr.bf16.mxu0 0
    %6353 = vmatpush1.bf16.msra.mxu0 0
    %6354 = vmatprep.subr.bf16.mxu0 0
    %6355 = vmatpush1.bf16.msra.mxu0 0
    %6356 = vmatprep.subr.bf16.mxu0 0
    %6357 = vmatpush1.bf16.msra.mxu0 0
    %6358 = vmatprep.subr.bf16.mxu0 0
    %6359 = vmatpush1.bf16.msra.mxu0 0
    %6360 = vmatprep.subr.bf16.mxu0 0
    %6361 = vmatpush1.bf16.msra.mxu0 0
    %6362 = vmatprep.subr.bf16.mxu0 0
    %6363 = vmatpush1.bf16.msra.mxu0 0
    %6364 = vmatprep.subr.bf16.mxu0 0
    %6365 = vmatpush1.bf16.msra.mxu0 0
    %6366 = vmatprep.subr.bf16.mxu0 0
    %6367 = vmatpush1.bf16.msra.mxu0 0
    %6368 = vmatprep.subr.bf16.mxu0 0
    %6369 = vmatpush1.bf16.msra.mxu0 0
    %6370 = vmatprep.subr.bf16.mxu0 0
    %6371 = vmatpush1.bf16.msra.mxu0 0
    %6372 = vmatprep.subr.bf16.mxu0 0
    %6373 = vmatpush1.bf16.msra.mxu0 0
    %6374 = vmatprep.subr.bf16.mxu0 0
    %6375 = vmatpush1.bf16.msra.mxu0 0
    %6376 = vmatprep.subr.bf16.mxu0 0
    %6377 = vmatpush1.bf16.msra.mxu0 0
    %6378 = vmatprep.subr.bf16.mxu0 0
    %6379 = vmatpush1.bf16.msra.mxu0 0
    %6380 = vmatprep.subr.bf16.mxu0 0
    %6381 = vmatpush1.bf16.msra.mxu0 0
    %6382 = vmatprep.mubr.bf16.mxu0 0
    %6383 = vmatmul.mubr.bf16.gmra.mrb[0].mxu0 %v6348
    %v6384 = vpop.f32.mrb[0].mxu0
    %v6385 = vadd.f32 0.0, %v6384
    %v6386 = vpop.f32.mrb[0].mxu0
    %v6387 = vadd.f32 0.0, %v6386
    %v6388 = vpop.f32.mrb[0].mxu0
    %v6389 = vpop.f32.mrb[0].mxu0
    %6390 = vdwg.mxu0
    %v6391 = vpack.c.bf16 %v6385, %v6385
    %v6392 = vpack.c.bf16 %v6387, %v6387
    %s6393 = scalar_lea.vmem [#allocation19], 2560
    %v6394 = vld [vmem:[%s6393] sm:$0xff]
    %v6395 = vld [vmem:[%s6393 + $0x8] sm:$0xff]
    %v6396 = vld [vmem:[%s6393 + $0x10] sm:$0xff]
    %v6397 = vld [vmem:[%s6393 + $0x18] sm:$0xff]
    %v6398 = vld [vmem:[%s6393 + $0x20] sm:$0xff]
    %v6399 = vld [vmem:[%s6393 + $0x28] sm:$0xff]
    %v6400 = vld [vmem:[%s6393 + $0x30] sm:$0xff]
    %v6401 = vld [vmem:[%s6393 + $0x38] sm:$0xff]
    %v6402 = vld [vmem:[%s6393 + $0x40] sm:$0xff]
    %v6403 = vld [vmem:[%s6393 + $0x48] sm:$0xff]
    %v6404 = vld [vmem:[%s6393 + $0x50] sm:$0xff]
    %v6405 = vld [vmem:[%s6393 + $0x58] sm:$0xff]
    %v6406 = vld [vmem:[%s6393 + $0x60] sm:$0xff]
    %v6407 = vld [vmem:[%s6393 + $0x68] sm:$0xff]
    %v6408 = vld [vmem:[%s6393 + $0x70] sm:$0xff]
    %v6409 = vld [vmem:[%s6393 + $0x78] sm:$0xff]
    %v6410 = vld [vmem:[%s6393 + $0x80] sm:$0xff]
    %v6411 = vld [vmem:[%s6393 + $0x88] sm:$0xff]
    %v6412 = vld [vmem:[%s6393 + $0x90] sm:$0xff]
    %v6413 = vld [vmem:[%s6393 + $0x98] sm:$0xff]
    %v6414 = vld [vmem:[%s6393 + $0xa0] sm:$0xff]
    %v6415 = vld [vmem:[%s6393 + $0xa8] sm:$0xff]
    %v6416 = vld [vmem:[%s6393 + $0xb0] sm:$0xff]
    %v6417 = vld [vmem:[%s6393 + $0xb8] sm:$0xff]
    %v6418 = vld [vmem:[%s6393 + $0xc0] sm:$0xff]
    %v6419 = vld [vmem:[%s6393 + $0xc8] sm:$0xff]
    %v6420 = vld [vmem:[%s6393 + $0xd0] sm:$0xff]
    %v6421 = vld [vmem:[%s6393 + $0xd8] sm:$0xff]
    %v6422 = vld [vmem:[%s6393 + $0xe0] sm:$0xff]
    %v6423 = vld [vmem:[%s6393 + $0xe8] sm:$0xff]
    %v6424 = vld [vmem:[%s6393 + $0xf0] sm:$0xff]
    %v6425 = vld [vmem:[%s6393 + $0xf8] sm:$0xff]
    %v6426 = vld [vmem:[%s6393 + $0x100] sm:$0xff]
    %v6427 = vld [vmem:[%s6393 + $0x108] sm:$0xff]
    %v6428 = vld [vmem:[%s6393 + $0x110] sm:$0xff]
    %v6429 = vld [vmem:[%s6393 + $0x118] sm:$0xff]
    %v6430 = vld [vmem:[%s6393 + $0x120] sm:$0xff]
    %v6431 = vld [vmem:[%s6393 + $0x128] sm:$0xff]
    %v6432 = vld [vmem:[%s6393 + $0x130] sm:$0xff]
    %v6433 = vld [vmem:[%s6393 + $0x138] sm:$0xff]
    %v6434 = vld [vmem:[%s6393 + $0x140] sm:$0xff]
    %v6435 = vld [vmem:[%s6393 + $0x148] sm:$0xff]
    %v6436 = vld [vmem:[%s6393 + $0x150] sm:$0xff]
    %v6437 = vld [vmem:[%s6393 + $0x158] sm:$0xff]
    %v6438 = vld [vmem:[%s6393 + $0x160] sm:$0xff]
    %v6439 = vld [vmem:[%s6393 + $0x168] sm:$0xff]
    %v6440 = vld [vmem:[%s6393 + $0x170] sm:$0xff]
    %v6441 = vld [vmem:[%s6393 + $0x178] sm:$0xff]
    %v6442 = vld [vmem:[%s6393 + $0x180] sm:$0xff]
    %v6443 = vld [vmem:[%s6393 + $0x188] sm:$0xff]
    %v6444 = vld [vmem:[%s6393 + $0x190] sm:$0xff]
    %v6445 = vld [vmem:[%s6393 + $0x198] sm:$0xff]
    %v6446 = vld [vmem:[%s6393 + $0x1a0] sm:$0xff]
    %v6447 = vld [vmem:[%s6393 + $0x1a8] sm:$0xff]
    %v6448 = vld [vmem:[%s6393 + $0x1b0] sm:$0xff]
    %v6449 = vld [vmem:[%s6393 + $0x1b8] sm:$0xff]
    %v6450 = vld [vmem:[%s6393 + $0x1c0] sm:$0xff]
    %v6451 = vld [vmem:[%s6393 + $0x1c8] sm:$0xff]
    %v6452 = vld [vmem:[%s6393 + $0x1d0] sm:$0xff]
    %v6453 = vld [vmem:[%s6393 + $0x1d8] sm:$0xff]
    %v6454 = vld [vmem:[%s6393 + $0x1e0] sm:$0xff]
    %v6455 = vld [vmem:[%s6393 + $0x1e8] sm:$0xff]
    %v6456 = vld [vmem:[%s6393 + $0x1f0] sm:$0xff]
    %v6457 = vld [vmem:[%s6393 + $0x1f8] sm:$0xff]
    %v6522 = vunpack.c.l.b16 %v6394
    %v6523 = vunpack.c.h.b16 %v6394
    %v6524 = vunpack.c.l.b16 %v6395
    %v6525 = vunpack.c.h.b16 %v6395
    %v6526 = vunpack.c.l.b16 %v6396
    %v6527 = vunpack.c.h.b16 %v6396
    %v6528 = vunpack.c.l.b16 %v6397
    %v6529 = vunpack.c.h.b16 %v6397
    %v6530 = vunpack.c.l.b16 %v6398
    %v6531 = vunpack.c.h.b16 %v6398
    %v6532 = vunpack.c.l.b16 %v6399
    %v6533 = vunpack.c.h.b16 %v6399
    %v6534 = vunpack.c.l.b16 %v6400
    %v6535 = vunpack.c.h.b16 %v6400
    %v6536 = vunpack.c.l.b16 %v6401
    %v6537 = vunpack.c.h.b16 %v6401
    %v6538 = vunpack.c.l.b16 %v6402
    %v6539 = vunpack.c.h.b16 %v6402
    %v6540 = vunpack.c.l.b16 %v6403
    %v6541 = vunpack.c.h.b16 %v6403
    %v6542 = vunpack.c.l.b16 %v6404
    %v6543 = vunpack.c.h.b16 %v6404
    %v6544 = vunpack.c.l.b16 %v6405
    %v6545 = vunpack.c.h.b16 %v6405
    %v6546 = vunpack.c.l.b16 %v6406
    %v6547 = vunpack.c.h.b16 %v6406
    %v6548 = vunpack.c.l.b16 %v6407
    %v6549 = vunpack.c.h.b16 %v6407
    %v6550 = vunpack.c.l.b16 %v6408
    %v6551 = vunpack.c.h.b16 %v6408
    %v6552 = vunpack.c.l.b16 %v6409
    %v6553 = vunpack.c.h.b16 %v6409
    %v6554 = vunpack.c.l.b16 %v6410
    %v6555 = vunpack.c.h.b16 %v6410
    %v6556 = vunpack.c.l.b16 %v6411
    %v6557 = vunpack.c.h.b16 %v6411
    %v6558 = vunpack.c.l.b16 %v6412
    %v6559 = vunpack.c.h.b16 %v6412
    %v6560 = vunpack.c.l.b16 %v6413
    %v6561 = vunpack.c.h.b16 %v6413
    %v6562 = vunpack.c.l.b16 %v6414
    %v6563 = vunpack.c.h.b16 %v6414
    %v6564 = vunpack.c.l.b16 %v6415
    %v6565 = vunpack.c.h.b16 %v6415
    %v6566 = vunpack.c.l.b16 %v6416
    %v6567 = vunpack.c.h.b16 %v6416
    %v6568 = vunpack.c.l.b16 %v6417
    %v6569 = vunpack.c.h.b16 %v6417
    %v6570 = vunpack.c.l.b16 %v6418
    %v6571 = vunpack.c.h.b16 %v6418
    %v6572 = vunpack.c.l.b16 %v6419
    %v6573 = vunpack.c.h.b16 %v6419
    %v6574 = vunpack.c.l.b16 %v6420
    %v6575 = vunpack.c.h.b16 %v6420
    %v6576 = vunpack.c.l.b16 %v6421
    %v6577 = vunpack.c.h.b16 %v6421
    %v6578 = vunpack.c.l.b16 %v6422
    %v6579 = vunpack.c.h.b16 %v6422
    %v6580 = vunpack.c.l.b16 %v6423
    %v6581 = vunpack.c.h.b16 %v6423
    %v6582 = vunpack.c.l.b16 %v6424
    %v6583 = vunpack.c.h.b16 %v6424
    %v6584 = vunpack.c.l.b16 %v6425
    %v6585 = vunpack.c.h.b16 %v6425
    %v6586 = vunpack.c.l.b16 %v6426
    %v6587 = vunpack.c.h.b16 %v6426
    %v6588 = vunpack.c.l.b16 %v6427
    %v6589 = vunpack.c.h.b16 %v6427
    %v6590 = vunpack.c.l.b16 %v6428
    %v6591 = vunpack.c.h.b16 %v6428
    %v6592 = vunpack.c.l.b16 %v6429
    %v6593 = vunpack.c.h.b16 %v6429
    %v6594 = vunpack.c.l.b16 %v6430
    %v6595 = vunpack.c.h.b16 %v6430
    %v6596 = vunpack.c.l.b16 %v6431
    %v6597 = vunpack.c.h.b16 %v6431
    %v6598 = vunpack.c.l.b16 %v6432
    %v6599 = vunpack.c.h.b16 %v6432
    %v6600 = vunpack.c.l.b16 %v6433
    %v6601 = vunpack.c.h.b16 %v6433
    %v6602 = vunpack.c.l.b16 %v6434
    %v6603 = vunpack.c.h.b16 %v6434
    %v6604 = vunpack.c.l.b16 %v6435
    %v6605 = vunpack.c.h.b16 %v6435
    %v6606 = vunpack.c.l.b16 %v6436
    %v6607 = vunpack.c.h.b16 %v6436
    %v6608 = vunpack.c.l.b16 %v6437
    %v6609 = vunpack.c.h.b16 %v6437
    %v6610 = vunpack.c.l.b16 %v6438
    %v6611 = vunpack.c.h.b16 %v6438
    %v6612 = vunpack.c.l.b16 %v6439
    %v6613 = vunpack.c.h.b16 %v6439
    %v6614 = vunpack.c.l.b16 %v6440
    %v6615 = vunpack.c.h.b16 %v6440
    %v6616 = vunpack.c.l.b16 %v6441
    %v6617 = vunpack.c.h.b16 %v6441
    %v6618 = vunpack.c.l.b16 %v6442
    %v6619 = vunpack.c.h.b16 %v6442
    %v6620 = vunpack.c.l.b16 %v6443
    %v6621 = vunpack.c.h.b16 %v6443
    %v6622 = vunpack.c.l.b16 %v6444
    %v6623 = vunpack.c.h.b16 %v6444
    %v6624 = vunpack.c.l.b16 %v6445
    %v6625 = vunpack.c.h.b16 %v6445
    %v6626 = vunpack.c.l.b16 %v6446
    %v6627 = vunpack.c.h.b16 %v6446
    %v6628 = vunpack.c.l.b16 %v6447
    %v6629 = vunpack.c.h.b16 %v6447
    %v6630 = vunpack.c.l.b16 %v6448
    %v6631 = vunpack.c.h.b16 %v6448
    %v6632 = vunpack.c.l.b16 %v6449
    %v6633 = vunpack.c.h.b16 %v6449
    %v6634 = vunpack.c.l.b16 %v6450
    %v6635 = vunpack.c.h.b16 %v6450
    %v6636 = vunpack.c.l.b16 %v6451
    %v6637 = vunpack.c.h.b16 %v6451
    %v6638 = vunpack.c.l.b16 %v6452
    %v6639 = vunpack.c.h.b16 %v6452
    %v6640 = vunpack.c.l.b16 %v6453
    %v6641 = vunpack.c.h.b16 %v6453
    %v6642 = vunpack.c.l.b16 %v6454
    %v6643 = vunpack.c.h.b16 %v6454
    %v6644 = vunpack.c.l.b16 %v6455
    %v6645 = vunpack.c.h.b16 %v6455
    %v6646 = vunpack.c.l.b16 %v6456
    %v6647 = vunpack.c.h.b16 %v6456
    %v6648 = vunpack.c.l.b16 %v6457
    %v6649 = vunpack.c.h.b16 %v6457
    %v6650 = vpack.c.b16 %v6526, %v6522
    %v6651 = vpack.c.b16 %v6527, %v6523
    %v6652 = vpack.c.b16 %v6528, %v6524
    %v6653 = vpack.c.b16 %v6529, %v6525
    %v6654 = vpack.c.b16 %v6534, %v6530
    %v6655 = vpack.c.b16 %v6535, %v6531
    %v6656 = vpack.c.b16 %v6536, %v6532
    %v6657 = vpack.c.b16 %v6537, %v6533
    %v6658 = vpack.c.b16 %v6542, %v6538
    %v6659 = vpack.c.b16 %v6543, %v6539
    %v6660 = vpack.c.b16 %v6544, %v6540
    %v6661 = vpack.c.b16 %v6545, %v6541
    %v6662 = vpack.c.b16 %v6550, %v6546
    %v6663 = vpack.c.b16 %v6551, %v6547
    %v6664 = vpack.c.b16 %v6552, %v6548
    %v6665 = vpack.c.b16 %v6553, %v6549
    %v6666 = vpack.c.b16 %v6558, %v6554
    %v6667 = vpack.c.b16 %v6559, %v6555
    %v6668 = vpack.c.b16 %v6560, %v6556
    %v6669 = vpack.c.b16 %v6561, %v6557
    %v6670 = vpack.c.b16 %v6566, %v6562
    %v6671 = vpack.c.b16 %v6567, %v6563
    %v6672 = vpack.c.b16 %v6568, %v6564
    %v6673 = vpack.c.b16 %v6569, %v6565
    %v6674 = vpack.c.b16 %v6574, %v6570
    %v6675 = vpack.c.b16 %v6575, %v6571
    %v6676 = vpack.c.b16 %v6576, %v6572
    %v6677 = vpack.c.b16 %v6577, %v6573
    %v6678 = vpack.c.b16 %v6582, %v6578
    %v6679 = vpack.c.b16 %v6583, %v6579
    %v6680 = vpack.c.b16 %v6584, %v6580
    %v6681 = vpack.c.b16 %v6585, %v6581
    %v6682 = vpack.c.b16 %v6590, %v6586
    %v6683 = vpack.c.b16 %v6591, %v6587
    %v6684 = vpack.c.b16 %v6592, %v6588
    %v6685 = vpack.c.b16 %v6593, %v6589
    %v6686 = vpack.c.b16 %v6598, %v6594
    %v6687 = vpack.c.b16 %v6599, %v6595
    %v6688 = vpack.c.b16 %v6600, %v6596
    %v6689 = vpack.c.b16 %v6601, %v6597
    %v6690 = vpack.c.b16 %v6606, %v6602
    %v6691 = vpack.c.b16 %v6607, %v6603
    %v6692 = vpack.c.b16 %v6608, %v6604
    %v6693 = vpack.c.b16 %v6609, %v6605
    %v6694 = vpack.c.b16 %v6614, %v6610
    %v6695 = vpack.c.b16 %v6615, %v6611
    %v6696 = vpack.c.b16 %v6616, %v6612
    %v6697 = vpack.c.b16 %v6617, %v6613
    %v6698 = vpack.c.b16 %v6622, %v6618
    %v6699 = vpack.c.b16 %v6623, %v6619
    %v6700 = vpack.c.b16 %v6624, %v6620
    %v6701 = vpack.c.b16 %v6625, %v6621
    %v6702 = vpack.c.b16 %v6630, %v6626
    %v6703 = vpack.c.b16 %v6631, %v6627
    %v6704 = vpack.c.b16 %v6632, %v6628
    %v6705 = vpack.c.b16 %v6633, %v6629
    %v6706 = vpack.c.b16 %v6638, %v6634
    %v6707 = vpack.c.b16 %v6639, %v6635
    %v6708 = vpack.c.b16 %v6640, %v6636
    %v6709 = vpack.c.b16 %v6641, %v6637
    %v6710 = vpack.c.b16 %v6646, %v6642
    %v6711 = vpack.c.b16 %v6647, %v6643
    %v6712 = vpack.c.b16 %v6648, %v6644
    %v6713 = vpack.c.b16 %v6649, %v6645
    %6778 = vmatprep.subr.bf16.mxu0 %v6651
    %6779 = vmatpush1.bf16.msra.mxu0 %v6650
    %6780 = vmatprep.subr.bf16.mxu0 %v6655
    %6781 = vmatpush1.bf16.msra.mxu0 %v6654
    %6782 = vmatprep.subr.bf16.mxu0 %v6659
    %6783 = vmatpush1.bf16.msra.mxu0 %v6658
    %6784 = vmatprep.subr.bf16.mxu0 %v6663
    %6785 = vmatpush1.bf16.msra.mxu0 %v6662
    %6786 = vmatprep.subr.bf16.mxu0 %v6667
    %6787 = vmatpush1.bf16.msra.mxu0 %v6666
    %6788 = vmatprep.subr.bf16.mxu0 %v6671
    %6789 = vmatpush1.bf16.msra.mxu0 %v6670
    %6790 = vmatprep.subr.bf16.mxu0 %v6675
    %6791 = vmatpush1.bf16.msra.mxu0 %v6674
    %6792 = vmatprep.subr.bf16.mxu0 %v6679
    %6793 = vmatpush1.bf16.msra.mxu0 %v6678
    %6794 = vmatprep.subr.bf16.mxu0 %v6683
    %6795 = vmatpush1.bf16.msra.mxu0 %v6682
    %6796 = vmatprep.subr.bf16.mxu0 %v6687
    %6797 = vmatpush1.bf16.msra.mxu0 %v6686
    %6798 = vmatprep.subr.bf16.mxu0 %v6691
    %6799 = vmatpush1.bf16.msra.mxu0 %v6690
    %6800 = vmatprep.subr.bf16.mxu0 %v6695
    %6801 = vmatpush1.bf16.msra.mxu0 %v6694
    %6802 = vmatprep.subr.bf16.mxu0 %v6699
    %6803 = vmatpush1.bf16.msra.mxu0 %v6698
    %6804 = vmatprep.subr.bf16.mxu0 %v6703
    %6805 = vmatpush1.bf16.msra.mxu0 %v6702
    %6806 = vmatprep.subr.bf16.mxu0 %v6707
    %6807 = vmatpush1.bf16.msra.mxu0 %v6706
    %6808 = vmatprep.subr.bf16.mxu0 %v6711
    %6809 = vmatpush1.bf16.msra.mxu0 %v6710
    %6810 = vmatprep.mubr.bf16.mxu0 %v6392
    %6811 = vmatmul.mubr.bf16.gmra.mrb[0].mxu0 %v6391
    %v6812 = vpop.f32.mrb[0].mxu0
    %v6813 = vadd.f32 0.0, %v6812
    %v6814 = vpop.f32.mrb[0].mxu0
    %v6815 = vadd.f32 0.0, %v6814
    %v6816 = vpop.f32.mrb[0].mxu0
    %v6817 = vpop.f32.mrb[0].mxu0
    %6818 = vdwg.mxu0
    %6819 = vmatprep.subr.bf16.mxu0 %v6653
    %6820 = vmatpush1.bf16.msra.mxu0 %v6652
    %6821 = vmatprep.subr.bf16.mxu0 %v6657
    %6822 = vmatpush1.bf16.msra.mxu0 %v6656
    %6823 = vmatprep.subr.bf16.mxu0 %v6661
    %6824 = vmatpush1.bf16.msra.mxu0 %v6660
    %6825 = vmatprep.subr.bf16.mxu0 %v6665
    %6826 = vmatpush1.bf16.msra.mxu0 %v6664
    %6827 = vmatprep.subr.bf16.mxu0 %v6669
    %6828 = vmatpush1.bf16.msra.mxu0 %v6668
    %6829 = vmatprep.subr.bf16.mxu0 %v6673
    %6830 = vmatpush1.bf16.msra.mxu0 %v6672
    %6831 = vmatprep.subr.bf16.mxu0 %v6677
    %6832 = vmatpush1.bf16.msra.mxu0 %v6676
    %6833 = vmatprep.subr.bf16.mxu0 %v6681
    %6834 = vmatpush1.bf16.msra.mxu0 %v6680
    %6835 = vmatprep.subr.bf16.mxu0 %v6685
    %6836 = vmatpush1.bf16.msra.mxu0 %v6684
    %6837 = vmatprep.subr.bf16.mxu0 %v6689
    %6838 = vmatpush1.bf16.msra.mxu0 %v6688
    %6839 = vmatprep.subr.bf16.mxu0 %v6693
    %6840 = vmatpush1.bf16.msra.mxu0 %v6692
    %6841 = vmatprep.subr.bf16.mxu0 %v6697
    %6842 = vmatpush1.bf16.msra.mxu0 %v6696
    %6843 = vmatprep.subr.bf16.mxu0 %v6701
    %6844 = vmatpush1.bf16.msra.mxu0 %v6700
    %6845 = vmatprep.subr.bf16.mxu0 %v6705
    %6846 = vmatpush1.bf16.msra.mxu0 %v6704
    %6847 = vmatprep.subr.bf16.mxu0 %v6709
    %6848 = vmatpush1.bf16.msra.mxu0 %v6708
    %6849 = vmatprep.subr.bf16.mxu0 %v6713
    %6850 = vmatpush1.bf16.msra.mxu0 %v6712
    %6851 = vmatprep.mubr.bf16.mxu0 %v6392
    %6852 = vmatmul.mubr.bf16.gmra.mrb[0].mxu0 %v6391
    %v6853 = vpop.f32.mrb[0].mxu0
    %v6854 = vadd.f32 0.0, %v6853
    %v6855 = vpop.f32.mrb[0].mxu0
    %v6856 = vadd.f32 0.0, %v6855
    %v6857 = vpop.f32.mrb[0].mxu0
    %v6858 = vpop.f32.mrb[0].mxu0
    %6859 = vdwg.mxu0
    %v6860 = vadd.f32 %v6341, %v6813
    %v6861 = vadd.f32 %v6342, %v6815
    %v6862 = vadd.f32 %v6343, %v6854
    %v6863 = vadd.f32 %v6344, %v6856
    %s6864 = scalar_lea.vmem [#allocation23], 6
    %v6865 = vld [vmem:[%s6864] sm:$0x1]
    %v6867 = vsel %vm3753, %v6865, 0
    %6869 = vmatprep.subr.bf16.mxu0 %v3762
    %6870 = vmatpush1.bf16.msra.mxu0 %v3759
    %6871 = vmatprep.subr.bf16.mxu0 0
    %6872 = vmatpush1.bf16.msra.mxu0 0
    %6873 = vmatprep.subr.bf16.mxu0 0
    %6874 = vmatpush1.bf16.msra.mxu0 0
    %6875 = vmatprep.subr.bf16.mxu0 0
    %6876 = vmatpush1.bf16.msra.mxu0 0
    %6877 = vmatprep.subr.bf16.mxu0 0
    %6878 = vmatpush1.bf16.msra.mxu0 0
    %6879 = vmatprep.subr.bf16.mxu0 0
    %6880 = vmatpush1.bf16.msra.mxu0 0
    %6881 = vmatprep.subr.bf16.mxu0 0
    %6882 = vmatpush1.bf16.msra.mxu0 0
    %6883 = vmatprep.subr.bf16.mxu0 0
    %6884 = vmatpush1.bf16.msra.mxu0 0
    %6885 = vmatprep.subr.bf16.mxu0 0
    %6886 = vmatpush1.bf16.msra.mxu0 0
    %6887 = vmatprep.subr.bf16.mxu0 0
    %6888 = vmatpush1.bf16.msra.mxu0 0
    %6889 = vmatprep.subr.bf16.mxu0 0
    %6890 = vmatpush1.bf16.msra.mxu0 0
    %6891 = vmatprep.subr.bf16.mxu0 0
    %6892 = vmatpush1.bf16.msra.mxu0 0
    %6893 = vmatprep.subr.bf16.mxu0 0
    %6894 = vmatpush1.bf16.msra.mxu0 0
    %6895 = vmatprep.subr.bf16.mxu0 0
    %6896 = vmatpush1.bf16.msra.mxu0 0
    %6897 = vmatprep.subr.bf16.mxu0 0
    %6898 = vmatpush1.bf16.msra.mxu0 0
    %6899 = vmatprep.subr.bf16.mxu0 0
    %6900 = vmatpush1.bf16.msra.mxu0 0
    %6901 = vmatprep.mubr.bf16.mxu0 0
    %6902 = vmatmul.mubr.bf16.gmra.mrb[0].mxu0 %v6867
    %v6903 = vpop.f32.mrb[0].mxu0
    %v6904 = vadd.f32 0.0, %v6903
    %v6905 = vpop.f32.mrb[0].mxu0
    %v6906 = vadd.f32 0.0, %v6905
    %v6907 = vpop.f32.mrb[0].mxu0
    %v6908 = vpop.f32.mrb[0].mxu0
    %6909 = vdwg.mxu0
    %v6910 = vpack.c.bf16 %v6904, %v6904
    %v6911 = vpack.c.bf16 %v6906, %v6906
    %s6912 = scalar_lea.vmem [#allocation19], 3072
    %v6913 = vld [vmem:[%s6912] sm:$0xff]
    %v6914 = vld [vmem:[%s6912 + $0x8] sm:$0xff]
    %v6915 = vld [vmem:[%s6912 + $0x10] sm:$0xff]
    %v6916 = vld [vmem:[%s6912 + $0x18] sm:$0xff]
    %v6917 = vld [vmem:[%s6912 + $0x20] sm:$0xff]
    %v6918 = vld [vmem:[%s6912 + $0x28] sm:$0xff]
    %v6919 = vld [vmem:[%s6912 + $0x30] sm:$0xff]
    %v6920 = vld [vmem:[%s6912 + $0x38] sm:$0xff]
    %v6921 = vld [vmem:[%s6912 + $0x40] sm:$0xff]
    %v6922 = vld [vmem:[%s6912 + $0x48] sm:$0xff]
    %v6923 = vld [vmem:[%s6912 + $0x50] sm:$0xff]
    %v6924 = vld [vmem:[%s6912 + $0x58] sm:$0xff]
    %v6925 = vld [vmem:[%s6912 + $0x60] sm:$0xff]
    %v6926 = vld [vmem:[%s6912 + $0x68] sm:$0xff]
    %v6927 = vld [vmem:[%s6912 + $0x70] sm:$0xff]
    %v6928 = vld [vmem:[%s6912 + $0x78] sm:$0xff]
    %v6929 = vld [vmem:[%s6912 + $0x80] sm:$0xff]
    %v6930 = vld [vmem:[%s6912 + $0x88] sm:$0xff]
    %v6931 = vld [vmem:[%s6912 + $0x90] sm:$0xff]
    %v6932 = vld [vmem:[%s6912 + $0x98] sm:$0xff]
    %v6933 = vld [vmem:[%s6912 + $0xa0] sm:$0xff]
    %v6934 = vld [vmem:[%s6912 + $0xa8] sm:$0xff]
    %v6935 = vld [vmem:[%s6912 + $0xb0] sm:$0xff]
    %v6936 = vld [vmem:[%s6912 + $0xb8] sm:$0xff]
    %v6937 = vld [vmem:[%s6912 + $0xc0] sm:$0xff]
    %v6938 = vld [vmem:[%s6912 + $0xc8] sm:$0xff]
    %v6939 = vld [vmem:[%s6912 + $0xd0] sm:$0xff]
    %v6940 = vld [vmem:[%s6912 + $0xd8] sm:$0xff]
    %v6941 = vld [vmem:[%s6912 + $0xe0] sm:$0xff]
    %v6942 = vld [vmem:[%s6912 + $0xe8] sm:$0xff]
    %v6943 = vld [vmem:[%s6912 + $0xf0] sm:$0xff]
    %v6944 = vld [vmem:[%s6912 + $0xf8] sm:$0xff]
    %v6945 = vld [vmem:[%s6912 + $0x100] sm:$0xff]
    %v6946 = vld [vmem:[%s6912 + $0x108] sm:$0xff]
    %v6947 = vld [vmem:[%s6912 + $0x110] sm:$0xff]
    %v6948 = vld [vmem:[%s6912 + $0x118] sm:$0xff]
    %v6949 = vld [vmem:[%s6912 + $0x120] sm:$0xff]
    %v6950 = vld [vmem:[%s6912 + $0x128] sm:$0xff]
    %v6951 = vld [vmem:[%s6912 + $0x130] sm:$0xff]
    %v6952 = vld [vmem:[%s6912 + $0x138] sm:$0xff]
    %v6953 = vld [vmem:[%s6912 + $0x140] sm:$0xff]
    %v6954 = vld [vmem:[%s6912 + $0x148] sm:$0xff]
    %v6955 = vld [vmem:[%s6912 + $0x150] sm:$0xff]
    %v6956 = vld [vmem:[%s6912 + $0x158] sm:$0xff]
    %v6957 = vld [vmem:[%s6912 + $0x160] sm:$0xff]
    %v6958 = vld [vmem:[%s6912 + $0x168] sm:$0xff]
    %v6959 = vld [vmem:[%s6912 + $0x170] sm:$0xff]
    %v6960 = vld [vmem:[%s6912 + $0x178] sm:$0xff]
    %v6961 = vld [vmem:[%s6912 + $0x180] sm:$0xff]
    %v6962 = vld [vmem:[%s6912 + $0x188] sm:$0xff]
    %v6963 = vld [vmem:[%s6912 + $0x190] sm:$0xff]
    %v6964 = vld [vmem:[%s6912 + $0x198] sm:$0xff]
    %v6965 = vld [vmem:[%s6912 + $0x1a0] sm:$0xff]
    %v6966 = vld [vmem:[%s6912 + $0x1a8] sm:$0xff]
    %v6967 = vld [vmem:[%s6912 + $0x1b0] sm:$0xff]
    %v6968 = vld [vmem:[%s6912 + $0x1b8] sm:$0xff]
    %v6969 = vld [vmem:[%s6912 + $0x1c0] sm:$0xff]
    %v6970 = vld [vmem:[%s6912 + $0x1c8] sm:$0xff]
    %v6971 = vld [vmem:[%s6912 + $0x1d0] sm:$0xff]
    %v6972 = vld [vmem:[%s6912 + $0x1d8] sm:$0xff]
    %v6973 = vld [vmem:[%s6912 + $0x1e0] sm:$0xff]
    %v6974 = vld [vmem:[%s6912 + $0x1e8] sm:$0xff]
    %v6975 = vld [vmem:[%s6912 + $0x1f0] sm:$0xff]
    %v6976 = vld [vmem:[%s6912 + $0x1f8] sm:$0xff]
    %v7041 = vunpack.c.l.b16 %v6913
    %v7042 = vunpack.c.h.b16 %v6913
    %v7043 = vunpack.c.l.b16 %v6914
    %v7044 = vunpack.c.h.b16 %v6914
    %v7045 = vunpack.c.l.b16 %v6915
    %v7046 = vunpack.c.h.b16 %v6915
    %v7047 = vunpack.c.l.b16 %v6916
    %v7048 = vunpack.c.h.b16 %v6916
    %v7049 = vunpack.c.l.b16 %v6917
    %v7050 = vunpack.c.h.b16 %v6917
    %v7051 = vunpack.c.l.b16 %v6918
    %v7052 = vunpack.c.h.b16 %v6918
    %v7053 = vunpack.c.l.b16 %v6919
    %v7054 = vunpack.c.h.b16 %v6919
    %v7055 = vunpack.c.l.b16 %v6920
    %v7056 = vunpack.c.h.b16 %v6920
    %v7057 = vunpack.c.l.b16 %v6921
    %v7058 = vunpack.c.h.b16 %v6921
    %v7059 = vunpack.c.l.b16 %v6922
    %v7060 = vunpack.c.h.b16 %v6922
    %v7061 = vunpack.c.l.b16 %v6923
    %v7062 = vunpack.c.h.b16 %v6923
    %v7063 = vunpack.c.l.b16 %v6924
    %v7064 = vunpack.c.h.b16 %v6924
    %v7065 = vunpack.c.l.b16 %v6925
    %v7066 = vunpack.c.h.b16 %v6925
    %v7067 = vunpack.c.l.b16 %v6926
    %v7068 = vunpack.c.h.b16 %v6926
    %v7069 = vunpack.c.l.b16 %v6927
    %v7070 = vunpack.c.h.b16 %v6927
    %v7071 = vunpack.c.l.b16 %v6928
    %v7072 = vunpack.c.h.b16 %v6928
    %v7073 = vunpack.c.l.b16 %v6929
    %v7074 = vunpack.c.h.b16 %v6929
    %v7075 = vunpack.c.l.b16 %v6930
    %v7076 = vunpack.c.h.b16 %v6930
    %v7077 = vunpack.c.l.b16 %v6931
    %v7078 = vunpack.c.h.b16 %v6931
    %v7079 = vunpack.c.l.b16 %v6932
    %v7080 = vunpack.c.h.b16 %v6932
    %v7081 = vunpack.c.l.b16 %v6933
    %v7082 = vunpack.c.h.b16 %v6933
    %v7083 = vunpack.c.l.b16 %v6934
    %v7084 = vunpack.c.h.b16 %v6934
    %v7085 = vunpack.c.l.b16 %v6935
    %v7086 = vunpack.c.h.b16 %v6935
    %v7087 = vunpack.c.l.b16 %v6936
    %v7088 = vunpack.c.h.b16 %v6936
    %v7089 = vunpack.c.l.b16 %v6937
    %v7090 = vunpack.c.h.b16 %v6937
    %v7091 = vunpack.c.l.b16 %v6938
    %v7092 = vunpack.c.h.b16 %v6938
    %v7093 = vunpack.c.l.b16 %v6939
    %v7094 = vunpack.c.h.b16 %v6939
    %v7095 = vunpack.c.l.b16 %v6940
    %v7096 = vunpack.c.h.b16 %v6940
    %v7097 = vunpack.c.l.b16 %v6941
    %v7098 = vunpack.c.h.b16 %v6941
    %v7099 = vunpack.c.l.b16 %v6942
    %v7100 = vunpack.c.h.b16 %v6942
    %v7101 = vunpack.c.l.b16 %v6943
    %v7102 = vunpack.c.h.b16 %v6943
    %v7103 = vunpack.c.l.b16 %v6944
    %v7104 = vunpack.c.h.b16 %v6944
    %v7105 = vunpack.c.l.b16 %v6945
    %v7106 = vunpack.c.h.b16 %v6945
    %v7107 = vunpack.c.l.b16 %v6946
    %v7108 = vunpack.c.h.b16 %v6946
    %v7109 = vunpack.c.l.b16 %v6947
    %v7110 = vunpack.c.h.b16 %v6947
    %v7111 = vunpack.c.l.b16 %v6948
    %v7112 = vunpack.c.h.b16 %v6948
    %v7113 = vunpack.c.l.b16 %v6949
    %v7114 = vunpack.c.h.b16 %v6949
    %v7115 = vunpack.c.l.b16 %v6950
    %v7116 = vunpack.c.h.b16 %v6950
    %v7117 = vunpack.c.l.b16 %v6951
    %v7118 = vunpack.c.h.b16 %v6951
    %v7119 = vunpack.c.l.b16 %v6952
    %v7120 = vunpack.c.h.b16 %v6952
    %v7121 = vunpack.c.l.b16 %v6953
    %v7122 = vunpack.c.h.b16 %v6953
    %v7123 = vunpack.c.l.b16 %v6954
    %v7124 = vunpack.c.h.b16 %v6954
    %v7125 = vunpack.c.l.b16 %v6955
    %v7126 = vunpack.c.h.b16 %v6955
    %v7127 = vunpack.c.l.b16 %v6956
    %v7128 = vunpack.c.h.b16 %v6956
    %v7129 = vunpack.c.l.b16 %v6957
    %v7130 = vunpack.c.h.b16 %v6957
    %v7131 = vunpack.c.l.b16 %v6958
    %v7132 = vunpack.c.h.b16 %v6958
    %v7133 = vunpack.c.l.b16 %v6959
    %v7134 = vunpack.c.h.b16 %v6959
    %v7135 = vunpack.c.l.b16 %v6960
    %v7136 = vunpack.c.h.b16 %v6960
    %v7137 = vunpack.c.l.b16 %v6961
    %v7138 = vunpack.c.h.b16 %v6961
    %v7139 = vunpack.c.l.b16 %v6962
    %v7140 = vunpack.c.h.b16 %v6962
    %v7141 = vunpack.c.l.b16 %v6963
    %v7142 = vunpack.c.h.b16 %v6963
    %v7143 = vunpack.c.l.b16 %v6964
    %v7144 = vunpack.c.h.b16 %v6964
    %v7145 = vunpack.c.l.b16 %v6965
    %v7146 = vunpack.c.h.b16 %v6965
    %v7147 = vunpack.c.l.b16 %v6966
    %v7148 = vunpack.c.h.b16 %v6966
    %v7149 = vunpack.c.l.b16 %v6967
    %v7150 = vunpack.c.h.b16 %v6967
    %v7151 = vunpack.c.l.b16 %v6968
    %v7152 = vunpack.c.h.b16 %v6968
    %v7153 = vunpack.c.l.b16 %v6969
    %v7154 = vunpack.c.h.b16 %v6969
    %v7155 = vunpack.c.l.b16 %v6970
    %v7156 = vunpack.c.h.b16 %v6970
    %v7157 = vunpack.c.l.b16 %v6971
    %v7158 = vunpack.c.h.b16 %v6971
    %v7159 = vunpack.c.l.b16 %v6972
    %v7160 = vunpack.c.h.b16 %v6972
    %v7161 = vunpack.c.l.b16 %v6973
    %v7162 = vunpack.c.h.b16 %v6973
    %v7163 = vunpack.c.l.b16 %v6974
    %v7164 = vunpack.c.h.b16 %v6974
    %v7165 = vunpack.c.l.b16 %v6975
    %v7166 = vunpack.c.h.b16 %v6975
    %v7167 = vunpack.c.l.b16 %v6976
    %v7168 = vunpack.c.h.b16 %v6976
    %v7169 = vpack.c.b16 %v7045, %v7041
    %v7170 = vpack.c.b16 %v7046, %v7042
    %v7171 = vpack.c.b16 %v7047, %v7043
    %v7172 = vpack.c.b16 %v7048, %v7044
    %v7173 = vpack.c.b16 %v7053, %v7049
    %v7174 = vpack.c.b16 %v7054, %v7050
    %v7175 = vpack.c.b16 %v7055, %v7051
    %v7176 = vpack.c.b16 %v7056, %v7052
    %v7177 = vpack.c.b16 %v7061, %v7057
    %v7178 = vpack.c.b16 %v7062, %v7058
    %v7179 = vpack.c.b16 %v7063, %v7059
    %v7180 = vpack.c.b16 %v7064, %v7060
    %v7181 = vpack.c.b16 %v7069, %v7065
    %v7182 = vpack.c.b16 %v7070, %v7066
    %v7183 = vpack.c.b16 %v7071, %v7067
    %v7184 = vpack.c.b16 %v7072, %v7068
    %v7185 = vpack.c.b16 %v7077, %v7073
    %v7186 = vpack.c.b16 %v7078, %v7074
    %v7187 = vpack.c.b16 %v7079, %v7075
    %v7188 = vpack.c.b16 %v7080, %v7076
    %v7189 = vpack.c.b16 %v7085, %v7081
    %v7190 = vpack.c.b16 %v7086, %v7082
    %v7191 = vpack.c.b16 %v7087, %v7083
    %v7192 = vpack.c.b16 %v7088, %v7084
    %v7193 = vpack.c.b16 %v7093, %v7089
    %v7194 = vpack.c.b16 %v7094, %v7090
    %v7195 = vpack.c.b16 %v7095, %v7091
    %v7196 = vpack.c.b16 %v7096, %v7092
    %v7197 = vpack.c.b16 %v7101, %v7097
    %v7198 = vpack.c.b16 %v7102, %v7098
    %v7199 = vpack.c.b16 %v7103, %v7099
    %v7200 = vpack.c.b16 %v7104, %v7100
    %v7201 = vpack.c.b16 %v7109, %v7105
    %v7202 = vpack.c.b16 %v7110, %v7106
    %v7203 = vpack.c.b16 %v7111, %v7107
    %v7204 = vpack.c.b16 %v7112, %v7108
    %v7205 = vpack.c.b16 %v7117, %v7113
    %v7206 = vpack.c.b16 %v7118, %v7114
    %v7207 = vpack.c.b16 %v7119, %v7115
    %v7208 = vpack.c.b16 %v7120, %v7116
    %v7209 = vpack.c.b16 %v7125, %v7121
    %v7210 = vpack.c.b16 %v7126, %v7122
    %v7211 = vpack.c.b16 %v7127, %v7123
    %v7212 = vpack.c.b16 %v7128, %v7124
    %v7213 = vpack.c.b16 %v7133, %v7129
    %v7214 = vpack.c.b16 %v7134, %v7130
    %v7215 = vpack.c.b16 %v7135, %v7131
    %v7216 = vpack.c.b16 %v7136, %v7132
    %v7217 = vpack.c.b16 %v7141, %v7137
    %v7218 = vpack.c.b16 %v7142, %v7138
    %v7219 = vpack.c.b16 %v7143, %v7139
    %v7220 = vpack.c.b16 %v7144, %v7140
    %v7221 = vpack.c.b16 %v7149, %v7145
    %v7222 = vpack.c.b16 %v7150, %v7146
    %v7223 = vpack.c.b16 %v7151, %v7147
    %v7224 = vpack.c.b16 %v7152, %v7148
    %v7225 = vpack.c.b16 %v7157, %v7153
    %v7226 = vpack.c.b16 %v7158, %v7154
    %v7227 = vpack.c.b16 %v7159, %v7155
    %v7228 = vpack.c.b16 %v7160, %v7156
    %v7229 = vpack.c.b16 %v7165, %v7161
    %v7230 = vpack.c.b16 %v7166, %v7162
    %v7231 = vpack.c.b16 %v7167, %v7163
    %v7232 = vpack.c.b16 %v7168, %v7164
    %7297 = vmatprep.subr.bf16.mxu0 %v7170
    %7298 = vmatpush1.bf16.msra.mxu0 %v7169
    %7299 = vmatprep.subr.bf16.mxu0 %v7174
    %7300 = vmatpush1.bf16.msra.mxu0 %v7173
    %7301 = vmatprep.subr.bf16.mxu0 %v7178
    %7302 = vmatpush1.bf16.msra.mxu0 %v7177
    %7303 = vmatprep.subr.bf16.mxu0 %v7182
    %7304 = vmatpush1.bf16.msra.mxu0 %v7181
    %7305 = vmatprep.subr.bf16.mxu0 %v7186
    %7306 = vmatpush1.bf16.msra.mxu0 %v7185
    %7307 = vmatprep.subr.bf16.mxu0 %v7190
    %7308 = vmatpush1.bf16.msra.mxu0 %v7189
    %7309 = vmatprep.subr.bf16.mxu0 %v7194
    %7310 = vmatpush1.bf16.msra.mxu0 %v7193
    %7311 = vmatprep.subr.bf16.mxu0 %v7198
    %7312 = vmatpush1.bf16.msra.mxu0 %v7197
    %7313 = vmatprep.subr.bf16.mxu0 %v7202
    %7314 = vmatpush1.bf16.msra.mxu0 %v7201
    %7315 = vmatprep.subr.bf16.mxu0 %v7206
    %7316 = vmatpush1.bf16.msra.mxu0 %v7205
    %7317 = vmatprep.subr.bf16.mxu0 %v7210
    %7318 = vmatpush1.bf16.msra.mxu0 %v7209
    %7319 = vmatprep.subr.bf16.mxu0 %v7214
    %7320 = vmatpush1.bf16.msra.mxu0 %v7213
    %7321 = vmatprep.subr.bf16.mxu0 %v7218
    %7322 = vmatpush1.bf16.msra.mxu0 %v7217
    %7323 = vmatprep.subr.bf16.mxu0 %v7222
    %7324 = vmatpush1.bf16.msra.mxu0 %v7221
    %7325 = vmatprep.subr.bf16.mxu0 %v7226
    %7326 = vmatpush1.bf16.msra.mxu0 %v7225
    %7327 = vmatprep.subr.bf16.mxu0 %v7230
    %7328 = vmatpush1.bf16.msra.mxu0 %v7229
    %7329 = vmatprep.mubr.bf16.mxu0 %v6911
    %7330 = vmatmul.mubr.bf16.gmra.mrb[0].mxu0 %v6910
    %v7331 = vpop.f32.mrb[0].mxu0
    %v7332 = vadd.f32 0.0, %v7331
    %v7333 = vpop.f32.mrb[0].mxu0
    %v7334 = vadd.f32 0.0, %v7333
    %v7335 = vpop.f32.mrb[0].mxu0
    %v7336 = vpop.f32.mrb[0].mxu0
    %7337 = vdwg.mxu0
    %7338 = vmatprep.subr.bf16.mxu0 %v7172
    %7339 = vmatpush1.bf16.msra.mxu0 %v7171
    %7340 = vmatprep.subr.bf16.mxu0 %v7176
    %7341 = vmatpush1.bf16.msra.mxu0 %v7175
    %7342 = vmatprep.subr.bf16.mxu0 %v7180
    %7343 = vmatpush1.bf16.msra.mxu0 %v7179
    %7344 = vmatprep.subr.bf16.mxu0 %v7184
    %7345 = vmatpush1.bf16.msra.mxu0 %v7183
    %7346 = vmatprep.subr.bf16.mxu0 %v7188
    %7347 = vmatpush1.bf16.msra.mxu0 %v7187
    %7348 = vmatprep.subr.bf16.mxu0 %v7192
    %7349 = vmatpush1.bf16.msra.mxu0 %v7191
    %7350 = vmatprep.subr.bf16.mxu0 %v7196
    %7351 = vmatpush1.bf16.msra.mxu0 %v7195
    %7352 = vmatprep.subr.bf16.mxu0 %v7200
    %7353 = vmatpush1.bf16.msra.mxu0 %v7199
    %7354 = vmatprep.subr.bf16.mxu0 %v7204
    %7355 = vmatpush1.bf16.msra.mxu0 %v7203
    %7356 = vmatprep.subr.bf16.mxu0 %v7208
    %7357 = vmatpush1.bf16.msra.mxu0 %v7207
    %7358 = vmatprep.subr.bf16.mxu0 %v7212
    %7359 = vmatpush1.bf16.msra.mxu0 %v7211
    %7360 = vmatprep.subr.bf16.mxu0 %v7216
    %7361 = vmatpush1.bf16.msra.mxu0 %v7215
    %7362 = vmatprep.subr.bf16.mxu0 %v7220
    %7363 = vmatpush1.bf16.msra.mxu0 %v7219
    %7364 = vmatprep.subr.bf16.mxu0 %v7224
    %7365 = vmatpush1.bf16.msra.mxu0 %v7223
    %7366 = vmatprep.subr.bf16.mxu0 %v7228
    %7367 = vmatpush1.bf16.msra.mxu0 %v7227
    %7368 = vmatprep.subr.bf16.mxu0 %v7232
    %7369 = vmatpush1.bf16.msra.mxu0 %v7231
    %7370 = vmatprep.mubr.bf16.mxu0 %v6911
    %7371 = vmatmul.mubr.bf16.gmra.mrb[0].mxu0 %v6910
    %v7372 = vpop.f32.mrb[0].mxu0
    %v7373 = vadd.f32 0.0, %v7372
    %v7374 = vpop.f32.mrb[0].mxu0
    %v7375 = vadd.f32 0.0, %v7374
    %v7376 = vpop.f32.mrb[0].mxu0
    %v7377 = vpop.f32.mrb[0].mxu0
    %7378 = vdwg.mxu0
    %v7379 = vadd.f32 %v6860, %v7332
    %v7380 = vadd.f32 %v6861, %v7334
    %v7381 = vadd.f32 %v6862, %v7373
    %v7382 = vadd.f32 %v6863, %v7375
    %s7383 = scalar_lea.vmem [#allocation23], 7
    %v7384 = vld [vmem:[%s7383] sm:$0x1]
    %v7386 = vsel %vm3753, %v7384, 0
    %7388 = vmatprep.subr.bf16.mxu0 %v3762
    %7389 = vmatpush1.bf16.msra.mxu0 %v3759
    %7390 = vmatprep.subr.bf16.mxu0 0
    %7391 = vmatpush1.bf16.msra.mxu0 0
    %7392 = vmatprep.subr.bf16.mxu0 0
    %7393 = vmatpush1.bf16.msra.mxu0 0
    %7394 = vmatprep.subr.bf16.mxu0 0
    %7395 = vmatpush1.bf16.msra.mxu0 0
    %7396 = vmatprep.subr.bf16.mxu0 0
    %7397 = vmatpush1.bf16.msra.mxu0 0
    %7398 = vmatprep.subr.bf16.mxu0 0
    %7399 = vmatpush1.bf16.msra.mxu0 0
    %7400 = vmatprep.subr.bf16.mxu0 0
    %7401 = vmatpush1.bf16.msra.mxu0 0
    %7402 = vmatprep.subr.bf16.mxu0 0
    %7403 = vmatpush1.bf16.msra.mxu0 0
    %7404 = vmatprep.subr.bf16.mxu0 0
    %7405 = vmatpush1.bf16.msra.mxu0 0
    %7406 = vmatprep.subr.bf16.mxu0 0
    %7407 = vmatpush1.bf16.msra.mxu0 0
    %7408 = vmatprep.subr.bf16.mxu0 0
    %7409 = vmatpush1.bf16.msra.mxu0 0
    %7410 = vmatprep.subr.bf16.mxu0 0
    %7411 = vmatpush1.bf16.msra.mxu0 0
    %7412 = vmatprep.subr.bf16.mxu0 0
    %7413 = vmatpush1.bf16.msra.mxu0 0
    %7414 = vmatprep.subr.bf16.mxu0 0
    %7415 = vmatpush1.bf16.msra.mxu0 0
    %7416 = vmatprep.subr.bf16.mxu0 0
    %7417 = vmatpush1.bf16.msra.mxu0 0
    %7418 = vmatprep.subr.bf16.mxu0 0
    %7419 = vmatpush1.bf16.msra.mxu0 0
    %7420 = vmatprep.mubr.bf16.mxu0 0
    %7421 = vmatmul.mubr.bf16.gmra.mrb[0].mxu0 %v7386
    %v7422 = vpop.f32.mrb[0].mxu0
    %v7423 = vadd.f32 0.0, %v7422
    %v7424 = vpop.f32.mrb[0].mxu0
    %v7425 = vadd.f32 0.0, %v7424
    %v7426 = vpop.f32.mrb[0].mxu0
    %v7427 = vpop.f32.mrb[0].mxu0
    %7428 = vdwg.mxu0
    %v7429 = vpack.c.bf16 %v7423, %v7423
    %v7430 = vpack.c.bf16 %v7425, %v7425
    %s7431 = scalar_lea.vmem [#allocation19], 3584
    %v7432 = vld [vmem:[%s7431] sm:$0xff]
    %v7433 = vld [vmem:[%s7431 + $0x8] sm:$0xff]
    %v7434 = vld [vmem:[%s7431 + $0x10] sm:$0xff]
    %v7435 = vld [vmem:[%s7431 + $0x18] sm:$0xff]
    %v7436 = vld [vmem:[%s7431 + $0x20] sm:$0xff]
    %v7437 = vld [vmem:[%s7431 + $0x28] sm:$0xff]
    %v7438 = vld [vmem:[%s7431 + $0x30] sm:$0xff]
    %v7439 = vld [vmem:[%s7431 + $0x38] sm:$0xff]
    %v7440 = vld [vmem:[%s7431 + $0x40] sm:$0xff]
    %v7441 = vld [vmem:[%s7431 + $0x48] sm:$0xff]
    %v7442 = vld [vmem:[%s7431 + $0x50] sm:$0xff]
    %v7443 = vld [vmem:[%s7431 + $0x58] sm:$0xff]
    %v7444 = vld [vmem:[%s7431 + $0x60] sm:$0xff]
    %v7445 = vld [vmem:[%s7431 + $0x68] sm:$0xff]
    %v7446 = vld [vmem:[%s7431 + $0x70] sm:$0xff]
    %v7447 = vld [vmem:[%s7431 + $0x78] sm:$0xff]
    %v7448 = vld [vmem:[%s7431 + $0x80] sm:$0xff]
    %v7449 = vld [vmem:[%s7431 + $0x88] sm:$0xff]
    %v7450 = vld [vmem:[%s7431 + $0x90] sm:$0xff]
    %v7451 = vld [vmem:[%s7431 + $0x98] sm:$0xff]
    %v7452 = vld [vmem:[%s7431 + $0xa0] sm:$0xff]
    %v7453 = vld [vmem:[%s7431 + $0xa8] sm:$0xff]
    %v7454 = vld [vmem:[%s7431 + $0xb0] sm:$0xff]
    %v7455 = vld [vmem:[%s7431 + $0xb8] sm:$0xff]
    %v7456 = vld [vmem:[%s7431 + $0xc0] sm:$0xff]
    %v7457 = vld [vmem:[%s7431 + $0xc8] sm:$0xff]
    %v7458 = vld [vmem:[%s7431 + $0xd0] sm:$0xff]
    %v7459 = vld [vmem:[%s7431 + $0xd8] sm:$0xff]
    %v7460 = vld [vmem:[%s7431 + $0xe0] sm:$0xff]
    %v7461 = vld [vmem:[%s7431 + $0xe8] sm:$0xff]
    %v7462 = vld [vmem:[%s7431 + $0xf0] sm:$0xff]
    %v7463 = vld [vmem:[%s7431 + $0xf8] sm:$0xff]
    %v7464 = vld [vmem:[%s7431 + $0x100] sm:$0xff]
    %v7465 = vld [vmem:[%s7431 + $0x108] sm:$0xff]
    %v7466 = vld [vmem:[%s7431 + $0x110] sm:$0xff]
    %v7467 = vld [vmem:[%s7431 + $0x118] sm:$0xff]
    %v7468 = vld [vmem:[%s7431 + $0x120] sm:$0xff]
    %v7469 = vld [vmem:[%s7431 + $0x128] sm:$0xff]
    %v7470 = vld [vmem:[%s7431 + $0x130] sm:$0xff]
    %v7471 = vld [vmem:[%s7431 + $0x138] sm:$0xff]
    %v7472 = vld [vmem:[%s7431 + $0x140] sm:$0xff]
    %v7473 = vld [vmem:[%s7431 + $0x148] sm:$0xff]
    %v7474 = vld [vmem:[%s7431 + $0x150] sm:$0xff]
    %v7475 = vld [vmem:[%s7431 + $0x158] sm:$0xff]
    %v7476 = vld [vmem:[%s7431 + $0x160] sm:$0xff]
    %v7477 = vld [vmem:[%s7431 + $0x168] sm:$0xff]
    %v7478 = vld [vmem:[%s7431 + $0x170] sm:$0xff]
    %v7479 = vld [vmem:[%s7431 + $0x178] sm:$0xff]
    %v7480 = vld [vmem:[%s7431 + $0x180] sm:$0xff]
    %v7481 = vld [vmem:[%s7431 + $0x188] sm:$0xff]
    %v7482 = vld [vmem:[%s7431 + $0x190] sm:$0xff]
    %v7483 = vld [vmem:[%s7431 + $0x198] sm:$0xff]
    %v7484 = vld [vmem:[%s7431 + $0x1a0] sm:$0xff]
    %v7485 = vld [vmem:[%s7431 + $0x1a8] sm:$0xff]
    %v7486 = vld [vmem:[%s7431 + $0x1b0] sm:$0xff]
    %v7487 = vld [vmem:[%s7431 + $0x1b8] sm:$0xff]
    %v7488 = vld [vmem:[%s7431 + $0x1c0] sm:$0xff]
    %v7489 = vld [vmem:[%s7431 + $0x1c8] sm:$0xff]
    %v7490 = vld [vmem:[%s7431 + $0x1d0] sm:$0xff]
    %v7491 = vld [vmem:[%s7431 + $0x1d8] sm:$0xff]
    %v7492 = vld [vmem:[%s7431 + $0x1e0] sm:$0xff]
    %v7493 = vld [vmem:[%s7431 + $0x1e8] sm:$0xff]
    %v7494 = vld [vmem:[%s7431 + $0x1f0] sm:$0xff]
    %v7495 = vld [vmem:[%s7431 + $0x1f8] sm:$0xff]
    %v7560 = vunpack.c.l.b16 %v7432
    %v7561 = vunpack.c.h.b16 %v7432
    %v7562 = vunpack.c.l.b16 %v7433
    %v7563 = vunpack.c.h.b16 %v7433
    %v7564 = vunpack.c.l.b16 %v7434
    %v7565 = vunpack.c.h.b16 %v7434
    %v7566 = vunpack.c.l.b16 %v7435
    %v7567 = vunpack.c.h.b16 %v7435
    %v7568 = vunpack.c.l.b16 %v7436
    %v7569 = vunpack.c.h.b16 %v7436
    %v7570 = vunpack.c.l.b16 %v7437
    %v7571 = vunpack.c.h.b16 %v7437
    %v7572 = vunpack.c.l.b16 %v7438
    %v7573 = vunpack.c.h.b16 %v7438
    %v7574 = vunpack.c.l.b16 %v7439
    %v7575 = vunpack.c.h.b16 %v7439
    %v7576 = vunpack.c.l.b16 %v7440
    %v7577 = vunpack.c.h.b16 %v7440
    %v7578 = vunpack.c.l.b16 %v7441
    %v7579 = vunpack.c.h.b16 %v7441
    %v7580 = vunpack.c.l.b16 %v7442
    %v7581 = vunpack.c.h.b16 %v7442
    %v7582 = vunpack.c.l.b16 %v7443
    %v7583 = vunpack.c.h.b16 %v7443
    %v7584 = vunpack.c.l.b16 %v7444
    %v7585 = vunpack.c.h.b16 %v7444
    %v7586 = vunpack.c.l.b16 %v7445
    %v7587 = vunpack.c.h.b16 %v7445
    %v7588 = vunpack.c.l.b16 %v7446
    %v7589 = vunpack.c.h.b16 %v7446
    %v7590 = vunpack.c.l.b16 %v7447
    %v7591 = vunpack.c.h.b16 %v7447
    %v7592 = vunpack.c.l.b16 %v7448
    %v7593 = vunpack.c.h.b16 %v7448
    %v7594 = vunpack.c.l.b16 %v7449
    %v7595 = vunpack.c.h.b16 %v7449
    %v7596 = vunpack.c.l.b16 %v7450
    %v7597 = vunpack.c.h.b16 %v7450
    %v7598 = vunpack.c.l.b16 %v7451
    %v7599 = vunpack.c.h.b16 %v7451
    %v7600 = vunpack.c.l.b16 %v7452
    %v7601 = vunpack.c.h.b16 %v7452
    %v7602 = vunpack.c.l.b16 %v7453
    %v7603 = vunpack.c.h.b16 %v7453
    %v7604 = vunpack.c.l.b16 %v7454
    %v7605 = vunpack.c.h.b16 %v7454
    %v7606 = vunpack.c.l.b16 %v7455
    %v7607 = vunpack.c.h.b16 %v7455
    %v7608 = vunpack.c.l.b16 %v7456
    %v7609 = vunpack.c.h.b16 %v7456
    %v7610 = vunpack.c.l.b16 %v7457
    %v7611 = vunpack.c.h.b16 %v7457
    %v7612 = vunpack.c.l.b16 %v7458
    %v7613 = vunpack.c.h.b16 %v7458
    %v7614 = vunpack.c.l.b16 %v7459
    %v7615 = vunpack.c.h.b16 %v7459
    %v7616 = vunpack.c.l.b16 %v7460
    %v7617 = vunpack.c.h.b16 %v7460
    %v7618 = vunpack.c.l.b16 %v7461
    %v7619 = vunpack.c.h.b16 %v7461
    %v7620 = vunpack.c.l.b16 %v7462
    %v7621 = vunpack.c.h.b16 %v7462
    %v7622 = vunpack.c.l.b16 %v7463
    %v7623 = vunpack.c.h.b16 %v7463
    %v7624 = vunpack.c.l.b16 %v7464
    %v7625 = vunpack.c.h.b16 %v7464
    %v7626 = vunpack.c.l.b16 %v7465
    %v7627 = vunpack.c.h.b16 %v7465
    %v7628 = vunpack.c.l.b16 %v7466
    %v7629 = vunpack.c.h.b16 %v7466
    %v7630 = vunpack.c.l.b16 %v7467
    %v7631 = vunpack.c.h.b16 %v7467
    %v7632 = vunpack.c.l.b16 %v7468
    %v7633 = vunpack.c.h.b16 %v7468
    %v7634 = vunpack.c.l.b16 %v7469
    %v7635 = vunpack.c.h.b16 %v7469
    %v7636 = vunpack.c.l.b16 %v7470
    %v7637 = vunpack.c.h.b16 %v7470
    %v7638 = vunpack.c.l.b16 %v7471
    %v7639 = vunpack.c.h.b16 %v7471
    %v7640 = vunpack.c.l.b16 %v7472
    %v7641 = vunpack.c.h.b16 %v7472
    %v7642 = vunpack.c.l.b16 %v7473
    %v7643 = vunpack.c.h.b16 %v7473
    %v7644 = vunpack.c.l.b16 %v7474
    %v7645 = vunpack.c.h.b16 %v7474
    %v7646 = vunpack.c.l.b16 %v7475
    %v7647 = vunpack.c.h.b16 %v7475
    %v7648 = vunpack.c.l.b16 %v7476
    %v7649 = vunpack.c.h.b16 %v7476
    %v7650 = vunpack.c.l.b16 %v7477
    %v7651 = vunpack.c.h.b16 %v7477
    %v7652 = vunpack.c.l.b16 %v7478
    %v7653 = vunpack.c.h.b16 %v7478
    %v7654 = vunpack.c.l.b16 %v7479
    %v7655 = vunpack.c.h.b16 %v7479
    %v7656 = vunpack.c.l.b16 %v7480
    %v7657 = vunpack.c.h.b16 %v7480
    %v7658 = vunpack.c.l.b16 %v7481
    %v7659 = vunpack.c.h.b16 %v7481
    %v7660 = vunpack.c.l.b16 %v7482
    %v7661 = vunpack.c.h.b16 %v7482
    %v7662 = vunpack.c.l.b16 %v7483
    %v7663 = vunpack.c.h.b16 %v7483
    %v7664 = vunpack.c.l.b16 %v7484
    %v7665 = vunpack.c.h.b16 %v7484
    %v7666 = vunpack.c.l.b16 %v7485
    %v7667 = vunpack.c.h.b16 %v7485
    %v7668 = vunpack.c.l.b16 %v7486
    %v7669 = vunpack.c.h.b16 %v7486
    %v7670 = vunpack.c.l.b16 %v7487
    %v7671 = vunpack.c.h.b16 %v7487
    %v7672 = vunpack.c.l.b16 %v7488
    %v7673 = vunpack.c.h.b16 %v7488
    %v7674 = vunpack.c.l.b16 %v7489
    %v7675 = vunpack.c.h.b16 %v7489
    %v7676 = vunpack.c.l.b16 %v7490
    %v7677 = vunpack.c.h.b16 %v7490
    %v7678 = vunpack.c.l.b16 %v7491
    %v7679 = vunpack.c.h.b16 %v7491
    %v7680 = vunpack.c.l.b16 %v7492
    %v7681 = vunpack.c.h.b16 %v7492
    %v7682 = vunpack.c.l.b16 %v7493
    %v7683 = vunpack.c.h.b16 %v7493
    %v7684 = vunpack.c.l.b16 %v7494
    %v7685 = vunpack.c.h.b16 %v7494
    %v7686 = vunpack.c.l.b16 %v7495
    %v7687 = vunpack.c.h.b16 %v7495
    %v7688 = vpack.c.b16 %v7564, %v7560
    %v7689 = vpack.c.b16 %v7565, %v7561
    %v7690 = vpack.c.b16 %v7566, %v7562
    %v7691 = vpack.c.b16 %v7567, %v7563
    %v7692 = vpack.c.b16 %v7572, %v7568
    %v7693 = vpack.c.b16 %v7573, %v7569
    %v7694 = vpack.c.b16 %v7574, %v7570
    %v7695 = vpack.c.b16 %v7575, %v7571
    %v7696 = vpack.c.b16 %v7580, %v7576
    %v7697 = vpack.c.b16 %v7581, %v7577
    %v7698 = vpack.c.b16 %v7582, %v7578
    %v7699 = vpack.c.b16 %v7583, %v7579
    %v7700 = vpack.c.b16 %v7588, %v7584
    %v7701 = vpack.c.b16 %v7589, %v7585
    %v7702 = vpack.c.b16 %v7590, %v7586
    %v7703 = vpack.c.b16 %v7591, %v7587
    %v7704 = vpack.c.b16 %v7596, %v7592
    %v7705 = vpack.c.b16 %v7597, %v7593
    %v7706 = vpack.c.b16 %v7598, %v7594
    %v7707 = vpack.c.b16 %v7599, %v7595
    %v7708 = vpack.c.b16 %v7604, %v7600
    %v7709 = vpack.c.b16 %v7605, %v7601
    %v7710 = vpack.c.b16 %v7606, %v7602
    %v7711 = vpack.c.b16 %v7607, %v7603
    %v7712 = vpack.c.b16 %v7612, %v7608
    %v7713 = vpack.c.b16 %v7613, %v7609
    %v7714 = vpack.c.b16 %v7614, %v7610
    %v7715 = vpack.c.b16 %v7615, %v7611
    %v7716 = vpack.c.b16 %v7620, %v7616
    %v7717 = vpack.c.b16 %v7621, %v7617
    %v7718 = vpack.c.b16 %v7622, %v7618
    %v7719 = vpack.c.b16 %v7623, %v7619
    %v7720 = vpack.c.b16 %v7628, %v7624
    %v7721 = vpack.c.b16 %v7629, %v7625
    %v7722 = vpack.c.b16 %v7630, %v7626
    %v7723 = vpack.c.b16 %v7631, %v7627
    %v7724 = vpack.c.b16 %v7636, %v7632
    %v7725 = vpack.c.b16 %v7637, %v7633
    %v7726 = vpack.c.b16 %v7638, %v7634
    %v7727 = vpack.c.b16 %v7639, %v7635
    %v7728 = vpack.c.b16 %v7644, %v7640
    %v7729 = vpack.c.b16 %v7645, %v7641
    %v7730 = vpack.c.b16 %v7646, %v7642
    %v7731 = vpack.c.b16 %v7647, %v7643
    %v7732 = vpack.c.b16 %v7652, %v7648
    %v7733 = vpack.c.b16 %v7653, %v7649
    %v7734 = vpack.c.b16 %v7654, %v7650
    %v7735 = vpack.c.b16 %v7655, %v7651
    %v7736 = vpack.c.b16 %v7660, %v7656
    %v7737 = vpack.c.b16 %v7661, %v7657
    %v7738 = vpack.c.b16 %v7662, %v7658
    %v7739 = vpack.c.b16 %v7663, %v7659
    %v7740 = vpack.c.b16 %v7668, %v7664
    %v7741 = vpack.c.b16 %v7669, %v7665
    %v7742 = vpack.c.b16 %v7670, %v7666
    %v7743 = vpack.c.b16 %v7671, %v7667
    %v7744 = vpack.c.b16 %v7676, %v7672
    %v7745 = vpack.c.b16 %v7677, %v7673
    %v7746 = vpack.c.b16 %v7678, %v7674
    %v7747 = vpack.c.b16 %v7679, %v7675
    %v7748 = vpack.c.b16 %v7684, %v7680
    %v7749 = vpack.c.b16 %v7685, %v7681
    %v7750 = vpack.c.b16 %v7686, %v7682
    %v7751 = vpack.c.b16 %v7687, %v7683
    %7816 = vmatprep.subr.bf16.mxu0 %v7689
    %7817 = vmatpush1.bf16.msra.mxu0 %v7688
    %7818 = vmatprep.subr.bf16.mxu0 %v7693
    %7819 = vmatpush1.bf16.msra.mxu0 %v7692
    %7820 = vmatprep.subr.bf16.mxu0 %v7697
    %7821 = vmatpush1.bf16.msra.mxu0 %v7696
    %7822 = vmatprep.subr.bf16.mxu0 %v7701
    %7823 = vmatpush1.bf16.msra.mxu0 %v7700
    %7824 = vmatprep.subr.bf16.mxu0 %v7705
    %7825 = vmatpush1.bf16.msra.mxu0 %v7704
    %7826 = vmatprep.subr.bf16.mxu0 %v7709
    %7827 = vmatpush1.bf16.msra.mxu0 %v7708
    %7828 = vmatprep.subr.bf16.mxu0 %v7713
    %7829 = vmatpush1.bf16.msra.mxu0 %v7712
    %7830 = vmatprep.subr.bf16.mxu0 %v7717
    %7831 = vmatpush1.bf16.msra.mxu0 %v7716
    %7832 = vmatprep.subr.bf16.mxu0 %v7721
    %7833 = vmatpush1.bf16.msra.mxu0 %v7720
    %7834 = vmatprep.subr.bf16.mxu0 %v7725
    %7835 = vmatpush1.bf16.msra.mxu0 %v7724
    %7836 = vmatprep.subr.bf16.mxu0 %v7729
    %7837 = vmatpush1.bf16.msra.mxu0 %v7728
    %7838 = vmatprep.subr.bf16.mxu0 %v7733
    %7839 = vmatpush1.bf16.msra.mxu0 %v7732
    %7840 = vmatprep.subr.bf16.mxu0 %v7737
    %7841 = vmatpush1.bf16.msra.mxu0 %v7736
    %7842 = vmatprep.subr.bf16.mxu0 %v7741
    %7843 = vmatpush1.bf16.msra.mxu0 %v7740
    %7844 = vmatprep.subr.bf16.mxu0 %v7745
    %7845 = vmatpush1.bf16.msra.mxu0 %v7744
    %7846 = vmatprep.subr.bf16.mxu0 %v7749
    %7847 = vmatpush1.bf16.msra.mxu0 %v7748
    %7848 = vmatprep.mubr.bf16.mxu0 %v7430
    %7849 = vmatmul.mubr.bf16.gmra.mrb[0].mxu0 %v7429
    %v7850 = vpop.f32.mrb[0].mxu0
    %v7851 = vadd.f32 0.0, %v7850
    %v7852 = vpop.f32.mrb[0].mxu0
    %v7853 = vadd.f32 0.0, %v7852
    %v7854 = vpop.f32.mrb[0].mxu0
    %v7855 = vpop.f32.mrb[0].mxu0
    %7856 = vdwg.mxu0
    %7857 = vmatprep.subr.bf16.mxu0 %v7691
    %7858 = vmatpush1.bf16.msra.mxu0 %v7690
    %7859 = vmatprep.subr.bf16.mxu0 %v7695
    %7860 = vmatpush1.bf16.msra.mxu0 %v7694
    %7861 = vmatprep.subr.bf16.mxu0 %v7699
    %7862 = vmatpush1.bf16.msra.mxu0 %v7698
    %7863 = vmatprep.subr.bf16.mxu0 %v7703
    %7864 = vmatpush1.bf16.msra.mxu0 %v7702
    %7865 = vmatprep.subr.bf16.mxu0 %v7707
    %7866 = vmatpush1.bf16.msra.mxu0 %v7706
    %7867 = vmatprep.subr.bf16.mxu0 %v7711
    %7868 = vmatpush1.bf16.msra.mxu0 %v7710
    %7869 = vmatprep.subr.bf16.mxu0 %v7715
    %7870 = vmatpush1.bf16.msra.mxu0 %v7714
    %7871 = vmatprep.subr.bf16.mxu0 %v7719
    %7872 = vmatpush1.bf16.msra.mxu0 %v7718
    %7873 = vmatprep.subr.bf16.mxu0 %v7723
    %7874 = vmatpush1.bf16.msra.mxu0 %v7722
    %7875 = vmatprep.subr.bf16.mxu0 %v7727
    %7876 = vmatpush1.bf16.msra.mxu0 %v7726
    %7877 = vmatprep.subr.bf16.mxu0 %v7731
    %7878 = vmatpush1.bf16.msra.mxu0 %v7730
    %7879 = vmatprep.subr.bf16.mxu0 %v7735
    %7880 = vmatpush1.bf16.msra.mxu0 %v7734
    %7881 = vmatprep.subr.bf16.mxu0 %v7739
    %7882 = vmatpush1.bf16.msra.mxu0 %v7738
    %7883 = vmatprep.subr.bf16.mxu0 %v7743
    %7884 = vmatpush1.bf16.msra.mxu0 %v7742
    %7885 = vmatprep.subr.bf16.mxu0 %v7747
    %7886 = vmatpush1.bf16.msra.mxu0 %v7746
    %7887 = vmatprep.subr.bf16.mxu0 %v7751
    %7888 = vmatpush1.bf16.msra.mxu0 %v7750
    %7889 = vmatprep.mubr.bf16.mxu0 %v7430
    %7890 = vmatmul.mubr.bf16.gmra.mrb[0].mxu0 %v7429
    %v7891 = vpop.f32.mrb[0].mxu0
    %v7892 = vadd.f32 0.0, %v7891
    %v7893 = vpop.f32.mrb[0].mxu0
    %v7894 = vadd.f32 0.0, %v7893
    %v7895 = vpop.f32.mrb[0].mxu0
    %v7896 = vpop.f32.mrb[0].mxu0
    %7897 = vdwg.mxu0
    %v7898 = vadd.f32 %v7379, %v7851
    %v7899 = vadd.f32 %v7380, %v7853
    %v7900 = vadd.f32 %v7381, %v7892
    %v7901 = vadd.f32 %v7382, %v7894
    %s7902 = scalar_lea.vmem [#allocation23], 8
    %v7903 = vld [vmem:[%s7902] sm:$0x1]
    %v7905 = vsel %vm3753, %v7903, 0
    %7907 = vmatprep.subr.bf16.mxu0 %v3762
    %7908 = vmatpush1.bf16.msra.mxu0 %v3759
    %7909 = vmatprep.subr.bf16.mxu0 0
    %7910 = vmatpush1.bf16.msra.mxu0 0
    %7911 = vmatprep.subr.bf16.mxu0 0
    %7912 = vmatpush1.bf16.msra.mxu0 0
    %7913 = vmatprep.subr.bf16.mxu0 0
    %7914 = vmatpush1.bf16.msra.mxu0 0
    %7915 = vmatprep.subr.bf16.mxu0 0
    %7916 = vmatpush1.bf16.msra.mxu0 0
    %7917 = vmatprep.subr.bf16.mxu0 0
    %7918 = vmatpush1.bf16.msra.mxu0 0
    %7919 = vmatprep.subr.bf16.mxu0 0
    %7920 = vmatpush1.bf16.msra.mxu0 0
    %7921 = vmatprep.subr.bf16.mxu0 0
    %7922 = vmatpush1.bf16.msra.mxu0 0
    %7923 = vmatprep.subr.bf16.mxu0 0
    %7924 = vmatpush1.bf16.msra.mxu0 0
    %7925 = vmatprep.subr.bf16.mxu0 0
    %7926 = vmatpush1.bf16.msra.mxu0 0
    %7927 = vmatprep.subr.bf16.mxu0 0
    %7928 = vmatpush1.bf16.msra.mxu0 0
    %7929 = vmatprep.subr.bf16.mxu0 0
    %7930 = vmatpush1.bf16.msra.mxu0 0
    %7931 = vmatprep.subr.bf16.mxu0 0
    %7932 = vmatpush1.bf16.msra.mxu0 0
    %7933 = vmatprep.subr.bf16.mxu0 0
    %7934 = vmatpush1.bf16.msra.mxu0 0
    %7935 = vmatprep.subr.bf16.mxu0 0
    %7936 = vmatpush1.bf16.msra.mxu0 0
    %7937 = vmatprep.subr.bf16.mxu0 0
    %7938 = vmatpush1.bf16.msra.mxu0 0
    %7939 = vmatprep.mubr.bf16.mxu0 0
    %7940 = vmatmul.mubr.bf16.gmra.mrb[0].mxu0 %v7905
    %v7941 = vpop.f32.mrb[0].mxu0
    %v7942 = vadd.f32 0.0, %v7941
    %v7943 = vpop.f32.mrb[0].mxu0
    %v7944 = vadd.f32 0.0, %v7943
    %v7945 = vpop.f32.mrb[0].mxu0
    %v7946 = vpop.f32.mrb[0].mxu0
    %7947 = vdwg.mxu0
    %v7948 = vpack.c.bf16 %v7942, %v7942
    %v7949 = vpack.c.bf16 %v7944, %v7944
    %s7950 = scalar_lea.vmem [#allocation19], 4096
    %v7951 = vld [vmem:[%s7950] sm:$0xff]
    %v7952 = vld [vmem:[%s7950 + $0x8] sm:$0xff]
    %v7953 = vld [vmem:[%s7950 + $0x10] sm:$0xff]
    %v7954 = vld [vmem:[%s7950 + $0x18] sm:$0xff]
    %v7955 = vld [vmem:[%s7950 + $0x20] sm:$0xff]
    %v7956 = vld [vmem:[%s7950 + $0x28] sm:$0xff]
    %v7957 = vld [vmem:[%s7950 + $0x30] sm:$0xff]
    %v7958 = vld [vmem:[%s7950 + $0x38] sm:$0xff]
    %v7959 = vld [vmem:[%s7950 + $0x40] sm:$0xff]
    %v7960 = vld [vmem:[%s7950 + $0x48] sm:$0xff]
    %v7961 = vld [vmem:[%s7950 + $0x50] sm:$0xff]
    %v7962 = vld [vmem:[%s7950 + $0x58] sm:$0xff]
    %v7963 = vld [vmem:[%s7950 + $0x60] sm:$0xff]
    %v7964 = vld [vmem:[%s7950 + $0x68] sm:$0xff]
    %v7965 = vld [vmem:[%s7950 + $0x70] sm:$0xff]
    %v7966 = vld [vmem:[%s7950 + $0x78] sm:$0xff]
    %v7967 = vld [vmem:[%s7950 + $0x80] sm:$0xff]
    %v7968 = vld [vmem:[%s7950 + $0x88] sm:$0xff]
    %v7969 = vld [vmem:[%s7950 + $0x90] sm:$0xff]
    %v7970 = vld [vmem:[%s7950 + $0x98] sm:$0xff]
    %v7971 = vld [vmem:[%s7950 + $0xa0] sm:$0xff]
    %v7972 = vld [vmem:[%s7950 + $0xa8] sm:$0xff]
    %v7973 = vld [vmem:[%s7950 + $0xb0] sm:$0xff]
    %v7974 = vld [vmem:[%s7950 + $0xb8] sm:$0xff]
    %v7975 = vld [vmem:[%s7950 + $0xc0] sm:$0xff]
    %v7976 = vld [vmem:[%s7950 + $0xc8] sm:$0xff]
    %v7977 = vld [vmem:[%s7950 + $0xd0] sm:$0xff]
    %v7978 = vld [vmem:[%s7950 + $0xd8] sm:$0xff]
    %v7979 = vld [vmem:[%s7950 + $0xe0] sm:$0xff]
    %v7980 = vld [vmem:[%s7950 + $0xe8] sm:$0xff]
    %v7981 = vld [vmem:[%s7950 + $0xf0] sm:$0xff]
    %v7982 = vld [vmem:[%s7950 + $0xf8] sm:$0xff]
    %v7983 = vld [vmem:[%s7950 + $0x100] sm:$0xff]
    %v7984 = vld [vmem:[%s7950 + $0x108] sm:$0xff]
    %v7985 = vld [vmem:[%s7950 + $0x110] sm:$0xff]
    %v7986 = vld [vmem:[%s7950 + $0x118] sm:$0xff]
    %v7987 = vld [vmem:[%s7950 + $0x120] sm:$0xff]
    %v7988 = vld [vmem:[%s7950 + $0x128] sm:$0xff]
    %v7989 = vld [vmem:[%s7950 + $0x130] sm:$0xff]
    %v7990 = vld [vmem:[%s7950 + $0x138] sm:$0xff]
    %v7991 = vld [vmem:[%s7950 + $0x140] sm:$0xff]
    %v7992 = vld [vmem:[%s7950 + $0x148] sm:$0xff]
    %v7993 = vld [vmem:[%s7950 + $0x150] sm:$0xff]
    %v7994 = vld [vmem:[%s7950 + $0x158] sm:$0xff]
    %v7995 = vld [vmem:[%s7950 + $0x160] sm:$0xff]
    %v7996 = vld [vmem:[%s7950 + $0x168] sm:$0xff]
    %v7997 = vld [vmem:[%s7950 + $0x170] sm:$0xff]
    %v7998 = vld [vmem:[%s7950 + $0x178] sm:$0xff]
    %v7999 = vld [vmem:[%s7950 + $0x180] sm:$0xff]
    %v8000 = vld [vmem:[%s7950 + $0x188] sm:$0xff]
    %v8001 = vld [vmem:[%s7950 + $0x190] sm:$0xff]
    %v8002 = vld [vmem:[%s7950 + $0x198] sm:$0xff]
    %v8003 = vld [vmem:[%s7950 + $0x1a0] sm:$0xff]
    %v8004 = vld [vmem:[%s7950 + $0x1a8] sm:$0xff]
    %v8005 = vld [vmem:[%s7950 + $0x1b0] sm:$0xff]
    %v8006 = vld [vmem:[%s7950 + $0x1b8] sm:$0xff]
    %v8007 = vld [vmem:[%s7950 + $0x1c0] sm:$0xff]
    %v8008 = vld [vmem:[%s7950 + $0x1c8] sm:$0xff]
    %v8009 = vld [vmem:[%s7950 + $0x1d0] sm:$0xff]
    %v8010 = vld [vmem:[%s7950 + $0x1d8] sm:$0xff]
    %v8011 = vld [vmem:[%s7950 + $0x1e0] sm:$0xff]
    %v8012 = vld [vmem:[%s7950 + $0x1e8] sm:$0xff]
    %v8013 = vld [vmem:[%s7950 + $0x1f0] sm:$0xff]
    %v8014 = vld [vmem:[%s7950 + $0x1f8] sm:$0xff]
    %v8079 = vunpack.c.l.b16 %v7951
    %v8080 = vunpack.c.h.b16 %v7951
    %v8081 = vunpack.c.l.b16 %v7952
    %v8082 = vunpack.c.h.b16 %v7952
    %v8083 = vunpack.c.l.b16 %v7953
    %v8084 = vunpack.c.h.b16 %v7953
    %v8085 = vunpack.c.l.b16 %v7954
    %v8086 = vunpack.c.h.b16 %v7954
    %v8087 = vunpack.c.l.b16 %v7955
    %v8088 = vunpack.c.h.b16 %v7955
    %v8089 = vunpack.c.l.b16 %v7956
    %v8090 = vunpack.c.h.b16 %v7956
    %v8091 = vunpack.c.l.b16 %v7957
    %v8092 = vunpack.c.h.b16 %v7957
    %v8093 = vunpack.c.l.b16 %v7958
    %v8094 = vunpack.c.h.b16 %v7958
    %v8095 = vunpack.c.l.b16 %v7959
    %v8096 = vunpack.c.h.b16 %v7959
    %v8097 = vunpack.c.l.b16 %v7960
    %v8098 = vunpack.c.h.b16 %v7960
    %v8099 = vunpack.c.l.b16 %v7961
    %v8100 = vunpack.c.h.b16 %v7961
    %v8101 = vunpack.c.l.b16 %v7962
    %v8102 = vunpack.c.h.b16 %v7962
    %v8103 = vunpack.c.l.b16 %v7963
    %v8104 = vunpack.c.h.b16 %v7963
    %v8105 = vunpack.c.l.b16 %v7964
    %v8106 = vunpack.c.h.b16 %v7964
    %v8107 = vunpack.c.l.b16 %v7965
    %v8108 = vunpack.c.h.b16 %v7965
    %v8109 = vunpack.c.l.b16 %v7966
    %v8110 = vunpack.c.h.b16 %v7966
    %v8111 = vunpack.c.l.b16 %v7967
    %v8112 = vunpack.c.h.b16 %v7967
    %v8113 = vunpack.c.l.b16 %v7968
    %v8114 = vunpack.c.h.b16 %v7968
    %v8115 = vunpack.c.l.b16 %v7969
    %v8116 = vunpack.c.h.b16 %v7969
    %v8117 = vunpack.c.l.b16 %v7970
    %v8118 = vunpack.c.h.b16 %v7970
    %v8119 = vunpack.c.l.b16 %v7971
    %v8120 = vunpack.c.h.b16 %v7971
    %v8121 = vunpack.c.l.b16 %v7972
    %v8122 = vunpack.c.h.b16 %v7972
    %v8123 = vunpack.c.l.b16 %v7973
    %v8124 = vunpack.c.h.b16 %v7973
    %v8125 = vunpack.c.l.b16 %v7974
    %v8126 = vunpack.c.h.b16 %v7974
    %v8127 = vunpack.c.l.b16 %v7975
    %v8128 = vunpack.c.h.b16 %v7975
    %v8129 = vunpack.c.l.b16 %v7976
    %v8130 = vunpack.c.h.b16 %v7976
    %v8131 = vunpack.c.l.b16 %v7977
    %v8132 = vunpack.c.h.b16 %v7977
    %v8133 = vunpack.c.l.b16 %v7978
    %v8134 = vunpack.c.h.b16 %v7978
    %v8135 = vunpack.c.l.b16 %v7979
    %v8136 = vunpack.c.h.b16 %v7979
    %v8137 = vunpack.c.l.b16 %v7980
    %v8138 = vunpack.c.h.b16 %v7980
    %v8139 = vunpack.c.l.b16 %v7981
    %v8140 = vunpack.c.h.b16 %v7981
    %v8141 = vunpack.c.l.b16 %v7982
    %v8142 = vunpack.c.h.b16 %v7982
    %v8143 = vunpack.c.l.b16 %v7983
    %v8144 = vunpack.c.h.b16 %v7983
    %v8145 = vunpack.c.l.b16 %v7984
    %v8146 = vunpack.c.h.b16 %v7984
    %v8147 = vunpack.c.l.b16 %v7985
    %v8148 = vunpack.c.h.b16 %v7985
    %v8149 = vunpack.c.l.b16 %v7986
    %v8150 = vunpack.c.h.b16 %v7986
    %v8151 = vunpack.c.l.b16 %v7987
    %v8152 = vunpack.c.h.b16 %v7987
    %v8153 = vunpack.c.l.b16 %v7988
    %v8154 = vunpack.c.h.b16 %v7988
    %v8155 = vunpack.c.l.b16 %v7989
    %v8156 = vunpack.c.h.b16 %v7989
    %v8157 = vunpack.c.l.b16 %v7990
    %v8158 = vunpack.c.h.b16 %v7990
    %v8159 = vunpack.c.l.b16 %v7991
    %v8160 = vunpack.c.h.b16 %v7991
    %v8161 = vunpack.c.l.b16 %v7992
    %v8162 = vunpack.c.h.b16 %v7992
    %v8163 = vunpack.c.l.b16 %v7993
    %v8164 = vunpack.c.h.b16 %v7993
    %v8165 = vunpack.c.l.b16 %v7994
    %v8166 = vunpack.c.h.b16 %v7994
    %v8167 = vunpack.c.l.b16 %v7995
    %v8168 = vunpack.c.h.b16 %v7995
    %v8169 = vunpack.c.l.b16 %v7996
    %v8170 = vunpack.c.h.b16 %v7996
    %v8171 = vunpack.c.l.b16 %v7997
    %v8172 = vunpack.c.h.b16 %v7997
    %v8173 = vunpack.c.l.b16 %v7998
    %v8174 = vunpack.c.h.b16 %v7998
    %v8175 = vunpack.c.l.b16 %v7999
    %v8176 = vunpack.c.h.b16 %v7999
    %v8177 = vunpack.c.l.b16 %v8000
    %v8178 = vunpack.c.h.b16 %v8000
    %v8179 = vunpack.c.l.b16 %v8001
    %v8180 = vunpack.c.h.b16 %v8001
    %v8181 = vunpack.c.l.b16 %v8002
    %v8182 = vunpack.c.h.b16 %v8002
    %v8183 = vunpack.c.l.b16 %v8003
    %v8184 = vunpack.c.h.b16 %v8003
    %v8185 = vunpack.c.l.b16 %v8004
    %v8186 = vunpack.c.h.b16 %v8004
    %v8187 = vunpack.c.l.b16 %v8005
    %v8188 = vunpack.c.h.b16 %v8005
    %v8189 = vunpack.c.l.b16 %v8006
    %v8190 = vunpack.c.h.b16 %v8006
    %v8191 = vunpack.c.l.b16 %v8007
    %v8192 = vunpack.c.h.b16 %v8007
    %v8193 = vunpack.c.l.b16 %v8008
    %v8194 = vunpack.c.h.b16 %v8008
    %v8195 = vunpack.c.l.b16 %v8009
    %v8196 = vunpack.c.h.b16 %v8009
    %v8197 = vunpack.c.l.b16 %v8010
    %v8198 = vunpack.c.h.b16 %v8010
    %v8199 = vunpack.c.l.b16 %v8011
    %v8200 = vunpack.c.h.b16 %v8011
    %v8201 = vunpack.c.l.b16 %v8012
    %v8202 = vunpack.c.h.b16 %v8012
    %v8203 = vunpack.c.l.b16 %v8013
    %v8204 = vunpack.c.h.b16 %v8013
    %v8205 = vunpack.c.l.b16 %v8014
    %v8206 = vunpack.c.h.b16 %v8014
    %v8207 = vpack.c.b16 %v8083, %v8079
    %v8208 = vpack.c.b16 %v8084, %v8080
    %v8209 = vpack.c.b16 %v8085, %v8081
    %v8210 = vpack.c.b16 %v8086, %v8082
    %v8211 = vpack.c.b16 %v8091, %v8087
    %v8212 = vpack.c.b16 %v8092, %v8088
    %v8213 = vpack.c.b16 %v8093, %v8089
    %v8214 = vpack.c.b16 %v8094, %v8090
    %v8215 = vpack.c.b16 %v8099, %v8095
    %v8216 = vpack.c.b16 %v8100, %v8096
    %v8217 = vpack.c.b16 %v8101, %v8097
    %v8218 = vpack.c.b16 %v8102, %v8098
    %v8219 = vpack.c.b16 %v8107, %v8103
    %v8220 = vpack.c.b16 %v8108, %v8104
    %v8221 = vpack.c.b16 %v8109, %v8105
    %v8222 = vpack.c.b16 %v8110, %v8106
    %v8223 = vpack.c.b16 %v8115, %v8111
    %v8224 = vpack.c.b16 %v8116, %v8112
    %v8225 = vpack.c.b16 %v8117, %v8113
    %v8226 = vpack.c.b16 %v8118, %v8114
    %v8227 = vpack.c.b16 %v8123, %v8119
    %v8228 = vpack.c.b16 %v8124, %v8120
    %v8229 = vpack.c.b16 %v8125, %v8121
    %v8230 = vpack.c.b16 %v8126, %v8122
    %v8231 = vpack.c.b16 %v8131, %v8127
    %v8232 = vpack.c.b16 %v8132, %v8128
    %v8233 = vpack.c.b16 %v8133, %v8129
    %v8234 = vpack.c.b16 %v8134, %v8130
    %v8235 = vpack.c.b16 %v8139, %v8135
    %v8236 = vpack.c.b16 %v8140, %v8136
    %v8237 = vpack.c.b16 %v8141, %v8137
    %v8238 = vpack.c.b16 %v8142, %v8138
    %v8239 = vpack.c.b16 %v8147, %v8143
    %v8240 = vpack.c.b16 %v8148, %v8144
    %v8241 = vpack.c.b16 %v8149, %v8145
    %v8242 = vpack.c.b16 %v8150, %v8146
    %v8243 = vpack.c.b16 %v8155, %v8151
    %v8244 = vpack.c.b16 %v8156, %v8152
    %v8245 = vpack.c.b16 %v8157, %v8153
    %v8246 = vpack.c.b16 %v8158, %v8154
    %v8247 = vpack.c.b16 %v8163, %v8159
    %v8248 = vpack.c.b16 %v8164, %v8160
    %v8249 = vpack.c.b16 %v8165, %v8161
    %v8250 = vpack.c.b16 %v8166, %v8162
    %v8251 = vpack.c.b16 %v8171, %v8167
    %v8252 = vpack.c.b16 %v8172, %v8168
    %v8253 = vpack.c.b16 %v8173, %v8169
    %v8254 = vpack.c.b16 %v8174, %v8170
    %v8255 = vpack.c.b16 %v8179, %v8175
    %v8256 = vpack.c.b16 %v8180, %v8176
    %v8257 = vpack.c.b16 %v8181, %v8177
    %v8258 = vpack.c.b16 %v8182, %v8178
    %v8259 = vpack.c.b16 %v8187, %v8183
    %v8260 = vpack.c.b16 %v8188, %v8184
    %v8261 = vpack.c.b16 %v8189, %v8185
    %v8262 = vpack.c.b16 %v8190, %v8186
    %v8263 = vpack.c.b16 %v8195, %v8191
    %v8264 = vpack.c.b16 %v8196, %v8192
    %v8265 = vpack.c.b16 %v8197, %v8193
    %v8266 = vpack.c.b16 %v8198, %v8194
    %v8267 = vpack.c.b16 %v8203, %v8199
    %v8268 = vpack.c.b16 %v8204, %v8200
    %v8269 = vpack.c.b16 %v8205, %v8201
    %v8270 = vpack.c.b16 %v8206, %v8202
    %8335 = vmatprep.subr.bf16.mxu0 %v8208
    %8336 = vmatpush1.bf16.msra.mxu0 %v8207
    %8337 = vmatprep.subr.bf16.mxu0 %v8212
    %8338 = vmatpush1.bf16.msra.mxu0 %v8211
    %8339 = vmatprep.subr.bf16.mxu0 %v8216
    %8340 = vmatpush1.bf16.msra.mxu0 %v8215
    %8341 = vmatprep.subr.bf16.mxu0 %v8220
    %8342 = vmatpush1.bf16.msra.mxu0 %v8219
    %8343 = vmatprep.subr.bf16.mxu0 %v8224
    %8344 = vmatpush1.bf16.msra.mxu0 %v8223
    %8345 = vmatprep.subr.bf16.mxu0 %v8228
    %8346 = vmatpush1.bf16.msra.mxu0 %v8227
    %8347 = vmatprep.subr.bf16.mxu0 %v8232
    %8348 = vmatpush1.bf16.msra.mxu0 %v8231
    %8349 = vmatprep.subr.bf16.mxu0 %v8236
    %8350 = vmatpush1.bf16.msra.mxu0 %v8235
    %8351 = vmatprep.subr.bf16.mxu0 %v8240
    %8352 = vmatpush1.bf16.msra.mxu0 %v8239
    %8353 = vmatprep.subr.bf16.mxu0 %v8244
    %8354 = vmatpush1.bf16.msra.mxu0 %v8243
    %8355 = vmatprep.subr.bf16.mxu0 %v8248
    %8356 = vmatpush1.bf16.msra.mxu0 %v8247
    %8357 = vmatprep.subr.bf16.mxu0 %v8252
    %8358 = vmatpush1.bf16.msra.mxu0 %v8251
    %8359 = vmatprep.subr.bf16.mxu0 %v8256
    %8360 = vmatpush1.bf16.msra.mxu0 %v8255
    %8361 = vmatprep.subr.bf16.mxu0 %v8260
    %8362 = vmatpush1.bf16.msra.mxu0 %v8259
    %8363 = vmatprep.subr.bf16.mxu0 %v8264
    %8364 = vmatpush1.bf16.msra.mxu0 %v8263
    %8365 = vmatprep.subr.bf16.mxu0 %v8268
    %8366 = vmatpush1.bf16.msra.mxu0 %v8267
    %8367 = vmatprep.mubr.bf16.mxu0 %v7949
    %8368 = vmatmul.mubr.bf16.gmra.mrb[0].mxu0 %v7948
    %v8369 = vpop.f32.mrb[0].mxu0
    %v8370 = vadd.f32 0.0, %v8369
    %v8371 = vpop.f32.mrb[0].mxu0
    %v8372 = vadd.f32 0.0, %v8371
    %v8373 = vpop.f32.mrb[0].mxu0
    %v8374 = vpop.f32.mrb[0].mxu0
    %8375 = vdwg.mxu0
    %8376 = vmatprep.subr.bf16.mxu0 %v8210
    %8377 = vmatpush1.bf16.msra.mxu0 %v8209
    %8378 = vmatprep.subr.bf16.mxu0 %v8214
    %8379 = vmatpush1.bf16.msra.mxu0 %v8213
    %8380 = vmatprep.subr.bf16.mxu0 %v8218
    %8381 = vmatpush1.bf16.msra.mxu0 %v8217
    %8382 = vmatprep.subr.bf16.mxu0 %v8222
    %8383 = vmatpush1.bf16.msra.mxu0 %v8221
    %8384 = vmatprep.subr.bf16.mxu0 %v8226
    %8385 = vmatpush1.bf16.msra.mxu0 %v8225
    %8386 = vmatprep.subr.bf16.mxu0 %v8230
    %8387 = vmatpush1.bf16.msra.mxu0 %v8229
    %8388 = vmatprep.subr.bf16.mxu0 %v8234
    %8389 = vmatpush1.bf16.msra.mxu0 %v8233
    %8390 = vmatprep.subr.bf16.mxu0 %v8238
    %8391 = vmatpush1.bf16.msra.mxu0 %v8237
    %8392 = vmatprep.subr.bf16.mxu0 %v8242
    %8393 = vmatpush1.bf16.msra.mxu0 %v8241
    %8394 = vmatprep.subr.bf16.mxu0 %v8246
    %8395 = vmatpush1.bf16.msra.mxu0 %v8245
    %8396 = vmatprep.subr.bf16.mxu0 %v8250
    %8397 = vmatpush1.bf16.msra.mxu0 %v8249
    %8398 = vmatprep.subr.bf16.mxu0 %v8254
    %8399 = vmatpush1.bf16.msra.mxu0 %v8253
    %8400 = vmatprep.subr.bf16.mxu0 %v8258
    %8401 = vmatpush1.bf16.msra.mxu0 %v8257
    %8402 = vmatprep.subr.bf16.mxu0 %v8262
    %8403 = vmatpush1.bf16.msra.mxu0 %v8261
    %8404 = vmatprep.subr.bf16.mxu0 %v8266
    %8405 = vmatpush1.bf16.msra.mxu0 %v8265
    %8406 = vmatprep.subr.bf16.mxu0 %v8270
    %8407 = vmatpush1.bf16.msra.mxu0 %v8269
    %8408 = vmatprep.mubr.bf16.mxu0 %v7949
    %8409 = vmatmul.mubr.bf16.gmra.mrb[0].mxu0 %v7948
    %v8410 = vpop.f32.mrb[0].mxu0
    %v8411 = vadd.f32 0.0, %v8410
    %v8412 = vpop.f32.mrb[0].mxu0
    %v8413 = vadd.f32 0.0, %v8412
    %v8414 = vpop.f32.mrb[0].mxu0
    %v8415 = vpop.f32.mrb[0].mxu0
    %8416 = vdwg.mxu0
    %v8417 = vadd.f32 %v7898, %v8370
    %v8418 = vadd.f32 %v7899, %v8372
    %v8419 = vadd.f32 %v7900, %v8411
    %v8420 = vadd.f32 %v7901, %v8413
    %vm8421 = vcmask 1041408
    %v8422 = vsel %vm8421, %v8417, 0.0
    %v8423 = vrot.slane %v8422, 4
    %v8424 = vadd.f32 %v8422, %v8423
    %v8425 = vrot.slane %v8424, 2
    %v8426 = vadd.f32 %v8424, %v8425
    %v8427 = vrot.slane %v8426, 1
    %v8428 = vadd.f32 %v8426, %v8427
    %v8429 = vsel %vm8421, %v8418, 0.0
    %v8430 = vrot.slane %v8429, 4
    %v8431 = vadd.f32 %v8429, %v8430
    %v8432 = vrot.slane %v8431, 2
    %v8433 = vadd.f32 %v8431, %v8432
    %v8434 = vrot.slane %v8433, 1
    %v8435 = vadd.f32 %v8433, %v8434
    %v8436 = vsel %vm8421, %v8419, 0.0
    %v8437 = vrot.slane %v8436, 4
    %v8438 = vadd.f32 %v8436, %v8437
    %v8439 = vrot.slane %v8438, 2
    %v8440 = vadd.f32 %v8438, %v8439
    %v8441 = vrot.slane %v8440, 1
    %v8442 = vadd.f32 %v8440, %v8441
    %v8443 = vsel %vm8421, %v8420, 0.0
    %v8444 = vrot.slane %v8443, 4
    %v8445 = vadd.f32 %v8443, %v8444
    %v8446 = vrot.slane %v8445, 2
    %v8447 = vadd.f32 %v8445, %v8446
    %v8448 = vrot.slane %v8447, 1
    %v8449 = vadd.f32 %v8447, %v8448
    %v8450 = vmul.f32 %v8428, 0.5
    %v8451 = vmul.f32 %v8435, 0.5
    %v8452 = vmul.f32 %v8442, 0.5
    %v8453 = vmul.f32 %v8449, 0.5
    %v8454 = vmul.f32 %v8417, %v8417
    %v8455 = vmul.f32 %v8418, %v8418
    %v8456 = vmul.f32 %v8419, %v8419
    %v8457 = vmul.f32 %v8420, %v8420
    %v8458 = vsel %vm8421, %v8454, 0.0
    %v8459 = vrot.slane %v8458, 4
    %v8460 = vadd.f32 %v8458, %v8459
    %v8461 = vrot.slane %v8460, 2
    %v8462 = vadd.f32 %v8460, %v8461
    %v8463 = vrot.slane %v8462, 1
    %v8464 = vadd.f32 %v8462, %v8463
    %v8465 = vsel %vm8421, %v8455, 0.0
    %v8466 = vrot.slane %v8465, 4
    %v8467 = vadd.f32 %v8465, %v8466
    %v8468 = vrot.slane %v8467, 2
    %v8469 = vadd.f32 %v8467, %v8468
    %v8470 = vrot.slane %v8469, 1
    %v8471 = vadd.f32 %v8469, %v8470
    %v8472 = vsel %vm8421, %v8456, 0.0
    %v8473 = vrot.slane %v8472, 4
    %v8474 = vadd.f32 %v8472, %v8473
    %v8475 = vrot.slane %v8474, 2
    %v8476 = vadd.f32 %v8474, %v8475
    %v8477 = vrot.slane %v8476, 1
    %v8478 = vadd.f32 %v8476, %v8477
    %v8479 = vsel %vm8421, %v8457, 0.0
    %v8480 = vrot.slane %v8479, 4
    %v8481 = vadd.f32 %v8479, %v8480
    %v8482 = vrot.slane %v8481, 2
    %v8483 = vadd.f32 %v8481, %v8482
    %v8484 = vrot.slane %v8483, 1
    %v8485 = vadd.f32 %v8483, %v8484
    %v8486 = vmul.f32 %v8464, 0.5
    %v8487 = vmul.f32 %v8471, 0.5
    %v8488 = vmul.f32 %v8478, 0.5
    %v8489 = vmul.f32 %v8485, 0.5
    %v8490 = vmul.f32 %v8450, %v8450
    %v8491 = vmul.f32 %v8451, %v8451
    %v8492 = vmul.f32 %v8452, %v8452
    %v8493 = vmul.f32 %v8453, %v8453
    %v8494 = vsub.f32 %v8486, %v8490
    %v8495 = vsub.f32 %v8487, %v8491
    %v8496 = vsub.f32 %v8488, %v8492
    %v8497 = vsub.f32 %v8489, %v8493
    %v8498 = vsub.f32 %v8417, %v8450
    %v8499 = vsub.f32 %v8418, %v8451
    %v8500 = vsub.f32 %v8419, %v8452
    %v8501 = vsub.f32 %v8420, %v8453
    %v8502 = vadd.f32 %v8494, 1e-05
    %v8503 = vadd.f32 %v8495, 1e-05
    %v8504 = vadd.f32 %v8496, 1e-05
    %v8505 = vadd.f32 %v8497, 1e-05
    %v8506 = vrsqrt.pop %v8502
    %v8507 = vrsqrt.pop %v8503
    %v8508 = vrsqrt.pop %v8504
    %v8509 = vrsqrt.pop %v8505
    %v8510 = vmul.f32 %v8498, %v8506
    %v8511 = vmul.f32 %v8499, %v8507
    %v8512 = vmul.f32 %v8500, %v8508
    %v8513 = vmul.f32 %v8501, %v8509
    %v8514 = vld [vmem:[#allocation20] sm:$0xf]
    %v8516 = vlaneseq
    %v8517 = vshrl.u32 %v8516, 7
    %v8518 = vsub.s32 0, %v8517
    %v8519 = vrot.slane %v8514, %v8518
    %v8520 = vlaneseq
    %v8521 = vshrl.u32 %v8520, 7
    %v8522 = vsub.s32 1, %v8521
    %v8523 = vrot.slane %v8514, %v8522
    %v8524 = vlaneseq
    %v8525 = vshrl.u32 %v8524, 7
    %v8526 = vsub.s32 2, %v8525
    %v8527 = vrot.slane %v8514, %v8526
    %v8528 = vlaneseq
    %v8529 = vshrl.u32 %v8528, 7
    %v8530 = vsub.s32 3, %v8529
    %v8531 = vrot.slane %v8514, %v8530
    %v8536 = vmul.f32 %v8510, %v8519
    %v8537 = vmul.f32 %v8511, %v8523
    %v8538 = vmul.f32 %v8512, %v8527
    %v8539 = vmul.f32 %v8513, %v8531
    %v8540 = vld [vmem:[#allocation22] sm:$0xf]
    %v8542 = vlaneseq
    %v8543 = vshrl.u32 %v8542, 7
    %v8544 = vsub.s32 0, %v8543
    %v8545 = vrot.slane %v8540, %v8544
    %v8546 = vlaneseq
    %v8547 = vshrl.u32 %v8546, 7
    %v8548 = vsub.s32 1, %v8547
    %v8549 = vrot.slane %v8540, %v8548
    %v8550 = vlaneseq
    %v8551 = vshrl.u32 %v8550, 7
    %v8552 = vsub.s32 2, %v8551
    %v8553 = vrot.slane %v8540, %v8552
    %v8554 = vlaneseq
    %v8555 = vshrl.u32 %v8554, 7
    %v8556 = vsub.s32 3, %v8555
    %v8557 = vrot.slane %v8540, %v8556
    %v8562 = vadd.f32 %v8536, %v8545
    %v8563 = vadd.f32 %v8537, %v8549
    %v8564 = vadd.f32 %v8538, %v8553
    %v8565 = vadd.f32 %v8539, %v8557
    %vm8566 = vcmp.ge.f32.partialorder %v8562, 0.0
    %vm8567 = vcmp.ge.f32.partialorder %v8563, 0.0
    %vm8568 = vcmp.ge.f32.partialorder %v8564, 0.0
    %vm8569 = vcmp.ge.f32.partialorder %v8565, 0.0
    %v8570 = vmul.f32 %v8562, 0.2
    %v8571 = vmul.f32 %v8563, 0.2
    %v8572 = vmul.f32 %v8564, 0.2
    %v8573 = vmul.f32 %v8565, 0.2
    %v8574 = vsel %vm8566, %v8562, %v8570
    %v8575 = vsel %vm8567, %v8563, %v8571
    %v8576 = vsel %vm8568, %v8564, %v8572
    %v8577 = vsel %vm8569, %v8565, %v8573
    %v8578 = vld [vmem:[#allocation25] sm:$0xf]
    %v8580 = vlaneseq
    %v8581 = vshrl.u32 %v8580, 7
    %v8582 = vsub.s32 0, %v8581
    %v8583 = vrot.slane %v8578, %v8582
    %v8584 = vlaneseq
    %v8585 = vshrl.u32 %v8584, 7
    %v8586 = vsub.s32 1, %v8585
    %v8587 = vrot.slane %v8578, %v8586
    %v8588 = vlaneseq
    %v8589 = vshrl.u32 %v8588, 7
    %v8590 = vsub.s32 2, %v8589
    %v8591 = vrot.slane %v8578, %v8590
    %v8592 = vlaneseq
    %v8593 = vshrl.u32 %v8592, 7
    %v8594 = vsub.s32 3, %v8593
    %v8595 = vrot.slane %v8578, %v8594
    %v8600 = vmul.f32 %v8574, %v8583
    %v8601 = vmul.f32 %v8575, %v8587
    %v8602 = vmul.f32 %v8576, %v8591
    %v8603 = vmul.f32 %v8577, %v8595
    %v8604 = vsel %vm8421, %v8600, 0.0
    %v8605 = vsel %vm8421, %v8601, 0.0
    %v8606 = vadd.f32 %v8604, %v8605
    %v8607 = vsel %vm8421, %v8602, 0.0
    %v8608 = vadd.f32 %v8606, %v8607
    %v8609 = vsel %vm8421, %v8603, 0.0
    %v8610 = vadd.f32 %v8608, %v8609
    %8611 = vadd.xlane.f32.xlu0 %v8610
    %v8612 = vpop.xlane.xlu0 %8611
    %v8613 = vld [vmem:[#allocation2] sm:$0x1]
    %v8615 = vlaneseq
    %v8616 = vshrl.u32 %v8615, 7
    %v8617 = vsub.s32 0, %v8616
    %v8618 = vrot.slane %v8613, %v8617
    %v8620 = vadd.f32 %v8612, %v8618
    %v8621 = vxor.u32 %v8620, 2147483648
    %v8622 = vmul.f32 %v8621, 1.442695
    %v8623 = vpow.pop %v8622
    %v8624 = vadd.f32 %v8623, 1.0
    %v8625 = vrcp.pop %v8624
    %v8626 = vmul.f32 1.0, %v8625
    %vm8627 = vcmask 1024
    %8628 = vst.msk [vmem:[%s17] sm:$0x3] %vm8627, %v8626
    // Predicated region
    $region130: #{discriminator_forward.1} parent=1 // pred_check
      _
    $region131: #{discriminator_forward.1} parent=1 // pred_check_branch
      %8630 = sbr.rel (0) target = $region133
    $region132: #{discriminator_forward.1} parent=1 // pred_region
      _
    $region133: #{discriminator_forward.1} parent=1 // pred_fallthru
      _
    // Predicated region
    $region134: #{discriminator_forward.1} parent=1 // pred_check
      _
    $region135: #{discriminator_forward.1} parent=1 // pred_check_branch
      %8632 = sbr.rel (0) target = $region137
    $region136: #{discriminator_forward.1} parent=1 // pred_region
      _
    $region137: #{discriminator_forward.1} parent=1 // pred_fallthru
      _
    %8633 = vsyncpa [#allocation4], 1
    %8634 = vsyncpa [#allocation6], 1
    %8635 = vsyncpa [#allocation9], 1
    %8636 = vsyncpa [#allocation12], 1
    %8637 = vsyncpa [#allocation15], 1
    %8638 = vsyncpa [#allocation18], 1
    %8639 = vsyncpa [#allocation21], 1
    %8640 = vsyncpa [#allocation24], 1

</llo_original>
